<compile_context>
chip_gen: v5e
topology: v5e:2x2
jax: 0.10.0
libtpu: 0.0.40
codegen_flags: <defaults>
</compile_context>

<pallas_src>
import functools

import jax
import jax.numpy as jnp
from jax.experimental import pallas as pl
from jax.experimental.pallas import tpu as pltpu


def _round_up(x, m):
    return (x + m - 1) // m * m


# ----------------------------------------------------------------------------
# Kernel A: act((patches @ W) + bias) — single K step, no accumulator scratch
# ----------------------------------------------------------------------------
def _matmul_bias_act_kernel(a_ref, w_ref, b_ref, o_ref, *, act):
    # bf16 MXU operands, fp32 accumulate; epilogue math stays fp32 (v5e-safe)
    x = jnp.dot(a_ref[...], w_ref[...], preferred_element_type=jnp.float32)
    x = x + b_ref[...]
    if act == "leaky":
        x = jnp.where(x > 0, x, 0.2 * x)
    elif act == "sigmoid":
        x = jax.nn.sigmoid(x)            # exp + recip -> EUP slot
    o_ref[...] = x.astype(o_ref.dtype)   # cast is the very last op before store


def matmul_bias_act(a, w_mat, b, act, out_dtype):
    """act((a @ w_mat) + b); returns padded [Mp, OCp] in out_dtype."""
    M, K = a.shape
    _, OC = w_mat.shape

    Mp = _round_up(M, 16)                # bf16 sublane packing
    tm = min(256, Mp)
    Mp = _round_up(Mp, tm)
    Kp = _round_up(K, 128)               # whole reduction in one K step
    OCp = _round_up(OC, 128)
    tn = 128                             # lane-dense; >=2 N tiles when OCp>=256

    a_p = jnp.pad(a.astype(jnp.bfloat16), ((0, Mp - M), (0, Kp - K)))
    w_p = jnp.pad(w_mat.astype(jnp.bfloat16), ((0, Kp - K), (0, OCp - OC)))
    b_p = jnp.pad(b.astype(jnp.float32), (0, OCp - OC)).reshape(1, OCp)

    grid = (Mp // tm, OCp // tn)
    cost = pl.CostEstimate(
        flops=2 * Mp * Kp * OCp,
        transcendentals=Mp * OCp if act == "sigmoid" else 0,
        bytes_accessed=(Mp * Kp * 2 * (OCp // tn) + Kp * OCp * 2 + OCp * 4
                        + Mp * OCp * jnp.dtype(out_dtype).itemsize),
    )
    kernel = functools.partial(_matmul_bias_act_kernel, act=act)
    return pl.pallas_call(
        kernel,
        out_shape=jax.ShapeDtypeStruct((Mp, OCp), out_dtype),
        grid_spec=pltpu.PrefetchScalarGridSpec(
            num_scalar_prefetch=0,
            grid=grid,
            in_specs=[
                pl.BlockSpec((tm, Kp), lambda i, j: (i, 0)),
                pl.BlockSpec((Kp, tn), lambda i, j: (0, j)),
                pl.BlockSpec((1, tn), lambda i, j: (0, j)),
            ],
            out_specs=pl.BlockSpec((tm, tn), lambda i, j: (i, j)),
        ),
        compiler_params=pltpu.CompilerParams(
            dimension_semantics=("parallel", "parallel")),
        cost_estimate=cost,
    )(a_p, w_p, b_p)


# ----------------------------------------------------------------------------
# Kernel B: LeakyReLU(BatchNorm(patches @ W)) — BN(batch stats) fused into the
# matmul epilogue.  Each block holds ALL rows of its channel slice.
# ----------------------------------------------------------------------------
def _matmul_bn_lrelu_kernel(a_ref, w_ref, g_ref, be_ref, o_ref, *, inv_m, eps):
    x = jnp.dot(a_ref[...], w_ref[...], preferred_element_type=jnp.float32)
    # Padded rows of `a` are exactly zero (no bias added), so they contribute
    # nothing to sum / sum-of-squares; divide by the TRUE row count.
    s = jnp.sum(x, axis=0, keepdims=True)
    sq = jnp.sum(x * x, axis=0, keepdims=True)
    mean = s * inv_m
    var = jnp.maximum(sq * inv_m - mean * mean, 0.0)   # clamp fp rounding
    scale = g_ref[...] * jax.lax.rsqrt(var + eps)
    shift = be_ref[...] - mean * scale
    y = x * scale + shift
    y = jnp.where(y > 0, y, 0.2 * y)
    o_ref[...] = y.astype(o_ref.dtype)


def matmul_bn_lrelu(a, w_mat, gamma, beta, eps=1e-5):
    """LeakyReLU(BatchNorm(a @ w_mat)) with batch statistics over the true rows
    of `a`.  Conv bias is omitted (BatchNorm cancels an additive per-channel
    bias exactly).  Returns padded bf16 [Mp, OCp]; padded rows/cols are only
    valid after the caller slices [:M, :OC]."""
    M, K = a.shape
    _, OC = w_mat.shape
    Mp = _round_up(M, 16)
    Kp = _round_up(K, 128)
    OCp = _round_up(OC, 128)
    tn = 128

    a_p = jnp.pad(a.astype(jnp.bfloat16), ((0, Mp - M), (0, Kp - K)))
    w_p = jnp.pad(w_mat.astype(jnp.bfloat16), ((0, Kp - K), (0, OCp - OC)))
    g_p = jnp.pad(gamma.astype(jnp.float32), (0, OCp - OC)).reshape(1, OCp)
    b_p = jnp.pad(beta.astype(jnp.float32), (0, OCp - OC)).reshape(1, OCp)

    grid = (OCp // tn,)
    cost = pl.CostEstimate(
        flops=2 * Mp * Kp * OCp + 10 * Mp * OCp,
        transcendentals=OCp,
        bytes_accessed=(Mp * Kp * 2 * (OCp // tn) + Kp * OCp * 2
                        + 2 * OCp * 4 + Mp * OCp * 2),
    )
    kernel = functools.partial(_matmul_bn_lrelu_kernel, inv_m=1.0 / M, eps=eps)
    return pl.pallas_call(
        kernel,
        out_shape=jax.ShapeDtypeStruct((Mp, OCp), jnp.bfloat16),
        grid_spec=pltpu.PrefetchScalarGridSpec(
            num_scalar_prefetch=0,
            grid=grid,
            in_specs=[
                pl.BlockSpec((Mp, Kp), lambda j: (0, 0)),
                pl.BlockSpec((Kp, tn), lambda j: (0, j)),
                pl.BlockSpec((1, tn), lambda j: (0, j)),
                pl.BlockSpec((1, tn), lambda j: (0, j)),
            ],
            out_specs=pl.BlockSpec((Mp, tn), lambda j: (0, j)),
        ),
        compiler_params=pltpu.CompilerParams(
            dimension_semantics=("parallel",)),
        cost_estimate=cost,
    )(a_p, w_p, g_p, b_p)


# ----------------------------------------------------------------------------
# im2col (one fused XLA op) + conv layer wrappers (NHWC in/out)
# ----------------------------------------------------------------------------
def _extract_patches(x_nhwc, kh, kw, stride, pad):
    """Patches [N*OH*OW, IC*KH*KW]; feature layout of each row is (C, KH, KW)."""
    p = jax.lax.conv_general_dilated_patches(
        x_nhwc, (kh, kw), (stride, stride), ((pad, pad), (pad, pad)),
        dimension_numbers=("NHWC", "HWIO", "NHWC"))
    n, oh, ow, k = p.shape
    return p.reshape(n * oh * ow, k), (n, oh, ow)


def _weight_to_matrix(w):
    """PyTorch [OC, IC, KH, KW] -> [IC*KH*KW, OC]; K layout (IC, KH, KW) matches
    conv_general_dilated_patches' (C, KH, KW) feature layout."""
    oc = w.shape[0]
    return w.reshape(oc, -1).T


def conv_act_layer(x_nhwc, w, b, stride, pad, act, out_dtype):
    """Conv2d (PyTorch semantics) + bias + activation, NHWC in/out."""
    oc, ic, kh, kw = w.shape
    patches, (n, oh, ow) = _extract_patches(x_nhwc, kh, kw, stride, pad)
    M = patches.shape[0]
    rows = matmul_bias_act(patches, _weight_to_matrix(w), b, act, out_dtype)
    return rows[:M, :oc].reshape(n, oh, ow, oc)


def conv_bn_lrelu_layer(x_nhwc, w, gamma, beta, stride, pad, eps=1e-5):
    """Conv2d -> BatchNorm2d (batch stats) -> LeakyReLU(0.2), NHWC in/out."""
    oc, ic, kh, kw = w.shape
    patches, (n, oh, ow) = _extract_patches(x_nhwc, kh, kw, stride, pad)
    M = patches.shape[0]
    rows = matmul_bn_lrelu(patches, _weight_to_matrix(w), gamma, beta, eps)
    return rows[:M, :oc].reshape(n, oh, ow, oc)


# ----------------------------------------------------------------------------
# discriminator forward
# ----------------------------------------------------------------------------
def init_params(key, d=32):
    """Deterministic synthetic parameters (DCGAN-style normal(0, 0.02) init)."""
    ks = jax.random.split(key, 5)

    def conv_p(k, oc, ic):
        w = 0.02 * jax.random.normal(k, (oc, ic, 4, 4), jnp.float32)
        b = jnp.zeros((oc,), jnp.float32)
        return w, b

    p = {}
    p["conv1"] = conv_p(ks[0], d, 3)
    p["conv2"] = conv_p(ks[1], d * 2, d)
    p["conv3"] = conv_p(ks[2], d * 4, d * 2)
    p["conv4"] = conv_p(ks[3], d * 8, d * 4)
    p["conv5"] = conv_p(ks[4], 1, d * 8)
    # BatchNorm affine params (PyTorch default init: gamma=1, beta=0)
    p["bn2"] = (jnp.ones((d * 2,), jnp.float32), jnp.zeros((d * 2,), jnp.float32))
    p["bn3"] = (jnp.ones((d * 4,), jnp.float32), jnp.zeros((d * 4,), jnp.float32))
    p["bn4"] = (jnp.ones((d * 8,), jnp.float32), jnp.zeros((d * 8,), jnp.float32))
    return p


def discriminator_forward(params, x_nchw):
    # single NCHW -> NHWC transpose at the module boundary
    x = jnp.transpose(x_nchw, (0, 2, 3, 1))

    x = conv_act_layer(x, *params["conv1"], stride=2, pad=1, act="leaky",
                       out_dtype=jnp.bfloat16)
    x = conv_bn_lrelu_layer(x, params["conv2"][0], *params["bn2"], stride=2, pad=1)
    x = conv_bn_lrelu_layer(x, params["conv3"][0], *params["bn3"], stride=2, pad=1)
    x = conv_bn_lrelu_layer(x, params["conv4"][0], *params["bn4"], stride=1, pad=1)
    x = conv_act_layer(x, *params["conv5"], stride=1, pad=1, act="sigmoid",
                       out_dtype=jnp.float32)

    # single NHWC -> NCHW transpose back at the boundary
    return jnp.transpose(x, (0, 3, 1, 2))


# ----------------------------------------------------------------------------
# pure-JAX/XLA reference of the PyTorch forward (fp32) for a numeric check
# ----------------------------------------------------------------------------
def reference_forward(params, x_nchw, eps=1e-5):
    def conv(x, w, b, stride, pad):
        y = jax.lax.conv_general_dilated(
            x, w, (stride, stride), ((pad, pad), (pad, pad)),
            dimension_numbers=("NCHW", "OIHW", "NCHW"))
        return y + b.reshape(1, -1, 1, 1)

    def bn(x, g, be):
        mean = jnp.mean(x, axis=(0, 2, 3), keepdims=True)
        var = jnp.mean((x - mean) ** 2, axis=(0, 2, 3), keepdims=True)
        return ((x - mean) * jax.lax.rsqrt(var + eps) * g.reshape(1, -1, 1, 1)
                + be.reshape(1, -1, 1, 1))

    lrelu = lambda v: jnp.where(v > 0, v, 0.2 * v)
    x = lrelu(conv(x_nchw, *params["conv1"], 2, 1))
    x = lrelu(bn(conv(x, *params["conv2"], 2, 1), *params["bn2"]))
    x = lrelu(bn(conv(x, *params["conv3"], 2, 1), *params["bn3"]))
    x = lrelu(bn(conv(x, *params["conv4"], 1, 1), *params["bn4"]))
    return jax.nn.sigmoid(conv(x, *params["conv5"], 1, 1))


if __name__ == "__main__":
    d = 32  # small width (module default is 64; d is a constructor arg)
    key = jax.random.PRNGKey(0)
    k_param, k_in = jax.random.split(key)
    params = init_params(k_param, d=d)

    # NCHW input, 32x32 so every conv produces a valid spatial extent:
    # 32 -> 16 -> 8 -> 4 -> 3 -> 2
    x = jax.random.normal(k_in, (2, 3, 32, 32), jnp.float32)

    fwd = jax.jit(discriminator_forward)
    out = jax.block_until_ready(fwd(params, x))
    assert out.shape == (2, 1, 2, 2), out.shape
    assert bool(jnp.all((out >= 0.0) & (out <= 1.0)))

    # numeric check vs. the fp32 XLA reference (kernel path uses bf16 activations)
    ref = jax.block_until_ready(jax.jit(reference_forward)(params, x))
    max_err = float(jnp.max(jnp.abs(out - ref)))
    assert max_err < 0.1, f"mismatch vs reference: max abs err = {max_err}"

    print("KERNEL_OK")
</pallas_src>

<mosaic_0001>
module attributes {stable_mosaic.version = 11 : i64} {
  func.func @_matmul_bias_act_kernel(%arg0: i32, %arg1: i32, %arg2: memref<256x128xbf16, #tpu.memory_space<vmem>>, %arg3: memref<128x128xbf16, #tpu.memory_space<vmem>>, %arg4: memref<1x128xf32, #tpu.memory_space<vmem>>, %arg5: memref<256x128xbf16, #tpu.memory_space<vmem>>) attributes {dimension_semantics = [#tpu.dimension_semantics<parallel>, #tpu.dimension_semantics<parallel>], iteration_bounds = array<i64: 2, 1>, scalar_prefetch = 0 : i64, scratch_operands = 0 : i64, tpu.core_type = #tpu.core_type<tc>, window_params = [{transform_indices = @transform_0, window_bounds = array<i64: 256, 128>}, {transform_indices = @transform_1, window_bounds = array<i64: 128, 128>}, {transform_indices = @transform_2, window_bounds = array<i64: 1, 128>}, {transform_indices = @transform_3, window_bounds = array<i64: 256, 128>}]} {
    %c0 = arith.constant 0 : index
    %c0_0 = arith.constant 0 : index
    %0 = vector.load %arg2[%c0, %c0_0] : memref<256x128xbf16, #tpu.memory_space<vmem>>, vector<256x128xbf16>
    %c0_1 = arith.constant 0 : index
    %c0_2 = arith.constant 0 : index
    %1 = vector.load %arg3[%c0_1, %c0_2] : memref<128x128xbf16, #tpu.memory_space<vmem>>, vector<128x128xbf16>
    %cst = arith.constant dense<0.000000e+00> : vector<256x128xf32>
    %2 = tpu.matmul %0, %1, %cst {dimension_numbers = #tpu.dot_dimension_numbers<[1], [0], [0], [1], [0, 0, 1, 1], [], []>} : vector<256x128xbf16>, vector<128x128xbf16>, vector<256x128xf32> -> vector<256x128xf32>
    %c0_3 = arith.constant 0 : index
    %c0_4 = arith.constant 0 : index
    %3 = vector.load %arg4[%c0_3, %c0_4] : memref<1x128xf32, #tpu.memory_space<vmem>>, vector<1x128xf32>
    %4 = vector.broadcast %3 : vector<1x128xf32> to vector<256x128xf32>
    %5 = arith.addf %2, %4 : vector<256x128xf32>
    %cst_5 = arith.constant 0.000000e+00 : f32
    %6 = vector.broadcast %cst_5 : f32 to vector<256x128xf32>
    %7 = arith.cmpf ogt, %5, %6 : vector<256x128xf32>
    %cst_6 = arith.constant 2.000000e-01 : f32
    %8 = vector.broadcast %cst_6 : f32 to vector<256x128xf32>
    %9 = arith.mulf %8, %5 : vector<256x128xf32>
    %10 = arith.select %7, %5, %9 : vector<256x128xi1>, vector<256x128xf32>
    %11 = arith.truncf %10 : vector<256x128xf32> to vector<256x128xbf16>
    %c0_7 = arith.constant 0 : index
    %c0_8 = arith.constant 0 : index
    %12 = vector.load %arg5[%c0_7, %c0_8] : memref<256x128xbf16, #tpu.memory_space<vmem>>, vector<256x128xbf16>
    tpu.vector_store %arg5[%c0_7, %c0_8], %11 {strides = array<i32>} : memref<256x128xbf16, #tpu.memory_space<vmem>>, vector<256x128xbf16>,
    return
  }
  func.func @transform_0(%arg0: i32, %arg1: i32) -> (i32, i32) {
    %c0_i32 = arith.constant 0 : i32
    %c0_i32_0 = arith.constant 0 : i32
    return %arg0, %c0_i32 : i32, i32
  }
  func.func @transform_1(%arg0: i32, %arg1: i32) -> (i32, i32) {
    %c0_i32 = arith.constant 0 : i32
    %c0_i32_0 = arith.constant 0 : i32
    return %c0_i32, %arg1 : i32, i32
  }
  func.func @transform_2(%arg0: i32, %arg1: i32) -> (i32, i32) {
    %c0_i32 = arith.constant 0 : i32
    %c0_i32_0 = arith.constant 0 : i32
    return %c0_i32, %arg1 : i32, i32
  }
  func.func @transform_3(%arg0: i32, %arg1: i32) -> (i32, i32) {
    %c0_i32 = arith.constant 0 : i32
    return %arg0, %arg1 : i32, i32
  }
}

module attributes {stable_mosaic.version = 11 : i64} {
  func.func @_matmul_bn_lrelu_kernel(%arg0: i32, %arg1: memref<128x512xbf16, #tpu.memory_space<vmem>>, %arg2: memref<512x128xbf16, #tpu.memory_space<vmem>>, %arg3: memref<1x128xf32, #tpu.memory_space<vmem>>, %arg4: memref<1x128xf32, #tpu.memory_space<vmem>>, %arg5: memref<128x128xbf16, #tpu.memory_space<vmem>>) attributes {dimension_semantics = [#tpu.dimension_semantics<parallel>], iteration_bounds = array<i64: 1>, scalar_prefetch = 0 : i64, scratch_operands = 0 : i64, tpu.core_type = #tpu.core_type<tc>, window_params = [{pipeline_mode = #tpu.pipeline_mode<synchronous>, transform_indices = @transform_0, window_bounds = array<i64: 128, 512>}, {transform_indices = @transform_1, window_bounds = array<i64: 512, 128>}, {transform_indices = @transform_2, window_bounds = array<i64: 1, 128>}, {transform_indices = @transform_3, window_bounds = array<i64: 1, 128>}, {transform_indices = @transform_4, window_bounds = array<i64: 128, 128>}]} {
    %c0 = arith.constant 0 : index
    %c0_0 = arith.constant 0 : index
    %0 = vector.load %arg1[%c0, %c0_0] : memref<128x512xbf16, #tpu.memory_space<vmem>>, vector<128x512xbf16>
    %c0_1 = arith.constant 0 : index
    %c0_2 = arith.constant 0 : index
    %1 = vector.load %arg2[%c0_1, %c0_2] : memref<512x128xbf16, #tpu.memory_space<vmem>>, vector<512x128xbf16>
    %cst = arith.constant dense<0.000000e+00> : vector<128x128xf32>
    %2 = tpu.matmul %0, %1, %cst {dimension_numbers = #tpu.dot_dimension_numbers<[1], [0], [0], [1], [0, 0, 1, 1], [], []>} : vector<128x512xbf16>, vector<512x128xbf16>, vector<128x128xf32> -> vector<128x128xf32>
    %cst_3 = arith.constant dense<0.000000e+00> : vector<128xf32>
    %3 = vector.multi_reduction <add>, %2, %cst_3 [0] : vector<128x128xf32> to vector<128xf32>
    %4 = vector.shape_cast %3 : vector<128xf32> to vector<1x128xf32>
    %5 = arith.mulf %2, %2 : vector<128x128xf32>
    %cst_4 = arith.constant dense<0.000000e+00> : vector<128xf32>
    %6 = vector.multi_reduction <add>, %5, %cst_4 [0] : vector<128x128xf32> to vector<128xf32>
    %7 = vector.shape_cast %6 : vector<128xf32> to vector<1x128xf32>
    %cst_5 = arith.constant 7.812500e-03 : f32
    %8 = vector.broadcast %cst_5 : f32 to vector<1x128xf32>
    %9 = arith.mulf %4, %8 : vector<1x128xf32>
    %cst_6 = arith.constant 7.812500e-03 : f32
    %10 = vector.broadcast %cst_6 : f32 to vector<1x128xf32>
    %11 = arith.mulf %7, %10 : vector<1x128xf32>
    %12 = arith.mulf %9, %9 : vector<1x128xf32>
    %13 = arith.subf %11, %12 : vector<1x128xf32>
    %cst_7 = arith.constant 0.000000e+00 : f32
    %14 = vector.broadcast %cst_7 : f32 to vector<1x128xf32>
    %15 = arith.maximumf %13, %14 : vector<1x128xf32>
    %c0_8 = arith.constant 0 : index
    %c0_9 = arith.constant 0 : index
    %16 = vector.load %arg3[%c0_8, %c0_9] : memref<1x128xf32, #tpu.memory_space<vmem>>, vector<1x128xf32>
    %cst_10 = arith.constant 9.99999974E-6 : f32
    %17 = vector.broadcast %cst_10 : f32 to vector<1x128xf32>
    %18 = arith.addf %15, %17 : vector<1x128xf32>
    %19 = math.rsqrt %18 : vector<1x128xf32>
    %20 = arith.mulf %16, %19 : vector<1x128xf32>
    %c0_11 = arith.constant 0 : index
    %c0_12 = arith.constant 0 : index
    %21 = vector.load %arg4[%c0_11, %c0_12] : memref<1x128xf32, #tpu.memory_space<vmem>>, vector<1x128xf32>
    %22 = arith.mulf %9, %20 : vector<1x128xf32>
    %23 = arith.subf %21, %22 : vector<1x128xf32>
    %24 = vector.broadcast %20 : vector<1x128xf32> to vector<128x128xf32>
    %25 = arith.mulf %2, %24 : vector<128x128xf32>
    %26 = vector.broadcast %23 : vector<1x128xf32> to vector<128x128xf32>
    %27 = arith.addf %25, %26 : vector<128x128xf32>
    %cst_13 = arith.constant 0.000000e+00 : f32
    %28 = vector.broadcast %cst_13 : f32 to vector<128x128xf32>
    %29 = arith.cmpf ogt, %27, %28 : vector<128x128xf32>
    %cst_14 = arith.constant 2.000000e-01 : f32
    %30 = vector.broadcast %cst_14 : f32 to vector<128x128xf32>
    %31 = arith.mulf %30, %27 : vector<128x128xf32>
    %32 = arith.select %29, %27, %31 : vector<128x128xi1>, vector<128x128xf32>
    %33 = arith.truncf %32 : vector<128x128xf32> to vector<128x128xbf16>
    %c0_15 = arith.constant 0 : index
    %c0_16 = arith.constant 0 : index
    %34 = vector.load %arg5[%c0_15, %c0_16] : memref<128x128xbf16, #tpu.memory_space<vmem>>, vector<128x128xbf16>
    tpu.vector_store %arg5[%c0_15, %c0_16], %33 {strides = array<i32>} : memref<128x128xbf16, #tpu.memory_space<vmem>>, vector<128x128xbf16>,
    return
  }
  func.func @transform_0(%arg0: i32) -> (i32, i32) {
    %c0_i32 = arith.constant 0 : i32
    %c0_i32_0 = arith.constant 0 : i32
    %c0_i32_1 = arith.constant 0 : i32
    return %c0_i32, %c0_i32_0 : i32, i32
  }
  func.func @transform_1(%arg0: i32) -> (i32, i32) {
    %c0_i32 = arith.constant 0 : i32
    %c0_i32_0 = arith.constant 0 : i32
    return %c0_i32, %arg0 : i32, i32
  }
  func.func @transform_2(%arg0: i32) -> (i32, i32) {
    %c0_i32 = arith.constant 0 : i32
    %c0_i32_0 = arith.constant 0 : i32
    return %c0_i32, %arg0 : i32, i32
  }
  func.func @transform_3(%arg0: i32) -> (i32, i32) {
    %c0_i32 = arith.constant 0 : i32
    %c0_i32_0 = arith.constant 0 : i32
    return %c0_i32, %arg0 : i32, i32
  }
  func.func @transform_4(%arg0: i32) -> (i32, i32) {
    %c0_i32 = arith.constant 0 : i32
    %c0_i32_0 = arith.constant 0 : i32
    return %c0_i32, %arg0 : i32, i32
  }
}

module attributes {stable_mosaic.version = 11 : i64} {
  func.func @_matmul_bn_lrelu_kernel(%arg0: i32, %arg1: memref<32x1024xbf16, #tpu.memory_space<vmem>>, %arg2: memref<1024x128xbf16, #tpu.memory_space<vmem>>, %arg3: memref<1x128xf32, #tpu.memory_space<vmem>>, %arg4: memref<1x128xf32, #tpu.memory_space<vmem>>, %arg5: memref<32x128xbf16, #tpu.memory_space<vmem>>) attributes {dimension_semantics = [#tpu.dimension_semantics<parallel>], iteration_bounds = array<i64: 1>, scalar_prefetch = 0 : i64, scratch_operands = 0 : i64, tpu.core_type = #tpu.core_type<tc>, window_params = [{pipeline_mode = #tpu.pipeline_mode<synchronous>, transform_indices = @transform_0, window_bounds = array<i64: 32, 1024>}, {transform_indices = @transform_1, window_bounds = array<i64: 1024, 128>}, {transform_indices = @transform_2, window_bounds = array<i64: 1, 128>}, {transform_indices = @transform_3, window_bounds = array<i64: 1, 128>}, {transform_indices = @transform_4, window_bounds = array<i64: 32, 128>}]} {
    %c0 = arith.constant 0 : index
    %c0_0 = arith.constant 0 : index
    %0 = vector.load %arg1[%c0, %c0_0] : memref<32x1024xbf16, #tpu.memory_space<vmem>>, vector<32x1024xbf16>
    %c0_1 = arith.constant 0 : index
    %c0_2 = arith.constant 0 : index
    %1 = vector.load %arg2[%c0_1, %c0_2] : memref<1024x128xbf16, #tpu.memory_space<vmem>>, vector<1024x128xbf16>
    %cst = arith.constant dense<0.000000e+00> : vector<32x128xf32>
    %2 = tpu.matmul %0, %1, %cst {dimension_numbers = #tpu.dot_dimension_numbers<[1], [0], [0], [1], [0, 0, 1, 1], [], []>} : vector<32x1024xbf16>, vector<1024x128xbf16>, vector<32x128xf32> -> vector<32x128xf32>
    %cst_3 = arith.constant dense<0.000000e+00> : vector<128xf32>
    %3 = vector.multi_reduction <add>, %2, %cst_3 [0] : vector<32x128xf32> to vector<128xf32>
    %4 = vector.shape_cast %3 : vector<128xf32> to vector<1x128xf32>
    %5 = arith.mulf %2, %2 : vector<32x128xf32>
    %cst_4 = arith.constant dense<0.000000e+00> : vector<128xf32>
    %6 = vector.multi_reduction <add>, %5, %cst_4 [0] : vector<32x128xf32> to vector<128xf32>
    %7 = vector.shape_cast %6 : vector<128xf32> to vector<1x128xf32>
    %cst_5 = arith.constant 3.125000e-02 : f32
    %8 = vector.broadcast %cst_5 : f32 to vector<1x128xf32>
    %9 = arith.mulf %4, %8 : vector<1x128xf32>
    %cst_6 = arith.constant 3.125000e-02 : f32
    %10 = vector.broadcast %cst_6 : f32 to vector<1x128xf32>
    %11 = arith.mulf %7, %10 : vector<1x128xf32>
    %12 = arith.mulf %9, %9 : vector<1x128xf32>
    %13 = arith.subf %11, %12 : vector<1x128xf32>
    %cst_7 = arith.constant 0.000000e+00 : f32
    %14 = vector.broadcast %cst_7 : f32 to vector<1x128xf32>
    %15 = arith.maximumf %13, %14 : vector<1x128xf32>
    %c0_8 = arith.constant 0 : index
    %c0_9 = arith.constant 0 : index
    %16 = vector.load %arg3[%c0_8, %c0_9] : memref<1x128xf32, #tpu.memory_space<vmem>>, vector<1x128xf32>
    %cst_10 = arith.constant 9.99999974E-6 : f32
    %17 = vector.broadcast %cst_10 : f32 to vector<1x128xf32>
    %18 = arith.addf %15, %17 : vector<1x128xf32>
    %19 = math.rsqrt %18 : vector<1x128xf32>
    %20 = arith.mulf %16, %19 : vector<1x128xf32>
    %c0_11 = arith.constant 0 : index
    %c0_12 = arith.constant 0 : index
    %21 = vector.load %arg4[%c0_11, %c0_12] : memref<1x128xf32, #tpu.memory_space<vmem>>, vector<1x128xf32>
    %22 = arith.mulf %9, %20 : vector<1x128xf32>
    %23 = arith.subf %21, %22 : vector<1x128xf32>
    %24 = vector.broadcast %20 : vector<1x128xf32> to vector<32x128xf32>
    %25 = arith.mulf %2, %24 : vector<32x128xf32>
    %26 = vector.broadcast %23 : vector<1x128xf32> to vector<32x128xf32>
    %27 = arith.addf %25, %26 : vector<32x128xf32>
    %cst_13 = arith.constant 0.000000e+00 : f32
    %28 = vector.broadcast %cst_13 : f32 to vector<32x128xf32>
    %29 = arith.cmpf ogt, %27, %28 : vector<32x128xf32>
    %cst_14 = arith.constant 2.000000e-01 : f32
    %30 = vector.broadcast %cst_14 : f32 to vector<32x128xf32>
    %31 = arith.mulf %30, %27 : vector<32x128xf32>
    %32 = arith.select %29, %27, %31 : vector<32x128xi1>, vector<32x128xf32>
    %33 = arith.truncf %32 : vector<32x128xf32> to vector<32x128xbf16>
    %c0_15 = arith.constant 0 : index
    %c0_16 = arith.constant 0 : index
    %34 = vector.load %arg5[%c0_15, %c0_16] : memref<32x128xbf16, #tpu.memory_space<vmem>>, vector<32x128xbf16>
    tpu.vector_store %arg5[%c0_15, %c0_16], %33 {strides = array<i32>} : memref<32x128xbf16, #tpu.memory_space<vmem>>, vector<32x128xbf16>,
    return
  }
  func.func @transform_0(%arg0: i32) -> (i32, i32) {
    %c0_i32 = arith.constant 0 : i32
    %c0_i32_0 = arith.constant 0 : i32
    %c0_i32_1 = arith.constant 0 : i32
    return %c0_i32, %c0_i32_0 : i32, i32
  }
  func.func @transform_1(%arg0: i32) -> (i32, i32) {
    %c0_i32 = arith.constant 0 : i32
    %c0_i32_0 = arith.constant 0 : i32
    return %c0_i32, %arg0 : i32, i32
  }
  func.func @transform_2(%arg0: i32) -> (i32, i32) {
    %c0_i32 = arith.constant 0 : i32
    %c0_i32_0 = arith.constant 0 : i32
    return %c0_i32, %arg0 : i32, i32
  }
  func.func @transform_3(%arg0: i32) -> (i32, i32) {
    %c0_i32 = arith.constant 0 : i32
    %c0_i32_0 = arith.constant 0 : i32
    return %c0_i32, %arg0 : i32, i32
  }
  func.func @transform_4(%arg0: i32) -> (i32, i32) {
    %c0_i32 = arith.constant 0 : i32
    %c0_i32_0 = arith.constant 0 : i32
    return %c0_i32, %arg0 : i32, i32
  }
}

module attributes {stable_mosaic.version = 11 : i64} {
  func.func @_matmul_bn_lrelu_kernel(%arg0: i32, %arg1: memref<32x2048xbf16, #tpu.memory_space<vmem>>, %arg2: memref<2048x128xbf16, #tpu.memory_space<vmem>>, %arg3: memref<1x128xf32, #tpu.memory_space<vmem>>, %arg4: memref<1x128xf32, #tpu.memory_space<vmem>>, %arg5: memref<32x128xbf16, #tpu.memory_space<vmem>>) attributes {dimension_semantics = [#tpu.dimension_semantics<parallel>], iteration_bounds = array<i64: 2>, scalar_prefetch = 0 : i64, scratch_operands = 0 : i64, tpu.core_type = #tpu.core_type<tc>, window_params = [{pipeline_mode = #tpu.pipeline_mode<synchronous>, transform_indices = @transform_0, window_bounds = array<i64: 32, 2048>}, {transform_indices = @transform_1, window_bounds = array<i64: 2048, 128>}, {transform_indices = @transform_2, window_bounds = array<i64: 1, 128>}, {transform_indices = @transform_3, window_bounds = array<i64: 1, 128>}, {transform_indices = @transform_4, window_bounds = array<i64: 32, 128>}]} {
    %c0 = arith.constant 0 : index
    %c0_0 = arith.constant 0 : index
    %0 = vector.load %arg1[%c0, %c0_0] : memref<32x2048xbf16, #tpu.memory_space<vmem>>, vector<32x2048xbf16>
    %c0_1 = arith.constant 0 : index
    %c0_2 = arith.constant 0 : index
    %1 = vector.load %arg2[%c0_1, %c0_2] : memref<2048x128xbf16, #tpu.memory_space<vmem>>, vector<2048x128xbf16>
    %cst = arith.constant dense<0.000000e+00> : vector<32x128xf32>
    %2 = tpu.matmul %0, %1, %cst {dimension_numbers = #tpu.dot_dimension_numbers<[1], [0], [0], [1], [0, 0, 1, 1], [], []>} : vector<32x2048xbf16>, vector<2048x128xbf16>, vector<32x128xf32> -> vector<32x128xf32>
    %cst_3 = arith.constant dense<0.000000e+00> : vector<128xf32>
    %3 = vector.multi_reduction <add>, %2, %cst_3 [0] : vector<32x128xf32> to vector<128xf32>
    %4 = vector.shape_cast %3 : vector<128xf32> to vector<1x128xf32>
    %5 = arith.mulf %2, %2 : vector<32x128xf32>
    %cst_4 = arith.constant dense<0.000000e+00> : vector<128xf32>
    %6 = vector.multi_reduction <add>, %5, %cst_4 [0] : vector<32x128xf32> to vector<128xf32>
    %7 = vector.shape_cast %6 : vector<128xf32> to vector<1x128xf32>
    %cst_5 = arith.constant 0.055555556 : f32
    %8 = vector.broadcast %cst_5 : f32 to vector<1x128xf32>
    %9 = arith.mulf %4, %8 : vector<1x128xf32>
    %cst_6 = arith.constant 0.055555556 : f32
    %10 = vector.broadcast %cst_6 : f32 to vector<1x128xf32>
    %11 = arith.mulf %7, %10 : vector<1x128xf32>
    %12 = arith.mulf %9, %9 : vector<1x128xf32>
    %13 = arith.subf %11, %12 : vector<1x128xf32>
    %cst_7 = arith.constant 0.000000e+00 : f32
    %14 = vector.broadcast %cst_7 : f32 to vector<1x128xf32>
    %15 = arith.maximumf %13, %14 : vector<1x128xf32>
    %c0_8 = arith.constant 0 : index
    %c0_9 = arith.constant 0 : index
    %16 = vector.load %arg3[%c0_8, %c0_9] : memref<1x128xf32, #tpu.memory_space<vmem>>, vector<1x128xf32>
    %cst_10 = arith.constant 9.99999974E-6 : f32
    %17 = vector.broadcast %cst_10 : f32 to vector<1x128xf32>
    %18 = arith.addf %15, %17 : vector<1x128xf32>
    %19 = math.rsqrt %18 : vector<1x128xf32>
    %20 = arith.mulf %16, %19 : vector<1x128xf32>
    %c0_11 = arith.constant 0 : index
    %c0_12 = arith.constant 0 : index
    %21 = vector.load %arg4[%c0_11, %c0_12] : memref<1x128xf32, #tpu.memory_space<vmem>>, vector<1x128xf32>
    %22 = arith.mulf %9, %20 : vector<1x128xf32>
    %23 = arith.subf %21, %22 : vector<1x128xf32>
    %24 = vector.broadcast %20 : vector<1x128xf32> to vector<32x128xf32>
    %25 = arith.mulf %2, %24 : vector<32x128xf32>
    %26 = vector.broadcast %23 : vector<1x128xf32> to vector<32x128xf32>
    %27 = arith.addf %25, %26 : vector<32x128xf32>
    %cst_13 = arith.constant 0.000000e+00 : f32
    %28 = vector.broadcast %cst_13 : f32 to vector<32x128xf32>
    %29 = arith.cmpf ogt, %27, %28 : vector<32x128xf32>
    %cst_14 = arith.constant 2.000000e-01 : f32
    %30 = vector.broadcast %cst_14 : f32 to vector<32x128xf32>
    %31 = arith.mulf %30, %27 : vector<32x128xf32>
    %32 = arith.select %29, %27, %31 : vector<32x128xi1>, vector<32x128xf32>
    %33 = arith.truncf %32 : vector<32x128xf32> to vector<32x128xbf16>
    %c0_15 = arith.constant 0 : index
    %c0_16 = arith.constant 0 : index
    %34 = vector.load %arg5[%c0_15, %c0_16] : memref<32x128xbf16, #tpu.memory_space<vmem>>, vector<32x128xbf16>
    tpu.vector_store %arg5[%c0_15, %c0_16], %33 {strides = array<i32>} : memref<32x128xbf16, #tpu.memory_space<vmem>>, vector<32x128xbf16>,
    return
  }
  func.func @transform_0(%arg0: i32) -> (i32, i32) {
    %c0_i32 = arith.constant 0 : i32
    %c0_i32_0 = arith.constant 0 : i32
    %c0_i32_1 = arith.constant 0 : i32
    return %c0_i32, %c0_i32_0 : i32, i32
  }
  func.func @transform_1(%arg0: i32) -> (i32, i32) {
    %c0_i32 = arith.constant 0 : i32
    %c0_i32_0 = arith.constant 0 : i32
    return %c0_i32, %arg0 : i32, i32
  }
  func.func @transform_2(%arg0: i32) -> (i32, i32) {
    %c0_i32 = arith.constant 0 : i32
    %c0_i32_0 = arith.constant 0 : i32
    return %c0_i32, %arg0 : i32, i32
  }
  func.func @transform_3(%arg0: i32) -> (i32, i32) {
    %c0_i32 = arith.constant 0 : i32
    %c0_i32_0 = arith.constant 0 : i32
    return %c0_i32, %arg0 : i32, i32
  }
  func.func @transform_4(%arg0: i32) -> (i32, i32) {
    %c0_i32 = arith.constant 0 : i32
    %c0_i32_0 = arith.constant 0 : i32
    return %c0_i32, %arg0 : i32, i32
  }
}

module attributes {stable_mosaic.version = 11 : i64} {
  func.func @_matmul_bias_act_kernel(%arg0: i32, %arg1: i32, %arg2: memref<16x4096xbf16, #tpu.memory_space<vmem>>, %arg3: memref<4096x128xbf16, #tpu.memory_space<vmem>>, %arg4: memref<1x128xf32, #tpu.memory_space<vmem>>, %arg5: memref<16x128xf32, #tpu.memory_space<vmem>>) attributes {dimension_semantics = [#tpu.dimension_semantics<parallel>, #tpu.dimension_semantics<parallel>], iteration_bounds = array<i64: 1, 1>, scalar_prefetch = 0 : i64, scratch_operands = 0 : i64, tpu.core_type = #tpu.core_type<tc>, window_params = [{transform_indices = @transform_0, window_bounds = array<i64: 16, 4096>}, {transform_indices = @transform_1, window_bounds = array<i64: 4096, 128>}, {transform_indices = @transform_2, window_bounds = array<i64: 1, 128>}, {transform_indices = @transform_3, window_bounds = array<i64: 16, 128>}]} {
    %c0 = arith.constant 0 : index
    %c0_0 = arith.constant 0 : index
    %0 = vector.load %arg2[%c0, %c0_0] : memref<16x4096xbf16, #tpu.memory_space<vmem>>, vector<16x4096xbf16>
    %c0_1 = arith.constant 0 : index
    %c0_2 = arith.constant 0 : index
    %1 = vector.load %arg3[%c0_1, %c0_2] : memref<4096x128xbf16, #tpu.memory_space<vmem>>, vector<4096x128xbf16>
    %cst = arith.constant dense<0.000000e+00> : vector<16x128xf32>
    %2 = tpu.matmul %0, %1, %cst {dimension_numbers = #tpu.dot_dimension_numbers<[1], [0], [0], [1], [0, 0, 1, 1], [], []>} : vector<16x4096xbf16>, vector<4096x128xbf16>, vector<16x128xf32> -> vector<16x128xf32>
    %c0_3 = arith.constant 0 : index
    %c0_4 = arith.constant 0 : index
    %3 = vector.load %arg4[%c0_3, %c0_4] : memref<1x128xf32, #tpu.memory_space<vmem>>, vector<1x128xf32>
    %4 = vector.broadcast %3 : vector<1x128xf32> to vector<16x128xf32>
    %5 = arith.addf %2, %4 : vector<16x128xf32>
    %6 = arith.negf %5 : vector<16x128xf32>
    %7 = math.exp %6 : vector<16x128xf32>
    %cst_5 = arith.constant 1.000000e+00 : f32
    %8 = vector.broadcast %cst_5 : f32 to vector<16x128xf32>
    %9 = arith.addf %8, %7 : vector<16x128xf32>
    %10 = arith.divf %8, %9 : vector<16x128xf32>
    %c0_6 = arith.constant 0 : index
    %c0_7 = arith.constant 0 : index
    %11 = vector.load %arg5[%c0_6, %c0_7] : memref<16x128xf32, #tpu.memory_space<vmem>>, vector<16x128xf32>
    tpu.vector_store %arg5[%c0_6, %c0_7], %10 {strides = array<i32>} : memref<16x128xf32, #tpu.memory_space<vmem>>, vector<16x128xf32>,
    return
  }
  func.func @transform_0(%arg0: i32, %arg1: i32) -> (i32, i32) {
    %c0_i32 = arith.constant 0 : i32
    %c0_i32_0 = arith.constant 0 : i32
    return %arg0, %c0_i32 : i32, i32
  }
  func.func @transform_1(%arg0: i32, %arg1: i32) -> (i32, i32) {
    %c0_i32 = arith.constant 0 : i32
    %c0_i32_0 = arith.constant 0 : i32
    return %c0_i32, %arg1 : i32, i32
  }
  func.func @transform_2(%arg0: i32, %arg1: i32) -> (i32, i32) {
    %c0_i32 = arith.constant 0 : i32
    %c0_i32_0 = arith.constant 0 : i32
    return %c0_i32, %arg1 : i32, i32
  }
  func.func @transform_3(%arg0: i32, %arg1: i32) -> (i32, i32) {
    %c0_i32 = arith.constant 0 : i32
    return %arg0, %arg1 : i32, i32
  }
}

</mosaic_0001>

<llo_original>
// kernel: discriminator_forward.5
$region0: #{discriminator_forward.5}
  #allocation0 [shape = 'u32[]', space=smem, size = 0x4, offset = 0x4, fixed_abs, tag = 'smem constant byte address 0x4 - core index']
  #allocation1 [shape = 'u32[72,128]{1,0:T(1,128)}', space=vmem, size = 0x9000, scoped, tag = 'internal scratch']
  %s0 = inlined_call_operand.vmem [shape: bf16[512,128], index: 0, kind: input, shape index: {}]
  %s1 = inlined_call_operand.vmem [shape: bf16[128,128], index: 1, kind: input, shape index: {}]
  %s2 = inlined_call_operand.vmem [shape: f32[1,128], index: 2, kind: input, shape index: {}]
  %s3 = inlined_call_operand.vmem [shape: bf16[512,128], index: 3, kind: output, shape index: {}]
  %s4 = sld [smem:[#allocation0]]
  $region45: #{discriminator_forward.5} parent=0
    _
  %s6 = ssub.s32 1, %s4
  %s7 = scalar_select 0, %s6, %s4
  loop: start=0, step=1, limit=4
  $region2: #{discriminator_forward.5} parent=0 // loop_pre_header
    _
  $region3: #{discriminator_forward.5} parent=0 // loop_header
    %s9 = sphi 0, %s13
    %p10 = scmp.ge.s32.totalorder %s9, 4
    %s16 = sphi 0, %s28
    %s17 = sphi 0, %s24
    %s18 = sphi 0, %s16
    %s19 = sphi 0, %s17
    %s20 = sphi 0, %s18
    %s21 = sphi 0, %s19
    %s31 = sphi 0, %s33
    %s34 = sphi 0, %s31
    %s35 = sphi 0, %s34
    %s51 = sphi 0, %s35
    %s57 = sphi 0, %s59
    %s60 = sphi 0, %s57
    %s61 = sphi 0, %s60
    %s77 = sphi 0, %s61
    %s83 = sphi 0, %s85
    %s86 = sphi 0, %s83
    %s87 = sphi 0, %s86
    %s103 = sphi 0, %s87
    %s111 = sphi 0, %s113
    %s114 = sphi 0, %s111
    %s115 = sphi 0, %s114
    %s131 = sphi 0, %s115
  $region4: #{discriminator_forward.5} parent=0 // loop_header_branch
    %12 = sbr.rel (%p10) target = $region8
  $region5: #{discriminator_forward.5} parent=0 // loop_body
    %s14 = ssub.s32 %s9, 1
    %s15 = ssub.s32 %s9, 2
    %s22 = sadd.s32 1, %s17
    %p23 = scmp.ge.s32.totalorder %s22, 1
    %s24 = scalar_select %p23, 0, %s22
    %s25 = sadd.s32 1, %s16
    %s26 = scalar_select %p23, %s25, %s16
    %p27 = scmp.ge.s32.totalorder %s26, 2
    %s28 = scalar_select %p27, 0, %s26
    %s29 = ssub.s32 %s16, %s28
    %p30 = scmp.eq.s32.totalorder %s29, 0
    %s32 = sadd.s32 %s31, 1
    %s33 = scalar_select %p30, %s31, %s32
    %p36 = pneg %p30
    %p37 = scmp.eq.s32.totalorder %s9, 1
    %p38 = por %p36, %p37
    %p39 = scmp.ne.s32.totalorder %s31, %s34
    %p40 = scmp.eq.s32.totalorder %s9, 0
    %p41 = por %p39, %p40
    %p42 = scmp.ne.s32.totalorder %s31, %s34
    %p43 = scmp.eq.s32.totalorder %s14, 1
    %p44 = por %p42, %p43
    %p45 = scmp.ne.s32.totalorder %s34, %s35
    %p46 = scmp.eq.s32.totalorder %s14, 0
    %p47 = por %p45, %p46
    %p48 = scmp.ne.s32.totalorder %s34, %s35
    %p49 = scmp.eq.s32.totalorder %s15, 1
    %p50 = por %p48, %p49
    %p52 = scmp.ne.s32.totalorder %s35, %s51
    %p53 = scmp.eq.s32.totalorder %s15, 0
    %p54 = por %p52, %p53
    %s55 = ssub.s32 %s17, %s24
    %p56 = scmp.eq.s32.totalorder %s55, 0
    %s58 = sadd.s32 %s57, 1
    %s59 = scalar_select %p56, %s57, %s58
    %p62 = pneg %p56
    %p63 = scmp.eq.s32.totalorder %s9, 1
    %p64 = por %p62, %p63
    %p65 = scmp.ne.s32.totalorder %s57, %s60
    %p66 = scmp.eq.s32.totalorder %s9, 0
    %p67 = por %p65, %p66
    %p68 = scmp.ne.s32.totalorder %s57, %s60
    %p69 = scmp.eq.s32.totalorder %s14, 1
    %p70 = por %p68, %p69
    %p71 = scmp.ne.s32.totalorder %s60, %s61
    %p72 = scmp.eq.s32.totalorder %s14, 0
    %p73 = por %p71, %p72
    %p74 = scmp.ne.s32.totalorder %s60, %s61
    %p75 = scmp.eq.s32.totalorder %s15, 1
    %p76 = por %p74, %p75
    %p78 = scmp.ne.s32.totalorder %s61, %s77
    %p79 = scmp.eq.s32.totalorder %s15, 0
    %p80 = por %p78, %p79
    %s81 = ssub.s32 %s17, %s24
    %p82 = scmp.eq.s32.totalorder %s81, 0
    %s84 = sadd.s32 %s83, 1
    %s85 = scalar_select %p82, %s83, %s84
    %p88 = pneg %p82
    %p89 = scmp.eq.s32.totalorder %s9, 1
    %p90 = por %p88, %p89
    %p91 = scmp.ne.s32.totalorder %s83, %s86
    %p92 = scmp.eq.s32.totalorder %s9, 0
    %p93 = por %p91, %p92
    %p94 = scmp.ne.s32.totalorder %s83, %s86
    %p95 = scmp.eq.s32.totalorder %s14, 1
    %p96 = por %p94, %p95
    %p97 = scmp.ne.s32.totalorder %s86, %s87
    %p98 = scmp.eq.s32.totalorder %s14, 0
    %p99 = por %p97, %p98
    %p100 = scmp.ne.s32.totalorder %s86, %s87
    %p101 = scmp.eq.s32.totalorder %s15, 1
    %p102 = por %p100, %p101
    %p104 = scmp.ne.s32.totalorder %s87, %s103
    %p105 = scmp.eq.s32.totalorder %s15, 0
    %p106 = por %p104, %p105
    %s107 = ssub.s32 %s16, %s28
    %s108 = ssub.s32 %s17, %s24
    %s109 = sor.u32 %s107, %s108
    %p110 = scmp.eq.s32.totalorder %s109, 0
    %s112 = sadd.s32 %s111, 1
    %s113 = scalar_select %p110, %s111, %s112
    %p116 = pneg %p110
    %p117 = scmp.eq.s32.totalorder %s9, 1
    %p118 = por %p116, %p117
    %p119 = scmp.ne.s32.totalorder %s111, %s114
    %p120 = scmp.eq.s32.totalorder %s9, 0
    %p121 = por %p119, %p120
    %p122 = scmp.ne.s32.totalorder %s111, %s114
    %p123 = scmp.eq.s32.totalorder %s14, 1
    %p124 = por %p122, %p123
    %p125 = scmp.ne.s32.totalorder %s114, %s115
    %p126 = scmp.eq.s32.totalorder %s14, 0
    %p127 = por %p125, %p126
    %p128 = scmp.ne.s32.totalorder %s114, %s115
    %p129 = scmp.eq.s32.totalorder %s15, 1
    %p130 = por %p128, %p129
    %p132 = scmp.ne.s32.totalorder %s115, %s131
    %p133 = scmp.eq.s32.totalorder %s15, 0
    %p134 = por %p132, %p133
    %p135 = scmp.le.s32.totalorder 1, %s9
    %p136 = scmp.lt.s32.totalorder %s9, 3
    %p137 = pnand %p135, %p136
    %p138 = pneg %p137
    // Predicated region
    $region9: #{discriminator_forward.5} parent=5 // pred_check
      _
    $region10: #{discriminator_forward.5} parent=5 // pred_check_branch
      %140 = sbr.rel (%p137) target = $region12
    $region11: #{discriminator_forward.5} parent=5 // pred_region
      %s141 = ssub.s32 %s9, 1
      // Predicated region
      $region13: #{discriminator_forward.5} parent=11 // pred_check
        %p142 = pneg %p73
      $region14: #{discriminator_forward.5} parent=11 // pred_check_branch
        %144 = sbr.rel (%p142) target = $region16
      $region15: #{discriminator_forward.5} parent=11 // pred_region
        %p145 = scmp.lt.s32.totalorder %s19, 0
        %s146 = scalar_select %p145, %s19, 0
        %s147 = smul.addr %s146, 4
        %s148 = scalar_lea.vmem %s1, %s147
      $region16: #{discriminator_forward.5} parent=11 // pred_fallthru
        _
      // Predicated region
      $region17: #{discriminator_forward.5} parent=11 // pred_check
        %p149 = pneg %p99
      $region18: #{discriminator_forward.5} parent=11 // pred_check_branch
        %151 = sbr.rel (%p149) target = $region20
      $region19: #{discriminator_forward.5} parent=11 // pred_region
        %p152 = scmp.lt.s32.totalorder %s19, 0
        %s153 = scalar_select %p152, %s19, 0
        %s154 = scalar_lea.vmem %s2, %s153
      $region20: #{discriminator_forward.5} parent=11 // pred_fallthru
        _
    $region12: #{discriminator_forward.5} parent=5 // pred_fallthru
      _
    %p155 = scmp.lt.s32.totalorder %s9, 2
    // Predicated region
    $region21: #{discriminator_forward.5} parent=5 // pred_check
      %p156 = pneg %p155
    $region22: #{discriminator_forward.5} parent=5 // pred_check_branch
      %158 = sbr.rel (%p156) target = $region24
    $region23: #{discriminator_forward.5} parent=5 // pred_region
      // Predicated region
      $region25: #{discriminator_forward.5} parent=23 // pred_check
        %p159 = pneg %p41
      $region26: #{discriminator_forward.5} parent=23 // pred_check_branch
        %161 = sbr.rel (%p159) target = $region28
      $region27: #{discriminator_forward.5} parent=23 // pred_region
        %s162 = smul.u32 32, %s16
        %p163 = scmp.lt.s32.totalorder %s162, 63
        %s164 = scalar_select %p163, %s162, 63
        %s165 = smul.addr %s164, 4
        %s166 = scalar_lea.vmem %s0, %s165
        %s167 = smul.u32 32, %s16
      $region28: #{discriminator_forward.5} parent=23 // pred_fallthru
        _
    $region24: #{discriminator_forward.5} parent=5 // pred_fallthru
      _
    %p168 = scmp.le.s32.totalorder 1, %s9
    %p169 = scmp.lt.s32.totalorder %s9, 3
    %p170 = pnand %p168, %p169
    %p171 = pneg %p170
    // Predicated region
    $region29: #{discriminator_forward.5} parent=5 // pred_check
      _
    $region30: #{discriminator_forward.5} parent=5 // pred_check_branch
      %173 = sbr.rel (%p170) target = $region32
    $region31: #{discriminator_forward.5} parent=5 // pred_region
      %s174 = ssub.s32 %s9, 1
      %s175 = smul.u32 32, %s18
      %p176 = scmp.lt.s32.totalorder %s175, 63
      %s177 = scalar_select %p176, %s175, 63
      %s178 = smul.addr %s177, 4
      %s179 = scalar_lea.vmem %s0, %s178
      %p180 = pneg %p47
      %p181 = pneg %p44
      %p182 = scmp.lt.s32.totalorder %s19, 0
      %s183 = scalar_select %p182, %s19, 0
      %s184 = smul.addr %s183, 4
      %s185 = scalar_lea.vmem %s1, %s184
      %p186 = pneg %p73
      %p187 = pneg %p70
      %p188 = scmp.lt.s32.totalorder %s19, 0
      %s189 = scalar_select %p188, %s19, 0
      %s190 = scalar_lea.vmem %s2, %s189
      %p191 = pneg %p99
      %p192 = pneg %p96
      %p193 = pneg %p127
      %p194 = pneg %p124
      %s195 = smul.u32 32, %s18
      %p196 = scmp.lt.s32.totalorder %s195, 63
      %s197 = scalar_select %p196, %s195, 63
      %p198 = scmp.lt.s32.totalorder %s19, 0
      %s199 = scalar_select %p198, %s19, 0
      %s200 = sadd.s32 %s199, %s197
      %s201 = smul.addr %s200, 4
      %s202 = scalar_lea.vmem %s3, %s201
      %s203 = smul.u32 32, %s18
      %p204 = scmp.lt.s32.totalorder %s203, 63
      %s205 = scalar_select %p204, %s203, 63
      %s206 = smul.addr %s205, 4
      %s207 = scalar_lea.vmem %s0, %s206
      %s208 = smul.u32 32, %s18
      %p209 = scmp.lt.s32.totalorder %s19, 0
      %s210 = scalar_select %p209, %s19, 0
      %s211 = smul.addr %s210, 4
      %s212 = scalar_lea.vmem %s1, %s211
      %p213 = scmp.lt.s32.totalorder %s19, 0
      %s214 = scalar_select %p213, %s19, 0
      %s215 = scalar_lea.vmem %s2, %s214
      %s216 = smul.u32 32, %s18
      %p217 = scmp.lt.s32.totalorder %s216, 63
      %s218 = scalar_select %p217, %s216, 63
      %p219 = scmp.lt.s32.totalorder %s19, 0
      %s220 = scalar_select %p219, %s19, 0
      %s221 = sadd.s32 %s220, %s218
      %s222 = smul.addr %s221, 4
      %s223 = scalar_lea.vmem %s3, %s222
      %s224 = smul.u32 32, %s18
      %v225 = vld [vmem:[%s207] sm:$0xf]
      %v226 = vld [vmem:[%s207 + $0x4] sm:$0xf]
      %v227 = vld [vmem:[%s207 + $0x8] sm:$0xf]
      %v228 = vld [vmem:[%s207 + $0xc] sm:$0xf]
      %v229 = vld [vmem:[%s207 + $0x10] sm:$0xf]
      %v230 = vld [vmem:[%s207 + $0x14] sm:$0xf]
      %v231 = vld [vmem:[%s207 + $0x18] sm:$0xf]
      %v232 = vld [vmem:[%s207 + $0x1c] sm:$0xf]
      %v233 = vld [vmem:[%s207 + $0x20] sm:$0xf]
      %v234 = vld [vmem:[%s207 + $0x24] sm:$0xf]
      %v235 = vld [vmem:[%s207 + $0x28] sm:$0xf]
      %v236 = vld [vmem:[%s207 + $0x2c] sm:$0xf]
      %v237 = vld [vmem:[%s207 + $0x30] sm:$0xf]
      %v238 = vld [vmem:[%s207 + $0x34] sm:$0xf]
      %v239 = vld [vmem:[%s207 + $0x38] sm:$0xf]
      %v240 = vld [vmem:[%s207 + $0x3c] sm:$0xf]
      %v241 = vld [vmem:[%s207 + $0x40] sm:$0xf]
      %v242 = vld [vmem:[%s207 + $0x44] sm:$0xf]
      %v243 = vld [vmem:[%s207 + $0x48] sm:$0xf]
      %v244 = vld [vmem:[%s207 + $0x4c] sm:$0xf]
      %v245 = vld [vmem:[%s207 + $0x50] sm:$0xf]
      %v246 = vld [vmem:[%s207 + $0x54] sm:$0xf]
      %v247 = vld [vmem:[%s207 + $0x58] sm:$0xf]
      %v248 = vld [vmem:[%s207 + $0x5c] sm:$0xf]
      %v249 = vld [vmem:[%s207 + $0x60] sm:$0xf]
      %v250 = vld [vmem:[%s207 + $0x64] sm:$0xf]
      %v251 = vld [vmem:[%s207 + $0x68] sm:$0xf]
      %v252 = vld [vmem:[%s207 + $0x6c] sm:$0xf]
      %v253 = vld [vmem:[%s207 + $0x70] sm:$0xf]
      %v254 = vld [vmem:[%s207 + $0x74] sm:$0xf]
      %v255 = vld [vmem:[%s207 + $0x78] sm:$0xf]
      %v256 = vld [vmem:[%s207 + $0x7c] sm:$0xf]
      %v257 = vld [vmem:[%s212] sm:$0xf]
      %v258 = vld [vmem:[%s212 + $0x4] sm:$0xf]
      %v259 = vld [vmem:[%s212 + $0x8] sm:$0xf]
      %v260 = vld [vmem:[%s212 + $0xc] sm:$0xf]
      %v261 = vld [vmem:[%s212 + $0x10] sm:$0xf]
      %v262 = vld [vmem:[%s212 + $0x14] sm:$0xf]
      %v263 = vld [vmem:[%s212 + $0x18] sm:$0xf]
      %v264 = vld [vmem:[%s212 + $0x1c] sm:$0xf]
      %v265 = vld [vmem:[%s212 + $0x20] sm:$0xf]
      %v266 = vld [vmem:[%s212 + $0x24] sm:$0xf]
      %v267 = vld [vmem:[%s212 + $0x28] sm:$0xf]
      %v268 = vld [vmem:[%s212 + $0x2c] sm:$0xf]
      %v269 = vld [vmem:[%s212 + $0x30] sm:$0xf]
      %v270 = vld [vmem:[%s212 + $0x34] sm:$0xf]
      %v271 = vld [vmem:[%s212 + $0x38] sm:$0xf]
      %v272 = vld [vmem:[%s212 + $0x3c] sm:$0xf]
      %v273 = vld [vmem:[%s215] sm:$0x1]
      %v275 = vperm.slane %v273, 0
      %v309 = vunpack.c.l.b16 %v225
      %v310 = vunpack.c.l.b16 %v226
      %v311 = vunpack.c.l.b16 %v227
      %v312 = vunpack.c.l.b16 %v228
      %v313 = vunpack.c.l.b16 %v229
      %v314 = vunpack.c.l.b16 %v230
      %v315 = vunpack.c.l.b16 %v231
      %v316 = vunpack.c.l.b16 %v232
      %v317 = vunpack.c.l.b16 %v233
      %v318 = vunpack.c.l.b16 %v234
      %v319 = vunpack.c.l.b16 %v235
      %v320 = vunpack.c.l.b16 %v236
      %v321 = vunpack.c.l.b16 %v237
      %v322 = vunpack.c.l.b16 %v238
      %v323 = vunpack.c.l.b16 %v239
      %v324 = vunpack.c.l.b16 %v240
      %v325 = vunpack.c.l.b16 %v241
      %v326 = vunpack.c.l.b16 %v242
      %v327 = vunpack.c.l.b16 %v243
      %v328 = vunpack.c.l.b16 %v244
      %v329 = vunpack.c.l.b16 %v245
      %v330 = vunpack.c.l.b16 %v246
      %v331 = vunpack.c.l.b16 %v247
      %v332 = vunpack.c.l.b16 %v248
      %v333 = vunpack.c.l.b16 %v249
      %v334 = vunpack.c.l.b16 %v250
      %v335 = vunpack.c.l.b16 %v251
      %v336 = vunpack.c.l.b16 %v252
      %v337 = vunpack.c.l.b16 %v253
      %v338 = vunpack.c.l.b16 %v254
      %v339 = vunpack.c.l.b16 %v255
      %v340 = vunpack.c.l.b16 %v256
      %v341 = vpack.c.b16 %v310, %v309
      %v342 = vpack.c.b16 %v312, %v311
      %v343 = vpack.c.b16 %v314, %v313
      %v344 = vpack.c.b16 %v316, %v315
      %v345 = vpack.c.b16 %v318, %v317
      %v346 = vpack.c.b16 %v320, %v319
      %v347 = vpack.c.b16 %v322, %v321
      %v348 = vpack.c.b16 %v324, %v323
      %v349 = vpack.c.b16 %v326, %v325
      %v350 = vpack.c.b16 %v328, %v327
      %v351 = vpack.c.b16 %v330, %v329
      %v352 = vpack.c.b16 %v332, %v331
      %v353 = vpack.c.b16 %v334, %v333
      %v354 = vpack.c.b16 %v336, %v335
      %v355 = vpack.c.b16 %v338, %v337
      %v356 = vpack.c.b16 %v340, %v339
      %v389 = vunpack.c.l.b16 %v257
      %v390 = vunpack.c.l.b16 %v258
      %v391 = vunpack.c.l.b16 %v259
      %v392 = vunpack.c.l.b16 %v260
      %v393 = vunpack.c.l.b16 %v261
      %v394 = vunpack.c.l.b16 %v262
      %v395 = vunpack.c.l.b16 %v263
      %v396 = vunpack.c.l.b16 %v264
      %v397 = vunpack.c.l.b16 %v265
      %v398 = vunpack.c.l.b16 %v266
      %v399 = vunpack.c.l.b16 %v267
      %v400 = vunpack.c.l.b16 %v268
      %v401 = vunpack.c.l.b16 %v269
      %v402 = vunpack.c.l.b16 %v270
      %v403 = vunpack.c.l.b16 %v271
      %v404 = vunpack.c.l.b16 %v272
      %v405 = vpack.c.b16 %v390, %v389
      %v406 = vpack.c.b16 %v392, %v391
      %v407 = vpack.c.b16 %v394, %v393
      %v408 = vpack.c.b16 %v396, %v395
      %v409 = vpack.c.b16 %v398, %v397
      %v410 = vpack.c.b16 %v400, %v399
      %v411 = vpack.c.b16 %v402, %v401
      %v412 = vpack.c.b16 %v404, %v403
      %421 = vmatpush.bf16.msra.mxu0 %v412
      %422 = vmatpush.bf16.msra.mxu0 %v411
      %423 = vmatpush.bf16.msra.mxu0 %v410
      %424 = vmatpush.bf16.msra.mxu0 %v409
      %425 = vmatpush.bf16.msra.mxu0 %v408
      %426 = vmatpush.bf16.msra.mxu0 %v407
      %427 = vmatpush.bf16.msra.mxu0 %v406
      %428 = vmatpush.bf16.msra.mxu0 %v405
      %429 = vmatmul.bf16.gmra.mxu0 %v341
      %v430 = vpop.f32.mrf.mxu0
      %v431 = vadd.f32 %v275, %v430
      %v432 = vpop.f32.mrf.mxu0
      %v433 = vadd.f32 %v275, %v432
      %434 = vmatmul.bf16.gmra.mxu0 %v342
      %v435 = vpop.f32.mrf.mxu0
      %v436 = vadd.f32 %v275, %v435
      %v437 = vpop.f32.mrf.mxu0
      %v438 = vadd.f32 %v275, %v437
      %439 = vmatmul.bf16.gmra.mxu0 %v343
      %v440 = vpop.f32.mrf.mxu0
      %v441 = vadd.f32 %v275, %v440
      %v442 = vpop.f32.mrf.mxu0
      %v443 = vadd.f32 %v275, %v442
      %444 = vmatmul.bf16.gmra.mxu0 %v344
      %v445 = vpop.f32.mrf.mxu0
      %v446 = vadd.f32 %v275, %v445
      %v447 = vpop.f32.mrf.mxu0
      %v448 = vadd.f32 %v275, %v447
      %449 = vmatmul.bf16.gmra.mxu0 %v345
      %v450 = vpop.f32.mrf.mxu0
      %v451 = vadd.f32 %v275, %v450
      %v452 = vpop.f32.mrf.mxu0
      %v453 = vadd.f32 %v275, %v452
      %454 = vmatmul.bf16.gmra.mxu0 %v346
      %v455 = vpop.f32.mrf.mxu0
      %v456 = vadd.f32 %v275, %v455
      %v457 = vpop.f32.mrf.mxu0
      %v458 = vadd.f32 %v275, %v457
      %459 = vmatmul.bf16.gmra.mxu0 %v347
      %v460 = vpop.f32.mrf.mxu0
      %v461 = vadd.f32 %v275, %v460
      %v462 = vpop.f32.mrf.mxu0
      %v463 = vadd.f32 %v275, %v462
      %464 = vmatmul.bf16.gmra.mxu0 %v348
      %v465 = vpop.f32.mrf.mxu0
      %v466 = vadd.f32 %v275, %v465
      %v467 = vpop.f32.mrf.mxu0
      %v468 = vadd.f32 %v275, %v467
      %469 = vmatmul.bf16.gmra.mxu0 %v349
      %v470 = vpop.f32.mrf.mxu0
      %v471 = vadd.f32 %v275, %v470
      %v472 = vpop.f32.mrf.mxu0
      %v473 = vadd.f32 %v275, %v472
      %474 = vmatmul.bf16.gmra.mxu0 %v350
      %v475 = vpop.f32.mrf.mxu0
      %v476 = vadd.f32 %v275, %v475
      %v477 = vpop.f32.mrf.mxu0
      %v478 = vadd.f32 %v275, %v477
      %479 = vmatmul.bf16.gmra.mxu0 %v351
      %v480 = vpop.f32.mrf.mxu0
      %v481 = vadd.f32 %v275, %v480
      %v482 = vpop.f32.mrf.mxu0
      %v483 = vadd.f32 %v275, %v482
      %484 = vmatmul.bf16.gmra.mxu0 %v352
      %v485 = vpop.f32.mrf.mxu0
      %v486 = vadd.f32 %v275, %v485
      %v487 = vpop.f32.mrf.mxu0
      %v488 = vadd.f32 %v275, %v487
      %489 = vmatmul.bf16.gmra.mxu0 %v353
      %v490 = vpop.f32.mrf.mxu0
      %v491 = vadd.f32 %v275, %v490
      %v492 = vpop.f32.mrf.mxu0
      %v493 = vadd.f32 %v275, %v492
      %494 = vmatmul.bf16.gmra.mxu0 %v354
      %v495 = vpop.f32.mrf.mxu0
      %v496 = vadd.f32 %v275, %v495
      %v497 = vpop.f32.mrf.mxu0
      %v498 = vadd.f32 %v275, %v497
      %499 = vmatmul.bf16.gmra.mxu0 %v355
      %v500 = vpop.f32.mrf.mxu0
      %v501 = vadd.f32 %v275, %v500
      %v502 = vpop.f32.mrf.mxu0
      %v503 = vadd.f32 %v275, %v502
      %504 = vmatmul.bf16.gmra.mxu0 %v356
      %v505 = vpop.f32.mrf.mxu0
      %v506 = vadd.f32 %v275, %v505
      %v507 = vpop.f32.mrf.mxu0
      %v508 = vadd.f32 %v275, %v507
      %509 = vdwg.mxu0
      %vm510 = vcmp.gt.f32.partialorder %v431, 0.0
      %vm511 = vcmp.gt.f32.partialorder %v433, 0.0
      %vm512 = vcmp.gt.f32.partialorder %v436, 0.0
      %vm513 = vcmp.gt.f32.partialorder %v438, 0.0
      %vm514 = vcmp.gt.f32.partialorder %v441, 0.0
      %vm515 = vcmp.gt.f32.partialorder %v443, 0.0
      %vm516 = vcmp.gt.f32.partialorder %v446, 0.0
      %vm517 = vcmp.gt.f32.partialorder %v448, 0.0
      %vm518 = vcmp.gt.f32.partialorder %v451, 0.0
      %vm519 = vcmp.gt.f32.partialorder %v453, 0.0
      %vm520 = vcmp.gt.f32.partialorder %v456, 0.0
      %vm521 = vcmp.gt.f32.partialorder %v458, 0.0
      %vm522 = vcmp.gt.f32.partialorder %v461, 0.0
      %vm523 = vcmp.gt.f32.partialorder %v463, 0.0
      %vm524 = vcmp.gt.f32.partialorder %v466, 0.0
      %vm525 = vcmp.gt.f32.partialorder %v468, 0.0
      %vm526 = vcmp.gt.f32.partialorder %v471, 0.0
      %vm527 = vcmp.gt.f32.partialorder %v473, 0.0
      %vm528 = vcmp.gt.f32.partialorder %v476, 0.0
      %vm529 = vcmp.gt.f32.partialorder %v478, 0.0
      %vm530 = vcmp.gt.f32.partialorder %v481, 0.0
      %vm531 = vcmp.gt.f32.partialorder %v483, 0.0
      %vm532 = vcmp.gt.f32.partialorder %v486, 0.0
      %vm533 = vcmp.gt.f32.partialorder %v488, 0.0
      %vm534 = vcmp.gt.f32.partialorder %v491, 0.0
      %vm535 = vcmp.gt.f32.partialorder %v493, 0.0
      %vm536 = vcmp.gt.f32.partialorder %v496, 0.0
      %vm537 = vcmp.gt.f32.partialorder %v498, 0.0
      %vm538 = vcmp.gt.f32.partialorder %v501, 0.0
      %vm539 = vcmp.gt.f32.partialorder %v503, 0.0
      %vm540 = vcmp.gt.f32.partialorder %v506, 0.0
      %vm541 = vcmp.gt.f32.partialorder %v508, 0.0
      %v542 = vmul.f32 %v431, 0.2
      %v543 = vmul.f32 %v433, 0.2
      %v544 = vmul.f32 %v436, 0.2
      %v545 = vmul.f32 %v438, 0.2
      %v546 = vmul.f32 %v441, 0.2
      %v547 = vmul.f32 %v443, 0.2
      %v548 = vmul.f32 %v446, 0.2
      %v549 = vmul.f32 %v448, 0.2
      %v550 = vmul.f32 %v451, 0.2
      %v551 = vmul.f32 %v453, 0.2
      %v552 = vmul.f32 %v456, 0.2
      %v553 = vmul.f32 %v458, 0.2
      %v554 = vmul.f32 %v461, 0.2
      %v555 = vmul.f32 %v463, 0.2
      %v556 = vmul.f32 %v466, 0.2
      %v557 = vmul.f32 %v468, 0.2
      %v558 = vmul.f32 %v471, 0.2
      %v559 = vmul.f32 %v473, 0.2
      %v560 = vmul.f32 %v476, 0.2
      %v561 = vmul.f32 %v478, 0.2
      %v562 = vmul.f32 %v481, 0.2
      %v563 = vmul.f32 %v483, 0.2
      %v564 = vmul.f32 %v486, 0.2
      %v565 = vmul.f32 %v488, 0.2
      %v566 = vmul.f32 %v491, 0.2
      %v567 = vmul.f32 %v493, 0.2
      %v568 = vmul.f32 %v496, 0.2
      %v569 = vmul.f32 %v498, 0.2
      %v570 = vmul.f32 %v501, 0.2
      %v571 = vmul.f32 %v503, 0.2
      %v572 = vmul.f32 %v506, 0.2
      %v573 = vmul.f32 %v508, 0.2
      %v574 = vsel %vm510, %v431, %v542
      %v575 = vsel %vm511, %v433, %v543
      %v576 = vsel %vm512, %v436, %v544
      %v577 = vsel %vm513, %v438, %v545
      %v578 = vsel %vm514, %v441, %v546
      %v579 = vsel %vm515, %v443, %v547
      %v580 = vsel %vm516, %v446, %v548
      %v581 = vsel %vm517, %v448, %v549
      %v582 = vsel %vm518, %v451, %v550
      %v583 = vsel %vm519, %v453, %v551
      %v584 = vsel %vm520, %v456, %v552
      %v585 = vsel %vm521, %v458, %v553
      %v586 = vsel %vm522, %v461, %v554
      %v587 = vsel %vm523, %v463, %v555
      %v588 = vsel %vm524, %v466, %v556
      %v589 = vsel %vm525, %v468, %v557
      %v590 = vsel %vm526, %v471, %v558
      %v591 = vsel %vm527, %v473, %v559
      %v592 = vsel %vm528, %v476, %v560
      %v593 = vsel %vm529, %v478, %v561
      %v594 = vsel %vm530, %v481, %v562
      %v595 = vsel %vm531, %v483, %v563
      %v596 = vsel %vm532, %v486, %v564
      %v597 = vsel %vm533, %v488, %v565
      %v598 = vsel %vm534, %v491, %v566
      %v599 = vsel %vm535, %v493, %v567
      %v600 = vsel %vm536, %v496, %v568
      %v601 = vsel %vm537, %v498, %v569
      %v602 = vsel %vm538, %v501, %v570
      %v603 = vsel %vm539, %v503, %v571
      %v604 = vsel %vm540, %v506, %v572
      %v605 = vsel %vm541, %v508, %v573
      %v606 = vpack.c.bf16 %v574, %v574
      %v607 = vpack.c.bf16 %v575, %v575
      %v608 = vpack.c.bf16 %v576, %v576
      %v609 = vpack.c.bf16 %v577, %v577
      %v610 = vpack.c.bf16 %v578, %v578
      %v611 = vpack.c.bf16 %v579, %v579
      %v612 = vpack.c.bf16 %v580, %v580
      %v613 = vpack.c.bf16 %v581, %v581
      %v614 = vpack.c.bf16 %v582, %v582
      %v615 = vpack.c.bf16 %v583, %v583
      %v616 = vpack.c.bf16 %v584, %v584
      %v617 = vpack.c.bf16 %v585, %v585
      %v618 = vpack.c.bf16 %v586, %v586
      %v619 = vpack.c.bf16 %v587, %v587
      %v620 = vpack.c.bf16 %v588, %v588
      %v621 = vpack.c.bf16 %v589, %v589
      %v622 = vpack.c.bf16 %v590, %v590
      %v623 = vpack.c.bf16 %v591, %v591
      %v624 = vpack.c.bf16 %v592, %v592
      %v625 = vpack.c.bf16 %v593, %v593
      %v626 = vpack.c.bf16 %v594, %v594
      %v627 = vpack.c.bf16 %v595, %v595
      %v628 = vpack.c.bf16 %v596, %v596
      %v629 = vpack.c.bf16 %v597, %v597
      %v630 = vpack.c.bf16 %v598, %v598
      %v631 = vpack.c.bf16 %v599, %v599
      %v632 = vpack.c.bf16 %v600, %v600
      %v633 = vpack.c.bf16 %v601, %v601
      %v634 = vpack.c.bf16 %v602, %v602
      %v635 = vpack.c.bf16 %v603, %v603
      %v636 = vpack.c.bf16 %v604, %v604
      %v637 = vpack.c.bf16 %v605, %v605
      %638 = vst [vmem:[%s223] sm:$0xf] %v606
      %639 = vst [vmem:[%s223 + $0x4] sm:$0xf] %v607
      %640 = vst [vmem:[%s223 + $0x8] sm:$0xf] %v608
      %641 = vst [vmem:[%s223 + $0xc] sm:$0xf] %v609
      %642 = vst [vmem:[%s223 + $0x10] sm:$0xf] %v610
      %643 = vst [vmem:[%s223 + $0x14] sm:$0xf] %v611
      %644 = vst [vmem:[%s223 + $0x18] sm:$0xf] %v612
      %645 = vst [vmem:[%s223 + $0x1c] sm:$0xf] %v613
      %646 = vst [vmem:[%s223 + $0x20] sm:$0xf] %v614
      %647 = vst [vmem:[%s223 + $0x24] sm:$0xf] %v615
      %648 = vst [vmem:[%s223 + $0x28] sm:$0xf] %v616
      %649 = vst [vmem:[%s223 + $0x2c] sm:$0xf] %v617
      %650 = vst [vmem:[%s223 + $0x30] sm:$0xf] %v618
      %651 = vst [vmem:[%s223 + $0x34] sm:$0xf] %v619
      %652 = vst [vmem:[%s223 + $0x38] sm:$0xf] %v620
      %653 = vst [vmem:[%s223 + $0x3c] sm:$0xf] %v621
      %654 = vst [vmem:[%s223 + $0x40] sm:$0xf] %v622
      %655 = vst [vmem:[%s223 + $0x44] sm:$0xf] %v623
      %656 = vst [vmem:[%s223 + $0x48] sm:$0xf] %v624
      %657 = vst [vmem:[%s223 + $0x4c] sm:$0xf] %v625
      %658 = vst [vmem:[%s223 + $0x50] sm:$0xf] %v626
      %659 = vst [vmem:[%s223 + $0x54] sm:$0xf] %v627
      %660 = vst [vmem:[%s223 + $0x58] sm:$0xf] %v628
      %661 = vst [vmem:[%s223 + $0x5c] sm:$0xf] %v629
      %662 = vst [vmem:[%s223 + $0x60] sm:$0xf] %v630
      %663 = vst [vmem:[%s223 + $0x64] sm:$0xf] %v631
      %664 = vst [vmem:[%s223 + $0x68] sm:$0xf] %v632
      %665 = vst [vmem:[%s223 + $0x6c] sm:$0xf] %v633
      %666 = vst [vmem:[%s223 + $0x70] sm:$0xf] %v634
      %667 = vst [vmem:[%s223 + $0x74] sm:$0xf] %v635
      %668 = vst [vmem:[%s223 + $0x78] sm:$0xf] %v636
      %669 = vst [vmem:[%s223 + $0x7c] sm:$0xf] %v637
      %s670 = smul.u32 32, %s18
      %p671 = scmp.lt.s32.totalorder %s670, 63
      %s672 = scalar_select %p671, %s670, 63
      %p673 = scmp.lt.s32.totalorder %s19, 0
      %s674 = scalar_select %p673, %s19, 0
      %s675 = sadd.s32 %s674, %s672
      %s676 = smul.addr %s675, 4
      %s677 = scalar_lea.vmem %s3, %s676
      // Predicated region
      $region33: #{discriminator_forward.5} parent=31 // pred_check
        %p678 = pneg %p124
      $region34: #{discriminator_forward.5} parent=31 // pred_check_branch
        %680 = sbr.rel (%p678) target = $region36
      $region35: #{discriminator_forward.5} parent=31 // pred_region
        %s681 = smul.u32 32, %s18
      $region36: #{discriminator_forward.5} parent=31 // pred_fallthru
        _
    $region32: #{discriminator_forward.5} parent=5 // pred_fallthru
      _
    %p682 = scmp.le.s32.totalorder 2, %s9
    // Predicated region
    $region37: #{discriminator_forward.5} parent=5 // pred_check
      %p683 = pneg %p682
    $region38: #{discriminator_forward.5} parent=5 // pred_check_branch
      %685 = sbr.rel (%p683) target = $region40
    $region39: #{discriminator_forward.5} parent=5 // pred_region
      %s686 = ssub.s32 %s9, 2
      // Predicated region
      $region41: #{discriminator_forward.5} parent=39 // pred_check
        %p687 = pneg %p130
      $region42: #{discriminator_forward.5} parent=39 // pred_check_branch
        %689 = sbr.rel (%p687) target = $region44
      $region43: #{discriminator_forward.5} parent=39 // pred_region
        %s690 = smul.u32 32, %s20
        %p691 = scmp.lt.s32.totalorder %s690, 63
        %s692 = scalar_select %p691, %s690, 63
        %p693 = scmp.lt.s32.totalorder %s21, 0
        %s694 = scalar_select %p693, %s21, 0
        %s695 = sadd.s32 %s694, %s692
        %s696 = smul.addr %s695, 4
        %s697 = scalar_lea.vmem %s3, %s696
      $region44: #{discriminator_forward.5} parent=39 // pred_fallthru
        _
    $region40: #{discriminator_forward.5} parent=5 // pred_fallthru
      _
  $region6: #{discriminator_forward.5} parent=0 // loop_footer
    %s13 = sadd.s32 1, %s9
  $region7: #{discriminator_forward.5} parent=0 // loop_footer_branch
    %8 = sbr.rel target = $region3
  $region8: #{discriminator_forward.5} parent=0 // loop_exit
    _

// kernel: discriminator_forward.6
$region0: #{discriminator_forward.6}
  #allocation0 [shape = 'u32[]', space=smem, size = 0x4, offset = 0x4, fixed_abs, tag = 'smem constant byte address 0x4 - core index']
  #allocation1 [shape = 'u32[72,128]{1,0:T(1,128)}', space=vmem, size = 0x9000, scoped, tag = 'internal scratch']
  %s0 = inlined_call_operand.vmem [shape: bf16[128,512], index: 0, kind: input, shape index: {}]
  %s1 = inlined_call_operand.vmem [shape: bf16[512,128], index: 1, kind: input, shape index: {}]
  %s2 = inlined_call_operand.vmem [shape: f32[1,128], index: 2, kind: input, shape index: {}]
  %s3 = inlined_call_operand.vmem [shape: f32[1,128], index: 3, kind: input, shape index: {}]
  %s4 = inlined_call_operand.vmem [shape: bf16[128,128], index: 4, kind: output, shape index: {}]
  %s5 = sld [smem:[#allocation0]]
  $region26: #{discriminator_forward.6} parent=0
    _
  %s7 = ssub.s32 1, %s5
  %s8 = scalar_select 0, %s7, %s5
  // Predicated region
  $region2: #{discriminator_forward.6} parent=0 // pred_check
    _
  $region3: #{discriminator_forward.6} parent=0 // pred_check_branch
    %10 = sbr.rel (0) target = $region5
  $region4: #{discriminator_forward.6} parent=0 // pred_region
    _
  $region5: #{discriminator_forward.6} parent=0 // pred_fallthru
    _
  // Predicated region
  $region6: #{discriminator_forward.6} parent=0 // pred_check
    _
  $region7: #{discriminator_forward.6} parent=0 // pred_check_branch
    %12 = sbr.rel (0) target = $region9
  $region8: #{discriminator_forward.6} parent=0 // pred_region
    _
  $region9: #{discriminator_forward.6} parent=0 // pred_fallthru
    _
  // Predicated region
  $region10: #{discriminator_forward.6} parent=0 // pred_check
    _
  $region11: #{discriminator_forward.6} parent=0 // pred_check_branch
    %14 = sbr.rel (0) target = $region13
  $region12: #{discriminator_forward.6} parent=0 // pred_region
    _
  $region13: #{discriminator_forward.6} parent=0 // pred_fallthru
    _
  // Predicated region
  $region14: #{discriminator_forward.6} parent=0 // pred_check
    _
  $region15: #{discriminator_forward.6} parent=0 // pred_check_branch
    %16 = sbr.rel (0) target = $region17
  $region16: #{discriminator_forward.6} parent=0 // pred_region
    _
  $region17: #{discriminator_forward.6} parent=0 // pred_fallthru
    _
  %v17 = vld [vmem:[%s0] sm:$0xff]
  %v18 = vld [vmem:[%s0 + $0x8] sm:$0xff]
  %v19 = vld [vmem:[%s0 + $0x10] sm:$0xff]
  %v20 = vld [vmem:[%s0 + $0x18] sm:$0xff]
  %v21 = vld [vmem:[%s0 + $0x20] sm:$0xff]
  %v22 = vld [vmem:[%s0 + $0x28] sm:$0xff]
  %v23 = vld [vmem:[%s0 + $0x30] sm:$0xff]
  %v24 = vld [vmem:[%s0 + $0x38] sm:$0xff]
  %v25 = vld [vmem:[%s0 + $0x40] sm:$0xff]
  %v26 = vld [vmem:[%s0 + $0x48] sm:$0xff]
  %v27 = vld [vmem:[%s0 + $0x50] sm:$0xff]
  %v28 = vld [vmem:[%s0 + $0x58] sm:$0xff]
  %v29 = vld [vmem:[%s0 + $0x60] sm:$0xff]
  %v30 = vld [vmem:[%s0 + $0x68] sm:$0xff]
  %v31 = vld [vmem:[%s0 + $0x70] sm:$0xff]
  %v32 = vld [vmem:[%s0 + $0x78] sm:$0xff]
  %v33 = vld [vmem:[%s0 + $0x80] sm:$0xff]
  %v34 = vld [vmem:[%s0 + $0x88] sm:$0xff]
  %v35 = vld [vmem:[%s0 + $0x90] sm:$0xff]
  %v36 = vld [vmem:[%s0 + $0x98] sm:$0xff]
  %v37 = vld [vmem:[%s0 + $0xa0] sm:$0xff]
  %v38 = vld [vmem:[%s0 + $0xa8] sm:$0xff]
  %v39 = vld [vmem:[%s0 + $0xb0] sm:$0xff]
  %v40 = vld [vmem:[%s0 + $0xb8] sm:$0xff]
  %v41 = vld [vmem:[%s0 + $0xc0] sm:$0xff]
  %v42 = vld [vmem:[%s0 + $0xc8] sm:$0xff]
  %v43 = vld [vmem:[%s0 + $0xd0] sm:$0xff]
  %v44 = vld [vmem:[%s0 + $0xd8] sm:$0xff]
  %v45 = vld [vmem:[%s0 + $0xe0] sm:$0xff]
  %v46 = vld [vmem:[%s0 + $0xe8] sm:$0xff]
  %v47 = vld [vmem:[%s0 + $0xf0] sm:$0xff]
  %v48 = vld [vmem:[%s0 + $0xf8] sm:$0xff]
  %v49 = vld [vmem:[%s1] sm:$0xf]
  %v50 = vld [vmem:[%s1 + $0x4] sm:$0xf]
  %v51 = vld [vmem:[%s1 + $0x8] sm:$0xf]
  %v52 = vld [vmem:[%s1 + $0xc] sm:$0xf]
  %v53 = vld [vmem:[%s1 + $0x10] sm:$0xf]
  %v54 = vld [vmem:[%s1 + $0x14] sm:$0xf]
  %v55 = vld [vmem:[%s1 + $0x18] sm:$0xf]
  %v56 = vld [vmem:[%s1 + $0x1c] sm:$0xf]
  %v57 = vld [vmem:[%s1 + $0x20] sm:$0xf]
  %v58 = vld [vmem:[%s1 + $0x24] sm:$0xf]
  %v59 = vld [vmem:[%s1 + $0x28] sm:$0xf]
  %v60 = vld [vmem:[%s1 + $0x2c] sm:$0xf]
  %v61 = vld [vmem:[%s1 + $0x30] sm:$0xf]
  %v62 = vld [vmem:[%s1 + $0x34] sm:$0xf]
  %v63 = vld [vmem:[%s1 + $0x38] sm:$0xf]
  %v64 = vld [vmem:[%s1 + $0x3c] sm:$0xf]
  %v65 = vld [vmem:[%s1 + $0x40] sm:$0xf]
  %v66 = vld [vmem:[%s1 + $0x44] sm:$0xf]
  %v67 = vld [vmem:[%s1 + $0x48] sm:$0xf]
  %v68 = vld [vmem:[%s1 + $0x4c] sm:$0xf]
  %v69 = vld [vmem:[%s1 + $0x50] sm:$0xf]
  %v70 = vld [vmem:[%s1 + $0x54] sm:$0xf]
  %v71 = vld [vmem:[%s1 + $0x58] sm:$0xf]
  %v72 = vld [vmem:[%s1 + $0x5c] sm:$0xf]
  %v73 = vld [vmem:[%s1 + $0x60] sm:$0xf]
  %v74 = vld [vmem:[%s1 + $0x64] sm:$0xf]
  %v75 = vld [vmem:[%s1 + $0x68] sm:$0xf]
  %v76 = vld [vmem:[%s1 + $0x6c] sm:$0xf]
  %v77 = vld [vmem:[%s1 + $0x70] sm:$0xf]
  %v78 = vld [vmem:[%s1 + $0x74] sm:$0xf]
  %v79 = vld [vmem:[%s1 + $0x78] sm:$0xf]
  %v80 = vld [vmem:[%s1 + $0x7c] sm:$0xf]
  %v81 = vld [vmem:[%s1 + $0x80] sm:$0xf]
  %v82 = vld [vmem:[%s1 + $0x84] sm:$0xf]
  %v83 = vld [vmem:[%s1 + $0x88] sm:$0xf]
  %v84 = vld [vmem:[%s1 + $0x8c] sm:$0xf]
  %v85 = vld [vmem:[%s1 + $0x90] sm:$0xf]
  %v86 = vld [vmem:[%s1 + $0x94] sm:$0xf]
  %v87 = vld [vmem:[%s1 + $0x98] sm:$0xf]
  %v88 = vld [vmem:[%s1 + $0x9c] sm:$0xf]
  %v89 = vld [vmem:[%s1 + $0xa0] sm:$0xf]
  %v90 = vld [vmem:[%s1 + $0xa4] sm:$0xf]
  %v91 = vld [vmem:[%s1 + $0xa8] sm:$0xf]
  %v92 = vld [vmem:[%s1 + $0xac] sm:$0xf]
  %v93 = vld [vmem:[%s1 + $0xb0] sm:$0xf]
  %v94 = vld [vmem:[%s1 + $0xb4] sm:$0xf]
  %v95 = vld [vmem:[%s1 + $0xb8] sm:$0xf]
  %v96 = vld [vmem:[%s1 + $0xbc] sm:$0xf]
  %v97 = vld [vmem:[%s1 + $0xc0] sm:$0xf]
  %v98 = vld [vmem:[%s1 + $0xc4] sm:$0xf]
  %v99 = vld [vmem:[%s1 + $0xc8] sm:$0xf]
  %v100 = vld [vmem:[%s1 + $0xcc] sm:$0xf]
  %v101 = vld [vmem:[%s1 + $0xd0] sm:$0xf]
  %v102 = vld [vmem:[%s1 + $0xd4] sm:$0xf]
  %v103 = vld [vmem:[%s1 + $0xd8] sm:$0xf]
  %v104 = vld [vmem:[%s1 + $0xdc] sm:$0xf]
  %v105 = vld [vmem:[%s1 + $0xe0] sm:$0xf]
  %v106 = vld [vmem:[%s1 + $0xe4] sm:$0xf]
  %v107 = vld [vmem:[%s1 + $0xe8] sm:$0xf]
  %v108 = vld [vmem:[%s1 + $0xec] sm:$0xf]
  %v109 = vld [vmem:[%s1 + $0xf0] sm:$0xf]
  %v110 = vld [vmem:[%s1 + $0xf4] sm:$0xf]
  %v111 = vld [vmem:[%s1 + $0xf8] sm:$0xf]
  %v112 = vld [vmem:[%s1 + $0xfc] sm:$0xf]
  %v145 = vunpack.c.l.b16 %v17
  %v146 = vunpack.c.h.b16 %v17
  %v147 = vunpack.c.l.b16 %v18
  %v148 = vunpack.c.h.b16 %v18
  %v149 = vunpack.c.l.b16 %v19
  %v150 = vunpack.c.h.b16 %v19
  %v151 = vunpack.c.l.b16 %v20
  %v152 = vunpack.c.h.b16 %v20
  %v153 = vunpack.c.l.b16 %v21
  %v154 = vunpack.c.h.b16 %v21
  %v155 = vunpack.c.l.b16 %v22
  %v156 = vunpack.c.h.b16 %v22
  %v157 = vunpack.c.l.b16 %v23
  %v158 = vunpack.c.h.b16 %v23
  %v159 = vunpack.c.l.b16 %v24
  %v160 = vunpack.c.h.b16 %v24
  %v161 = vunpack.c.l.b16 %v25
  %v162 = vunpack.c.h.b16 %v25
  %v163 = vunpack.c.l.b16 %v26
  %v164 = vunpack.c.h.b16 %v26
  %v165 = vunpack.c.l.b16 %v27
  %v166 = vunpack.c.h.b16 %v27
  %v167 = vunpack.c.l.b16 %v28
  %v168 = vunpack.c.h.b16 %v28
  %v169 = vunpack.c.l.b16 %v29
  %v170 = vunpack.c.h.b16 %v29
  %v171 = vunpack.c.l.b16 %v30
  %v172 = vunpack.c.h.b16 %v30
  %v173 = vunpack.c.l.b16 %v31
  %v174 = vunpack.c.h.b16 %v31
  %v175 = vunpack.c.l.b16 %v32
  %v176 = vunpack.c.h.b16 %v32
  %v177 = vunpack.c.l.b16 %v33
  %v178 = vunpack.c.h.b16 %v33
  %v179 = vunpack.c.l.b16 %v34
  %v180 = vunpack.c.h.b16 %v34
  %v181 = vunpack.c.l.b16 %v35
  %v182 = vunpack.c.h.b16 %v35
  %v183 = vunpack.c.l.b16 %v36
  %v184 = vunpack.c.h.b16 %v36
  %v185 = vunpack.c.l.b16 %v37
  %v186 = vunpack.c.h.b16 %v37
  %v187 = vunpack.c.l.b16 %v38
  %v188 = vunpack.c.h.b16 %v38
  %v189 = vunpack.c.l.b16 %v39
  %v190 = vunpack.c.h.b16 %v39
  %v191 = vunpack.c.l.b16 %v40
  %v192 = vunpack.c.h.b16 %v40
  %v193 = vunpack.c.l.b16 %v41
  %v194 = vunpack.c.h.b16 %v41
  %v195 = vunpack.c.l.b16 %v42
  %v196 = vunpack.c.h.b16 %v42
  %v197 = vunpack.c.l.b16 %v43
  %v198 = vunpack.c.h.b16 %v43
  %v199 = vunpack.c.l.b16 %v44
  %v200 = vunpack.c.h.b16 %v44
  %v201 = vunpack.c.l.b16 %v45
  %v202 = vunpack.c.h.b16 %v45
  %v203 = vunpack.c.l.b16 %v46
  %v204 = vunpack.c.h.b16 %v46
  %v205 = vunpack.c.l.b16 %v47
  %v206 = vunpack.c.h.b16 %v47
  %v207 = vunpack.c.l.b16 %v48
  %v208 = vunpack.c.h.b16 %v48
  %v209 = vpack.c.b16 %v149, %v145
  %v210 = vpack.c.b16 %v150, %v146
  %v211 = vpack.c.b16 %v151, %v147
  %v212 = vpack.c.b16 %v152, %v148
  %v213 = vpack.c.b16 %v157, %v153
  %v214 = vpack.c.b16 %v158, %v154
  %v215 = vpack.c.b16 %v159, %v155
  %v216 = vpack.c.b16 %v160, %v156
  %v217 = vpack.c.b16 %v165, %v161
  %v218 = vpack.c.b16 %v166, %v162
  %v219 = vpack.c.b16 %v167, %v163
  %v220 = vpack.c.b16 %v168, %v164
  %v221 = vpack.c.b16 %v173, %v169
  %v222 = vpack.c.b16 %v174, %v170
  %v223 = vpack.c.b16 %v175, %v171
  %v224 = vpack.c.b16 %v176, %v172
  %v225 = vpack.c.b16 %v181, %v177
  %v226 = vpack.c.b16 %v182, %v178
  %v227 = vpack.c.b16 %v183, %v179
  %v228 = vpack.c.b16 %v184, %v180
  %v229 = vpack.c.b16 %v189, %v185
  %v230 = vpack.c.b16 %v190, %v186
  %v231 = vpack.c.b16 %v191, %v187
  %v232 = vpack.c.b16 %v192, %v188
  %v233 = vpack.c.b16 %v197, %v193
  %v234 = vpack.c.b16 %v198, %v194
  %v235 = vpack.c.b16 %v199, %v195
  %v236 = vpack.c.b16 %v200, %v196
  %v237 = vpack.c.b16 %v205, %v201
  %v238 = vpack.c.b16 %v206, %v202
  %v239 = vpack.c.b16 %v207, %v203
  %v240 = vpack.c.b16 %v208, %v204
  %v337 = vunpack.c.l.b16 %v49
  %v338 = vunpack.c.l.b16 %v50
  %v339 = vunpack.c.l.b16 %v51
  %v340 = vunpack.c.l.b16 %v52
  %v341 = vunpack.c.l.b16 %v53
  %v342 = vunpack.c.l.b16 %v54
  %v343 = vunpack.c.l.b16 %v55
  %v344 = vunpack.c.l.b16 %v56
  %v345 = vunpack.c.l.b16 %v57
  %v346 = vunpack.c.l.b16 %v58
  %v347 = vunpack.c.l.b16 %v59
  %v348 = vunpack.c.l.b16 %v60
  %v349 = vunpack.c.l.b16 %v61
  %v350 = vunpack.c.l.b16 %v62
  %v351 = vunpack.c.l.b16 %v63
  %v352 = vunpack.c.l.b16 %v64
  %v353 = vunpack.c.l.b16 %v65
  %v354 = vunpack.c.l.b16 %v66
  %v355 = vunpack.c.l.b16 %v67
  %v356 = vunpack.c.l.b16 %v68
  %v357 = vunpack.c.l.b16 %v69
  %v358 = vunpack.c.l.b16 %v70
  %v359 = vunpack.c.l.b16 %v71
  %v360 = vunpack.c.l.b16 %v72
  %v361 = vunpack.c.l.b16 %v73
  %v362 = vunpack.c.l.b16 %v74
  %v363 = vunpack.c.l.b16 %v75
  %v364 = vunpack.c.l.b16 %v76
  %v365 = vunpack.c.l.b16 %v77
  %v366 = vunpack.c.l.b16 %v78
  %v367 = vunpack.c.l.b16 %v79
  %v368 = vunpack.c.l.b16 %v80
  %v369 = vunpack.c.l.b16 %v81
  %v370 = vunpack.c.l.b16 %v82
  %v371 = vunpack.c.l.b16 %v83
  %v372 = vunpack.c.l.b16 %v84
  %v373 = vunpack.c.l.b16 %v85
  %v374 = vunpack.c.l.b16 %v86
  %v375 = vunpack.c.l.b16 %v87
  %v376 = vunpack.c.l.b16 %v88
  %v377 = vunpack.c.l.b16 %v89
  %v378 = vunpack.c.l.b16 %v90
  %v379 = vunpack.c.l.b16 %v91
  %v380 = vunpack.c.l.b16 %v92
  %v381 = vunpack.c.l.b16 %v93
  %v382 = vunpack.c.l.b16 %v94
  %v383 = vunpack.c.l.b16 %v95
  %v384 = vunpack.c.l.b16 %v96
  %v385 = vunpack.c.l.b16 %v97
  %v386 = vunpack.c.l.b16 %v98
  %v387 = vunpack.c.l.b16 %v99
  %v388 = vunpack.c.l.b16 %v100
  %v389 = vunpack.c.l.b16 %v101
  %v390 = vunpack.c.l.b16 %v102
  %v391 = vunpack.c.l.b16 %v103
  %v392 = vunpack.c.l.b16 %v104
  %v393 = vunpack.c.l.b16 %v105
  %v394 = vunpack.c.l.b16 %v106
  %v395 = vunpack.c.l.b16 %v107
  %v396 = vunpack.c.l.b16 %v108
  %v397 = vunpack.c.l.b16 %v109
  %v398 = vunpack.c.l.b16 %v110
  %v399 = vunpack.c.l.b16 %v111
  %v400 = vunpack.c.l.b16 %v112
  %v401 = vpack.c.b16 %v338, %v337
  %v402 = vpack.c.b16 %v340, %v339
  %v403 = vpack.c.b16 %v342, %v341
  %v404 = vpack.c.b16 %v344, %v343
  %v405 = vpack.c.b16 %v346, %v345
  %v406 = vpack.c.b16 %v348, %v347
  %v407 = vpack.c.b16 %v350, %v349
  %v408 = vpack.c.b16 %v352, %v351
  %v409 = vpack.c.b16 %v354, %v353
  %v410 = vpack.c.b16 %v356, %v355
  %v411 = vpack.c.b16 %v358, %v357
  %v412 = vpack.c.b16 %v360, %v359
  %v413 = vpack.c.b16 %v362, %v361
  %v414 = vpack.c.b16 %v364, %v363
  %v415 = vpack.c.b16 %v366, %v365
  %v416 = vpack.c.b16 %v368, %v367
  %v417 = vpack.c.b16 %v370, %v369
  %v418 = vpack.c.b16 %v372, %v371
  %v419 = vpack.c.b16 %v374, %v373
  %v420 = vpack.c.b16 %v376, %v375
  %v421 = vpack.c.b16 %v378, %v377
  %v422 = vpack.c.b16 %v380, %v379
  %v423 = vpack.c.b16 %v382, %v381
  %v424 = vpack.c.b16 %v384, %v383
  %v425 = vpack.c.b16 %v386, %v385
  %v426 = vpack.c.b16 %v388, %v387
  %v427 = vpack.c.b16 %v390, %v389
  %v428 = vpack.c.b16 %v392, %v391
  %v429 = vpack.c.b16 %v394, %v393
  %v430 = vpack.c.b16 %v396, %v395
  %v431 = vpack.c.b16 %v398, %v397
  %v432 = vpack.c.b16 %v400, %v399
  %465 = vmatpush.bf16.msra.mxu0 %v408
  %466 = vmatpush.bf16.msra.mxu0 %v407
  %467 = vmatpush.bf16.msra.mxu0 %v406
  %468 = vmatpush.bf16.msra.mxu0 %v405
  %469 = vmatpush.bf16.msra.mxu0 %v404
  %470 = vmatpush.bf16.msra.mxu0 %v403
  %471 = vmatpush.bf16.msra.mxu0 %v402
  %472 = vmatpush.bf16.msra.mxu0 %v401
  %473 = vmatmul.bf16.gmra.mxu0 %v209
  %v474 = vpop.f32.mrf.mxu0
  %v475 = vadd.f32 0.0, %v474
  %v476 = vpop.f32.mrf.mxu0
  %v477 = vadd.f32 0.0, %v476
  %478 = vmatmul.bf16.gmra.mxu0 %v213
  %v479 = vpop.f32.mrf.mxu0
  %v480 = vadd.f32 0.0, %v479
  %v481 = vpop.f32.mrf.mxu0
  %v482 = vadd.f32 0.0, %v481
  %483 = vmatmul.bf16.gmra.mxu0 %v217
  %v484 = vpop.f32.mrf.mxu0
  %v485 = vadd.f32 0.0, %v484
  %v486 = vpop.f32.mrf.mxu0
  %v487 = vadd.f32 0.0, %v486
  %488 = vmatmul.bf16.gmra.mxu0 %v221
  %v489 = vpop.f32.mrf.mxu0
  %v490 = vadd.f32 0.0, %v489
  %v491 = vpop.f32.mrf.mxu0
  %v492 = vadd.f32 0.0, %v491
  %493 = vmatmul.bf16.gmra.mxu0 %v225
  %v494 = vpop.f32.mrf.mxu0
  %v495 = vadd.f32 0.0, %v494
  %v496 = vpop.f32.mrf.mxu0
  %v497 = vadd.f32 0.0, %v496
  %498 = vmatmul.bf16.gmra.mxu0 %v229
  %v499 = vpop.f32.mrf.mxu0
  %v500 = vadd.f32 0.0, %v499
  %v501 = vpop.f32.mrf.mxu0
  %v502 = vadd.f32 0.0, %v501
  %503 = vmatmul.bf16.gmra.mxu0 %v233
  %v504 = vpop.f32.mrf.mxu0
  %v505 = vadd.f32 0.0, %v504
  %v506 = vpop.f32.mrf.mxu0
  %v507 = vadd.f32 0.0, %v506
  %508 = vmatmul.bf16.gmra.mxu0 %v237
  %v509 = vpop.f32.mrf.mxu0
  %v510 = vadd.f32 0.0, %v509
  %v511 = vpop.f32.mrf.mxu0
  %v512 = vadd.f32 0.0, %v511
  %513 = vdwg.mxu0
  %514 = vmatpush.bf16.msra.mxu0 %v416
  %515 = vmatpush.bf16.msra.mxu0 %v415
  %516 = vmatpush.bf16.msra.mxu0 %v414
  %517 = vmatpush.bf16.msra.mxu0 %v413
  %518 = vmatpush.bf16.msra.mxu0 %v412
  %519 = vmatpush.bf16.msra.mxu0 %v411
  %520 = vmatpush.bf16.msra.mxu0 %v410
  %521 = vmatpush.bf16.msra.mxu0 %v409
  %522 = vmatmul.bf16.gmra.mxu0 %v210
  %v523 = vpop.f32.mrf.mxu0
  %v524 = vadd.f32 %v475, %v523
  %v525 = vpop.f32.mrf.mxu0
  %v526 = vadd.f32 %v477, %v525
  %527 = vmatmul.bf16.gmra.mxu0 %v214
  %v528 = vpop.f32.mrf.mxu0
  %v529 = vadd.f32 %v480, %v528
  %v530 = vpop.f32.mrf.mxu0
  %v531 = vadd.f32 %v482, %v530
  %532 = vmatmul.bf16.gmra.mxu0 %v218
  %v533 = vpop.f32.mrf.mxu0
  %v534 = vadd.f32 %v485, %v533
  %v535 = vpop.f32.mrf.mxu0
  %v536 = vadd.f32 %v487, %v535
  %537 = vmatmul.bf16.gmra.mxu0 %v222
  %v538 = vpop.f32.mrf.mxu0
  %v539 = vadd.f32 %v490, %v538
  %v540 = vpop.f32.mrf.mxu0
  %v541 = vadd.f32 %v492, %v540
  %542 = vmatmul.bf16.gmra.mxu0 %v226
  %v543 = vpop.f32.mrf.mxu0
  %v544 = vadd.f32 %v495, %v543
  %v545 = vpop.f32.mrf.mxu0
  %v546 = vadd.f32 %v497, %v545
  %547 = vmatmul.bf16.gmra.mxu0 %v230
  %v548 = vpop.f32.mrf.mxu0
  %v549 = vadd.f32 %v500, %v548
  %v550 = vpop.f32.mrf.mxu0
  %v551 = vadd.f32 %v502, %v550
  %552 = vmatmul.bf16.gmra.mxu0 %v234
  %v553 = vpop.f32.mrf.mxu0
  %v554 = vadd.f32 %v505, %v553
  %v555 = vpop.f32.mrf.mxu0
  %v556 = vadd.f32 %v507, %v555
  %557 = vmatmul.bf16.gmra.mxu0 %v238
  %v558 = vpop.f32.mrf.mxu0
  %v559 = vadd.f32 %v510, %v558
  %v560 = vpop.f32.mrf.mxu0
  %v561 = vadd.f32 %v512, %v560
  %562 = vdwg.mxu0
  %563 = vmatpush.bf16.msra.mxu0 %v424
  %564 = vmatpush.bf16.msra.mxu0 %v423
  %565 = vmatpush.bf16.msra.mxu0 %v422
  %566 = vmatpush.bf16.msra.mxu0 %v421
  %567 = vmatpush.bf16.msra.mxu0 %v420
  %568 = vmatpush.bf16.msra.mxu0 %v419
  %569 = vmatpush.bf16.msra.mxu0 %v418
  %570 = vmatpush.bf16.msra.mxu0 %v417
  %571 = vmatmul.bf16.gmra.mxu0 %v211
  %v572 = vpop.f32.mrf.mxu0
  %v573 = vadd.f32 %v524, %v572
  %v574 = vpop.f32.mrf.mxu0
  %v575 = vadd.f32 %v526, %v574
  %576 = vmatmul.bf16.gmra.mxu0 %v215
  %v577 = vpop.f32.mrf.mxu0
  %v578 = vadd.f32 %v529, %v577
  %v579 = vpop.f32.mrf.mxu0
  %v580 = vadd.f32 %v531, %v579
  %581 = vmatmul.bf16.gmra.mxu0 %v219
  %v582 = vpop.f32.mrf.mxu0
  %v583 = vadd.f32 %v534, %v582
  %v584 = vpop.f32.mrf.mxu0
  %v585 = vadd.f32 %v536, %v584
  %586 = vmatmul.bf16.gmra.mxu0 %v223
  %v587 = vpop.f32.mrf.mxu0
  %v588 = vadd.f32 %v539, %v587
  %v589 = vpop.f32.mrf.mxu0
  %v590 = vadd.f32 %v541, %v589
  %591 = vmatmul.bf16.gmra.mxu0 %v227
  %v592 = vpop.f32.mrf.mxu0
  %v593 = vadd.f32 %v544, %v592
  %v594 = vpop.f32.mrf.mxu0
  %v595 = vadd.f32 %v546, %v594
  %596 = vmatmul.bf16.gmra.mxu0 %v231
  %v597 = vpop.f32.mrf.mxu0
  %v598 = vadd.f32 %v549, %v597
  %v599 = vpop.f32.mrf.mxu0
  %v600 = vadd.f32 %v551, %v599
  %601 = vmatmul.bf16.gmra.mxu0 %v235
  %v602 = vpop.f32.mrf.mxu0
  %v603 = vadd.f32 %v554, %v602
  %v604 = vpop.f32.mrf.mxu0
  %v605 = vadd.f32 %v556, %v604
  %606 = vmatmul.bf16.gmra.mxu0 %v239
  %v607 = vpop.f32.mrf.mxu0
  %v608 = vadd.f32 %v559, %v607
  %v609 = vpop.f32.mrf.mxu0
  %v610 = vadd.f32 %v561, %v609
  %611 = vdwg.mxu0
  %612 = vmatpush.bf16.msra.mxu0 %v432
  %613 = vmatpush.bf16.msra.mxu0 %v431
  %614 = vmatpush.bf16.msra.mxu0 %v430
  %615 = vmatpush.bf16.msra.mxu0 %v429
  %616 = vmatpush.bf16.msra.mxu0 %v428
  %617 = vmatpush.bf16.msra.mxu0 %v427
  %618 = vmatpush.bf16.msra.mxu0 %v426
  %619 = vmatpush.bf16.msra.mxu0 %v425
  %620 = vmatmul.bf16.gmra.mxu0 %v212
  %v621 = vpop.f32.mrf.mxu0
  %v622 = vadd.f32 %v573, %v621
  %v623 = vpop.f32.mrf.mxu0
  %v624 = vadd.f32 %v575, %v623
  %625 = vmatmul.bf16.gmra.mxu0 %v216
  %v626 = vpop.f32.mrf.mxu0
  %v627 = vadd.f32 %v578, %v626
  %v628 = vpop.f32.mrf.mxu0
  %v629 = vadd.f32 %v580, %v628
  %630 = vmatmul.bf16.gmra.mxu0 %v220
  %v631 = vpop.f32.mrf.mxu0
  %v632 = vadd.f32 %v583, %v631
  %v633 = vpop.f32.mrf.mxu0
  %v634 = vadd.f32 %v585, %v633
  %635 = vmatmul.bf16.gmra.mxu0 %v224
  %v636 = vpop.f32.mrf.mxu0
  %v637 = vadd.f32 %v588, %v636
  %v638 = vpop.f32.mrf.mxu0
  %v639 = vadd.f32 %v590, %v638
  %640 = vmatmul.bf16.gmra.mxu0 %v228
  %v641 = vpop.f32.mrf.mxu0
  %v642 = vadd.f32 %v593, %v641
  %v643 = vpop.f32.mrf.mxu0
  %v644 = vadd.f32 %v595, %v643
  %645 = vmatmul.bf16.gmra.mxu0 %v232
  %v646 = vpop.f32.mrf.mxu0
  %v647 = vadd.f32 %v598, %v646
  %v648 = vpop.f32.mrf.mxu0
  %v649 = vadd.f32 %v600, %v648
  %650 = vmatmul.bf16.gmra.mxu0 %v236
  %v651 = vpop.f32.mrf.mxu0
  %v652 = vadd.f32 %v603, %v651
  %v653 = vpop.f32.mrf.mxu0
  %v654 = vadd.f32 %v605, %v653
  %655 = vmatmul.bf16.gmra.mxu0 %v240
  %v656 = vpop.f32.mrf.mxu0
  %v657 = vadd.f32 %v608, %v656
  %v658 = vpop.f32.mrf.mxu0
  %v659 = vadd.f32 %v610, %v658
  %660 = vdwg.mxu0
  %v661 = vadd.f32 %v622, %v624
  %v662 = vadd.f32 %v661, %v627
  %v663 = vadd.f32 %v662, %v629
  %v664 = vadd.f32 %v663, %v632
  %v665 = vadd.f32 %v664, %v634
  %v666 = vadd.f32 %v665, %v637
  %v667 = vadd.f32 %v666, %v639
  %v668 = vadd.f32 %v667, %v642
  %v669 = vadd.f32 %v668, %v644
  %v670 = vadd.f32 %v669, %v647
  %v671 = vadd.f32 %v670, %v649
  %v672 = vadd.f32 %v671, %v652
  %v673 = vadd.f32 %v672, %v654
  %v674 = vadd.f32 %v673, %v657
  %v675 = vadd.f32 %v674, %v659
  %v676 = vrot.slane %v675, 4
  %v677 = vadd.f32 %v675, %v676
  %v678 = vrot.slane %v677, 2
  %v679 = vadd.f32 %v677, %v678
  %v680 = vrot.slane %v679, 1
  %v681 = vadd.f32 %v679, %v680
  %v682 = vmul.f32 %v622, %v622
  %v683 = vmul.f32 %v624, %v624
  %v684 = vmul.f32 %v627, %v627
  %v685 = vmul.f32 %v629, %v629
  %v686 = vmul.f32 %v632, %v632
  %v687 = vmul.f32 %v634, %v634
  %v688 = vmul.f32 %v637, %v637
  %v689 = vmul.f32 %v639, %v639
  %v690 = vmul.f32 %v642, %v642
  %v691 = vmul.f32 %v644, %v644
  %v692 = vmul.f32 %v647, %v647
  %v693 = vmul.f32 %v649, %v649
  %v694 = vmul.f32 %v652, %v652
  %v695 = vmul.f32 %v654, %v654
  %v696 = vmul.f32 %v657, %v657
  %v697 = vmul.f32 %v659, %v659
  %v698 = vadd.f32 %v682, %v683
  %v699 = vadd.f32 %v698, %v684
  %v700 = vadd.f32 %v699, %v685
  %v701 = vadd.f32 %v700, %v686
  %v702 = vadd.f32 %v701, %v687
  %v703 = vadd.f32 %v702, %v688
  %v704 = vadd.f32 %v703, %v689
  %v705 = vadd.f32 %v704, %v690
  %v706 = vadd.f32 %v705, %v691
  %v707 = vadd.f32 %v706, %v692
  %v708 = vadd.f32 %v707, %v693
  %v709 = vadd.f32 %v708, %v694
  %v710 = vadd.f32 %v709, %v695
  %v711 = vadd.f32 %v710, %v696
  %v712 = vadd.f32 %v711, %v697
  %v713 = vrot.slane %v712, 4
  %v714 = vadd.f32 %v712, %v713
  %v715 = vrot.slane %v714, 2
  %v716 = vadd.f32 %v714, %v715
  %v717 = vrot.slane %v716, 1
  %v718 = vadd.f32 %v716, %v717
  %v719 = vmul.f32 %v681, 0.0078125
  %v720 = vmul.f32 %v718, 0.0078125
  %v721 = vmul.f32 %v719, %v719
  %v722 = vsub.f32 %v720, %v721
  %v723 = vmax.f32 %v722, 0.0
  %v724 = vld [vmem:[%s2] sm:$0x1]
  %v725 = vadd.f32 %v723, 1e-05
  %v726 = vrsqrt.pop %v725
  %v727 = vmul.f32 %v726, %v725
  %v728 = vmul.f32 %v727, %v726
  %v729 = vmul.f32 0.5, %v728
  %v730 = vsub.f32 1.5, %v729
  %v731 = vmul.f32 %v726, %v730
  %vm732 = vweird.f32 %v725
  %vm733 = vweird.f32 %v726
  %vm734 = vmor %vm732, %vm733
  %v735 = vsel %vm734, %v726, %v731
  %v736 = vmul.f32 %v724, %v735
  %v737 = vld [vmem:[%s3] sm:$0x1]
  %v738 = vmul.f32 %v719, %v736
  %v739 = vsub.f32 %v737, %v738
  %v741 = vperm.slane %v736, 0
  %v743 = vmul.f32 %v622, %v741
  %v744 = vmul.f32 %v624, %v741
  %v745 = vmul.f32 %v627, %v741
  %v746 = vmul.f32 %v629, %v741
  %v747 = vmul.f32 %v632, %v741
  %v748 = vmul.f32 %v634, %v741
  %v749 = vmul.f32 %v637, %v741
  %v750 = vmul.f32 %v639, %v741
  %v751 = vmul.f32 %v642, %v741
  %v752 = vmul.f32 %v644, %v741
  %v753 = vmul.f32 %v647, %v741
  %v754 = vmul.f32 %v649, %v741
  %v755 = vmul.f32 %v652, %v741
  %v756 = vmul.f32 %v654, %v741
  %v757 = vmul.f32 %v657, %v741
  %v758 = vmul.f32 %v659, %v741
  %v760 = vperm.slane %v739, 0
  %v762 = vadd.f32 %v743, %v760
  %v763 = vadd.f32 %v744, %v760
  %v764 = vadd.f32 %v745, %v760
  %v765 = vadd.f32 %v746, %v760
  %v766 = vadd.f32 %v747, %v760
  %v767 = vadd.f32 %v748, %v760
  %v768 = vadd.f32 %v749, %v760
  %v769 = vadd.f32 %v750, %v760
  %v770 = vadd.f32 %v751, %v760
  %v771 = vadd.f32 %v752, %v760
  %v772 = vadd.f32 %v753, %v760
  %v773 = vadd.f32 %v754, %v760
  %v774 = vadd.f32 %v755, %v760
  %v775 = vadd.f32 %v756, %v760
  %v776 = vadd.f32 %v757, %v760
  %v777 = vadd.f32 %v758, %v760
  %vm778 = vcmp.gt.f32.partialorder %v762, 0.0
  %vm779 = vcmp.gt.f32.partialorder %v763, 0.0
  %vm780 = vcmp.gt.f32.partialorder %v764, 0.0
  %vm781 = vcmp.gt.f32.partialorder %v765, 0.0
  %vm782 = vcmp.gt.f32.partialorder %v766, 0.0
  %vm783 = vcmp.gt.f32.partialorder %v767, 0.0
  %vm784 = vcmp.gt.f32.partialorder %v768, 0.0
  %vm785 = vcmp.gt.f32.partialorder %v769, 0.0
  %vm786 = vcmp.gt.f32.partialorder %v770, 0.0
  %vm787 = vcmp.gt.f32.partialorder %v771, 0.0
  %vm788 = vcmp.gt.f32.partialorder %v772, 0.0
  %vm789 = vcmp.gt.f32.partialorder %v773, 0.0
  %vm790 = vcmp.gt.f32.partialorder %v774, 0.0
  %vm791 = vcmp.gt.f32.partialorder %v775, 0.0
  %vm792 = vcmp.gt.f32.partialorder %v776, 0.0
  %vm793 = vcmp.gt.f32.partialorder %v777, 0.0
  %v794 = vmul.f32 %v762, 0.2
  %v795 = vmul.f32 %v763, 0.2
  %v796 = vmul.f32 %v764, 0.2
  %v797 = vmul.f32 %v765, 0.2
  %v798 = vmul.f32 %v766, 0.2
  %v799 = vmul.f32 %v767, 0.2
  %v800 = vmul.f32 %v768, 0.2
  %v801 = vmul.f32 %v769, 0.2
  %v802 = vmul.f32 %v770, 0.2
  %v803 = vmul.f32 %v771, 0.2
  %v804 = vmul.f32 %v772, 0.2
  %v805 = vmul.f32 %v773, 0.2
  %v806 = vmul.f32 %v774, 0.2
  %v807 = vmul.f32 %v775, 0.2
  %v808 = vmul.f32 %v776, 0.2
  %v809 = vmul.f32 %v777, 0.2
  %v810 = vsel %vm778, %v762, %v794
  %v811 = vsel %vm779, %v763, %v795
  %v812 = vsel %vm780, %v764, %v796
  %v813 = vsel %vm781, %v765, %v797
  %v814 = vsel %vm782, %v766, %v798
  %v815 = vsel %vm783, %v767, %v799
  %v816 = vsel %vm784, %v768, %v800
  %v817 = vsel %vm785, %v769, %v801
  %v818 = vsel %vm786, %v770, %v802
  %v819 = vsel %vm787, %v771, %v803
  %v820 = vsel %vm788, %v772, %v804
  %v821 = vsel %vm789, %v773, %v805
  %v822 = vsel %vm790, %v774, %v806
  %v823 = vsel %vm791, %v775, %v807
  %v824 = vsel %vm792, %v776, %v808
  %v825 = vsel %vm793, %v777, %v809
  %v826 = vpack.c.bf16 %v810, %v810
  %v827 = vpack.c.bf16 %v811, %v811
  %v828 = vpack.c.bf16 %v812, %v812
  %v829 = vpack.c.bf16 %v813, %v813
  %v830 = vpack.c.bf16 %v814, %v814
  %v831 = vpack.c.bf16 %v815, %v815
  %v832 = vpack.c.bf16 %v816, %v816
  %v833 = vpack.c.bf16 %v817, %v817
  %v834 = vpack.c.bf16 %v818, %v818
  %v835 = vpack.c.bf16 %v819, %v819
  %v836 = vpack.c.bf16 %v820, %v820
  %v837 = vpack.c.bf16 %v821, %v821
  %v838 = vpack.c.bf16 %v822, %v822
  %v839 = vpack.c.bf16 %v823, %v823
  %v840 = vpack.c.bf16 %v824, %v824
  %v841 = vpack.c.bf16 %v825, %v825
  %842 = vst [vmem:[%s4] sm:$0xf] %v826
  %843 = vst [vmem:[%s4 + $0x4] sm:$0xf] %v827
  %844 = vst [vmem:[%s4 + $0x8] sm:$0xf] %v828
  %845 = vst [vmem:[%s4 + $0xc] sm:$0xf] %v829
  %846 = vst [vmem:[%s4 + $0x10] sm:$0xf] %v830
  %847 = vst [vmem:[%s4 + $0x14] sm:$0xf] %v831
  %848 = vst [vmem:[%s4 + $0x18] sm:$0xf] %v832
  %849 = vst [vmem:[%s4 + $0x1c] sm:$0xf] %v833
  %850 = vst [vmem:[%s4 + $0x20] sm:$0xf] %v834
  %851 = vst [vmem:[%s4 + $0x24] sm:$0xf] %v835
  %852 = vst [vmem:[%s4 + $0x28] sm:$0xf] %v836
  %853 = vst [vmem:[%s4 + $0x2c] sm:$0xf] %v837
  %854 = vst [vmem:[%s4 + $0x30] sm:$0xf] %v838
  %855 = vst [vmem:[%s4 + $0x34] sm:$0xf] %v839
  %856 = vst [vmem:[%s4 + $0x38] sm:$0xf] %v840
  %857 = vst [vmem:[%s4 + $0x3c] sm:$0xf] %v841
  // Predicated region
  $region18: #{discriminator_forward.6} parent=0 // pred_check
    _
  $region19: #{discriminator_forward.6} parent=0 // pred_check_branch
    %859 = sbr.rel (0) target = $region21
  $region20: #{discriminator_forward.6} parent=0 // pred_region
    _
  $region21: #{discriminator_forward.6} parent=0 // pred_fallthru
    _
  // Predicated region
  $region22: #{discriminator_forward.6} parent=0 // pred_check
    _
  $region23: #{discriminator_forward.6} parent=0 // pred_check_branch
    %861 = sbr.rel (0) target = $region25
  $region24: #{discriminator_forward.6} parent=0 // pred_region
    _
  $region25: #{discriminator_forward.6} parent=0 // pred_fallthru
    _

// kernel: discriminator_forward.7
$region0: #{discriminator_forward.7}
  #allocation0 [shape = 'u32[]', space=smem, size = 0x4, offset = 0x4, fixed_abs, tag = 'smem constant byte address 0x4 - core index']
  #allocation1 [shape = 'u32[72,128]{1,0:T(1,128)}', space=vmem, size = 0x9000, scoped, tag = 'internal scratch']
  %s0 = inlined_call_operand.vmem [shape: bf16[32,1024], index: 0, kind: input, shape index: {}]
  %s1 = inlined_call_operand.vmem [shape: bf16[1024,128], index: 1, kind: input, shape index: {}]
  %s2 = inlined_call_operand.vmem [shape: f32[1,128], index: 2, kind: input, shape index: {}]
  %s3 = inlined_call_operand.vmem [shape: f32[1,128], index: 3, kind: input, shape index: {}]
  %s4 = inlined_call_operand.vmem [shape: bf16[32,128], index: 4, kind: output, shape index: {}]
  %s5 = sld [smem:[#allocation0]]
  $region26: #{discriminator_forward.7} parent=0
    _
  %s7 = ssub.s32 1, %s5
  %s8 = scalar_select 0, %s7, %s5
  // Predicated region
  $region2: #{discriminator_forward.7} parent=0 // pred_check
    _
  $region3: #{discriminator_forward.7} parent=0 // pred_check_branch
    %10 = sbr.rel (0) target = $region5
  $region4: #{discriminator_forward.7} parent=0 // pred_region
    _
  $region5: #{discriminator_forward.7} parent=0 // pred_fallthru
    _
  // Predicated region
  $region6: #{discriminator_forward.7} parent=0 // pred_check
    _
  $region7: #{discriminator_forward.7} parent=0 // pred_check_branch
    %12 = sbr.rel (0) target = $region9
  $region8: #{discriminator_forward.7} parent=0 // pred_region
    _
  $region9: #{discriminator_forward.7} parent=0 // pred_fallthru
    _
  // Predicated region
  $region10: #{discriminator_forward.7} parent=0 // pred_check
    _
  $region11: #{discriminator_forward.7} parent=0 // pred_check_branch
    %14 = sbr.rel (0) target = $region13
  $region12: #{discriminator_forward.7} parent=0 // pred_region
    _
  $region13: #{discriminator_forward.7} parent=0 // pred_fallthru
    _
  // Predicated region
  $region14: #{discriminator_forward.7} parent=0 // pred_check
    _
  $region15: #{discriminator_forward.7} parent=0 // pred_check_branch
    %16 = sbr.rel (0) target = $region17
  $region16: #{discriminator_forward.7} parent=0 // pred_region
    _
  $region17: #{discriminator_forward.7} parent=0 // pred_fallthru
    _
  %v17 = vld [vmem:[%s0] sm:$0xff]
  %v18 = vld [vmem:[%s0 + $0x8] sm:$0xff]
  %v19 = vld [vmem:[%s0 + $0x10] sm:$0xff]
  %v20 = vld [vmem:[%s0 + $0x18] sm:$0xff]
  %v21 = vld [vmem:[%s0 + $0x20] sm:$0xff]
  %v22 = vld [vmem:[%s0 + $0x28] sm:$0xff]
  %v23 = vld [vmem:[%s0 + $0x30] sm:$0xff]
  %v24 = vld [vmem:[%s0 + $0x38] sm:$0xff]
  %v25 = vld [vmem:[%s0 + $0x40] sm:$0xff]
  %v26 = vld [vmem:[%s0 + $0x48] sm:$0xff]
  %v27 = vld [vmem:[%s0 + $0x50] sm:$0xff]
  %v28 = vld [vmem:[%s0 + $0x58] sm:$0xff]
  %v29 = vld [vmem:[%s0 + $0x60] sm:$0xff]
  %v30 = vld [vmem:[%s0 + $0x68] sm:$0xff]
  %v31 = vld [vmem:[%s0 + $0x70] sm:$0xff]
  %v32 = vld [vmem:[%s0 + $0x78] sm:$0xff]
  %v33 = vld [vmem:[%s1] sm:$0xf]
  %v34 = vld [vmem:[%s1 + $0x4] sm:$0xf]
  %v35 = vld [vmem:[%s1 + $0x8] sm:$0xf]
  %v36 = vld [vmem:[%s1 + $0xc] sm:$0xf]
  %v37 = vld [vmem:[%s1 + $0x10] sm:$0xf]
  %v38 = vld [vmem:[%s1 + $0x14] sm:$0xf]
  %v39 = vld [vmem:[%s1 + $0x18] sm:$0xf]
  %v40 = vld [vmem:[%s1 + $0x1c] sm:$0xf]
  %v41 = vld [vmem:[%s1 + $0x20] sm:$0xf]
  %v42 = vld [vmem:[%s1 + $0x24] sm:$0xf]
  %v43 = vld [vmem:[%s1 + $0x28] sm:$0xf]
  %v44 = vld [vmem:[%s1 + $0x2c] sm:$0xf]
  %v45 = vld [vmem:[%s1 + $0x30] sm:$0xf]
  %v46 = vld [vmem:[%s1 + $0x34] sm:$0xf]
  %v47 = vld [vmem:[%s1 + $0x38] sm:$0xf]
  %v48 = vld [vmem:[%s1 + $0x3c] sm:$0xf]
  %v49 = vld [vmem:[%s1 + $0x40] sm:$0xf]
  %v50 = vld [vmem:[%s1 + $0x44] sm:$0xf]
  %v51 = vld [vmem:[%s1 + $0x48] sm:$0xf]
  %v52 = vld [vmem:[%s1 + $0x4c] sm:$0xf]
  %v53 = vld [vmem:[%s1 + $0x50] sm:$0xf]
  %v54 = vld [vmem:[%s1 + $0x54] sm:$0xf]
  %v55 = vld [vmem:[%s1 + $0x58] sm:$0xf]
  %v56 = vld [vmem:[%s1 + $0x5c] sm:$0xf]
  %v57 = vld [vmem:[%s1 + $0x60] sm:$0xf]
  %v58 = vld [vmem:[%s1 + $0x64] sm:$0xf]
  %v59 = vld [vmem:[%s1 + $0x68] sm:$0xf]
  %v60 = vld [vmem:[%s1 + $0x6c] sm:$0xf]
  %v61 = vld [vmem:[%s1 + $0x70] sm:$0xf]
  %v62 = vld [vmem:[%s1 + $0x74] sm:$0xf]
  %v63 = vld [vmem:[%s1 + $0x78] sm:$0xf]
  %v64 = vld [vmem:[%s1 + $0x7c] sm:$0xf]
  %v65 = vld [vmem:[%s1 + $0x80] sm:$0xf]
  %v66 = vld [vmem:[%s1 + $0x84] sm:$0xf]
  %v67 = vld [vmem:[%s1 + $0x88] sm:$0xf]
  %v68 = vld [vmem:[%s1 + $0x8c] sm:$0xf]
  %v69 = vld [vmem:[%s1 + $0x90] sm:$0xf]
  %v70 = vld [vmem:[%s1 + $0x94] sm:$0xf]
  %v71 = vld [vmem:[%s1 + $0x98] sm:$0xf]
  %v72 = vld [vmem:[%s1 + $0x9c] sm:$0xf]
  %v73 = vld [vmem:[%s1 + $0xa0] sm:$0xf]
  %v74 = vld [vmem:[%s1 + $0xa4] sm:$0xf]
  %v75 = vld [vmem:[%s1 + $0xa8] sm:$0xf]
  %v76 = vld [vmem:[%s1 + $0xac] sm:$0xf]
  %v77 = vld [vmem:[%s1 + $0xb0] sm:$0xf]
  %v78 = vld [vmem:[%s1 + $0xb4] sm:$0xf]
  %v79 = vld [vmem:[%s1 + $0xb8] sm:$0xf]
  %v80 = vld [vmem:[%s1 + $0xbc] sm:$0xf]
  %v81 = vld [vmem:[%s1 + $0xc0] sm:$0xf]
  %v82 = vld [vmem:[%s1 + $0xc4] sm:$0xf]
  %v83 = vld [vmem:[%s1 + $0xc8] sm:$0xf]
  %v84 = vld [vmem:[%s1 + $0xcc] sm:$0xf]
  %v85 = vld [vmem:[%s1 + $0xd0] sm:$0xf]
  %v86 = vld [vmem:[%s1 + $0xd4] sm:$0xf]
  %v87 = vld [vmem:[%s1 + $0xd8] sm:$0xf]
  %v88 = vld [vmem:[%s1 + $0xdc] sm:$0xf]
  %v89 = vld [vmem:[%s1 + $0xe0] sm:$0xf]
  %v90 = vld [vmem:[%s1 + $0xe4] sm:$0xf]
  %v91 = vld [vmem:[%s1 + $0xe8] sm:$0xf]
  %v92 = vld [vmem:[%s1 + $0xec] sm:$0xf]
  %v93 = vld [vmem:[%s1 + $0xf0] sm:$0xf]
  %v94 = vld [vmem:[%s1 + $0xf4] sm:$0xf]
  %v95 = vld [vmem:[%s1 + $0xf8] sm:$0xf]
  %v96 = vld [vmem:[%s1 + $0xfc] sm:$0xf]
  %v97 = vld [vmem:[%s1 + $0x100] sm:$0xf]
  %v98 = vld [vmem:[%s1 + $0x104] sm:$0xf]
  %v99 = vld [vmem:[%s1 + $0x108] sm:$0xf]
  %v100 = vld [vmem:[%s1 + $0x10c] sm:$0xf]
  %v101 = vld [vmem:[%s1 + $0x110] sm:$0xf]
  %v102 = vld [vmem:[%s1 + $0x114] sm:$0xf]
  %v103 = vld [vmem:[%s1 + $0x118] sm:$0xf]
  %v104 = vld [vmem:[%s1 + $0x11c] sm:$0xf]
  %v105 = vld [vmem:[%s1 + $0x120] sm:$0xf]
  %v106 = vld [vmem:[%s1 + $0x124] sm:$0xf]
  %v107 = vld [vmem:[%s1 + $0x128] sm:$0xf]
  %v108 = vld [vmem:[%s1 + $0x12c] sm:$0xf]
  %v109 = vld [vmem:[%s1 + $0x130] sm:$0xf]
  %v110 = vld [vmem:[%s1 + $0x134] sm:$0xf]
  %v111 = vld [vmem:[%s1 + $0x138] sm:$0xf]
  %v112 = vld [vmem:[%s1 + $0x13c] sm:$0xf]
  %v113 = vld [vmem:[%s1 + $0x140] sm:$0xf]
  %v114 = vld [vmem:[%s1 + $0x144] sm:$0xf]
  %v115 = vld [vmem:[%s1 + $0x148] sm:$0xf]
  %v116 = vld [vmem:[%s1 + $0x14c] sm:$0xf]
  %v117 = vld [vmem:[%s1 + $0x150] sm:$0xf]
  %v118 = vld [vmem:[%s1 + $0x154] sm:$0xf]
  %v119 = vld [vmem:[%s1 + $0x158] sm:$0xf]
  %v120 = vld [vmem:[%s1 + $0x15c] sm:$0xf]
  %v121 = vld [vmem:[%s1 + $0x160] sm:$0xf]
  %v122 = vld [vmem:[%s1 + $0x164] sm:$0xf]
  %v123 = vld [vmem:[%s1 + $0x168] sm:$0xf]
  %v124 = vld [vmem:[%s1 + $0x16c] sm:$0xf]
  %v125 = vld [vmem:[%s1 + $0x170] sm:$0xf]
  %v126 = vld [vmem:[%s1 + $0x174] sm:$0xf]
  %v127 = vld [vmem:[%s1 + $0x178] sm:$0xf]
  %v128 = vld [vmem:[%s1 + $0x17c] sm:$0xf]
  %v129 = vld [vmem:[%s1 + $0x180] sm:$0xf]
  %v130 = vld [vmem:[%s1 + $0x184] sm:$0xf]
  %v131 = vld [vmem:[%s1 + $0x188] sm:$0xf]
  %v132 = vld [vmem:[%s1 + $0x18c] sm:$0xf]
  %v133 = vld [vmem:[%s1 + $0x190] sm:$0xf]
  %v134 = vld [vmem:[%s1 + $0x194] sm:$0xf]
  %v135 = vld [vmem:[%s1 + $0x198] sm:$0xf]
  %v136 = vld [vmem:[%s1 + $0x19c] sm:$0xf]
  %v137 = vld [vmem:[%s1 + $0x1a0] sm:$0xf]
  %v138 = vld [vmem:[%s1 + $0x1a4] sm:$0xf]
  %v139 = vld [vmem:[%s1 + $0x1a8] sm:$0xf]
  %v140 = vld [vmem:[%s1 + $0x1ac] sm:$0xf]
  %v141 = vld [vmem:[%s1 + $0x1b0] sm:$0xf]
  %v142 = vld [vmem:[%s1 + $0x1b4] sm:$0xf]
  %v143 = vld [vmem:[%s1 + $0x1b8] sm:$0xf]
  %v144 = vld [vmem:[%s1 + $0x1bc] sm:$0xf]
  %v145 = vld [vmem:[%s1 + $0x1c0] sm:$0xf]
  %v146 = vld [vmem:[%s1 + $0x1c4] sm:$0xf]
  %v147 = vld [vmem:[%s1 + $0x1c8] sm:$0xf]
  %v148 = vld [vmem:[%s1 + $0x1cc] sm:$0xf]
  %v149 = vld [vmem:[%s1 + $0x1d0] sm:$0xf]
  %v150 = vld [vmem:[%s1 + $0x1d4] sm:$0xf]
  %v151 = vld [vmem:[%s1 + $0x1d8] sm:$0xf]
  %v152 = vld [vmem:[%s1 + $0x1dc] sm:$0xf]
  %v153 = vld [vmem:[%s1 + $0x1e0] sm:$0xf]
  %v154 = vld [vmem:[%s1 + $0x1e4] sm:$0xf]
  %v155 = vld [vmem:[%s1 + $0x1e8] sm:$0xf]
  %v156 = vld [vmem:[%s1 + $0x1ec] sm:$0xf]
  %v157 = vld [vmem:[%s1 + $0x1f0] sm:$0xf]
  %v158 = vld [vmem:[%s1 + $0x1f4] sm:$0xf]
  %v159 = vld [vmem:[%s1 + $0x1f8] sm:$0xf]
  %v160 = vld [vmem:[%s1 + $0x1fc] sm:$0xf]
  %v177 = vunpack.c.l.b16 %v17
  %v178 = vunpack.c.h.b16 %v17
  %v179 = vunpack.c.l.b16 %v18
  %v180 = vunpack.c.h.b16 %v18
  %v181 = vunpack.c.l.b16 %v19
  %v182 = vunpack.c.h.b16 %v19
  %v183 = vunpack.c.l.b16 %v20
  %v184 = vunpack.c.h.b16 %v20
  %v185 = vunpack.c.l.b16 %v21
  %v186 = vunpack.c.h.b16 %v21
  %v187 = vunpack.c.l.b16 %v22
  %v188 = vunpack.c.h.b16 %v22
  %v189 = vunpack.c.l.b16 %v23
  %v190 = vunpack.c.h.b16 %v23
  %v191 = vunpack.c.l.b16 %v24
  %v192 = vunpack.c.h.b16 %v24
  %v193 = vunpack.c.l.b16 %v25
  %v194 = vunpack.c.h.b16 %v25
  %v195 = vunpack.c.l.b16 %v26
  %v196 = vunpack.c.h.b16 %v26
  %v197 = vunpack.c.l.b16 %v27
  %v198 = vunpack.c.h.b16 %v27
  %v199 = vunpack.c.l.b16 %v28
  %v200 = vunpack.c.h.b16 %v28
  %v201 = vunpack.c.l.b16 %v29
  %v202 = vunpack.c.h.b16 %v29
  %v203 = vunpack.c.l.b16 %v30
  %v204 = vunpack.c.h.b16 %v30
  %v205 = vunpack.c.l.b16 %v31
  %v206 = vunpack.c.h.b16 %v31
  %v207 = vunpack.c.l.b16 %v32
  %v208 = vunpack.c.h.b16 %v32
  %v209 = vpack.c.b16 %v185, %v177
  %v210 = vpack.c.b16 %v186, %v178
  %v211 = vpack.c.b16 %v187, %v179
  %v212 = vpack.c.b16 %v188, %v180
  %v213 = vpack.c.b16 %v189, %v181
  %v214 = vpack.c.b16 %v190, %v182
  %v215 = vpack.c.b16 %v191, %v183
  %v216 = vpack.c.b16 %v192, %v184
  %v217 = vpack.c.b16 %v201, %v193
  %v218 = vpack.c.b16 %v202, %v194
  %v219 = vpack.c.b16 %v203, %v195
  %v220 = vpack.c.b16 %v204, %v196
  %v221 = vpack.c.b16 %v205, %v197
  %v222 = vpack.c.b16 %v206, %v198
  %v223 = vpack.c.b16 %v207, %v199
  %v224 = vpack.c.b16 %v208, %v200
  %v369 = vunpack.c.l.b16 %v33
  %v370 = vunpack.c.l.b16 %v34
  %v371 = vunpack.c.l.b16 %v35
  %v372 = vunpack.c.l.b16 %v36
  %v373 = vunpack.c.l.b16 %v37
  %v374 = vunpack.c.l.b16 %v38
  %v375 = vunpack.c.l.b16 %v39
  %v376 = vunpack.c.l.b16 %v40
  %v377 = vunpack.c.l.b16 %v41
  %v378 = vunpack.c.l.b16 %v42
  %v379 = vunpack.c.l.b16 %v43
  %v380 = vunpack.c.l.b16 %v44
  %v381 = vunpack.c.l.b16 %v45
  %v382 = vunpack.c.l.b16 %v46
  %v383 = vunpack.c.l.b16 %v47
  %v384 = vunpack.c.l.b16 %v48
  %v385 = vunpack.c.l.b16 %v49
  %v386 = vunpack.c.l.b16 %v50
  %v387 = vunpack.c.l.b16 %v51
  %v388 = vunpack.c.l.b16 %v52
  %v389 = vunpack.c.l.b16 %v53
  %v390 = vunpack.c.l.b16 %v54
  %v391 = vunpack.c.l.b16 %v55
  %v392 = vunpack.c.l.b16 %v56
  %v393 = vunpack.c.l.b16 %v57
  %v394 = vunpack.c.l.b16 %v58
  %v395 = vunpack.c.l.b16 %v59
  %v396 = vunpack.c.l.b16 %v60
  %v397 = vunpack.c.l.b16 %v61
  %v398 = vunpack.c.l.b16 %v62
  %v399 = vunpack.c.l.b16 %v63
  %v400 = vunpack.c.l.b16 %v64
  %v401 = vunpack.c.l.b16 %v65
  %v402 = vunpack.c.l.b16 %v66
  %v403 = vunpack.c.l.b16 %v67
  %v404 = vunpack.c.l.b16 %v68
  %v405 = vunpack.c.l.b16 %v69
  %v406 = vunpack.c.l.b16 %v70
  %v407 = vunpack.c.l.b16 %v71
  %v408 = vunpack.c.l.b16 %v72
  %v409 = vunpack.c.l.b16 %v73
  %v410 = vunpack.c.l.b16 %v74
  %v411 = vunpack.c.l.b16 %v75
  %v412 = vunpack.c.l.b16 %v76
  %v413 = vunpack.c.l.b16 %v77
  %v414 = vunpack.c.l.b16 %v78
  %v415 = vunpack.c.l.b16 %v79
  %v416 = vunpack.c.l.b16 %v80
  %v417 = vunpack.c.l.b16 %v81
  %v418 = vunpack.c.l.b16 %v82
  %v419 = vunpack.c.l.b16 %v83
  %v420 = vunpack.c.l.b16 %v84
  %v421 = vunpack.c.l.b16 %v85
  %v422 = vunpack.c.l.b16 %v86
  %v423 = vunpack.c.l.b16 %v87
  %v424 = vunpack.c.l.b16 %v88
  %v425 = vunpack.c.l.b16 %v89
  %v426 = vunpack.c.l.b16 %v90
  %v427 = vunpack.c.l.b16 %v91
  %v428 = vunpack.c.l.b16 %v92
  %v429 = vunpack.c.l.b16 %v93
  %v430 = vunpack.c.l.b16 %v94
  %v431 = vunpack.c.l.b16 %v95
  %v432 = vunpack.c.l.b16 %v96
  %v433 = vunpack.c.l.b16 %v97
  %v434 = vunpack.c.l.b16 %v98
  %v435 = vunpack.c.l.b16 %v99
  %v436 = vunpack.c.l.b16 %v100
  %v437 = vunpack.c.l.b16 %v101
  %v438 = vunpack.c.l.b16 %v102
  %v439 = vunpack.c.l.b16 %v103
  %v440 = vunpack.c.l.b16 %v104
  %v441 = vunpack.c.l.b16 %v105
  %v442 = vunpack.c.l.b16 %v106
  %v443 = vunpack.c.l.b16 %v107
  %v444 = vunpack.c.l.b16 %v108
  %v445 = vunpack.c.l.b16 %v109
  %v446 = vunpack.c.l.b16 %v110
  %v447 = vunpack.c.l.b16 %v111
  %v448 = vunpack.c.l.b16 %v112
  %v449 = vunpack.c.l.b16 %v113
  %v450 = vunpack.c.l.b16 %v114
  %v451 = vunpack.c.l.b16 %v115
  %v452 = vunpack.c.l.b16 %v116
  %v453 = vunpack.c.l.b16 %v117
  %v454 = vunpack.c.l.b16 %v118
  %v455 = vunpack.c.l.b16 %v119
  %v456 = vunpack.c.l.b16 %v120
  %v457 = vunpack.c.l.b16 %v121
  %v458 = vunpack.c.l.b16 %v122
  %v459 = vunpack.c.l.b16 %v123
  %v460 = vunpack.c.l.b16 %v124
  %v461 = vunpack.c.l.b16 %v125
  %v462 = vunpack.c.l.b16 %v126
  %v463 = vunpack.c.l.b16 %v127
  %v464 = vunpack.c.l.b16 %v128
  %v465 = vunpack.c.l.b16 %v129
  %v466 = vunpack.c.l.b16 %v130
  %v467 = vunpack.c.l.b16 %v131
  %v468 = vunpack.c.l.b16 %v132
  %v469 = vunpack.c.l.b16 %v133
  %v470 = vunpack.c.l.b16 %v134
  %v471 = vunpack.c.l.b16 %v135
  %v472 = vunpack.c.l.b16 %v136
  %v473 = vunpack.c.l.b16 %v137
  %v474 = vunpack.c.l.b16 %v138
  %v475 = vunpack.c.l.b16 %v139
  %v476 = vunpack.c.l.b16 %v140
  %v477 = vunpack.c.l.b16 %v141
  %v478 = vunpack.c.l.b16 %v142
  %v479 = vunpack.c.l.b16 %v143
  %v480 = vunpack.c.l.b16 %v144
  %v481 = vunpack.c.l.b16 %v145
  %v482 = vunpack.c.l.b16 %v146
  %v483 = vunpack.c.l.b16 %v147
  %v484 = vunpack.c.l.b16 %v148
  %v485 = vunpack.c.l.b16 %v149
  %v486 = vunpack.c.l.b16 %v150
  %v487 = vunpack.c.l.b16 %v151
  %v488 = vunpack.c.l.b16 %v152
  %v489 = vunpack.c.l.b16 %v153
  %v490 = vunpack.c.l.b16 %v154
  %v491 = vunpack.c.l.b16 %v155
  %v492 = vunpack.c.l.b16 %v156
  %v493 = vunpack.c.l.b16 %v157
  %v494 = vunpack.c.l.b16 %v158
  %v495 = vunpack.c.l.b16 %v159
  %v496 = vunpack.c.l.b16 %v160
  %v497 = vpack.c.b16 %v370, %v369
  %v498 = vpack.c.b16 %v372, %v371
  %v499 = vpack.c.b16 %v374, %v373
  %v500 = vpack.c.b16 %v376, %v375
  %v501 = vpack.c.b16 %v378, %v377
  %v502 = vpack.c.b16 %v380, %v379
  %v503 = vpack.c.b16 %v382, %v381
  %v504 = vpack.c.b16 %v384, %v383
  %v505 = vpack.c.b16 %v386, %v385
  %v506 = vpack.c.b16 %v388, %v387
  %v507 = vpack.c.b16 %v390, %v389
  %v508 = vpack.c.b16 %v392, %v391
  %v509 = vpack.c.b16 %v394, %v393
  %v510 = vpack.c.b16 %v396, %v395
  %v511 = vpack.c.b16 %v398, %v397
  %v512 = vpack.c.b16 %v400, %v399
  %v513 = vpack.c.b16 %v402, %v401
  %v514 = vpack.c.b16 %v404, %v403
  %v515 = vpack.c.b16 %v406, %v405
  %v516 = vpack.c.b16 %v408, %v407
  %v517 = vpack.c.b16 %v410, %v409
  %v518 = vpack.c.b16 %v412, %v411
  %v519 = vpack.c.b16 %v414, %v413
  %v520 = vpack.c.b16 %v416, %v415
  %v521 = vpack.c.b16 %v418, %v417
  %v522 = vpack.c.b16 %v420, %v419
  %v523 = vpack.c.b16 %v422, %v421
  %v524 = vpack.c.b16 %v424, %v423
  %v525 = vpack.c.b16 %v426, %v425
  %v526 = vpack.c.b16 %v428, %v427
  %v527 = vpack.c.b16 %v430, %v429
  %v528 = vpack.c.b16 %v432, %v431
  %v529 = vpack.c.b16 %v434, %v433
  %v530 = vpack.c.b16 %v436, %v435
  %v531 = vpack.c.b16 %v438, %v437
  %v532 = vpack.c.b16 %v440, %v439
  %v533 = vpack.c.b16 %v442, %v441
  %v534 = vpack.c.b16 %v444, %v443
  %v535 = vpack.c.b16 %v446, %v445
  %v536 = vpack.c.b16 %v448, %v447
  %v537 = vpack.c.b16 %v450, %v449
  %v538 = vpack.c.b16 %v452, %v451
  %v539 = vpack.c.b16 %v454, %v453
  %v540 = vpack.c.b16 %v456, %v455
  %v541 = vpack.c.b16 %v458, %v457
  %v542 = vpack.c.b16 %v460, %v459
  %v543 = vpack.c.b16 %v462, %v461
  %v544 = vpack.c.b16 %v464, %v463
  %v545 = vpack.c.b16 %v466, %v465
  %v546 = vpack.c.b16 %v468, %v467
  %v547 = vpack.c.b16 %v470, %v469
  %v548 = vpack.c.b16 %v472, %v471
  %v549 = vpack.c.b16 %v474, %v473
  %v550 = vpack.c.b16 %v476, %v475
  %v551 = vpack.c.b16 %v478, %v477
  %v552 = vpack.c.b16 %v480, %v479
  %v553 = vpack.c.b16 %v482, %v481
  %v554 = vpack.c.b16 %v484, %v483
  %v555 = vpack.c.b16 %v486, %v485
  %v556 = vpack.c.b16 %v488, %v487
  %v557 = vpack.c.b16 %v490, %v489
  %v558 = vpack.c.b16 %v492, %v491
  %v559 = vpack.c.b16 %v494, %v493
  %v560 = vpack.c.b16 %v496, %v495
  %625 = vmatpush.bf16.msra.mxu0 %v504
  %626 = vmatpush.bf16.msra.mxu0 %v503
  %627 = vmatpush.bf16.msra.mxu0 %v502
  %628 = vmatpush.bf16.msra.mxu0 %v501
  %629 = vmatpush.bf16.msra.mxu0 %v500
  %630 = vmatpush.bf16.msra.mxu0 %v499
  %631 = vmatpush.bf16.msra.mxu0 %v498
  %632 = vmatpush.bf16.msra.mxu0 %v497
  %633 = vmatmul.bf16.gmra.mxu0 %v209
  %v634 = vpop.f32.mrf.mxu0
  %v635 = vadd.f32 0.0, %v634
  %v636 = vpop.f32.mrf.mxu0
  %v637 = vadd.f32 0.0, %v636
  %638 = vmatmul.bf16.gmra.mxu0 %v217
  %v639 = vpop.f32.mrf.mxu0
  %v640 = vadd.f32 0.0, %v639
  %v641 = vpop.f32.mrf.mxu0
  %v642 = vadd.f32 0.0, %v641
  %643 = vdwg.mxu0
  %644 = vmatpush.bf16.msra.mxu0 %v512
  %645 = vmatpush.bf16.msra.mxu0 %v511
  %646 = vmatpush.bf16.msra.mxu0 %v510
  %647 = vmatpush.bf16.msra.mxu0 %v509
  %648 = vmatpush.bf16.msra.mxu0 %v508
  %649 = vmatpush.bf16.msra.mxu0 %v507
  %650 = vmatpush.bf16.msra.mxu0 %v506
  %651 = vmatpush.bf16.msra.mxu0 %v505
  %652 = vmatmul.bf16.gmra.mxu0 %v210
  %v653 = vpop.f32.mrf.mxu0
  %v654 = vadd.f32 %v635, %v653
  %v655 = vpop.f32.mrf.mxu0
  %v656 = vadd.f32 %v637, %v655
  %657 = vmatmul.bf16.gmra.mxu0 %v218
  %v658 = vpop.f32.mrf.mxu0
  %v659 = vadd.f32 %v640, %v658
  %v660 = vpop.f32.mrf.mxu0
  %v661 = vadd.f32 %v642, %v660
  %662 = vdwg.mxu0
  %663 = vmatpush.bf16.msra.mxu0 %v520
  %664 = vmatpush.bf16.msra.mxu0 %v519
  %665 = vmatpush.bf16.msra.mxu0 %v518
  %666 = vmatpush.bf16.msra.mxu0 %v517
  %667 = vmatpush.bf16.msra.mxu0 %v516
  %668 = vmatpush.bf16.msra.mxu0 %v515
  %669 = vmatpush.bf16.msra.mxu0 %v514
  %670 = vmatpush.bf16.msra.mxu0 %v513
  %671 = vmatmul.bf16.gmra.mxu0 %v211
  %v672 = vpop.f32.mrf.mxu0
  %v673 = vadd.f32 %v654, %v672
  %v674 = vpop.f32.mrf.mxu0
  %v675 = vadd.f32 %v656, %v674
  %676 = vmatmul.bf16.gmra.mxu0 %v219
  %v677 = vpop.f32.mrf.mxu0
  %v678 = vadd.f32 %v659, %v677
  %v679 = vpop.f32.mrf.mxu0
  %v680 = vadd.f32 %v661, %v679
  %681 = vdwg.mxu0
  %682 = vmatpush.bf16.msra.mxu0 %v528
  %683 = vmatpush.bf16.msra.mxu0 %v527
  %684 = vmatpush.bf16.msra.mxu0 %v526
  %685 = vmatpush.bf16.msra.mxu0 %v525
  %686 = vmatpush.bf16.msra.mxu0 %v524
  %687 = vmatpush.bf16.msra.mxu0 %v523
  %688 = vmatpush.bf16.msra.mxu0 %v522
  %689 = vmatpush.bf16.msra.mxu0 %v521
  %690 = vmatmul.bf16.gmra.mxu0 %v212
  %v691 = vpop.f32.mrf.mxu0
  %v692 = vadd.f32 %v673, %v691
  %v693 = vpop.f32.mrf.mxu0
  %v694 = vadd.f32 %v675, %v693
  %695 = vmatmul.bf16.gmra.mxu0 %v220
  %v696 = vpop.f32.mrf.mxu0
  %v697 = vadd.f32 %v678, %v696
  %v698 = vpop.f32.mrf.mxu0
  %v699 = vadd.f32 %v680, %v698
  %700 = vdwg.mxu0
  %701 = vmatpush.bf16.msra.mxu0 %v536
  %702 = vmatpush.bf16.msra.mxu0 %v535
  %703 = vmatpush.bf16.msra.mxu0 %v534
  %704 = vmatpush.bf16.msra.mxu0 %v533
  %705 = vmatpush.bf16.msra.mxu0 %v532
  %706 = vmatpush.bf16.msra.mxu0 %v531
  %707 = vmatpush.bf16.msra.mxu0 %v530
  %708 = vmatpush.bf16.msra.mxu0 %v529
  %709 = vmatmul.bf16.gmra.mxu0 %v213
  %v710 = vpop.f32.mrf.mxu0
  %v711 = vadd.f32 %v692, %v710
  %v712 = vpop.f32.mrf.mxu0
  %v713 = vadd.f32 %v694, %v712
  %714 = vmatmul.bf16.gmra.mxu0 %v221
  %v715 = vpop.f32.mrf.mxu0
  %v716 = vadd.f32 %v697, %v715
  %v717 = vpop.f32.mrf.mxu0
  %v718 = vadd.f32 %v699, %v717
  %719 = vdwg.mxu0
  %720 = vmatpush.bf16.msra.mxu0 %v544
  %721 = vmatpush.bf16.msra.mxu0 %v543
  %722 = vmatpush.bf16.msra.mxu0 %v542
  %723 = vmatpush.bf16.msra.mxu0 %v541
  %724 = vmatpush.bf16.msra.mxu0 %v540
  %725 = vmatpush.bf16.msra.mxu0 %v539
  %726 = vmatpush.bf16.msra.mxu0 %v538
  %727 = vmatpush.bf16.msra.mxu0 %v537
  %728 = vmatmul.bf16.gmra.mxu0 %v214
  %v729 = vpop.f32.mrf.mxu0
  %v730 = vadd.f32 %v711, %v729
  %v731 = vpop.f32.mrf.mxu0
  %v732 = vadd.f32 %v713, %v731
  %733 = vmatmul.bf16.gmra.mxu0 %v222
  %v734 = vpop.f32.mrf.mxu0
  %v735 = vadd.f32 %v716, %v734
  %v736 = vpop.f32.mrf.mxu0
  %v737 = vadd.f32 %v718, %v736
  %738 = vdwg.mxu0
  %739 = vmatpush.bf16.msra.mxu0 %v552
  %740 = vmatpush.bf16.msra.mxu0 %v551
  %741 = vmatpush.bf16.msra.mxu0 %v550
  %742 = vmatpush.bf16.msra.mxu0 %v549
  %743 = vmatpush.bf16.msra.mxu0 %v548
  %744 = vmatpush.bf16.msra.mxu0 %v547
  %745 = vmatpush.bf16.msra.mxu0 %v546
  %746 = vmatpush.bf16.msra.mxu0 %v545
  %747 = vmatmul.bf16.gmra.mxu0 %v215
  %v748 = vpop.f32.mrf.mxu0
  %v749 = vadd.f32 %v730, %v748
  %v750 = vpop.f32.mrf.mxu0
  %v751 = vadd.f32 %v732, %v750
  %752 = vmatmul.bf16.gmra.mxu0 %v223
  %v753 = vpop.f32.mrf.mxu0
  %v754 = vadd.f32 %v735, %v753
  %v755 = vpop.f32.mrf.mxu0
  %v756 = vadd.f32 %v737, %v755
  %757 = vdwg.mxu0
  %758 = vmatpush.bf16.msra.mxu0 %v560
  %759 = vmatpush.bf16.msra.mxu0 %v559
  %760 = vmatpush.bf16.msra.mxu0 %v558
  %761 = vmatpush.bf16.msra.mxu0 %v557
  %762 = vmatpush.bf16.msra.mxu0 %v556
  %763 = vmatpush.bf16.msra.mxu0 %v555
  %764 = vmatpush.bf16.msra.mxu0 %v554
  %765 = vmatpush.bf16.msra.mxu0 %v553
  %766 = vmatmul.bf16.gmra.mxu0 %v216
  %v767 = vpop.f32.mrf.mxu0
  %v768 = vadd.f32 %v749, %v767
  %v769 = vpop.f32.mrf.mxu0
  %v770 = vadd.f32 %v751, %v769
  %771 = vmatmul.bf16.gmra.mxu0 %v224
  %v772 = vpop.f32.mrf.mxu0
  %v773 = vadd.f32 %v754, %v772
  %v774 = vpop.f32.mrf.mxu0
  %v775 = vadd.f32 %v756, %v774
  %776 = vdwg.mxu0
  %v777 = vadd.f32 %v768, %v770
  %v778 = vadd.f32 %v777, %v773
  %v779 = vadd.f32 %v778, %v775
  %v780 = vrot.slane %v779, 4
  %v781 = vadd.f32 %v779, %v780
  %v782 = vrot.slane %v781, 2
  %v783 = vadd.f32 %v781, %v782
  %v784 = vrot.slane %v783, 1
  %v785 = vadd.f32 %v783, %v784
  %v786 = vmul.f32 %v768, %v768
  %v787 = vmul.f32 %v770, %v770
  %v788 = vmul.f32 %v773, %v773
  %v789 = vmul.f32 %v775, %v775
  %v790 = vadd.f32 %v786, %v787
  %v791 = vadd.f32 %v790, %v788
  %v792 = vadd.f32 %v791, %v789
  %v793 = vrot.slane %v792, 4
  %v794 = vadd.f32 %v792, %v793
  %v795 = vrot.slane %v794, 2
  %v796 = vadd.f32 %v794, %v795
  %v797 = vrot.slane %v796, 1
  %v798 = vadd.f32 %v796, %v797
  %v799 = vmul.f32 %v785, 0.03125
  %v800 = vmul.f32 %v798, 0.03125
  %v801 = vmul.f32 %v799, %v799
  %v802 = vsub.f32 %v800, %v801
  %v803 = vmax.f32 %v802, 0.0
  %v804 = vld [vmem:[%s2] sm:$0x1]
  %v805 = vadd.f32 %v803, 1e-05
  %v806 = vrsqrt.pop %v805
  %v807 = vmul.f32 %v806, %v805
  %v808 = vmul.f32 %v807, %v806
  %v809 = vmul.f32 0.5, %v808
  %v810 = vsub.f32 1.5, %v809
  %v811 = vmul.f32 %v806, %v810
  %vm812 = vweird.f32 %v805
  %vm813 = vweird.f32 %v806
  %vm814 = vmor %vm812, %vm813
  %v815 = vsel %vm814, %v806, %v811
  %v816 = vmul.f32 %v804, %v815
  %v817 = vld [vmem:[%s3] sm:$0x1]
  %v818 = vmul.f32 %v799, %v816
  %v819 = vsub.f32 %v817, %v818
  %v821 = vperm.slane %v816, 0
  %v823 = vmul.f32 %v768, %v821
  %v824 = vmul.f32 %v770, %v821
  %v825 = vmul.f32 %v773, %v821
  %v826 = vmul.f32 %v775, %v821
  %v828 = vperm.slane %v819, 0
  %v830 = vadd.f32 %v823, %v828
  %v831 = vadd.f32 %v824, %v828
  %v832 = vadd.f32 %v825, %v828
  %v833 = vadd.f32 %v826, %v828
  %vm834 = vcmp.gt.f32.partialorder %v830, 0.0
  %vm835 = vcmp.gt.f32.partialorder %v831, 0.0
  %vm836 = vcmp.gt.f32.partialorder %v832, 0.0
  %vm837 = vcmp.gt.f32.partialorder %v833, 0.0
  %v838 = vmul.f32 %v830, 0.2
  %v839 = vmul.f32 %v831, 0.2
  %v840 = vmul.f32 %v832, 0.2
  %v841 = vmul.f32 %v833, 0.2
  %v842 = vsel %vm834, %v830, %v838
  %v843 = vsel %vm835, %v831, %v839
  %v844 = vsel %vm836, %v832, %v840
  %v845 = vsel %vm837, %v833, %v841
  %v846 = vpack.c.bf16 %v842, %v842
  %v847 = vpack.c.bf16 %v843, %v843
  %v848 = vpack.c.bf16 %v844, %v844
  %v849 = vpack.c.bf16 %v845, %v845
  %850 = vst [vmem:[%s4] sm:$0xf] %v846
  %851 = vst [vmem:[%s4 + $0x4] sm:$0xf] %v847
  %852 = vst [vmem:[%s4 + $0x8] sm:$0xf] %v848
  %853 = vst [vmem:[%s4 + $0xc] sm:$0xf] %v849
  // Predicated region
  $region18: #{discriminator_forward.7} parent=0 // pred_check
    _
  $region19: #{discriminator_forward.7} parent=0 // pred_check_branch
    %855 = sbr.rel (0) target = $region21
  $region20: #{discriminator_forward.7} parent=0 // pred_region
    _
  $region21: #{discriminator_forward.7} parent=0 // pred_fallthru
    _
  // Predicated region
  $region22: #{discriminator_forward.7} parent=0 // pred_check
    _
  $region23: #{discriminator_forward.7} parent=0 // pred_check_branch
    %857 = sbr.rel (0) target = $region25
  $region24: #{discriminator_forward.7} parent=0 // pred_region
    _
  $region25: #{discriminator_forward.7} parent=0 // pred_fallthru
    _

// kernel: discriminator_forward.8
$region0: #{discriminator_forward.8}
  #allocation0 [shape = 'u32[]', space=smem, size = 0x4, offset = 0x4, fixed_abs, tag = 'smem constant byte address 0x4 - core index']
  #allocation1 [shape = 'u32[72,128]{1,0:T(1,128)}', space=vmem, size = 0x9000, scoped, tag = 'internal scratch']
  %s0 = inlined_call_operand.vmem [shape: bf16[32,2048], index: 0, kind: input, shape index: {}]
  %s1 = inlined_call_operand.vmem [shape: bf16[2048,256], index: 1, kind: input, shape index: {}]
  %s2 = inlined_call_operand.vmem [shape: f32[1,256], index: 2, kind: input, shape index: {}]
  %s3 = inlined_call_operand.vmem [shape: f32[1,256], index: 3, kind: input, shape index: {}]
  %s4 = inlined_call_operand.vmem [shape: bf16[32,256], index: 4, kind: output, shape index: {}]
  %s5 = sld [smem:[#allocation0]]
  $region138: #{discriminator_forward.8} parent=0
    _
  %s7 = ssub.s32 1, %s5
  %s8 = scalar_select 0, %s7, %s5
  $region1: #{discriminator_forward.8} parent=0
    #allocation2 [shape = 'u8[1048576]{0}', space=vmem, size = 0x100000, scoped, tag = 'input window, operand 1']
    #allocation3 [shape = 'u8[16384]{0}', space=vmem, size = 0x4000, scoped, tag = 'output window, operand 0']
    loop: start=0, step=1, limit=4
    $region2: #{discriminator_forward.8} parent=1 // loop_pre_header
      _
    $region3: #{discriminator_forward.8} parent=1 // loop_header
      %s10 = sphi 0, %s14
      %p11 = scmp.ge.s32.totalorder %s10, 4
      %s18 = sphi 0, %s18
      %s20 = sphi 0, %s18
      %s21 = sphi 0, %s20
      %s35 = sphi 0, %s21
      %s41 = sphi 0, %s43
      %s44 = sphi 0, %s41
      %s45 = sphi 0, %s44
      %s61 = sphi 0, %s45
      %s67 = sphi 0, %s69
      %s70 = sphi 0, %s67
      %s71 = sphi 0, %s70
      %s87 = sphi 0, %s71
      %s93 = sphi 0, %s95
      %s96 = sphi 0, %s93
      %s97 = sphi 0, %s96
      %s113 = sphi 0, %s97
      %s119 = sphi 0, %s121
      %s122 = sphi 0, %s119
      %s123 = sphi 0, %s122
      %s139 = sphi 0, %s123
    $region4: #{discriminator_forward.8} parent=1 // loop_header_branch
      %13 = sbr.rel (%p11) target = $region8
    $region5: #{discriminator_forward.8} parent=1 // loop_body
      %s15 = ssub.s32 %s10, 1
      %s16 = ssub.s32 %s10, 2
      %s17 = sadd.s32 %s10, 1
      %s19 = sadd.s32 %s18, 1
      %p22 = scmp.eq.s32.totalorder %s10, 1
      %p23 = scmp.ne.s32.totalorder %s18, %s20
      %p24 = scmp.eq.s32.totalorder %s10, 0
      %p25 = por %p23, %p24
      %p26 = scmp.ne.s32.totalorder %s18, %s20
      %p27 = scmp.eq.s32.totalorder %s15, 1
      %p28 = por %p26, %p27
      %p29 = scmp.ne.s32.totalorder %s20, %s21
      %p30 = scmp.eq.s32.totalorder %s15, 0
      %p31 = por %p29, %p30
      %p32 = scmp.ne.s32.totalorder %s20, %s21
      %p33 = scmp.eq.s32.totalorder %s16, 1
      %p34 = por %p32, %p33
      %p36 = scmp.ne.s32.totalorder %s21, %s35
      %p37 = scmp.eq.s32.totalorder %s16, 0
      %p38 = por %p36, %p37
      %s39 = ssub.s32 %s10, %s17
      %p40 = scmp.eq.s32.totalorder %s39, 0
      %s42 = sadd.s32 %s41, 1
      %s43 = scalar_select %p40, %s41, %s42
      %p46 = pneg %p40
      %p47 = scmp.eq.s32.totalorder %s10, 1
      %p48 = por %p46, %p47
      %p49 = scmp.ne.s32.totalorder %s41, %s44
      %p50 = scmp.eq.s32.totalorder %s10, 0
      %p51 = por %p49, %p50
      %p52 = scmp.ne.s32.totalorder %s41, %s44
      %p53 = scmp.eq.s32.totalorder %s15, 1
      %p54 = por %p52, %p53
      %p55 = scmp.ne.s32.totalorder %s44, %s45
      %p56 = scmp.eq.s32.totalorder %s15, 0
      %p57 = por %p55, %p56
      %p58 = scmp.ne.s32.totalorder %s44, %s45
      %p59 = scmp.eq.s32.totalorder %s16, 1
      %p60 = por %p58, %p59
      %p62 = scmp.ne.s32.totalorder %s45, %s61
      %p63 = scmp.eq.s32.totalorder %s16, 0
      %p64 = por %p62, %p63
      %s65 = ssub.s32 %s10, %s17
      %p66 = scmp.eq.s32.totalorder %s65, 0
      %s68 = sadd.s32 %s67, 1
      %s69 = scalar_select %p66, %s67, %s68
      %p72 = pneg %p66
      %p73 = scmp.eq.s32.totalorder %s10, 1
      %p74 = por %p72, %p73
      %p75 = scmp.ne.s32.totalorder %s67, %s70
      %p76 = scmp.eq.s32.totalorder %s10, 0
      %p77 = por %p75, %p76
      %p78 = scmp.ne.s32.totalorder %s67, %s70
      %p79 = scmp.eq.s32.totalorder %s15, 1
      %p80 = por %p78, %p79
      %p81 = scmp.ne.s32.totalorder %s70, %s71
      %p82 = scmp.eq.s32.totalorder %s15, 0
      %p83 = por %p81, %p82
      %p84 = scmp.ne.s32.totalorder %s70, %s71
      %p85 = scmp.eq.s32.totalorder %s16, 1
      %p86 = por %p84, %p85
      %p88 = scmp.ne.s32.totalorder %s71, %s87
      %p89 = scmp.eq.s32.totalorder %s16, 0
      %p90 = por %p88, %p89
      %s91 = ssub.s32 %s10, %s17
      %p92 = scmp.eq.s32.totalorder %s91, 0
      %s94 = sadd.s32 %s93, 1
      %s95 = scalar_select %p92, %s93, %s94
      %p98 = pneg %p92
      %p99 = scmp.eq.s32.totalorder %s10, 1
      %p100 = por %p98, %p99
      %p101 = scmp.ne.s32.totalorder %s93, %s96
      %p102 = scmp.eq.s32.totalorder %s10, 0
      %p103 = por %p101, %p102
      %p104 = scmp.ne.s32.totalorder %s93, %s96
      %p105 = scmp.eq.s32.totalorder %s15, 1
      %p106 = por %p104, %p105
      %p107 = scmp.ne.s32.totalorder %s96, %s97
      %p108 = scmp.eq.s32.totalorder %s15, 0
      %p109 = por %p107, %p108
      %p110 = scmp.ne.s32.totalorder %s96, %s97
      %p111 = scmp.eq.s32.totalorder %s16, 1
      %p112 = por %p110, %p111
      %p114 = scmp.ne.s32.totalorder %s97, %s113
      %p115 = scmp.eq.s32.totalorder %s16, 0
      %p116 = por %p114, %p115
      %s117 = ssub.s32 %s10, %s17
      %p118 = scmp.eq.s32.totalorder %s117, 0
      %s120 = sadd.s32 %s119, 1
      %s121 = scalar_select %p118, %s119, %s120
      %p124 = pneg %p118
      %p125 = scmp.eq.s32.totalorder %s10, 1
      %p126 = por %p124, %p125
      %p127 = scmp.ne.s32.totalorder %s119, %s122
      %p128 = scmp.eq.s32.totalorder %s10, 0
      %p129 = por %p127, %p128
      %p130 = scmp.ne.s32.totalorder %s119, %s122
      %p131 = scmp.eq.s32.totalorder %s15, 1
      %p132 = por %p130, %p131
      %p133 = scmp.ne.s32.totalorder %s122, %s123
      %p134 = scmp.eq.s32.totalorder %s15, 0
      %p135 = por %p133, %p134
      %p136 = scmp.ne.s32.totalorder %s122, %s123
      %p137 = scmp.eq.s32.totalorder %s16, 1
      %p138 = por %p136, %p137
      %p140 = scmp.ne.s32.totalorder %s123, %s139
      %p141 = scmp.eq.s32.totalorder %s16, 0
      %p142 = por %p140, %p141
      %p143 = scmp.le.s32.totalorder 1, %s10
      %p144 = scmp.lt.s32.totalorder %s10, 3
      %p145 = pnand %p143, %p144
      %p146 = pneg %p145
      // Predicated region
      $region9: #{discriminator_forward.8} parent=5 // pred_check
        _
      $region10: #{discriminator_forward.8} parent=5 // pred_check_branch
        %148 = sbr.rel (%p145) target = $region12
      $region11: #{discriminator_forward.8} parent=5 // pred_region
        %s149 = ssub.s32 %s10, 1
        // Predicated region
        $region13: #{discriminator_forward.8} parent=11 // pred_check
          %p150 = pneg %p31
        $region14: #{discriminator_forward.8} parent=11 // pred_check_branch
          %152 = sbr.rel (%p150) target = $region16
        $region15: #{discriminator_forward.8} parent=11 // pred_region
          _
        $region16: #{discriminator_forward.8} parent=11 // pred_fallthru
          _
      $region12: #{discriminator_forward.8} parent=5 // pred_fallthru
        _
      %p153 = scmp.lt.s32.totalorder %s10, 2
      // Predicated region
      $region17: #{discriminator_forward.8} parent=5 // pred_check
        %p154 = pneg %p153
      $region18: #{discriminator_forward.8} parent=5 // pred_check_branch
        %156 = sbr.rel (%p154) target = $region20
      $region19: #{discriminator_forward.8} parent=5 // pred_region
        // Predicated region
        $region21: #{discriminator_forward.8} parent=19 // pred_check
          %p157 = pneg %p51
        $region22: #{discriminator_forward.8} parent=19 // pred_check_branch
          %159 = sbr.rel (%p157) target = $region24
        $region23: #{discriminator_forward.8} parent=19 // pred_region
          %s160 = sand.u32 %s41, 1
          %s161 = sand.u32 %s41, 1
          %s162 = smul.addr %s161, 1024
          %s163 = scalar_lea.vmem [#allocation2], %s162
          %s164 = smul.addr %s10, 4
          %s165 = scalar_lea.vmem %s1, %s164
          // Predicated region
          $region25: #{discriminator_forward.8} parent=23 // pred_check
            _
          $region26: #{discriminator_forward.8} parent=23 // pred_check_branch
            %167 = sbr.rel (0) target = $region28
          $region27: #{discriminator_forward.8} parent=23 // pred_region
            // Predicated region
            $region29: #{discriminator_forward.8} parent=27 // pred_check
              _
            $region30: #{discriminator_forward.8} parent=27 // pred_check_branch
              %169 = sbr.rel target = $region32
            $region31: #{discriminator_forward.8} parent=27 // pred_region
              // Predicated region
              $region44: #{discriminator_forward.8} parent=31 // pred_check
                _
              $region45: #{discriminator_forward.8} parent=31 // pred_check_branch
                %695 = sbr.rel target = $region47
              $region46: #{discriminator_forward.8} parent=31 // pred_region
                loop: start=0, step=1, limit=0
                $region48: #{discriminator_forward.8} parent=46 // loop_pre_header
                  _
                $region49: #{discriminator_forward.8} parent=46 // loop_header
                  %s697 = sphi 0, %s701
                  %p698 = scmp.ge.s32.totalorder %s697, 0
                  %s702 = sphi 0, %s1219
                  %s703 = sphi %s165, %s1222
                  %s704 = sphi %s163, %s1223
                $region50: #{discriminator_forward.8} parent=46 // loop_header_branch
                  %700 = sbr.rel (%p698) target = $region54
                $region51: #{discriminator_forward.8} parent=46 // loop_body
                  %v705 = vld [vmem:[%s703] sm:$0xff]
                  %706 = vst [vmem:[%s704] sm:$0xff] %v705
                  %v707 = vld [vmem:[%s703 + $0x8] sm:$0xff]
                  %708 = vst [vmem:[%s704 + $0x4] sm:$0xff] %v707
                  %v709 = vld [vmem:[%s703 + $0x10] sm:$0xff]
                  %710 = vst [vmem:[%s704 + $0x8] sm:$0xff] %v709
                  %v711 = vld [vmem:[%s703 + $0x18] sm:$0xff]
                  %712 = vst [vmem:[%s704 + $0xc] sm:$0xff] %v711
                  %v713 = vld [vmem:[%s703 + $0x20] sm:$0xff]
                  %714 = vst [vmem:[%s704 + $0x10] sm:$0xff] %v713
                  %v715 = vld [vmem:[%s703 + $0x28] sm:$0xff]
                  %716 = vst [vmem:[%s704 + $0x14] sm:$0xff] %v715
                  %v717 = vld [vmem:[%s703 + $0x30] sm:$0xff]
                  %718 = vst [vmem:[%s704 + $0x18] sm:$0xff] %v717
                  %v719 = vld [vmem:[%s703 + $0x38] sm:$0xff]
                  %720 = vst [vmem:[%s704 + $0x1c] sm:$0xff] %v719
                  %v721 = vld [vmem:[%s703 + $0x40] sm:$0xff]
                  %722 = vst [vmem:[%s704 + $0x20] sm:$0xff] %v721
                  %v723 = vld [vmem:[%s703 + $0x48] sm:$0xff]
                  %724 = vst [vmem:[%s704 + $0x24] sm:$0xff] %v723
                  %v725 = vld [vmem:[%s703 + $0x50] sm:$0xff]
                  %726 = vst [vmem:[%s704 + $0x28] sm:$0xff] %v725
                  %v727 = vld [vmem:[%s703 + $0x58] sm:$0xff]
                  %728 = vst [vmem:[%s704 + $0x2c] sm:$0xff] %v727
                  %v729 = vld [vmem:[%s703 + $0x60] sm:$0xff]
                  %730 = vst [vmem:[%s704 + $0x30] sm:$0xff] %v729
                  %v731 = vld [vmem:[%s703 + $0x68] sm:$0xff]
                  %732 = vst [vmem:[%s704 + $0x34] sm:$0xff] %v731
                  %v733 = vld [vmem:[%s703 + $0x70] sm:$0xff]
                  %734 = vst [vmem:[%s704 + $0x38] sm:$0xff] %v733
                  %v735 = vld [vmem:[%s703 + $0x78] sm:$0xff]
                  %736 = vst [vmem:[%s704 + $0x3c] sm:$0xff] %v735
                  %v737 = vld [vmem:[%s703 + $0x80] sm:$0xff]
                  %738 = vst [vmem:[%s704 + $0x40] sm:$0xff] %v737
                  %v739 = vld [vmem:[%s703 + $0x88] sm:$0xff]
                  %740 = vst [vmem:[%s704 + $0x44] sm:$0xff] %v739
                  %v741 = vld [vmem:[%s703 + $0x90] sm:$0xff]
                  %742 = vst [vmem:[%s704 + $0x48] sm:$0xff] %v741
                  %v743 = vld [vmem:[%s703 + $0x98] sm:$0xff]
                  %744 = vst [vmem:[%s704 + $0x4c] sm:$0xff] %v743
                  %v745 = vld [vmem:[%s703 + $0xa0] sm:$0xff]
                  %746 = vst [vmem:[%s704 + $0x50] sm:$0xff] %v745
                  %v747 = vld [vmem:[%s703 + $0xa8] sm:$0xff]
                  %748 = vst [vmem:[%s704 + $0x54] sm:$0xff] %v747
                  %v749 = vld [vmem:[%s703 + $0xb0] sm:$0xff]
                  %750 = vst [vmem:[%s704 + $0x58] sm:$0xff] %v749
                  %v751 = vld [vmem:[%s703 + $0xb8] sm:$0xff]
                  %752 = vst [vmem:[%s704 + $0x5c] sm:$0xff] %v751
                  %v753 = vld [vmem:[%s703 + $0xc0] sm:$0xff]
                  %754 = vst [vmem:[%s704 + $0x60] sm:$0xff] %v753
                  %v755 = vld [vmem:[%s703 + $0xc8] sm:$0xff]
                  %756 = vst [vmem:[%s704 + $0x64] sm:$0xff] %v755
                  %v757 = vld [vmem:[%s703 + $0xd0] sm:$0xff]
                  %758 = vst [vmem:[%s704 + $0x68] sm:$0xff] %v757
                  %v759 = vld [vmem:[%s703 + $0xd8] sm:$0xff]
                  %760 = vst [vmem:[%s704 + $0x6c] sm:$0xff] %v759
                  %v761 = vld [vmem:[%s703 + $0xe0] sm:$0xff]
                  %762 = vst [vmem:[%s704 + $0x70] sm:$0xff] %v761
                  %v763 = vld [vmem:[%s703 + $0xe8] sm:$0xff]
                  %764 = vst [vmem:[%s704 + $0x74] sm:$0xff] %v763
                  %v765 = vld [vmem:[%s703 + $0xf0] sm:$0xff]
                  %766 = vst [vmem:[%s704 + $0x78] sm:$0xff] %v765
                  %v767 = vld [vmem:[%s703 + $0xf8] sm:$0xff]
                  %768 = vst [vmem:[%s704 + $0x7c] sm:$0xff] %v767
                  %v769 = vld [vmem:[%s703 + $0x100] sm:$0xff]
                  %770 = vst [vmem:[%s704 + $0x80] sm:$0xff] %v769
                  %v771 = vld [vmem:[%s703 + $0x108] sm:$0xff]
                  %772 = vst [vmem:[%s704 + $0x84] sm:$0xff] %v771
                  %v773 = vld [vmem:[%s703 + $0x110] sm:$0xff]
                  %774 = vst [vmem:[%s704 + $0x88] sm:$0xff] %v773
                  %v775 = vld [vmem:[%s703 + $0x118] sm:$0xff]
                  %776 = vst [vmem:[%s704 + $0x8c] sm:$0xff] %v775
                  %v777 = vld [vmem:[%s703 + $0x120] sm:$0xff]
                  %778 = vst [vmem:[%s704 + $0x90] sm:$0xff] %v777
                  %v779 = vld [vmem:[%s703 + $0x128] sm:$0xff]
                  %780 = vst [vmem:[%s704 + $0x94] sm:$0xff] %v779
                  %v781 = vld [vmem:[%s703 + $0x130] sm:$0xff]
                  %782 = vst [vmem:[%s704 + $0x98] sm:$0xff] %v781
                  %v783 = vld [vmem:[%s703 + $0x138] sm:$0xff]
                  %784 = vst [vmem:[%s704 + $0x9c] sm:$0xff] %v783
                  %v785 = vld [vmem:[%s703 + $0x140] sm:$0xff]
                  %786 = vst [vmem:[%s704 + $0xa0] sm:$0xff] %v785
                  %v787 = vld [vmem:[%s703 + $0x148] sm:$0xff]
                  %788 = vst [vmem:[%s704 + $0xa4] sm:$0xff] %v787
                  %v789 = vld [vmem:[%s703 + $0x150] sm:$0xff]
                  %790 = vst [vmem:[%s704 + $0xa8] sm:$0xff] %v789
                  %v791 = vld [vmem:[%s703 + $0x158] sm:$0xff]
                  %792 = vst [vmem:[%s704 + $0xac] sm:$0xff] %v791
                  %v793 = vld [vmem:[%s703 + $0x160] sm:$0xff]
                  %794 = vst [vmem:[%s704 + $0xb0] sm:$0xff] %v793
                  %v795 = vld [vmem:[%s703 + $0x168] sm:$0xff]
                  %796 = vst [vmem:[%s704 + $0xb4] sm:$0xff] %v795
                  %v797 = vld [vmem:[%s703 + $0x170] sm:$0xff]
                  %798 = vst [vmem:[%s704 + $0xb8] sm:$0xff] %v797
                  %v799 = vld [vmem:[%s703 + $0x178] sm:$0xff]
                  %800 = vst [vmem:[%s704 + $0xbc] sm:$0xff] %v799
                  %v801 = vld [vmem:[%s703 + $0x180] sm:$0xff]
                  %802 = vst [vmem:[%s704 + $0xc0] sm:$0xff] %v801
                  %v803 = vld [vmem:[%s703 + $0x188] sm:$0xff]
                  %804 = vst [vmem:[%s704 + $0xc4] sm:$0xff] %v803
                  %v805 = vld [vmem:[%s703 + $0x190] sm:$0xff]
                  %806 = vst [vmem:[%s704 + $0xc8] sm:$0xff] %v805
                  %v807 = vld [vmem:[%s703 + $0x198] sm:$0xff]
                  %808 = vst [vmem:[%s704 + $0xcc] sm:$0xff] %v807
                  %v809 = vld [vmem:[%s703 + $0x1a0] sm:$0xff]
                  %810 = vst [vmem:[%s704 + $0xd0] sm:$0xff] %v809
                  %v811 = vld [vmem:[%s703 + $0x1a8] sm:$0xff]
                  %812 = vst [vmem:[%s704 + $0xd4] sm:$0xff] %v811
                  %v813 = vld [vmem:[%s703 + $0x1b0] sm:$0xff]
                  %814 = vst [vmem:[%s704 + $0xd8] sm:$0xff] %v813
                  %v815 = vld [vmem:[%s703 + $0x1b8] sm:$0xff]
                  %816 = vst [vmem:[%s704 + $0xdc] sm:$0xff] %v815
                  %v817 = vld [vmem:[%s703 + $0x1c0] sm:$0xff]
                  %818 = vst [vmem:[%s704 + $0xe0] sm:$0xff] %v817
                  %v819 = vld [vmem:[%s703 + $0x1c8] sm:$0xff]
                  %820 = vst [vmem:[%s704 + $0xe4] sm:$0xff] %v819
                  %v821 = vld [vmem:[%s703 + $0x1d0] sm:$0xff]
                  %822 = vst [vmem:[%s704 + $0xe8] sm:$0xff] %v821
                  %v823 = vld [vmem:[%s703 + $0x1d8] sm:$0xff]
                  %824 = vst [vmem:[%s704 + $0xec] sm:$0xff] %v823
                  %v825 = vld [vmem:[%s703 + $0x1e0] sm:$0xff]
                  %826 = vst [vmem:[%s704 + $0xf0] sm:$0xff] %v825
                  %v827 = vld [vmem:[%s703 + $0x1e8] sm:$0xff]
                  %828 = vst [vmem:[%s704 + $0xf4] sm:$0xff] %v827
                  %v829 = vld [vmem:[%s703 + $0x1f0] sm:$0xff]
                  %830 = vst [vmem:[%s704 + $0xf8] sm:$0xff] %v829
                  %v831 = vld [vmem:[%s703 + $0x1f8] sm:$0xff]
                  %832 = vst [vmem:[%s704 + $0xfc] sm:$0xff] %v831
                  %v833 = vld [vmem:[%s703 + $0x200] sm:$0xff]
                  %834 = vst [vmem:[%s704 + $0x100] sm:$0xff] %v833
                  %v835 = vld [vmem:[%s703 + $0x208] sm:$0xff]
                  %836 = vst [vmem:[%s704 + $0x104] sm:$0xff] %v835
                  %v837 = vld [vmem:[%s703 + $0x210] sm:$0xff]
                  %838 = vst [vmem:[%s704 + $0x108] sm:$0xff] %v837
                  %v839 = vld [vmem:[%s703 + $0x218] sm:$0xff]
                  %840 = vst [vmem:[%s704 + $0x10c] sm:$0xff] %v839
                  %v841 = vld [vmem:[%s703 + $0x220] sm:$0xff]
                  %842 = vst [vmem:[%s704 + $0x110] sm:$0xff] %v841
                  %v843 = vld [vmem:[%s703 + $0x228] sm:$0xff]
                  %844 = vst [vmem:[%s704 + $0x114] sm:$0xff] %v843
                  %v845 = vld [vmem:[%s703 + $0x230] sm:$0xff]
                  %846 = vst [vmem:[%s704 + $0x118] sm:$0xff] %v845
                  %v847 = vld [vmem:[%s703 + $0x238] sm:$0xff]
                  %848 = vst [vmem:[%s704 + $0x11c] sm:$0xff] %v847
                  %v849 = vld [vmem:[%s703 + $0x240] sm:$0xff]
                  %850 = vst [vmem:[%s704 + $0x120] sm:$0xff] %v849
                  %v851 = vld [vmem:[%s703 + $0x248] sm:$0xff]
                  %852 = vst [vmem:[%s704 + $0x124] sm:$0xff] %v851
                  %v853 = vld [vmem:[%s703 + $0x250] sm:$0xff]
                  %854 = vst [vmem:[%s704 + $0x128] sm:$0xff] %v853
                  %v855 = vld [vmem:[%s703 + $0x258] sm:$0xff]
                  %856 = vst [vmem:[%s704 + $0x12c] sm:$0xff] %v855
                  %v857 = vld [vmem:[%s703 + $0x260] sm:$0xff]
                  %858 = vst [vmem:[%s704 + $0x130] sm:$0xff] %v857
                  %v859 = vld [vmem:[%s703 + $0x268] sm:$0xff]
                  %860 = vst [vmem:[%s704 + $0x134] sm:$0xff] %v859
                  %v861 = vld [vmem:[%s703 + $0x270] sm:$0xff]
                  %862 = vst [vmem:[%s704 + $0x138] sm:$0xff] %v861
                  %v863 = vld [vmem:[%s703 + $0x278] sm:$0xff]
                  %864 = vst [vmem:[%s704 + $0x13c] sm:$0xff] %v863
                  %v865 = vld [vmem:[%s703 + $0x280] sm:$0xff]
                  %866 = vst [vmem:[%s704 + $0x140] sm:$0xff] %v865
                  %v867 = vld [vmem:[%s703 + $0x288] sm:$0xff]
                  %868 = vst [vmem:[%s704 + $0x144] sm:$0xff] %v867
                  %v869 = vld [vmem:[%s703 + $0x290] sm:$0xff]
                  %870 = vst [vmem:[%s704 + $0x148] sm:$0xff] %v869
                  %v871 = vld [vmem:[%s703 + $0x298] sm:$0xff]
                  %872 = vst [vmem:[%s704 + $0x14c] sm:$0xff] %v871
                  %v873 = vld [vmem:[%s703 + $0x2a0] sm:$0xff]
                  %874 = vst [vmem:[%s704 + $0x150] sm:$0xff] %v873
                  %v875 = vld [vmem:[%s703 + $0x2a8] sm:$0xff]
                  %876 = vst [vmem:[%s704 + $0x154] sm:$0xff] %v875
                  %v877 = vld [vmem:[%s703 + $0x2b0] sm:$0xff]
                  %878 = vst [vmem:[%s704 + $0x158] sm:$0xff] %v877
                  %v879 = vld [vmem:[%s703 + $0x2b8] sm:$0xff]
                  %880 = vst [vmem:[%s704 + $0x15c] sm:$0xff] %v879
                  %v881 = vld [vmem:[%s703 + $0x2c0] sm:$0xff]
                  %882 = vst [vmem:[%s704 + $0x160] sm:$0xff] %v881
                  %v883 = vld [vmem:[%s703 + $0x2c8] sm:$0xff]
                  %884 = vst [vmem:[%s704 + $0x164] sm:$0xff] %v883
                  %v885 = vld [vmem:[%s703 + $0x2d0] sm:$0xff]
                  %886 = vst [vmem:[%s704 + $0x168] sm:$0xff] %v885
                  %v887 = vld [vmem:[%s703 + $0x2d8] sm:$0xff]
                  %888 = vst [vmem:[%s704 + $0x16c] sm:$0xff] %v887
                  %v889 = vld [vmem:[%s703 + $0x2e0] sm:$0xff]
                  %890 = vst [vmem:[%s704 + $0x170] sm:$0xff] %v889
                  %v891 = vld [vmem:[%s703 + $0x2e8] sm:$0xff]
                  %892 = vst [vmem:[%s704 + $0x174] sm:$0xff] %v891
                  %v893 = vld [vmem:[%s703 + $0x2f0] sm:$0xff]
                  %894 = vst [vmem:[%s704 + $0x178] sm:$0xff] %v893
                  %v895 = vld [vmem:[%s703 + $0x2f8] sm:$0xff]
                  %896 = vst [vmem:[%s704 + $0x17c] sm:$0xff] %v895
                  %v897 = vld [vmem:[%s703 + $0x300] sm:$0xff]
                  %898 = vst [vmem:[%s704 + $0x180] sm:$0xff] %v897
                  %v899 = vld [vmem:[%s703 + $0x308] sm:$0xff]
                  %900 = vst [vmem:[%s704 + $0x184] sm:$0xff] %v899
                  %v901 = vld [vmem:[%s703 + $0x310] sm:$0xff]
                  %902 = vst [vmem:[%s704 + $0x188] sm:$0xff] %v901
                  %v903 = vld [vmem:[%s703 + $0x318] sm:$0xff]
                  %904 = vst [vmem:[%s704 + $0x18c] sm:$0xff] %v903
                  %v905 = vld [vmem:[%s703 + $0x320] sm:$0xff]
                  %906 = vst [vmem:[%s704 + $0x190] sm:$0xff] %v905
                  %v907 = vld [vmem:[%s703 + $0x328] sm:$0xff]
                  %908 = vst [vmem:[%s704 + $0x194] sm:$0xff] %v907
                  %v909 = vld [vmem:[%s703 + $0x330] sm:$0xff]
                  %910 = vst [vmem:[%s704 + $0x198] sm:$0xff] %v909
                  %v911 = vld [vmem:[%s703 + $0x338] sm:$0xff]
                  %912 = vst [vmem:[%s704 + $0x19c] sm:$0xff] %v911
                  %v913 = vld [vmem:[%s703 + $0x340] sm:$0xff]
                  %914 = vst [vmem:[%s704 + $0x1a0] sm:$0xff] %v913
                  %v915 = vld [vmem:[%s703 + $0x348] sm:$0xff]
                  %916 = vst [vmem:[%s704 + $0x1a4] sm:$0xff] %v915
                  %v917 = vld [vmem:[%s703 + $0x350] sm:$0xff]
                  %918 = vst [vmem:[%s704 + $0x1a8] sm:$0xff] %v917
                  %v919 = vld [vmem:[%s703 + $0x358] sm:$0xff]
                  %920 = vst [vmem:[%s704 + $0x1ac] sm:$0xff] %v919
                  %v921 = vld [vmem:[%s703 + $0x360] sm:$0xff]
                  %922 = vst [vmem:[%s704 + $0x1b0] sm:$0xff] %v921
                  %v923 = vld [vmem:[%s703 + $0x368] sm:$0xff]
                  %924 = vst [vmem:[%s704 + $0x1b4] sm:$0xff] %v923
                  %v925 = vld [vmem:[%s703 + $0x370] sm:$0xff]
                  %926 = vst [vmem:[%s704 + $0x1b8] sm:$0xff] %v925
                  %v927 = vld [vmem:[%s703 + $0x378] sm:$0xff]
                  %928 = vst [vmem:[%s704 + $0x1bc] sm:$0xff] %v927
                  %v929 = vld [vmem:[%s703 + $0x380] sm:$0xff]
                  %930 = vst [vmem:[%s704 + $0x1c0] sm:$0xff] %v929
                  %v931 = vld [vmem:[%s703 + $0x388] sm:$0xff]
                  %932 = vst [vmem:[%s704 + $0x1c4] sm:$0xff] %v931
                  %v933 = vld [vmem:[%s703 + $0x390] sm:$0xff]
                  %934 = vst [vmem:[%s704 + $0x1c8] sm:$0xff] %v933
                  %v935 = vld [vmem:[%s703 + $0x398] sm:$0xff]
                  %936 = vst [vmem:[%s704 + $0x1cc] sm:$0xff] %v935
                  %v937 = vld [vmem:[%s703 + $0x3a0] sm:$0xff]
                  %938 = vst [vmem:[%s704 + $0x1d0] sm:$0xff] %v937
                  %v939 = vld [vmem:[%s703 + $0x3a8] sm:$0xff]
                  %940 = vst [vmem:[%s704 + $0x1d4] sm:$0xff] %v939
                  %v941 = vld [vmem:[%s703 + $0x3b0] sm:$0xff]
                  %942 = vst [vmem:[%s704 + $0x1d8] sm:$0xff] %v941
                  %v943 = vld [vmem:[%s703 + $0x3b8] sm:$0xff]
                  %944 = vst [vmem:[%s704 + $0x1dc] sm:$0xff] %v943
                  %v945 = vld [vmem:[%s703 + $0x3c0] sm:$0xff]
                  %946 = vst [vmem:[%s704 + $0x1e0] sm:$0xff] %v945
                  %v947 = vld [vmem:[%s703 + $0x3c8] sm:$0xff]
                  %948 = vst [vmem:[%s704 + $0x1e4] sm:$0xff] %v947
                  %v949 = vld [vmem:[%s703 + $0x3d0] sm:$0xff]
                  %950 = vst [vmem:[%s704 + $0x1e8] sm:$0xff] %v949
                  %v951 = vld [vmem:[%s703 + $0x3d8] sm:$0xff]
                  %952 = vst [vmem:[%s704 + $0x1ec] sm:$0xff] %v951
                  %v953 = vld [vmem:[%s703 + $0x3e0] sm:$0xff]
                  %954 = vst [vmem:[%s704 + $0x1f0] sm:$0xff] %v953
                  %v955 = vld [vmem:[%s703 + $0x3e8] sm:$0xff]
                  %956 = vst [vmem:[%s704 + $0x1f4] sm:$0xff] %v955
                  %v957 = vld [vmem:[%s703 + $0x3f0] sm:$0xff]
                  %958 = vst [vmem:[%s704 + $0x1f8] sm:$0xff] %v957
                  %v959 = vld [vmem:[%s703 + $0x3f8] sm:$0xff]
                  %960 = vst [vmem:[%s704 + $0x1fc] sm:$0xff] %v959
                  %v961 = vld [vmem:[%s703 + $0x400] sm:$0xff]
                  %962 = vst [vmem:[%s704 + $0x200] sm:$0xff] %v961
                  %v963 = vld [vmem:[%s703 + $0x408] sm:$0xff]
                  %964 = vst [vmem:[%s704 + $0x204] sm:$0xff] %v963
                  %v965 = vld [vmem:[%s703 + $0x410] sm:$0xff]
                  %966 = vst [vmem:[%s704 + $0x208] sm:$0xff] %v965
                  %v967 = vld [vmem:[%s703 + $0x418] sm:$0xff]
                  %968 = vst [vmem:[%s704 + $0x20c] sm:$0xff] %v967
                  %v969 = vld [vmem:[%s703 + $0x420] sm:$0xff]
                  %970 = vst [vmem:[%s704 + $0x210] sm:$0xff] %v969
                  %v971 = vld [vmem:[%s703 + $0x428] sm:$0xff]
                  %972 = vst [vmem:[%s704 + $0x214] sm:$0xff] %v971
                  %v973 = vld [vmem:[%s703 + $0x430] sm:$0xff]
                  %974 = vst [vmem:[%s704 + $0x218] sm:$0xff] %v973
                  %v975 = vld [vmem:[%s703 + $0x438] sm:$0xff]
                  %976 = vst [vmem:[%s704 + $0x21c] sm:$0xff] %v975
                  %v977 = vld [vmem:[%s703 + $0x440] sm:$0xff]
                  %978 = vst [vmem:[%s704 + $0x220] sm:$0xff] %v977
                  %v979 = vld [vmem:[%s703 + $0x448] sm:$0xff]
                  %980 = vst [vmem:[%s704 + $0x224] sm:$0xff] %v979
                  %v981 = vld [vmem:[%s703 + $0x450] sm:$0xff]
                  %982 = vst [vmem:[%s704 + $0x228] sm:$0xff] %v981
                  %v983 = vld [vmem:[%s703 + $0x458] sm:$0xff]
                  %984 = vst [vmem:[%s704 + $0x22c] sm:$0xff] %v983
                  %v985 = vld [vmem:[%s703 + $0x460] sm:$0xff]
                  %986 = vst [vmem:[%s704 + $0x230] sm:$0xff] %v985
                  %v987 = vld [vmem:[%s703 + $0x468] sm:$0xff]
                  %988 = vst [vmem:[%s704 + $0x234] sm:$0xff] %v987
                  %v989 = vld [vmem:[%s703 + $0x470] sm:$0xff]
                  %990 = vst [vmem:[%s704 + $0x238] sm:$0xff] %v989
                  %v991 = vld [vmem:[%s703 + $0x478] sm:$0xff]
                  %992 = vst [vmem:[%s704 + $0x23c] sm:$0xff] %v991
                  %v993 = vld [vmem:[%s703 + $0x480] sm:$0xff]
                  %994 = vst [vmem:[%s704 + $0x240] sm:$0xff] %v993
                  %v995 = vld [vmem:[%s703 + $0x488] sm:$0xff]
                  %996 = vst [vmem:[%s704 + $0x244] sm:$0xff] %v995
                  %v997 = vld [vmem:[%s703 + $0x490] sm:$0xff]
                  %998 = vst [vmem:[%s704 + $0x248] sm:$0xff] %v997
                  %v999 = vld [vmem:[%s703 + $0x498] sm:$0xff]
                  %1000 = vst [vmem:[%s704 + $0x24c] sm:$0xff] %v999
                  %v1001 = vld [vmem:[%s703 + $0x4a0] sm:$0xff]
                  %1002 = vst [vmem:[%s704 + $0x250] sm:$0xff] %v1001
                  %v1003 = vld [vmem:[%s703 + $0x4a8] sm:$0xff]
                  %1004 = vst [vmem:[%s704 + $0x254] sm:$0xff] %v1003
                  %v1005 = vld [vmem:[%s703 + $0x4b0] sm:$0xff]
                  %1006 = vst [vmem:[%s704 + $0x258] sm:$0xff] %v1005
                  %v1007 = vld [vmem:[%s703 + $0x4b8] sm:$0xff]
                  %1008 = vst [vmem:[%s704 + $0x25c] sm:$0xff] %v1007
                  %v1009 = vld [vmem:[%s703 + $0x4c0] sm:$0xff]
                  %1010 = vst [vmem:[%s704 + $0x260] sm:$0xff] %v1009
                  %v1011 = vld [vmem:[%s703 + $0x4c8] sm:$0xff]
                  %1012 = vst [vmem:[%s704 + $0x264] sm:$0xff] %v1011
                  %v1013 = vld [vmem:[%s703 + $0x4d0] sm:$0xff]
                  %1014 = vst [vmem:[%s704 + $0x268] sm:$0xff] %v1013
                  %v1015 = vld [vmem:[%s703 + $0x4d8] sm:$0xff]
                  %1016 = vst [vmem:[%s704 + $0x26c] sm:$0xff] %v1015
                  %v1017 = vld [vmem:[%s703 + $0x4e0] sm:$0xff]
                  %1018 = vst [vmem:[%s704 + $0x270] sm:$0xff] %v1017
                  %v1019 = vld [vmem:[%s703 + $0x4e8] sm:$0xff]
                  %1020 = vst [vmem:[%s704 + $0x274] sm:$0xff] %v1019
                  %v1021 = vld [vmem:[%s703 + $0x4f0] sm:$0xff]
                  %1022 = vst [vmem:[%s704 + $0x278] sm:$0xff] %v1021
                  %v1023 = vld [vmem:[%s703 + $0x4f8] sm:$0xff]
                  %1024 = vst [vmem:[%s704 + $0x27c] sm:$0xff] %v1023
                  %v1025 = vld [vmem:[%s703 + $0x500] sm:$0xff]
                  %1026 = vst [vmem:[%s704 + $0x280] sm:$0xff] %v1025
                  %v1027 = vld [vmem:[%s703 + $0x508] sm:$0xff]
                  %1028 = vst [vmem:[%s704 + $0x284] sm:$0xff] %v1027
                  %v1029 = vld [vmem:[%s703 + $0x510] sm:$0xff]
                  %1030 = vst [vmem:[%s704 + $0x288] sm:$0xff] %v1029
                  %v1031 = vld [vmem:[%s703 + $0x518] sm:$0xff]
                  %1032 = vst [vmem:[%s704 + $0x28c] sm:$0xff] %v1031
                  %v1033 = vld [vmem:[%s703 + $0x520] sm:$0xff]
                  %1034 = vst [vmem:[%s704 + $0x290] sm:$0xff] %v1033
                  %v1035 = vld [vmem:[%s703 + $0x528] sm:$0xff]
                  %1036 = vst [vmem:[%s704 + $0x294] sm:$0xff] %v1035
                  %v1037 = vld [vmem:[%s703 + $0x530] sm:$0xff]
                  %1038 = vst [vmem:[%s704 + $0x298] sm:$0xff] %v1037
                  %v1039 = vld [vmem:[%s703 + $0x538] sm:$0xff]
                  %1040 = vst [vmem:[%s704 + $0x29c] sm:$0xff] %v1039
                  %v1041 = vld [vmem:[%s703 + $0x540] sm:$0xff]
                  %1042 = vst [vmem:[%s704 + $0x2a0] sm:$0xff] %v1041
                  %v1043 = vld [vmem:[%s703 + $0x548] sm:$0xff]
                  %1044 = vst [vmem:[%s704 + $0x2a4] sm:$0xff] %v1043
                  %v1045 = vld [vmem:[%s703 + $0x550] sm:$0xff]
                  %1046 = vst [vmem:[%s704 + $0x2a8] sm:$0xff] %v1045
                  %v1047 = vld [vmem:[%s703 + $0x558] sm:$0xff]
                  %1048 = vst [vmem:[%s704 + $0x2ac] sm:$0xff] %v1047
                  %v1049 = vld [vmem:[%s703 + $0x560] sm:$0xff]
                  %1050 = vst [vmem:[%s704 + $0x2b0] sm:$0xff] %v1049
                  %v1051 = vld [vmem:[%s703 + $0x568] sm:$0xff]
                  %1052 = vst [vmem:[%s704 + $0x2b4] sm:$0xff] %v1051
                  %v1053 = vld [vmem:[%s703 + $0x570] sm:$0xff]
                  %1054 = vst [vmem:[%s704 + $0x2b8] sm:$0xff] %v1053
                  %v1055 = vld [vmem:[%s703 + $0x578] sm:$0xff]
                  %1056 = vst [vmem:[%s704 + $0x2bc] sm:$0xff] %v1055
                  %v1057 = vld [vmem:[%s703 + $0x580] sm:$0xff]
                  %1058 = vst [vmem:[%s704 + $0x2c0] sm:$0xff] %v1057
                  %v1059 = vld [vmem:[%s703 + $0x588] sm:$0xff]
                  %1060 = vst [vmem:[%s704 + $0x2c4] sm:$0xff] %v1059
                  %v1061 = vld [vmem:[%s703 + $0x590] sm:$0xff]
                  %1062 = vst [vmem:[%s704 + $0x2c8] sm:$0xff] %v1061
                  %v1063 = vld [vmem:[%s703 + $0x598] sm:$0xff]
                  %1064 = vst [vmem:[%s704 + $0x2cc] sm:$0xff] %v1063
                  %v1065 = vld [vmem:[%s703 + $0x5a0] sm:$0xff]
                  %1066 = vst [vmem:[%s704 + $0x2d0] sm:$0xff] %v1065
                  %v1067 = vld [vmem:[%s703 + $0x5a8] sm:$0xff]
                  %1068 = vst [vmem:[%s704 + $0x2d4] sm:$0xff] %v1067
                  %v1069 = vld [vmem:[%s703 + $0x5b0] sm:$0xff]
                  %1070 = vst [vmem:[%s704 + $0x2d8] sm:$0xff] %v1069
                  %v1071 = vld [vmem:[%s703 + $0x5b8] sm:$0xff]
                  %1072 = vst [vmem:[%s704 + $0x2dc] sm:$0xff] %v1071
                  %v1073 = vld [vmem:[%s703 + $0x5c0] sm:$0xff]
                  %1074 = vst [vmem:[%s704 + $0x2e0] sm:$0xff] %v1073
                  %v1075 = vld [vmem:[%s703 + $0x5c8] sm:$0xff]
                  %1076 = vst [vmem:[%s704 + $0x2e4] sm:$0xff] %v1075
                  %v1077 = vld [vmem:[%s703 + $0x5d0] sm:$0xff]
                  %1078 = vst [vmem:[%s704 + $0x2e8] sm:$0xff] %v1077
                  %v1079 = vld [vmem:[%s703 + $0x5d8] sm:$0xff]
                  %1080 = vst [vmem:[%s704 + $0x2ec] sm:$0xff] %v1079
                  %v1081 = vld [vmem:[%s703 + $0x5e0] sm:$0xff]
                  %1082 = vst [vmem:[%s704 + $0x2f0] sm:$0xff] %v1081
                  %v1083 = vld [vmem:[%s703 + $0x5e8] sm:$0xff]
                  %1084 = vst [vmem:[%s704 + $0x2f4] sm:$0xff] %v1083
                  %v1085 = vld [vmem:[%s703 + $0x5f0] sm:$0xff]
                  %1086 = vst [vmem:[%s704 + $0x2f8] sm:$0xff] %v1085
                  %v1087 = vld [vmem:[%s703 + $0x5f8] sm:$0xff]
                  %1088 = vst [vmem:[%s704 + $0x2fc] sm:$0xff] %v1087
                  %v1089 = vld [vmem:[%s703 + $0x600] sm:$0xff]
                  %1090 = vst [vmem:[%s704 + $0x300] sm:$0xff] %v1089
                  %v1091 = vld [vmem:[%s703 + $0x608] sm:$0xff]
                  %1092 = vst [vmem:[%s704 + $0x304] sm:$0xff] %v1091
                  %v1093 = vld [vmem:[%s703 + $0x610] sm:$0xff]
                  %1094 = vst [vmem:[%s704 + $0x308] sm:$0xff] %v1093
                  %v1095 = vld [vmem:[%s703 + $0x618] sm:$0xff]
                  %1096 = vst [vmem:[%s704 + $0x30c] sm:$0xff] %v1095
                  %v1097 = vld [vmem:[%s703 + $0x620] sm:$0xff]
                  %1098 = vst [vmem:[%s704 + $0x310] sm:$0xff] %v1097
                  %v1099 = vld [vmem:[%s703 + $0x628] sm:$0xff]
                  %1100 = vst [vmem:[%s704 + $0x314] sm:$0xff] %v1099
                  %v1101 = vld [vmem:[%s703 + $0x630] sm:$0xff]
                  %1102 = vst [vmem:[%s704 + $0x318] sm:$0xff] %v1101
                  %v1103 = vld [vmem:[%s703 + $0x638] sm:$0xff]
                  %1104 = vst [vmem:[%s704 + $0x31c] sm:$0xff] %v1103
                  %v1105 = vld [vmem:[%s703 + $0x640] sm:$0xff]
                  %1106 = vst [vmem:[%s704 + $0x320] sm:$0xff] %v1105
                  %v1107 = vld [vmem:[%s703 + $0x648] sm:$0xff]
                  %1108 = vst [vmem:[%s704 + $0x324] sm:$0xff] %v1107
                  %v1109 = vld [vmem:[%s703 + $0x650] sm:$0xff]
                  %1110 = vst [vmem:[%s704 + $0x328] sm:$0xff] %v1109
                  %v1111 = vld [vmem:[%s703 + $0x658] sm:$0xff]
                  %1112 = vst [vmem:[%s704 + $0x32c] sm:$0xff] %v1111
                  %v1113 = vld [vmem:[%s703 + $0x660] sm:$0xff]
                  %1114 = vst [vmem:[%s704 + $0x330] sm:$0xff] %v1113
                  %v1115 = vld [vmem:[%s703 + $0x668] sm:$0xff]
                  %1116 = vst [vmem:[%s704 + $0x334] sm:$0xff] %v1115
                  %v1117 = vld [vmem:[%s703 + $0x670] sm:$0xff]
                  %1118 = vst [vmem:[%s704 + $0x338] sm:$0xff] %v1117
                  %v1119 = vld [vmem:[%s703 + $0x678] sm:$0xff]
                  %1120 = vst [vmem:[%s704 + $0x33c] sm:$0xff] %v1119
                  %v1121 = vld [vmem:[%s703 + $0x680] sm:$0xff]
                  %1122 = vst [vmem:[%s704 + $0x340] sm:$0xff] %v1121
                  %v1123 = vld [vmem:[%s703 + $0x688] sm:$0xff]
                  %1124 = vst [vmem:[%s704 + $0x344] sm:$0xff] %v1123
                  %v1125 = vld [vmem:[%s703 + $0x690] sm:$0xff]
                  %1126 = vst [vmem:[%s704 + $0x348] sm:$0xff] %v1125
                  %v1127 = vld [vmem:[%s703 + $0x698] sm:$0xff]
                  %1128 = vst [vmem:[%s704 + $0x34c] sm:$0xff] %v1127
                  %v1129 = vld [vmem:[%s703 + $0x6a0] sm:$0xff]
                  %1130 = vst [vmem:[%s704 + $0x350] sm:$0xff] %v1129
                  %v1131 = vld [vmem:[%s703 + $0x6a8] sm:$0xff]
                  %1132 = vst [vmem:[%s704 + $0x354] sm:$0xff] %v1131
                  %v1133 = vld [vmem:[%s703 + $0x6b0] sm:$0xff]
                  %1134 = vst [vmem:[%s704 + $0x358] sm:$0xff] %v1133
                  %v1135 = vld [vmem:[%s703 + $0x6b8] sm:$0xff]
                  %1136 = vst [vmem:[%s704 + $0x35c] sm:$0xff] %v1135
                  %v1137 = vld [vmem:[%s703 + $0x6c0] sm:$0xff]
                  %1138 = vst [vmem:[%s704 + $0x360] sm:$0xff] %v1137
                  %v1139 = vld [vmem:[%s703 + $0x6c8] sm:$0xff]
                  %1140 = vst [vmem:[%s704 + $0x364] sm:$0xff] %v1139
                  %v1141 = vld [vmem:[%s703 + $0x6d0] sm:$0xff]
                  %1142 = vst [vmem:[%s704 + $0x368] sm:$0xff] %v1141
                  %v1143 = vld [vmem:[%s703 + $0x6d8] sm:$0xff]
                  %1144 = vst [vmem:[%s704 + $0x36c] sm:$0xff] %v1143
                  %v1145 = vld [vmem:[%s703 + $0x6e0] sm:$0xff]
                  %1146 = vst [vmem:[%s704 + $0x370] sm:$0xff] %v1145
                  %v1147 = vld [vmem:[%s703 + $0x6e8] sm:$0xff]
                  %1148 = vst [vmem:[%s704 + $0x374] sm:$0xff] %v1147
                  %v1149 = vld [vmem:[%s703 + $0x6f0] sm:$0xff]
                  %1150 = vst [vmem:[%s704 + $0x378] sm:$0xff] %v1149
                  %v1151 = vld [vmem:[%s703 + $0x6f8] sm:$0xff]
                  %1152 = vst [vmem:[%s704 + $0x37c] sm:$0xff] %v1151
                  %v1153 = vld [vmem:[%s703 + $0x700] sm:$0xff]
                  %1154 = vst [vmem:[%s704 + $0x380] sm:$0xff] %v1153
                  %v1155 = vld [vmem:[%s703 + $0x708] sm:$0xff]
                  %1156 = vst [vmem:[%s704 + $0x384] sm:$0xff] %v1155
                  %v1157 = vld [vmem:[%s703 + $0x710] sm:$0xff]
                  %1158 = vst [vmem:[%s704 + $0x388] sm:$0xff] %v1157
                  %v1159 = vld [vmem:[%s703 + $0x718] sm:$0xff]
                  %1160 = vst [vmem:[%s704 + $0x38c] sm:$0xff] %v1159
                  %v1161 = vld [vmem:[%s703 + $0x720] sm:$0xff]
                  %1162 = vst [vmem:[%s704 + $0x390] sm:$0xff] %v1161
                  %v1163 = vld [vmem:[%s703 + $0x728] sm:$0xff]
                  %1164 = vst [vmem:[%s704 + $0x394] sm:$0xff] %v1163
                  %v1165 = vld [vmem:[%s703 + $0x730] sm:$0xff]
                  %1166 = vst [vmem:[%s704 + $0x398] sm:$0xff] %v1165
                  %v1167 = vld [vmem:[%s703 + $0x738] sm:$0xff]
                  %1168 = vst [vmem:[%s704 + $0x39c] sm:$0xff] %v1167
                  %v1169 = vld [vmem:[%s703 + $0x740] sm:$0xff]
                  %1170 = vst [vmem:[%s704 + $0x3a0] sm:$0xff] %v1169
                  %v1171 = vld [vmem:[%s703 + $0x748] sm:$0xff]
                  %1172 = vst [vmem:[%s704 + $0x3a4] sm:$0xff] %v1171
                  %v1173 = vld [vmem:[%s703 + $0x750] sm:$0xff]
                  %1174 = vst [vmem:[%s704 + $0x3a8] sm:$0xff] %v1173
                  %v1175 = vld [vmem:[%s703 + $0x758] sm:$0xff]
                  %1176 = vst [vmem:[%s704 + $0x3ac] sm:$0xff] %v1175
                  %v1177 = vld [vmem:[%s703 + $0x760] sm:$0xff]
                  %1178 = vst [vmem:[%s704 + $0x3b0] sm:$0xff] %v1177
                  %v1179 = vld [vmem:[%s703 + $0x768] sm:$0xff]
                  %1180 = vst [vmem:[%s704 + $0x3b4] sm:$0xff] %v1179
                  %v1181 = vld [vmem:[%s703 + $0x770] sm:$0xff]
                  %1182 = vst [vmem:[%s704 + $0x3b8] sm:$0xff] %v1181
                  %v1183 = vld [vmem:[%s703 + $0x778] sm:$0xff]
                  %1184 = vst [vmem:[%s704 + $0x3bc] sm:$0xff] %v1183
                  %v1185 = vld [vmem:[%s703 + $0x780] sm:$0xff]
                  %1186 = vst [vmem:[%s704 + $0x3c0] sm:$0xff] %v1185
                  %v1187 = vld [vmem:[%s703 + $0x788] sm:$0xff]
                  %1188 = vst [vmem:[%s704 + $0x3c4] sm:$0xff] %v1187
                  %v1189 = vld [vmem:[%s703 + $0x790] sm:$0xff]
                  %1190 = vst [vmem:[%s704 + $0x3c8] sm:$0xff] %v1189
                  %v1191 = vld [vmem:[%s703 + $0x798] sm:$0xff]
                  %1192 = vst [vmem:[%s704 + $0x3cc] sm:$0xff] %v1191
                  %v1193 = vld [vmem:[%s703 + $0x7a0] sm:$0xff]
                  %1194 = vst [vmem:[%s704 + $0x3d0] sm:$0xff] %v1193
                  %v1195 = vld [vmem:[%s703 + $0x7a8] sm:$0xff]
                  %1196 = vst [vmem:[%s704 + $0x3d4] sm:$0xff] %v1195
                  %v1197 = vld [vmem:[%s703 + $0x7b0] sm:$0xff]
                  %1198 = vst [vmem:[%s704 + $0x3d8] sm:$0xff] %v1197
                  %v1199 = vld [vmem:[%s703 + $0x7b8] sm:$0xff]
                  %1200 = vst [vmem:[%s704 + $0x3dc] sm:$0xff] %v1199
                  %v1201 = vld [vmem:[%s703 + $0x7c0] sm:$0xff]
                  %1202 = vst [vmem:[%s704 + $0x3e0] sm:$0xff] %v1201
                  %v1203 = vld [vmem:[%s703 + $0x7c8] sm:$0xff]
                  %1204 = vst [vmem:[%s704 + $0x3e4] sm:$0xff] %v1203
                  %v1205 = vld [vmem:[%s703 + $0x7d0] sm:$0xff]
                  %1206 = vst [vmem:[%s704 + $0x3e8] sm:$0xff] %v1205
                  %v1207 = vld [vmem:[%s703 + $0x7d8] sm:$0xff]
                  %1208 = vst [vmem:[%s704 + $0x3ec] sm:$0xff] %v1207
                  %v1209 = vld [vmem:[%s703 + $0x7e0] sm:$0xff]
                  %1210 = vst [vmem:[%s704 + $0x3f0] sm:$0xff] %v1209
                  %v1211 = vld [vmem:[%s703 + $0x7e8] sm:$0xff]
                  %1212 = vst [vmem:[%s704 + $0x3f4] sm:$0xff] %v1211
                  %v1213 = vld [vmem:[%s703 + $0x7f0] sm:$0xff]
                  %1214 = vst [vmem:[%s704 + $0x3f8] sm:$0xff] %v1213
                  %v1215 = vld [vmem:[%s703 + $0x7f8] sm:$0xff]
                  %1216 = vst [vmem:[%s704 + $0x3fc] sm:$0xff] %v1215
                  %s1217 = sadd.s32 1, %s702
                  %p1218 = scmp.ge.s32.totalorder %s1217, 0
                  %s1219 = scalar_select %p1218, 0, %s1217
                  %s1220 = smul.u32 %s1219, 8
                  %s1221 = smul.u32 %s1219, 8
                  %s1222 = scalar_lea.vmem %s165, %s1220
                  %s1223 = scalar_lea.vmem %s163, %s1221 [#allocation2]
                $region52: #{discriminator_forward.8} parent=46 // loop_footer
                  %s701 = sadd.s32 1, %s697
                $region53: #{discriminator_forward.8} parent=46 // loop_footer_branch
                  %696 = sbr.rel target = $region49
                $region54: #{discriminator_forward.8} parent=46 // loop_exit
                  _
              $region47: #{discriminator_forward.8} parent=31 // pred_fallthru
                _
              // Predicated region
              $region55: #{discriminator_forward.8} parent=31 // pred_check
                _
              $region56: #{discriminator_forward.8} parent=31 // pred_check_branch
                %1225 = sbr.rel (0) target = $region58
              $region57: #{discriminator_forward.8} parent=31 // pred_region
                loop: start=0, step=1, limit=0
                $region59: #{discriminator_forward.8} parent=57 // loop_pre_header
                  _
                $region60: #{discriminator_forward.8} parent=57 // loop_header
                  %s1227 = sphi 0, %s1231
                  %p1228 = scmp.ge.s32.totalorder %s1227, 0
                  %s1232 = sphi 0, %s1749
                  %s1233 = sphi %s165, %s1752
                  %s1234 = sphi %s163, %s1753
                $region61: #{discriminator_forward.8} parent=57 // loop_header_branch
                  %1230 = sbr.rel (%p1228) target = $region65
                $region62: #{discriminator_forward.8} parent=57 // loop_body
                  %v1235 = vld [vmem:[%s1233] sm:$0xff]
                  %1236 = vst [vmem:[%s1234] sm:$0xff] %v1235
                  %v1237 = vld [vmem:[%s1233 + $0x8] sm:$0xff]
                  %1238 = vst [vmem:[%s1234 + $0x4] sm:$0xff] %v1237
                  %v1239 = vld [vmem:[%s1233 + $0x10] sm:$0xff]
                  %1240 = vst [vmem:[%s1234 + $0x8] sm:$0xff] %v1239
                  %v1241 = vld [vmem:[%s1233 + $0x18] sm:$0xff]
                  %1242 = vst [vmem:[%s1234 + $0xc] sm:$0xff] %v1241
                  %v1243 = vld [vmem:[%s1233 + $0x20] sm:$0xff]
                  %1244 = vst [vmem:[%s1234 + $0x10] sm:$0xff] %v1243
                  %v1245 = vld [vmem:[%s1233 + $0x28] sm:$0xff]
                  %1246 = vst [vmem:[%s1234 + $0x14] sm:$0xff] %v1245
                  %v1247 = vld [vmem:[%s1233 + $0x30] sm:$0xff]
                  %1248 = vst [vmem:[%s1234 + $0x18] sm:$0xff] %v1247
                  %v1249 = vld [vmem:[%s1233 + $0x38] sm:$0xff]
                  %1250 = vst [vmem:[%s1234 + $0x1c] sm:$0xff] %v1249
                  %v1251 = vld [vmem:[%s1233 + $0x40] sm:$0xff]
                  %1252 = vst [vmem:[%s1234 + $0x20] sm:$0xff] %v1251
                  %v1253 = vld [vmem:[%s1233 + $0x48] sm:$0xff]
                  %1254 = vst [vmem:[%s1234 + $0x24] sm:$0xff] %v1253
                  %v1255 = vld [vmem:[%s1233 + $0x50] sm:$0xff]
                  %1256 = vst [vmem:[%s1234 + $0x28] sm:$0xff] %v1255
                  %v1257 = vld [vmem:[%s1233 + $0x58] sm:$0xff]
                  %1258 = vst [vmem:[%s1234 + $0x2c] sm:$0xff] %v1257
                  %v1259 = vld [vmem:[%s1233 + $0x60] sm:$0xff]
                  %1260 = vst [vmem:[%s1234 + $0x30] sm:$0xff] %v1259
                  %v1261 = vld [vmem:[%s1233 + $0x68] sm:$0xff]
                  %1262 = vst [vmem:[%s1234 + $0x34] sm:$0xff] %v1261
                  %v1263 = vld [vmem:[%s1233 + $0x70] sm:$0xff]
                  %1264 = vst [vmem:[%s1234 + $0x38] sm:$0xff] %v1263
                  %v1265 = vld [vmem:[%s1233 + $0x78] sm:$0xff]
                  %1266 = vst [vmem:[%s1234 + $0x3c] sm:$0xff] %v1265
                  %v1267 = vld [vmem:[%s1233 + $0x80] sm:$0xff]
                  %1268 = vst [vmem:[%s1234 + $0x40] sm:$0xff] %v1267
                  %v1269 = vld [vmem:[%s1233 + $0x88] sm:$0xff]
                  %1270 = vst [vmem:[%s1234 + $0x44] sm:$0xff] %v1269
                  %v1271 = vld [vmem:[%s1233 + $0x90] sm:$0xff]
                  %1272 = vst [vmem:[%s1234 + $0x48] sm:$0xff] %v1271
                  %v1273 = vld [vmem:[%s1233 + $0x98] sm:$0xff]
                  %1274 = vst [vmem:[%s1234 + $0x4c] sm:$0xff] %v1273
                  %v1275 = vld [vmem:[%s1233 + $0xa0] sm:$0xff]
                  %1276 = vst [vmem:[%s1234 + $0x50] sm:$0xff] %v1275
                  %v1277 = vld [vmem:[%s1233 + $0xa8] sm:$0xff]
                  %1278 = vst [vmem:[%s1234 + $0x54] sm:$0xff] %v1277
                  %v1279 = vld [vmem:[%s1233 + $0xb0] sm:$0xff]
                  %1280 = vst [vmem:[%s1234 + $0x58] sm:$0xff] %v1279
                  %v1281 = vld [vmem:[%s1233 + $0xb8] sm:$0xff]
                  %1282 = vst [vmem:[%s1234 + $0x5c] sm:$0xff] %v1281
                  %v1283 = vld [vmem:[%s1233 + $0xc0] sm:$0xff]
                  %1284 = vst [vmem:[%s1234 + $0x60] sm:$0xff] %v1283
                  %v1285 = vld [vmem:[%s1233 + $0xc8] sm:$0xff]
                  %1286 = vst [vmem:[%s1234 + $0x64] sm:$0xff] %v1285
                  %v1287 = vld [vmem:[%s1233 + $0xd0] sm:$0xff]
                  %1288 = vst [vmem:[%s1234 + $0x68] sm:$0xff] %v1287
                  %v1289 = vld [vmem:[%s1233 + $0xd8] sm:$0xff]
                  %1290 = vst [vmem:[%s1234 + $0x6c] sm:$0xff] %v1289
                  %v1291 = vld [vmem:[%s1233 + $0xe0] sm:$0xff]
                  %1292 = vst [vmem:[%s1234 + $0x70] sm:$0xff] %v1291
                  %v1293 = vld [vmem:[%s1233 + $0xe8] sm:$0xff]
                  %1294 = vst [vmem:[%s1234 + $0x74] sm:$0xff] %v1293
                  %v1295 = vld [vmem:[%s1233 + $0xf0] sm:$0xff]
                  %1296 = vst [vmem:[%s1234 + $0x78] sm:$0xff] %v1295
                  %v1297 = vld [vmem:[%s1233 + $0xf8] sm:$0xff]
                  %1298 = vst [vmem:[%s1234 + $0x7c] sm:$0xff] %v1297
                  %v1299 = vld [vmem:[%s1233 + $0x100] sm:$0xff]
                  %1300 = vst [vmem:[%s1234 + $0x80] sm:$0xff] %v1299
                  %v1301 = vld [vmem:[%s1233 + $0x108] sm:$0xff]
                  %1302 = vst [vmem:[%s1234 + $0x84] sm:$0xff] %v1301
                  %v1303 = vld [vmem:[%s1233 + $0x110] sm:$0xff]
                  %1304 = vst [vmem:[%s1234 + $0x88] sm:$0xff] %v1303
                  %v1305 = vld [vmem:[%s1233 + $0x118] sm:$0xff]
                  %1306 = vst [vmem:[%s1234 + $0x8c] sm:$0xff] %v1305
                  %v1307 = vld [vmem:[%s1233 + $0x120] sm:$0xff]
                  %1308 = vst [vmem:[%s1234 + $0x90] sm:$0xff] %v1307
                  %v1309 = vld [vmem:[%s1233 + $0x128] sm:$0xff]
                  %1310 = vst [vmem:[%s1234 + $0x94] sm:$0xff] %v1309
                  %v1311 = vld [vmem:[%s1233 + $0x130] sm:$0xff]
                  %1312 = vst [vmem:[%s1234 + $0x98] sm:$0xff] %v1311
                  %v1313 = vld [vmem:[%s1233 + $0x138] sm:$0xff]
                  %1314 = vst [vmem:[%s1234 + $0x9c] sm:$0xff] %v1313
                  %v1315 = vld [vmem:[%s1233 + $0x140] sm:$0xff]
                  %1316 = vst [vmem:[%s1234 + $0xa0] sm:$0xff] %v1315
                  %v1317 = vld [vmem:[%s1233 + $0x148] sm:$0xff]
                  %1318 = vst [vmem:[%s1234 + $0xa4] sm:$0xff] %v1317
                  %v1319 = vld [vmem:[%s1233 + $0x150] sm:$0xff]
                  %1320 = vst [vmem:[%s1234 + $0xa8] sm:$0xff] %v1319
                  %v1321 = vld [vmem:[%s1233 + $0x158] sm:$0xff]
                  %1322 = vst [vmem:[%s1234 + $0xac] sm:$0xff] %v1321
                  %v1323 = vld [vmem:[%s1233 + $0x160] sm:$0xff]
                  %1324 = vst [vmem:[%s1234 + $0xb0] sm:$0xff] %v1323
                  %v1325 = vld [vmem:[%s1233 + $0x168] sm:$0xff]
                  %1326 = vst [vmem:[%s1234 + $0xb4] sm:$0xff] %v1325
                  %v1327 = vld [vmem:[%s1233 + $0x170] sm:$0xff]
                  %1328 = vst [vmem:[%s1234 + $0xb8] sm:$0xff] %v1327
                  %v1329 = vld [vmem:[%s1233 + $0x178] sm:$0xff]
                  %1330 = vst [vmem:[%s1234 + $0xbc] sm:$0xff] %v1329
                  %v1331 = vld [vmem:[%s1233 + $0x180] sm:$0xff]
                  %1332 = vst [vmem:[%s1234 + $0xc0] sm:$0xff] %v1331
                  %v1333 = vld [vmem:[%s1233 + $0x188] sm:$0xff]
                  %1334 = vst [vmem:[%s1234 + $0xc4] sm:$0xff] %v1333
                  %v1335 = vld [vmem:[%s1233 + $0x190] sm:$0xff]
                  %1336 = vst [vmem:[%s1234 + $0xc8] sm:$0xff] %v1335
                  %v1337 = vld [vmem:[%s1233 + $0x198] sm:$0xff]
                  %1338 = vst [vmem:[%s1234 + $0xcc] sm:$0xff] %v1337
                  %v1339 = vld [vmem:[%s1233 + $0x1a0] sm:$0xff]
                  %1340 = vst [vmem:[%s1234 + $0xd0] sm:$0xff] %v1339
                  %v1341 = vld [vmem:[%s1233 + $0x1a8] sm:$0xff]
                  %1342 = vst [vmem:[%s1234 + $0xd4] sm:$0xff] %v1341
                  %v1343 = vld [vmem:[%s1233 + $0x1b0] sm:$0xff]
                  %1344 = vst [vmem:[%s1234 + $0xd8] sm:$0xff] %v1343
                  %v1345 = vld [vmem:[%s1233 + $0x1b8] sm:$0xff]
                  %1346 = vst [vmem:[%s1234 + $0xdc] sm:$0xff] %v1345
                  %v1347 = vld [vmem:[%s1233 + $0x1c0] sm:$0xff]
                  %1348 = vst [vmem:[%s1234 + $0xe0] sm:$0xff] %v1347
                  %v1349 = vld [vmem:[%s1233 + $0x1c8] sm:$0xff]
                  %1350 = vst [vmem:[%s1234 + $0xe4] sm:$0xff] %v1349
                  %v1351 = vld [vmem:[%s1233 + $0x1d0] sm:$0xff]
                  %1352 = vst [vmem:[%s1234 + $0xe8] sm:$0xff] %v1351
                  %v1353 = vld [vmem:[%s1233 + $0x1d8] sm:$0xff]
                  %1354 = vst [vmem:[%s1234 + $0xec] sm:$0xff] %v1353
                  %v1355 = vld [vmem:[%s1233 + $0x1e0] sm:$0xff]
                  %1356 = vst [vmem:[%s1234 + $0xf0] sm:$0xff] %v1355
                  %v1357 = vld [vmem:[%s1233 + $0x1e8] sm:$0xff]
                  %1358 = vst [vmem:[%s1234 + $0xf4] sm:$0xff] %v1357
                  %v1359 = vld [vmem:[%s1233 + $0x1f0] sm:$0xff]
                  %1360 = vst [vmem:[%s1234 + $0xf8] sm:$0xff] %v1359
                  %v1361 = vld [vmem:[%s1233 + $0x1f8] sm:$0xff]
                  %1362 = vst [vmem:[%s1234 + $0xfc] sm:$0xff] %v1361
                  %v1363 = vld [vmem:[%s1233 + $0x200] sm:$0xff]
                  %1364 = vst [vmem:[%s1234 + $0x100] sm:$0xff] %v1363
                  %v1365 = vld [vmem:[%s1233 + $0x208] sm:$0xff]
                  %1366 = vst [vmem:[%s1234 + $0x104] sm:$0xff] %v1365
                  %v1367 = vld [vmem:[%s1233 + $0x210] sm:$0xff]
                  %1368 = vst [vmem:[%s1234 + $0x108] sm:$0xff] %v1367
                  %v1369 = vld [vmem:[%s1233 + $0x218] sm:$0xff]
                  %1370 = vst [vmem:[%s1234 + $0x10c] sm:$0xff] %v1369
                  %v1371 = vld [vmem:[%s1233 + $0x220] sm:$0xff]
                  %1372 = vst [vmem:[%s1234 + $0x110] sm:$0xff] %v1371
                  %v1373 = vld [vmem:[%s1233 + $0x228] sm:$0xff]
                  %1374 = vst [vmem:[%s1234 + $0x114] sm:$0xff] %v1373
                  %v1375 = vld [vmem:[%s1233 + $0x230] sm:$0xff]
                  %1376 = vst [vmem:[%s1234 + $0x118] sm:$0xff] %v1375
                  %v1377 = vld [vmem:[%s1233 + $0x238] sm:$0xff]
                  %1378 = vst [vmem:[%s1234 + $0x11c] sm:$0xff] %v1377
                  %v1379 = vld [vmem:[%s1233 + $0x240] sm:$0xff]
                  %1380 = vst [vmem:[%s1234 + $0x120] sm:$0xff] %v1379
                  %v1381 = vld [vmem:[%s1233 + $0x248] sm:$0xff]
                  %1382 = vst [vmem:[%s1234 + $0x124] sm:$0xff] %v1381
                  %v1383 = vld [vmem:[%s1233 + $0x250] sm:$0xff]
                  %1384 = vst [vmem:[%s1234 + $0x128] sm:$0xff] %v1383
                  %v1385 = vld [vmem:[%s1233 + $0x258] sm:$0xff]
                  %1386 = vst [vmem:[%s1234 + $0x12c] sm:$0xff] %v1385
                  %v1387 = vld [vmem:[%s1233 + $0x260] sm:$0xff]
                  %1388 = vst [vmem:[%s1234 + $0x130] sm:$0xff] %v1387
                  %v1389 = vld [vmem:[%s1233 + $0x268] sm:$0xff]
                  %1390 = vst [vmem:[%s1234 + $0x134] sm:$0xff] %v1389
                  %v1391 = vld [vmem:[%s1233 + $0x270] sm:$0xff]
                  %1392 = vst [vmem:[%s1234 + $0x138] sm:$0xff] %v1391
                  %v1393 = vld [vmem:[%s1233 + $0x278] sm:$0xff]
                  %1394 = vst [vmem:[%s1234 + $0x13c] sm:$0xff] %v1393
                  %v1395 = vld [vmem:[%s1233 + $0x280] sm:$0xff]
                  %1396 = vst [vmem:[%s1234 + $0x140] sm:$0xff] %v1395
                  %v1397 = vld [vmem:[%s1233 + $0x288] sm:$0xff]
                  %1398 = vst [vmem:[%s1234 + $0x144] sm:$0xff] %v1397
                  %v1399 = vld [vmem:[%s1233 + $0x290] sm:$0xff]
                  %1400 = vst [vmem:[%s1234 + $0x148] sm:$0xff] %v1399
                  %v1401 = vld [vmem:[%s1233 + $0x298] sm:$0xff]
                  %1402 = vst [vmem:[%s1234 + $0x14c] sm:$0xff] %v1401
                  %v1403 = vld [vmem:[%s1233 + $0x2a0] sm:$0xff]
                  %1404 = vst [vmem:[%s1234 + $0x150] sm:$0xff] %v1403
                  %v1405 = vld [vmem:[%s1233 + $0x2a8] sm:$0xff]
                  %1406 = vst [vmem:[%s1234 + $0x154] sm:$0xff] %v1405
                  %v1407 = vld [vmem:[%s1233 + $0x2b0] sm:$0xff]
                  %1408 = vst [vmem:[%s1234 + $0x158] sm:$0xff] %v1407
                  %v1409 = vld [vmem:[%s1233 + $0x2b8] sm:$0xff]
                  %1410 = vst [vmem:[%s1234 + $0x15c] sm:$0xff] %v1409
                  %v1411 = vld [vmem:[%s1233 + $0x2c0] sm:$0xff]
                  %1412 = vst [vmem:[%s1234 + $0x160] sm:$0xff] %v1411
                  %v1413 = vld [vmem:[%s1233 + $0x2c8] sm:$0xff]
                  %1414 = vst [vmem:[%s1234 + $0x164] sm:$0xff] %v1413
                  %v1415 = vld [vmem:[%s1233 + $0x2d0] sm:$0xff]
                  %1416 = vst [vmem:[%s1234 + $0x168] sm:$0xff] %v1415
                  %v1417 = vld [vmem:[%s1233 + $0x2d8] sm:$0xff]
                  %1418 = vst [vmem:[%s1234 + $0x16c] sm:$0xff] %v1417
                  %v1419 = vld [vmem:[%s1233 + $0x2e0] sm:$0xff]
                  %1420 = vst [vmem:[%s1234 + $0x170] sm:$0xff] %v1419
                  %v1421 = vld [vmem:[%s1233 + $0x2e8] sm:$0xff]
                  %1422 = vst [vmem:[%s1234 + $0x174] sm:$0xff] %v1421
                  %v1423 = vld [vmem:[%s1233 + $0x2f0] sm:$0xff]
                  %1424 = vst [vmem:[%s1234 + $0x178] sm:$0xff] %v1423
                  %v1425 = vld [vmem:[%s1233 + $0x2f8] sm:$0xff]
                  %1426 = vst [vmem:[%s1234 + $0x17c] sm:$0xff] %v1425
                  %v1427 = vld [vmem:[%s1233 + $0x300] sm:$0xff]
                  %1428 = vst [vmem:[%s1234 + $0x180] sm:$0xff] %v1427
                  %v1429 = vld [vmem:[%s1233 + $0x308] sm:$0xff]
                  %1430 = vst [vmem:[%s1234 + $0x184] sm:$0xff] %v1429
                  %v1431 = vld [vmem:[%s1233 + $0x310] sm:$0xff]
                  %1432 = vst [vmem:[%s1234 + $0x188] sm:$0xff] %v1431
                  %v1433 = vld [vmem:[%s1233 + $0x318] sm:$0xff]
                  %1434 = vst [vmem:[%s1234 + $0x18c] sm:$0xff] %v1433
                  %v1435 = vld [vmem:[%s1233 + $0x320] sm:$0xff]
                  %1436 = vst [vmem:[%s1234 + $0x190] sm:$0xff] %v1435
                  %v1437 = vld [vmem:[%s1233 + $0x328] sm:$0xff]
                  %1438 = vst [vmem:[%s1234 + $0x194] sm:$0xff] %v1437
                  %v1439 = vld [vmem:[%s1233 + $0x330] sm:$0xff]
                  %1440 = vst [vmem:[%s1234 + $0x198] sm:$0xff] %v1439
                  %v1441 = vld [vmem:[%s1233 + $0x338] sm:$0xff]
                  %1442 = vst [vmem:[%s1234 + $0x19c] sm:$0xff] %v1441
                  %v1443 = vld [vmem:[%s1233 + $0x340] sm:$0xff]
                  %1444 = vst [vmem:[%s1234 + $0x1a0] sm:$0xff] %v1443
                  %v1445 = vld [vmem:[%s1233 + $0x348] sm:$0xff]
                  %1446 = vst [vmem:[%s1234 + $0x1a4] sm:$0xff] %v1445
                  %v1447 = vld [vmem:[%s1233 + $0x350] sm:$0xff]
                  %1448 = vst [vmem:[%s1234 + $0x1a8] sm:$0xff] %v1447
                  %v1449 = vld [vmem:[%s1233 + $0x358] sm:$0xff]
                  %1450 = vst [vmem:[%s1234 + $0x1ac] sm:$0xff] %v1449
                  %v1451 = vld [vmem:[%s1233 + $0x360] sm:$0xff]
                  %1452 = vst [vmem:[%s1234 + $0x1b0] sm:$0xff] %v1451
                  %v1453 = vld [vmem:[%s1233 + $0x368] sm:$0xff]
                  %1454 = vst [vmem:[%s1234 + $0x1b4] sm:$0xff] %v1453
                  %v1455 = vld [vmem:[%s1233 + $0x370] sm:$0xff]
                  %1456 = vst [vmem:[%s1234 + $0x1b8] sm:$0xff] %v1455
                  %v1457 = vld [vmem:[%s1233 + $0x378] sm:$0xff]
                  %1458 = vst [vmem:[%s1234 + $0x1bc] sm:$0xff] %v1457
                  %v1459 = vld [vmem:[%s1233 + $0x380] sm:$0xff]
                  %1460 = vst [vmem:[%s1234 + $0x1c0] sm:$0xff] %v1459
                  %v1461 = vld [vmem:[%s1233 + $0x388] sm:$0xff]
                  %1462 = vst [vmem:[%s1234 + $0x1c4] sm:$0xff] %v1461
                  %v1463 = vld [vmem:[%s1233 + $0x390] sm:$0xff]
                  %1464 = vst [vmem:[%s1234 + $0x1c8] sm:$0xff] %v1463
                  %v1465 = vld [vmem:[%s1233 + $0x398] sm:$0xff]
                  %1466 = vst [vmem:[%s1234 + $0x1cc] sm:$0xff] %v1465
                  %v1467 = vld [vmem:[%s1233 + $0x3a0] sm:$0xff]
                  %1468 = vst [vmem:[%s1234 + $0x1d0] sm:$0xff] %v1467
                  %v1469 = vld [vmem:[%s1233 + $0x3a8] sm:$0xff]
                  %1470 = vst [vmem:[%s1234 + $0x1d4] sm:$0xff] %v1469
                  %v1471 = vld [vmem:[%s1233 + $0x3b0] sm:$0xff]
                  %1472 = vst [vmem:[%s1234 + $0x1d8] sm:$0xff] %v1471
                  %v1473 = vld [vmem:[%s1233 + $0x3b8] sm:$0xff]
                  %1474 = vst [vmem:[%s1234 + $0x1dc] sm:$0xff] %v1473
                  %v1475 = vld [vmem:[%s1233 + $0x3c0] sm:$0xff]
                  %1476 = vst [vmem:[%s1234 + $0x1e0] sm:$0xff] %v1475
                  %v1477 = vld [vmem:[%s1233 + $0x3c8] sm:$0xff]
                  %1478 = vst [vmem:[%s1234 + $0x1e4] sm:$0xff] %v1477
                  %v1479 = vld [vmem:[%s1233 + $0x3d0] sm:$0xff]
                  %1480 = vst [vmem:[%s1234 + $0x1e8] sm:$0xff] %v1479
                  %v1481 = vld [vmem:[%s1233 + $0x3d8] sm:$0xff]
                  %1482 = vst [vmem:[%s1234 + $0x1ec] sm:$0xff] %v1481
                  %v1483 = vld [vmem:[%s1233 + $0x3e0] sm:$0xff]
                  %1484 = vst [vmem:[%s1234 + $0x1f0] sm:$0xff] %v1483
                  %v1485 = vld [vmem:[%s1233 + $0x3e8] sm:$0xff]
                  %1486 = vst [vmem:[%s1234 + $0x1f4] sm:$0xff] %v1485
                  %v1487 = vld [vmem:[%s1233 + $0x3f0] sm:$0xff]
                  %1488 = vst [vmem:[%s1234 + $0x1f8] sm:$0xff] %v1487
                  %v1489 = vld [vmem:[%s1233 + $0x3f8] sm:$0xff]
                  %1490 = vst [vmem:[%s1234 + $0x1fc] sm:$0xff] %v1489
                  %v1491 = vld [vmem:[%s1233 + $0x400] sm:$0xff]
                  %1492 = vst [vmem:[%s1234 + $0x200] sm:$0xff] %v1491
                  %v1493 = vld [vmem:[%s1233 + $0x408] sm:$0xff]
                  %1494 = vst [vmem:[%s1234 + $0x204] sm:$0xff] %v1493
                  %v1495 = vld [vmem:[%s1233 + $0x410] sm:$0xff]
                  %1496 = vst [vmem:[%s1234 + $0x208] sm:$0xff] %v1495
                  %v1497 = vld [vmem:[%s1233 + $0x418] sm:$0xff]
                  %1498 = vst [vmem:[%s1234 + $0x20c] sm:$0xff] %v1497
                  %v1499 = vld [vmem:[%s1233 + $0x420] sm:$0xff]
                  %1500 = vst [vmem:[%s1234 + $0x210] sm:$0xff] %v1499
                  %v1501 = vld [vmem:[%s1233 + $0x428] sm:$0xff]
                  %1502 = vst [vmem:[%s1234 + $0x214] sm:$0xff] %v1501
                  %v1503 = vld [vmem:[%s1233 + $0x430] sm:$0xff]
                  %1504 = vst [vmem:[%s1234 + $0x218] sm:$0xff] %v1503
                  %v1505 = vld [vmem:[%s1233 + $0x438] sm:$0xff]
                  %1506 = vst [vmem:[%s1234 + $0x21c] sm:$0xff] %v1505
                  %v1507 = vld [vmem:[%s1233 + $0x440] sm:$0xff]
                  %1508 = vst [vmem:[%s1234 + $0x220] sm:$0xff] %v1507
                  %v1509 = vld [vmem:[%s1233 + $0x448] sm:$0xff]
                  %1510 = vst [vmem:[%s1234 + $0x224] sm:$0xff] %v1509
                  %v1511 = vld [vmem:[%s1233 + $0x450] sm:$0xff]
                  %1512 = vst [vmem:[%s1234 + $0x228] sm:$0xff] %v1511
                  %v1513 = vld [vmem:[%s1233 + $0x458] sm:$0xff]
                  %1514 = vst [vmem:[%s1234 + $0x22c] sm:$0xff] %v1513
                  %v1515 = vld [vmem:[%s1233 + $0x460] sm:$0xff]
                  %1516 = vst [vmem:[%s1234 + $0x230] sm:$0xff] %v1515
                  %v1517 = vld [vmem:[%s1233 + $0x468] sm:$0xff]
                  %1518 = vst [vmem:[%s1234 + $0x234] sm:$0xff] %v1517
                  %v1519 = vld [vmem:[%s1233 + $0x470] sm:$0xff]
                  %1520 = vst [vmem:[%s1234 + $0x238] sm:$0xff] %v1519
                  %v1521 = vld [vmem:[%s1233 + $0x478] sm:$0xff]
                  %1522 = vst [vmem:[%s1234 + $0x23c] sm:$0xff] %v1521
                  %v1523 = vld [vmem:[%s1233 + $0x480] sm:$0xff]
                  %1524 = vst [vmem:[%s1234 + $0x240] sm:$0xff] %v1523
                  %v1525 = vld [vmem:[%s1233 + $0x488] sm:$0xff]
                  %1526 = vst [vmem:[%s1234 + $0x244] sm:$0xff] %v1525
                  %v1527 = vld [vmem:[%s1233 + $0x490] sm:$0xff]
                  %1528 = vst [vmem:[%s1234 + $0x248] sm:$0xff] %v1527
                  %v1529 = vld [vmem:[%s1233 + $0x498] sm:$0xff]
                  %1530 = vst [vmem:[%s1234 + $0x24c] sm:$0xff] %v1529
                  %v1531 = vld [vmem:[%s1233 + $0x4a0] sm:$0xff]
                  %1532 = vst [vmem:[%s1234 + $0x250] sm:$0xff] %v1531
                  %v1533 = vld [vmem:[%s1233 + $0x4a8] sm:$0xff]
                  %1534 = vst [vmem:[%s1234 + $0x254] sm:$0xff] %v1533
                  %v1535 = vld [vmem:[%s1233 + $0x4b0] sm:$0xff]
                  %1536 = vst [vmem:[%s1234 + $0x258] sm:$0xff] %v1535
                  %v1537 = vld [vmem:[%s1233 + $0x4b8] sm:$0xff]
                  %1538 = vst [vmem:[%s1234 + $0x25c] sm:$0xff] %v1537
                  %v1539 = vld [vmem:[%s1233 + $0x4c0] sm:$0xff]
                  %1540 = vst [vmem:[%s1234 + $0x260] sm:$0xff] %v1539
                  %v1541 = vld [vmem:[%s1233 + $0x4c8] sm:$0xff]
                  %1542 = vst [vmem:[%s1234 + $0x264] sm:$0xff] %v1541
                  %v1543 = vld [vmem:[%s1233 + $0x4d0] sm:$0xff]
                  %1544 = vst [vmem:[%s1234 + $0x268] sm:$0xff] %v1543
                  %v1545 = vld [vmem:[%s1233 + $0x4d8] sm:$0xff]
                  %1546 = vst [vmem:[%s1234 + $0x26c] sm:$0xff] %v1545
                  %v1547 = vld [vmem:[%s1233 + $0x4e0] sm:$0xff]
                  %1548 = vst [vmem:[%s1234 + $0x270] sm:$0xff] %v1547
                  %v1549 = vld [vmem:[%s1233 + $0x4e8] sm:$0xff]
                  %1550 = vst [vmem:[%s1234 + $0x274] sm:$0xff] %v1549
                  %v1551 = vld [vmem:[%s1233 + $0x4f0] sm:$0xff]
                  %1552 = vst [vmem:[%s1234 + $0x278] sm:$0xff] %v1551
                  %v1553 = vld [vmem:[%s1233 + $0x4f8] sm:$0xff]
                  %1554 = vst [vmem:[%s1234 + $0x27c] sm:$0xff] %v1553
                  %v1555 = vld [vmem:[%s1233 + $0x500] sm:$0xff]
                  %1556 = vst [vmem:[%s1234 + $0x280] sm:$0xff] %v1555
                  %v1557 = vld [vmem:[%s1233 + $0x508] sm:$0xff]
                  %1558 = vst [vmem:[%s1234 + $0x284] sm:$0xff] %v1557
                  %v1559 = vld [vmem:[%s1233 + $0x510] sm:$0xff]
                  %1560 = vst [vmem:[%s1234 + $0x288] sm:$0xff] %v1559
                  %v1561 = vld [vmem:[%s1233 + $0x518] sm:$0xff]
                  %1562 = vst [vmem:[%s1234 + $0x28c] sm:$0xff] %v1561
                  %v1563 = vld [vmem:[%s1233 + $0x520] sm:$0xff]
                  %1564 = vst [vmem:[%s1234 + $0x290] sm:$0xff] %v1563
                  %v1565 = vld [vmem:[%s1233 + $0x528] sm:$0xff]
                  %1566 = vst [vmem:[%s1234 + $0x294] sm:$0xff] %v1565
                  %v1567 = vld [vmem:[%s1233 + $0x530] sm:$0xff]
                  %1568 = vst [vmem:[%s1234 + $0x298] sm:$0xff] %v1567
                  %v1569 = vld [vmem:[%s1233 + $0x538] sm:$0xff]
                  %1570 = vst [vmem:[%s1234 + $0x29c] sm:$0xff] %v1569
                  %v1571 = vld [vmem:[%s1233 + $0x540] sm:$0xff]
                  %1572 = vst [vmem:[%s1234 + $0x2a0] sm:$0xff] %v1571
                  %v1573 = vld [vmem:[%s1233 + $0x548] sm:$0xff]
                  %1574 = vst [vmem:[%s1234 + $0x2a4] sm:$0xff] %v1573
                  %v1575 = vld [vmem:[%s1233 + $0x550] sm:$0xff]
                  %1576 = vst [vmem:[%s1234 + $0x2a8] sm:$0xff] %v1575
                  %v1577 = vld [vmem:[%s1233 + $0x558] sm:$0xff]
                  %1578 = vst [vmem:[%s1234 + $0x2ac] sm:$0xff] %v1577
                  %v1579 = vld [vmem:[%s1233 + $0x560] sm:$0xff]
                  %1580 = vst [vmem:[%s1234 + $0x2b0] sm:$0xff] %v1579
                  %v1581 = vld [vmem:[%s1233 + $0x568] sm:$0xff]
                  %1582 = vst [vmem:[%s1234 + $0x2b4] sm:$0xff] %v1581
                  %v1583 = vld [vmem:[%s1233 + $0x570] sm:$0xff]
                  %1584 = vst [vmem:[%s1234 + $0x2b8] sm:$0xff] %v1583
                  %v1585 = vld [vmem:[%s1233 + $0x578] sm:$0xff]
                  %1586 = vst [vmem:[%s1234 + $0x2bc] sm:$0xff] %v1585
                  %v1587 = vld [vmem:[%s1233 + $0x580] sm:$0xff]
                  %1588 = vst [vmem:[%s1234 + $0x2c0] sm:$0xff] %v1587
                  %v1589 = vld [vmem:[%s1233 + $0x588] sm:$0xff]
                  %1590 = vst [vmem:[%s1234 + $0x2c4] sm:$0xff] %v1589
                  %v1591 = vld [vmem:[%s1233 + $0x590] sm:$0xff]
                  %1592 = vst [vmem:[%s1234 + $0x2c8] sm:$0xff] %v1591
                  %v1593 = vld [vmem:[%s1233 + $0x598] sm:$0xff]
                  %1594 = vst [vmem:[%s1234 + $0x2cc] sm:$0xff] %v1593
                  %v1595 = vld [vmem:[%s1233 + $0x5a0] sm:$0xff]
                  %1596 = vst [vmem:[%s1234 + $0x2d0] sm:$0xff] %v1595
                  %v1597 = vld [vmem:[%s1233 + $0x5a8] sm:$0xff]
                  %1598 = vst [vmem:[%s1234 + $0x2d4] sm:$0xff] %v1597
                  %v1599 = vld [vmem:[%s1233 + $0x5b0] sm:$0xff]
                  %1600 = vst [vmem:[%s1234 + $0x2d8] sm:$0xff] %v1599
                  %v1601 = vld [vmem:[%s1233 + $0x5b8] sm:$0xff]
                  %1602 = vst [vmem:[%s1234 + $0x2dc] sm:$0xff] %v1601
                  %v1603 = vld [vmem:[%s1233 + $0x5c0] sm:$0xff]
                  %1604 = vst [vmem:[%s1234 + $0x2e0] sm:$0xff] %v1603
                  %v1605 = vld [vmem:[%s1233 + $0x5c8] sm:$0xff]
                  %1606 = vst [vmem:[%s1234 + $0x2e4] sm:$0xff] %v1605
                  %v1607 = vld [vmem:[%s1233 + $0x5d0] sm:$0xff]
                  %1608 = vst [vmem:[%s1234 + $0x2e8] sm:$0xff] %v1607
                  %v1609 = vld [vmem:[%s1233 + $0x5d8] sm:$0xff]
                  %1610 = vst [vmem:[%s1234 + $0x2ec] sm:$0xff] %v1609
                  %v1611 = vld [vmem:[%s1233 + $0x5e0] sm:$0xff]
                  %1612 = vst [vmem:[%s1234 + $0x2f0] sm:$0xff] %v1611
                  %v1613 = vld [vmem:[%s1233 + $0x5e8] sm:$0xff]
                  %1614 = vst [vmem:[%s1234 + $0x2f4] sm:$0xff] %v1613
                  %v1615 = vld [vmem:[%s1233 + $0x5f0] sm:$0xff]
                  %1616 = vst [vmem:[%s1234 + $0x2f8] sm:$0xff] %v1615
                  %v1617 = vld [vmem:[%s1233 + $0x5f8] sm:$0xff]
                  %1618 = vst [vmem:[%s1234 + $0x2fc] sm:$0xff] %v1617
                  %v1619 = vld [vmem:[%s1233 + $0x600] sm:$0xff]
                  %1620 = vst [vmem:[%s1234 + $0x300] sm:$0xff] %v1619
                  %v1621 = vld [vmem:[%s1233 + $0x608] sm:$0xff]
                  %1622 = vst [vmem:[%s1234 + $0x304] sm:$0xff] %v1621
                  %v1623 = vld [vmem:[%s1233 + $0x610] sm:$0xff]
                  %1624 = vst [vmem:[%s1234 + $0x308] sm:$0xff] %v1623
                  %v1625 = vld [vmem:[%s1233 + $0x618] sm:$0xff]
                  %1626 = vst [vmem:[%s1234 + $0x30c] sm:$0xff] %v1625
                  %v1627 = vld [vmem:[%s1233 + $0x620] sm:$0xff]
                  %1628 = vst [vmem:[%s1234 + $0x310] sm:$0xff] %v1627
                  %v1629 = vld [vmem:[%s1233 + $0x628] sm:$0xff]
                  %1630 = vst [vmem:[%s1234 + $0x314] sm:$0xff] %v1629
                  %v1631 = vld [vmem:[%s1233 + $0x630] sm:$0xff]
                  %1632 = vst [vmem:[%s1234 + $0x318] sm:$0xff] %v1631
                  %v1633 = vld [vmem:[%s1233 + $0x638] sm:$0xff]
                  %1634 = vst [vmem:[%s1234 + $0x31c] sm:$0xff] %v1633
                  %v1635 = vld [vmem:[%s1233 + $0x640] sm:$0xff]
                  %1636 = vst [vmem:[%s1234 + $0x320] sm:$0xff] %v1635
                  %v1637 = vld [vmem:[%s1233 + $0x648] sm:$0xff]
                  %1638 = vst [vmem:[%s1234 + $0x324] sm:$0xff] %v1637
                  %v1639 = vld [vmem:[%s1233 + $0x650] sm:$0xff]
                  %1640 = vst [vmem:[%s1234 + $0x328] sm:$0xff] %v1639
                  %v1641 = vld [vmem:[%s1233 + $0x658] sm:$0xff]
                  %1642 = vst [vmem:[%s1234 + $0x32c] sm:$0xff] %v1641
                  %v1643 = vld [vmem:[%s1233 + $0x660] sm:$0xff]
                  %1644 = vst [vmem:[%s1234 + $0x330] sm:$0xff] %v1643
                  %v1645 = vld [vmem:[%s1233 + $0x668] sm:$0xff]
                  %1646 = vst [vmem:[%s1234 + $0x334] sm:$0xff] %v1645
                  %v1647 = vld [vmem:[%s1233 + $0x670] sm:$0xff]
                  %1648 = vst [vmem:[%s1234 + $0x338] sm:$0xff] %v1647
                  %v1649 = vld [vmem:[%s1233 + $0x678] sm:$0xff]
                  %1650 = vst [vmem:[%s1234 + $0x33c] sm:$0xff] %v1649
                  %v1651 = vld [vmem:[%s1233 + $0x680] sm:$0xff]
                  %1652 = vst [vmem:[%s1234 + $0x340] sm:$0xff] %v1651
                  %v1653 = vld [vmem:[%s1233 + $0x688] sm:$0xff]
                  %1654 = vst [vmem:[%s1234 + $0x344] sm:$0xff] %v1653
                  %v1655 = vld [vmem:[%s1233 + $0x690] sm:$0xff]
                  %1656 = vst [vmem:[%s1234 + $0x348] sm:$0xff] %v1655
                  %v1657 = vld [vmem:[%s1233 + $0x698] sm:$0xff]
                  %1658 = vst [vmem:[%s1234 + $0x34c] sm:$0xff] %v1657
                  %v1659 = vld [vmem:[%s1233 + $0x6a0] sm:$0xff]
                  %1660 = vst [vmem:[%s1234 + $0x350] sm:$0xff] %v1659
                  %v1661 = vld [vmem:[%s1233 + $0x6a8] sm:$0xff]
                  %1662 = vst [vmem:[%s1234 + $0x354] sm:$0xff] %v1661
                  %v1663 = vld [vmem:[%s1233 + $0x6b0] sm:$0xff]
                  %1664 = vst [vmem:[%s1234 + $0x358] sm:$0xff] %v1663
                  %v1665 = vld [vmem:[%s1233 + $0x6b8] sm:$0xff]
                  %1666 = vst [vmem:[%s1234 + $0x35c] sm:$0xff] %v1665
                  %v1667 = vld [vmem:[%s1233 + $0x6c0] sm:$0xff]
                  %1668 = vst [vmem:[%s1234 + $0x360] sm:$0xff] %v1667
                  %v1669 = vld [vmem:[%s1233 + $0x6c8] sm:$0xff]
                  %1670 = vst [vmem:[%s1234 + $0x364] sm:$0xff] %v1669
                  %v1671 = vld [vmem:[%s1233 + $0x6d0] sm:$0xff]
                  %1672 = vst [vmem:[%s1234 + $0x368] sm:$0xff] %v1671
                  %v1673 = vld [vmem:[%s1233 + $0x6d8] sm:$0xff]
                  %1674 = vst [vmem:[%s1234 + $0x36c] sm:$0xff] %v1673
                  %v1675 = vld [vmem:[%s1233 + $0x6e0] sm:$0xff]
                  %1676 = vst [vmem:[%s1234 + $0x370] sm:$0xff] %v1675
                  %v1677 = vld [vmem:[%s1233 + $0x6e8] sm:$0xff]
                  %1678 = vst [vmem:[%s1234 + $0x374] sm:$0xff] %v1677
                  %v1679 = vld [vmem:[%s1233 + $0x6f0] sm:$0xff]
                  %1680 = vst [vmem:[%s1234 + $0x378] sm:$0xff] %v1679
                  %v1681 = vld [vmem:[%s1233 + $0x6f8] sm:$0xff]
                  %1682 = vst [vmem:[%s1234 + $0x37c] sm:$0xff] %v1681
                  %v1683 = vld [vmem:[%s1233 + $0x700] sm:$0xff]
                  %1684 = vst [vmem:[%s1234 + $0x380] sm:$0xff] %v1683
                  %v1685 = vld [vmem:[%s1233 + $0x708] sm:$0xff]
                  %1686 = vst [vmem:[%s1234 + $0x384] sm:$0xff] %v1685
                  %v1687 = vld [vmem:[%s1233 + $0x710] sm:$0xff]
                  %1688 = vst [vmem:[%s1234 + $0x388] sm:$0xff] %v1687
                  %v1689 = vld [vmem:[%s1233 + $0x718] sm:$0xff]
                  %1690 = vst [vmem:[%s1234 + $0x38c] sm:$0xff] %v1689
                  %v1691 = vld [vmem:[%s1233 + $0x720] sm:$0xff]
                  %1692 = vst [vmem:[%s1234 + $0x390] sm:$0xff] %v1691
                  %v1693 = vld [vmem:[%s1233 + $0x728] sm:$0xff]
                  %1694 = vst [vmem:[%s1234 + $0x394] sm:$0xff] %v1693
                  %v1695 = vld [vmem:[%s1233 + $0x730] sm:$0xff]
                  %1696 = vst [vmem:[%s1234 + $0x398] sm:$0xff] %v1695
                  %v1697 = vld [vmem:[%s1233 + $0x738] sm:$0xff]
                  %1698 = vst [vmem:[%s1234 + $0x39c] sm:$0xff] %v1697
                  %v1699 = vld [vmem:[%s1233 + $0x740] sm:$0xff]
                  %1700 = vst [vmem:[%s1234 + $0x3a0] sm:$0xff] %v1699
                  %v1701 = vld [vmem:[%s1233 + $0x748] sm:$0xff]
                  %1702 = vst [vmem:[%s1234 + $0x3a4] sm:$0xff] %v1701
                  %v1703 = vld [vmem:[%s1233 + $0x750] sm:$0xff]
                  %1704 = vst [vmem:[%s1234 + $0x3a8] sm:$0xff] %v1703
                  %v1705 = vld [vmem:[%s1233 + $0x758] sm:$0xff]
                  %1706 = vst [vmem:[%s1234 + $0x3ac] sm:$0xff] %v1705
                  %v1707 = vld [vmem:[%s1233 + $0x760] sm:$0xff]
                  %1708 = vst [vmem:[%s1234 + $0x3b0] sm:$0xff] %v1707
                  %v1709 = vld [vmem:[%s1233 + $0x768] sm:$0xff]
                  %1710 = vst [vmem:[%s1234 + $0x3b4] sm:$0xff] %v1709
                  %v1711 = vld [vmem:[%s1233 + $0x770] sm:$0xff]
                  %1712 = vst [vmem:[%s1234 + $0x3b8] sm:$0xff] %v1711
                  %v1713 = vld [vmem:[%s1233 + $0x778] sm:$0xff]
                  %1714 = vst [vmem:[%s1234 + $0x3bc] sm:$0xff] %v1713
                  %v1715 = vld [vmem:[%s1233 + $0x780] sm:$0xff]
                  %1716 = vst [vmem:[%s1234 + $0x3c0] sm:$0xff] %v1715
                  %v1717 = vld [vmem:[%s1233 + $0x788] sm:$0xff]
                  %1718 = vst [vmem:[%s1234 + $0x3c4] sm:$0xff] %v1717
                  %v1719 = vld [vmem:[%s1233 + $0x790] sm:$0xff]
                  %1720 = vst [vmem:[%s1234 + $0x3c8] sm:$0xff] %v1719
                  %v1721 = vld [vmem:[%s1233 + $0x798] sm:$0xff]
                  %1722 = vst [vmem:[%s1234 + $0x3cc] sm:$0xff] %v1721
                  %v1723 = vld [vmem:[%s1233 + $0x7a0] sm:$0xff]
                  %1724 = vst [vmem:[%s1234 + $0x3d0] sm:$0xff] %v1723
                  %v1725 = vld [vmem:[%s1233 + $0x7a8] sm:$0xff]
                  %1726 = vst [vmem:[%s1234 + $0x3d4] sm:$0xff] %v1725
                  %v1727 = vld [vmem:[%s1233 + $0x7b0] sm:$0xff]
                  %1728 = vst [vmem:[%s1234 + $0x3d8] sm:$0xff] %v1727
                  %v1729 = vld [vmem:[%s1233 + $0x7b8] sm:$0xff]
                  %1730 = vst [vmem:[%s1234 + $0x3dc] sm:$0xff] %v1729
                  %v1731 = vld [vmem:[%s1233 + $0x7c0] sm:$0xff]
                  %1732 = vst [vmem:[%s1234 + $0x3e0] sm:$0xff] %v1731
                  %v1733 = vld [vmem:[%s1233 + $0x7c8] sm:$0xff]
                  %1734 = vst [vmem:[%s1234 + $0x3e4] sm:$0xff] %v1733
                  %v1735 = vld [vmem:[%s1233 + $0x7d0] sm:$0xff]
                  %1736 = vst [vmem:[%s1234 + $0x3e8] sm:$0xff] %v1735
                  %v1737 = vld [vmem:[%s1233 + $0x7d8] sm:$0xff]
                  %1738 = vst [vmem:[%s1234 + $0x3ec] sm:$0xff] %v1737
                  %v1739 = vld [vmem:[%s1233 + $0x7e0] sm:$0xff]
                  %1740 = vst [vmem:[%s1234 + $0x3f0] sm:$0xff] %v1739
                  %v1741 = vld [vmem:[%s1233 + $0x7e8] sm:$0xff]
                  %1742 = vst [vmem:[%s1234 + $0x3f4] sm:$0xff] %v1741
                  %v1743 = vld [vmem:[%s1233 + $0x7f0] sm:$0xff]
                  %1744 = vst [vmem:[%s1234 + $0x3f8] sm:$0xff] %v1743
                  %v1745 = vld [vmem:[%s1233 + $0x7f8] sm:$0xff]
                  %1746 = vst [vmem:[%s1234 + $0x3fc] sm:$0xff] %v1745
                  %s1747 = sadd.s32 1, %s1232
                  %p1748 = scmp.ge.s32.totalorder %s1747, 0
                  %s1749 = scalar_select %p1748, 0, %s1747
                  %s1750 = smul.u32 %s1749, 8
                  %s1751 = smul.u32 %s1749, 8
                  %s1752 = scalar_lea.vmem %s165, %s1750
                  %s1753 = scalar_lea.vmem %s163, %s1751 [#allocation2]
                $region63: #{discriminator_forward.8} parent=57 // loop_footer
                  %s1231 = sadd.s32 1, %s1227
                $region64: #{discriminator_forward.8} parent=57 // loop_footer_branch
                  %1226 = sbr.rel target = $region60
                $region65: #{discriminator_forward.8} parent=57 // loop_exit
                  _
                %s1755 = ssub.s32 16, 1
                loop: start=0, step=1, limit=1
                $region66: #{discriminator_forward.8} parent=57 // loop_pre_header
                  _
                $region67: #{discriminator_forward.8} parent=57 // loop_header
                  %s1757 = sphi 0, %s1761
                  %p1758 = scmp.ge.s32.totalorder %s1757, 1
                  %s1762 = sphi %s165, %s165
                  %s1763 = sphi %s163, %s163
                $region68: #{discriminator_forward.8} parent=57 // loop_header_branch
                  %1760 = sbr.rel (%p1758) target = $region72
                $region69: #{discriminator_forward.8} parent=57 // loop_body
                  %v1764 = vld [vmem:[%s1762] sm:%s1755]
                  %1765 = vst [vmem:[%s1763] sm:%s1755] %v1764
                  %v1766 = vld [vmem:[%s1762 + $0x8] sm:%s1755]
                  %1767 = vst [vmem:[%s1763 + $0x4] sm:%s1755] %v1766
                  %v1768 = vld [vmem:[%s1762 + $0x10] sm:%s1755]
                  %1769 = vst [vmem:[%s1763 + $0x8] sm:%s1755] %v1768
                  %v1770 = vld [vmem:[%s1762 + $0x18] sm:%s1755]
                  %1771 = vst [vmem:[%s1763 + $0xc] sm:%s1755] %v1770
                  %v1772 = vld [vmem:[%s1762 + $0x20] sm:%s1755]
                  %1773 = vst [vmem:[%s1763 + $0x10] sm:%s1755] %v1772
                  %v1774 = vld [vmem:[%s1762 + $0x28] sm:%s1755]
                  %1775 = vst [vmem:[%s1763 + $0x14] sm:%s1755] %v1774
                  %v1776 = vld [vmem:[%s1762 + $0x30] sm:%s1755]
                  %1777 = vst [vmem:[%s1763 + $0x18] sm:%s1755] %v1776
                  %v1778 = vld [vmem:[%s1762 + $0x38] sm:%s1755]
                  %1779 = vst [vmem:[%s1763 + $0x1c] sm:%s1755] %v1778
                  %v1780 = vld [vmem:[%s1762 + $0x40] sm:%s1755]
                  %1781 = vst [vmem:[%s1763 + $0x20] sm:%s1755] %v1780
                  %v1782 = vld [vmem:[%s1762 + $0x48] sm:%s1755]
                  %1783 = vst [vmem:[%s1763 + $0x24] sm:%s1755] %v1782
                  %v1784 = vld [vmem:[%s1762 + $0x50] sm:%s1755]
                  %1785 = vst [vmem:[%s1763 + $0x28] sm:%s1755] %v1784
                  %v1786 = vld [vmem:[%s1762 + $0x58] sm:%s1755]
                  %1787 = vst [vmem:[%s1763 + $0x2c] sm:%s1755] %v1786
                  %v1788 = vld [vmem:[%s1762 + $0x60] sm:%s1755]
                  %1789 = vst [vmem:[%s1763 + $0x30] sm:%s1755] %v1788
                  %v1790 = vld [vmem:[%s1762 + $0x68] sm:%s1755]
                  %1791 = vst [vmem:[%s1763 + $0x34] sm:%s1755] %v1790
                  %v1792 = vld [vmem:[%s1762 + $0x70] sm:%s1755]
                  %1793 = vst [vmem:[%s1763 + $0x38] sm:%s1755] %v1792
                  %v1794 = vld [vmem:[%s1762 + $0x78] sm:%s1755]
                  %1795 = vst [vmem:[%s1763 + $0x3c] sm:%s1755] %v1794
                  %v1796 = vld [vmem:[%s1762 + $0x80] sm:%s1755]
                  %1797 = vst [vmem:[%s1763 + $0x40] sm:%s1755] %v1796
                  %v1798 = vld [vmem:[%s1762 + $0x88] sm:%s1755]
                  %1799 = vst [vmem:[%s1763 + $0x44] sm:%s1755] %v1798
                  %v1800 = vld [vmem:[%s1762 + $0x90] sm:%s1755]
                  %1801 = vst [vmem:[%s1763 + $0x48] sm:%s1755] %v1800
                  %v1802 = vld [vmem:[%s1762 + $0x98] sm:%s1755]
                  %1803 = vst [vmem:[%s1763 + $0x4c] sm:%s1755] %v1802
                  %v1804 = vld [vmem:[%s1762 + $0xa0] sm:%s1755]
                  %1805 = vst [vmem:[%s1763 + $0x50] sm:%s1755] %v1804
                  %v1806 = vld [vmem:[%s1762 + $0xa8] sm:%s1755]
                  %1807 = vst [vmem:[%s1763 + $0x54] sm:%s1755] %v1806
                  %v1808 = vld [vmem:[%s1762 + $0xb0] sm:%s1755]
                  %1809 = vst [vmem:[%s1763 + $0x58] sm:%s1755] %v1808
                  %v1810 = vld [vmem:[%s1762 + $0xb8] sm:%s1755]
                  %1811 = vst [vmem:[%s1763 + $0x5c] sm:%s1755] %v1810
                  %v1812 = vld [vmem:[%s1762 + $0xc0] sm:%s1755]
                  %1813 = vst [vmem:[%s1763 + $0x60] sm:%s1755] %v1812
                  %v1814 = vld [vmem:[%s1762 + $0xc8] sm:%s1755]
                  %1815 = vst [vmem:[%s1763 + $0x64] sm:%s1755] %v1814
                  %v1816 = vld [vmem:[%s1762 + $0xd0] sm:%s1755]
                  %1817 = vst [vmem:[%s1763 + $0x68] sm:%s1755] %v1816
                  %v1818 = vld [vmem:[%s1762 + $0xd8] sm:%s1755]
                  %1819 = vst [vmem:[%s1763 + $0x6c] sm:%s1755] %v1818
                  %v1820 = vld [vmem:[%s1762 + $0xe0] sm:%s1755]
                  %1821 = vst [vmem:[%s1763 + $0x70] sm:%s1755] %v1820
                  %v1822 = vld [vmem:[%s1762 + $0xe8] sm:%s1755]
                  %1823 = vst [vmem:[%s1763 + $0x74] sm:%s1755] %v1822
                  %v1824 = vld [vmem:[%s1762 + $0xf0] sm:%s1755]
                  %1825 = vst [vmem:[%s1763 + $0x78] sm:%s1755] %v1824
                  %v1826 = vld [vmem:[%s1762 + $0xf8] sm:%s1755]
                  %1827 = vst [vmem:[%s1763 + $0x7c] sm:%s1755] %v1826
                  %v1828 = vld [vmem:[%s1762 + $0x100] sm:%s1755]
                  %1829 = vst [vmem:[%s1763 + $0x80] sm:%s1755] %v1828
                  %v1830 = vld [vmem:[%s1762 + $0x108] sm:%s1755]
                  %1831 = vst [vmem:[%s1763 + $0x84] sm:%s1755] %v1830
                  %v1832 = vld [vmem:[%s1762 + $0x110] sm:%s1755]
                  %1833 = vst [vmem:[%s1763 + $0x88] sm:%s1755] %v1832
                  %v1834 = vld [vmem:[%s1762 + $0x118] sm:%s1755]
                  %1835 = vst [vmem:[%s1763 + $0x8c] sm:%s1755] %v1834
                  %v1836 = vld [vmem:[%s1762 + $0x120] sm:%s1755]
                  %1837 = vst [vmem:[%s1763 + $0x90] sm:%s1755] %v1836
                  %v1838 = vld [vmem:[%s1762 + $0x128] sm:%s1755]
                  %1839 = vst [vmem:[%s1763 + $0x94] sm:%s1755] %v1838
                  %v1840 = vld [vmem:[%s1762 + $0x130] sm:%s1755]
                  %1841 = vst [vmem:[%s1763 + $0x98] sm:%s1755] %v1840
                  %v1842 = vld [vmem:[%s1762 + $0x138] sm:%s1755]
                  %1843 = vst [vmem:[%s1763 + $0x9c] sm:%s1755] %v1842
                  %v1844 = vld [vmem:[%s1762 + $0x140] sm:%s1755]
                  %1845 = vst [vmem:[%s1763 + $0xa0] sm:%s1755] %v1844
                  %v1846 = vld [vmem:[%s1762 + $0x148] sm:%s1755]
                  %1847 = vst [vmem:[%s1763 + $0xa4] sm:%s1755] %v1846
                  %v1848 = vld [vmem:[%s1762 + $0x150] sm:%s1755]
                  %1849 = vst [vmem:[%s1763 + $0xa8] sm:%s1755] %v1848
                  %v1850 = vld [vmem:[%s1762 + $0x158] sm:%s1755]
                  %1851 = vst [vmem:[%s1763 + $0xac] sm:%s1755] %v1850
                  %v1852 = vld [vmem:[%s1762 + $0x160] sm:%s1755]
                  %1853 = vst [vmem:[%s1763 + $0xb0] sm:%s1755] %v1852
                  %v1854 = vld [vmem:[%s1762 + $0x168] sm:%s1755]
                  %1855 = vst [vmem:[%s1763 + $0xb4] sm:%s1755] %v1854
                  %v1856 = vld [vmem:[%s1762 + $0x170] sm:%s1755]
                  %1857 = vst [vmem:[%s1763 + $0xb8] sm:%s1755] %v1856
                  %v1858 = vld [vmem:[%s1762 + $0x178] sm:%s1755]
                  %1859 = vst [vmem:[%s1763 + $0xbc] sm:%s1755] %v1858
                  %v1860 = vld [vmem:[%s1762 + $0x180] sm:%s1755]
                  %1861 = vst [vmem:[%s1763 + $0xc0] sm:%s1755] %v1860
                  %v1862 = vld [vmem:[%s1762 + $0x188] sm:%s1755]
                  %1863 = vst [vmem:[%s1763 + $0xc4] sm:%s1755] %v1862
                  %v1864 = vld [vmem:[%s1762 + $0x190] sm:%s1755]
                  %1865 = vst [vmem:[%s1763 + $0xc8] sm:%s1755] %v1864
                  %v1866 = vld [vmem:[%s1762 + $0x198] sm:%s1755]
                  %1867 = vst [vmem:[%s1763 + $0xcc] sm:%s1755] %v1866
                  %v1868 = vld [vmem:[%s1762 + $0x1a0] sm:%s1755]
                  %1869 = vst [vmem:[%s1763 + $0xd0] sm:%s1755] %v1868
                  %v1870 = vld [vmem:[%s1762 + $0x1a8] sm:%s1755]
                  %1871 = vst [vmem:[%s1763 + $0xd4] sm:%s1755] %v1870
                  %v1872 = vld [vmem:[%s1762 + $0x1b0] sm:%s1755]
                  %1873 = vst [vmem:[%s1763 + $0xd8] sm:%s1755] %v1872
                  %v1874 = vld [vmem:[%s1762 + $0x1b8] sm:%s1755]
                  %1875 = vst [vmem:[%s1763 + $0xdc] sm:%s1755] %v1874
                  %v1876 = vld [vmem:[%s1762 + $0x1c0] sm:%s1755]
                  %1877 = vst [vmem:[%s1763 + $0xe0] sm:%s1755] %v1876
                  %v1878 = vld [vmem:[%s1762 + $0x1c8] sm:%s1755]
                  %1879 = vst [vmem:[%s1763 + $0xe4] sm:%s1755] %v1878
                  %v1880 = vld [vmem:[%s1762 + $0x1d0] sm:%s1755]
                  %1881 = vst [vmem:[%s1763 + $0xe8] sm:%s1755] %v1880
                  %v1882 = vld [vmem:[%s1762 + $0x1d8] sm:%s1755]
                  %1883 = vst [vmem:[%s1763 + $0xec] sm:%s1755] %v1882
                  %v1884 = vld [vmem:[%s1762 + $0x1e0] sm:%s1755]
                  %1885 = vst [vmem:[%s1763 + $0xf0] sm:%s1755] %v1884
                  %v1886 = vld [vmem:[%s1762 + $0x1e8] sm:%s1755]
                  %1887 = vst [vmem:[%s1763 + $0xf4] sm:%s1755] %v1886
                  %v1888 = vld [vmem:[%s1762 + $0x1f0] sm:%s1755]
                  %1889 = vst [vmem:[%s1763 + $0xf8] sm:%s1755] %v1888
                  %v1890 = vld [vmem:[%s1762 + $0x1f8] sm:%s1755]
                  %1891 = vst [vmem:[%s1763 + $0xfc] sm:%s1755] %v1890
                  %v1892 = vld [vmem:[%s1762 + $0x200] sm:%s1755]
                  %1893 = vst [vmem:[%s1763 + $0x100] sm:%s1755] %v1892
                  %v1894 = vld [vmem:[%s1762 + $0x208] sm:%s1755]
                  %1895 = vst [vmem:[%s1763 + $0x104] sm:%s1755] %v1894
                  %v1896 = vld [vmem:[%s1762 + $0x210] sm:%s1755]
                  %1897 = vst [vmem:[%s1763 + $0x108] sm:%s1755] %v1896
                  %v1898 = vld [vmem:[%s1762 + $0x218] sm:%s1755]
                  %1899 = vst [vmem:[%s1763 + $0x10c] sm:%s1755] %v1898
                  %v1900 = vld [vmem:[%s1762 + $0x220] sm:%s1755]
                  %1901 = vst [vmem:[%s1763 + $0x110] sm:%s1755] %v1900
                  %v1902 = vld [vmem:[%s1762 + $0x228] sm:%s1755]
                  %1903 = vst [vmem:[%s1763 + $0x114] sm:%s1755] %v1902
                  %v1904 = vld [vmem:[%s1762 + $0x230] sm:%s1755]
                  %1905 = vst [vmem:[%s1763 + $0x118] sm:%s1755] %v1904
                  %v1906 = vld [vmem:[%s1762 + $0x238] sm:%s1755]
                  %1907 = vst [vmem:[%s1763 + $0x11c] sm:%s1755] %v1906
                  %v1908 = vld [vmem:[%s1762 + $0x240] sm:%s1755]
                  %1909 = vst [vmem:[%s1763 + $0x120] sm:%s1755] %v1908
                  %v1910 = vld [vmem:[%s1762 + $0x248] sm:%s1755]
                  %1911 = vst [vmem:[%s1763 + $0x124] sm:%s1755] %v1910
                  %v1912 = vld [vmem:[%s1762 + $0x250] sm:%s1755]
                  %1913 = vst [vmem:[%s1763 + $0x128] sm:%s1755] %v1912
                  %v1914 = vld [vmem:[%s1762 + $0x258] sm:%s1755]
                  %1915 = vst [vmem:[%s1763 + $0x12c] sm:%s1755] %v1914
                  %v1916 = vld [vmem:[%s1762 + $0x260] sm:%s1755]
                  %1917 = vst [vmem:[%s1763 + $0x130] sm:%s1755] %v1916
                  %v1918 = vld [vmem:[%s1762 + $0x268] sm:%s1755]
                  %1919 = vst [vmem:[%s1763 + $0x134] sm:%s1755] %v1918
                  %v1920 = vld [vmem:[%s1762 + $0x270] sm:%s1755]
                  %1921 = vst [vmem:[%s1763 + $0x138] sm:%s1755] %v1920
                  %v1922 = vld [vmem:[%s1762 + $0x278] sm:%s1755]
                  %1923 = vst [vmem:[%s1763 + $0x13c] sm:%s1755] %v1922
                  %v1924 = vld [vmem:[%s1762 + $0x280] sm:%s1755]
                  %1925 = vst [vmem:[%s1763 + $0x140] sm:%s1755] %v1924
                  %v1926 = vld [vmem:[%s1762 + $0x288] sm:%s1755]
                  %1927 = vst [vmem:[%s1763 + $0x144] sm:%s1755] %v1926
                  %v1928 = vld [vmem:[%s1762 + $0x290] sm:%s1755]
                  %1929 = vst [vmem:[%s1763 + $0x148] sm:%s1755] %v1928
                  %v1930 = vld [vmem:[%s1762 + $0x298] sm:%s1755]
                  %1931 = vst [vmem:[%s1763 + $0x14c] sm:%s1755] %v1930
                  %v1932 = vld [vmem:[%s1762 + $0x2a0] sm:%s1755]
                  %1933 = vst [vmem:[%s1763 + $0x150] sm:%s1755] %v1932
                  %v1934 = vld [vmem:[%s1762 + $0x2a8] sm:%s1755]
                  %1935 = vst [vmem:[%s1763 + $0x154] sm:%s1755] %v1934
                  %v1936 = vld [vmem:[%s1762 + $0x2b0] sm:%s1755]
                  %1937 = vst [vmem:[%s1763 + $0x158] sm:%s1755] %v1936
                  %v1938 = vld [vmem:[%s1762 + $0x2b8] sm:%s1755]
                  %1939 = vst [vmem:[%s1763 + $0x15c] sm:%s1755] %v1938
                  %v1940 = vld [vmem:[%s1762 + $0x2c0] sm:%s1755]
                  %1941 = vst [vmem:[%s1763 + $0x160] sm:%s1755] %v1940
                  %v1942 = vld [vmem:[%s1762 + $0x2c8] sm:%s1755]
                  %1943 = vst [vmem:[%s1763 + $0x164] sm:%s1755] %v1942
                  %v1944 = vld [vmem:[%s1762 + $0x2d0] sm:%s1755]
                  %1945 = vst [vmem:[%s1763 + $0x168] sm:%s1755] %v1944
                  %v1946 = vld [vmem:[%s1762 + $0x2d8] sm:%s1755]
                  %1947 = vst [vmem:[%s1763 + $0x16c] sm:%s1755] %v1946
                  %v1948 = vld [vmem:[%s1762 + $0x2e0] sm:%s1755]
                  %1949 = vst [vmem:[%s1763 + $0x170] sm:%s1755] %v1948
                  %v1950 = vld [vmem:[%s1762 + $0x2e8] sm:%s1755]
                  %1951 = vst [vmem:[%s1763 + $0x174] sm:%s1755] %v1950
                  %v1952 = vld [vmem:[%s1762 + $0x2f0] sm:%s1755]
                  %1953 = vst [vmem:[%s1763 + $0x178] sm:%s1755] %v1952
                  %v1954 = vld [vmem:[%s1762 + $0x2f8] sm:%s1755]
                  %1955 = vst [vmem:[%s1763 + $0x17c] sm:%s1755] %v1954
                  %v1956 = vld [vmem:[%s1762 + $0x300] sm:%s1755]
                  %1957 = vst [vmem:[%s1763 + $0x180] sm:%s1755] %v1956
                  %v1958 = vld [vmem:[%s1762 + $0x308] sm:%s1755]
                  %1959 = vst [vmem:[%s1763 + $0x184] sm:%s1755] %v1958
                  %v1960 = vld [vmem:[%s1762 + $0x310] sm:%s1755]
                  %1961 = vst [vmem:[%s1763 + $0x188] sm:%s1755] %v1960
                  %v1962 = vld [vmem:[%s1762 + $0x318] sm:%s1755]
                  %1963 = vst [vmem:[%s1763 + $0x18c] sm:%s1755] %v1962
                  %v1964 = vld [vmem:[%s1762 + $0x320] sm:%s1755]
                  %1965 = vst [vmem:[%s1763 + $0x190] sm:%s1755] %v1964
                  %v1966 = vld [vmem:[%s1762 + $0x328] sm:%s1755]
                  %1967 = vst [vmem:[%s1763 + $0x194] sm:%s1755] %v1966
                  %v1968 = vld [vmem:[%s1762 + $0x330] sm:%s1755]
                  %1969 = vst [vmem:[%s1763 + $0x198] sm:%s1755] %v1968
                  %v1970 = vld [vmem:[%s1762 + $0x338] sm:%s1755]
                  %1971 = vst [vmem:[%s1763 + $0x19c] sm:%s1755] %v1970
                  %v1972 = vld [vmem:[%s1762 + $0x340] sm:%s1755]
                  %1973 = vst [vmem:[%s1763 + $0x1a0] sm:%s1755] %v1972
                  %v1974 = vld [vmem:[%s1762 + $0x348] sm:%s1755]
                  %1975 = vst [vmem:[%s1763 + $0x1a4] sm:%s1755] %v1974
                  %v1976 = vld [vmem:[%s1762 + $0x350] sm:%s1755]
                  %1977 = vst [vmem:[%s1763 + $0x1a8] sm:%s1755] %v1976
                  %v1978 = vld [vmem:[%s1762 + $0x358] sm:%s1755]
                  %1979 = vst [vmem:[%s1763 + $0x1ac] sm:%s1755] %v1978
                  %v1980 = vld [vmem:[%s1762 + $0x360] sm:%s1755]
                  %1981 = vst [vmem:[%s1763 + $0x1b0] sm:%s1755] %v1980
                  %v1982 = vld [vmem:[%s1762 + $0x368] sm:%s1755]
                  %1983 = vst [vmem:[%s1763 + $0x1b4] sm:%s1755] %v1982
                  %v1984 = vld [vmem:[%s1762 + $0x370] sm:%s1755]
                  %1985 = vst [vmem:[%s1763 + $0x1b8] sm:%s1755] %v1984
                  %v1986 = vld [vmem:[%s1762 + $0x378] sm:%s1755]
                  %1987 = vst [vmem:[%s1763 + $0x1bc] sm:%s1755] %v1986
                  %v1988 = vld [vmem:[%s1762 + $0x380] sm:%s1755]
                  %1989 = vst [vmem:[%s1763 + $0x1c0] sm:%s1755] %v1988
                  %v1990 = vld [vmem:[%s1762 + $0x388] sm:%s1755]
                  %1991 = vst [vmem:[%s1763 + $0x1c4] sm:%s1755] %v1990
                  %v1992 = vld [vmem:[%s1762 + $0x390] sm:%s1755]
                  %1993 = vst [vmem:[%s1763 + $0x1c8] sm:%s1755] %v1992
                  %v1994 = vld [vmem:[%s1762 + $0x398] sm:%s1755]
                  %1995 = vst [vmem:[%s1763 + $0x1cc] sm:%s1755] %v1994
                  %v1996 = vld [vmem:[%s1762 + $0x3a0] sm:%s1755]
                  %1997 = vst [vmem:[%s1763 + $0x1d0] sm:%s1755] %v1996
                  %v1998 = vld [vmem:[%s1762 + $0x3a8] sm:%s1755]
                  %1999 = vst [vmem:[%s1763 + $0x1d4] sm:%s1755] %v1998
                  %v2000 = vld [vmem:[%s1762 + $0x3b0] sm:%s1755]
                  %2001 = vst [vmem:[%s1763 + $0x1d8] sm:%s1755] %v2000
                  %v2002 = vld [vmem:[%s1762 + $0x3b8] sm:%s1755]
                  %2003 = vst [vmem:[%s1763 + $0x1dc] sm:%s1755] %v2002
                  %v2004 = vld [vmem:[%s1762 + $0x3c0] sm:%s1755]
                  %2005 = vst [vmem:[%s1763 + $0x1e0] sm:%s1755] %v2004
                  %v2006 = vld [vmem:[%s1762 + $0x3c8] sm:%s1755]
                  %2007 = vst [vmem:[%s1763 + $0x1e4] sm:%s1755] %v2006
                  %v2008 = vld [vmem:[%s1762 + $0x3d0] sm:%s1755]
                  %2009 = vst [vmem:[%s1763 + $0x1e8] sm:%s1755] %v2008
                  %v2010 = vld [vmem:[%s1762 + $0x3d8] sm:%s1755]
                  %2011 = vst [vmem:[%s1763 + $0x1ec] sm:%s1755] %v2010
                  %v2012 = vld [vmem:[%s1762 + $0x3e0] sm:%s1755]
                  %2013 = vst [vmem:[%s1763 + $0x1f0] sm:%s1755] %v2012
                  %v2014 = vld [vmem:[%s1762 + $0x3e8] sm:%s1755]
                  %2015 = vst [vmem:[%s1763 + $0x1f4] sm:%s1755] %v2014
                  %v2016 = vld [vmem:[%s1762 + $0x3f0] sm:%s1755]
                  %2017 = vst [vmem:[%s1763 + $0x1f8] sm:%s1755] %v2016
                  %v2018 = vld [vmem:[%s1762 + $0x3f8] sm:%s1755]
                  %2019 = vst [vmem:[%s1763 + $0x1fc] sm:%s1755] %v2018
                  %v2020 = vld [vmem:[%s1762 + $0x400] sm:%s1755]
                  %2021 = vst [vmem:[%s1763 + $0x200] sm:%s1755] %v2020
                  %v2022 = vld [vmem:[%s1762 + $0x408] sm:%s1755]
                  %2023 = vst [vmem:[%s1763 + $0x204] sm:%s1755] %v2022
                  %v2024 = vld [vmem:[%s1762 + $0x410] sm:%s1755]
                  %2025 = vst [vmem:[%s1763 + $0x208] sm:%s1755] %v2024
                  %v2026 = vld [vmem:[%s1762 + $0x418] sm:%s1755]
                  %2027 = vst [vmem:[%s1763 + $0x20c] sm:%s1755] %v2026
                  %v2028 = vld [vmem:[%s1762 + $0x420] sm:%s1755]
                  %2029 = vst [vmem:[%s1763 + $0x210] sm:%s1755] %v2028
                  %v2030 = vld [vmem:[%s1762 + $0x428] sm:%s1755]
                  %2031 = vst [vmem:[%s1763 + $0x214] sm:%s1755] %v2030
                  %v2032 = vld [vmem:[%s1762 + $0x430] sm:%s1755]
                  %2033 = vst [vmem:[%s1763 + $0x218] sm:%s1755] %v2032
                  %v2034 = vld [vmem:[%s1762 + $0x438] sm:%s1755]
                  %2035 = vst [vmem:[%s1763 + $0x21c] sm:%s1755] %v2034
                  %v2036 = vld [vmem:[%s1762 + $0x440] sm:%s1755]
                  %2037 = vst [vmem:[%s1763 + $0x220] sm:%s1755] %v2036
                  %v2038 = vld [vmem:[%s1762 + $0x448] sm:%s1755]
                  %2039 = vst [vmem:[%s1763 + $0x224] sm:%s1755] %v2038
                  %v2040 = vld [vmem:[%s1762 + $0x450] sm:%s1755]
                  %2041 = vst [vmem:[%s1763 + $0x228] sm:%s1755] %v2040
                  %v2042 = vld [vmem:[%s1762 + $0x458] sm:%s1755]
                  %2043 = vst [vmem:[%s1763 + $0x22c] sm:%s1755] %v2042
                  %v2044 = vld [vmem:[%s1762 + $0x460] sm:%s1755]
                  %2045 = vst [vmem:[%s1763 + $0x230] sm:%s1755] %v2044
                  %v2046 = vld [vmem:[%s1762 + $0x468] sm:%s1755]
                  %2047 = vst [vmem:[%s1763 + $0x234] sm:%s1755] %v2046
                  %v2048 = vld [vmem:[%s1762 + $0x470] sm:%s1755]
                  %2049 = vst [vmem:[%s1763 + $0x238] sm:%s1755] %v2048
                  %v2050 = vld [vmem:[%s1762 + $0x478] sm:%s1755]
                  %2051 = vst [vmem:[%s1763 + $0x23c] sm:%s1755] %v2050
                  %v2052 = vld [vmem:[%s1762 + $0x480] sm:%s1755]
                  %2053 = vst [vmem:[%s1763 + $0x240] sm:%s1755] %v2052
                  %v2054 = vld [vmem:[%s1762 + $0x488] sm:%s1755]
                  %2055 = vst [vmem:[%s1763 + $0x244] sm:%s1755] %v2054
                  %v2056 = vld [vmem:[%s1762 + $0x490] sm:%s1755]
                  %2057 = vst [vmem:[%s1763 + $0x248] sm:%s1755] %v2056
                  %v2058 = vld [vmem:[%s1762 + $0x498] sm:%s1755]
                  %2059 = vst [vmem:[%s1763 + $0x24c] sm:%s1755] %v2058
                  %v2060 = vld [vmem:[%s1762 + $0x4a0] sm:%s1755]
                  %2061 = vst [vmem:[%s1763 + $0x250] sm:%s1755] %v2060
                  %v2062 = vld [vmem:[%s1762 + $0x4a8] sm:%s1755]
                  %2063 = vst [vmem:[%s1763 + $0x254] sm:%s1755] %v2062
                  %v2064 = vld [vmem:[%s1762 + $0x4b0] sm:%s1755]
                  %2065 = vst [vmem:[%s1763 + $0x258] sm:%s1755] %v2064
                  %v2066 = vld [vmem:[%s1762 + $0x4b8] sm:%s1755]
                  %2067 = vst [vmem:[%s1763 + $0x25c] sm:%s1755] %v2066
                  %v2068 = vld [vmem:[%s1762 + $0x4c0] sm:%s1755]
                  %2069 = vst [vmem:[%s1763 + $0x260] sm:%s1755] %v2068
                  %v2070 = vld [vmem:[%s1762 + $0x4c8] sm:%s1755]
                  %2071 = vst [vmem:[%s1763 + $0x264] sm:%s1755] %v2070
                  %v2072 = vld [vmem:[%s1762 + $0x4d0] sm:%s1755]
                  %2073 = vst [vmem:[%s1763 + $0x268] sm:%s1755] %v2072
                  %v2074 = vld [vmem:[%s1762 + $0x4d8] sm:%s1755]
                  %2075 = vst [vmem:[%s1763 + $0x26c] sm:%s1755] %v2074
                  %v2076 = vld [vmem:[%s1762 + $0x4e0] sm:%s1755]
                  %2077 = vst [vmem:[%s1763 + $0x270] sm:%s1755] %v2076
                  %v2078 = vld [vmem:[%s1762 + $0x4e8] sm:%s1755]
                  %2079 = vst [vmem:[%s1763 + $0x274] sm:%s1755] %v2078
                  %v2080 = vld [vmem:[%s1762 + $0x4f0] sm:%s1755]
                  %2081 = vst [vmem:[%s1763 + $0x278] sm:%s1755] %v2080
                  %v2082 = vld [vmem:[%s1762 + $0x4f8] sm:%s1755]
                  %2083 = vst [vmem:[%s1763 + $0x27c] sm:%s1755] %v2082
                  %v2084 = vld [vmem:[%s1762 + $0x500] sm:%s1755]
                  %2085 = vst [vmem:[%s1763 + $0x280] sm:%s1755] %v2084
                  %v2086 = vld [vmem:[%s1762 + $0x508] sm:%s1755]
                  %2087 = vst [vmem:[%s1763 + $0x284] sm:%s1755] %v2086
                  %v2088 = vld [vmem:[%s1762 + $0x510] sm:%s1755]
                  %2089 = vst [vmem:[%s1763 + $0x288] sm:%s1755] %v2088
                  %v2090 = vld [vmem:[%s1762 + $0x518] sm:%s1755]
                  %2091 = vst [vmem:[%s1763 + $0x28c] sm:%s1755] %v2090
                  %v2092 = vld [vmem:[%s1762 + $0x520] sm:%s1755]
                  %2093 = vst [vmem:[%s1763 + $0x290] sm:%s1755] %v2092
                  %v2094 = vld [vmem:[%s1762 + $0x528] sm:%s1755]
                  %2095 = vst [vmem:[%s1763 + $0x294] sm:%s1755] %v2094
                  %v2096 = vld [vmem:[%s1762 + $0x530] sm:%s1755]
                  %2097 = vst [vmem:[%s1763 + $0x298] sm:%s1755] %v2096
                  %v2098 = vld [vmem:[%s1762 + $0x538] sm:%s1755]
                  %2099 = vst [vmem:[%s1763 + $0x29c] sm:%s1755] %v2098
                  %v2100 = vld [vmem:[%s1762 + $0x540] sm:%s1755]
                  %2101 = vst [vmem:[%s1763 + $0x2a0] sm:%s1755] %v2100
                  %v2102 = vld [vmem:[%s1762 + $0x548] sm:%s1755]
                  %2103 = vst [vmem:[%s1763 + $0x2a4] sm:%s1755] %v2102
                  %v2104 = vld [vmem:[%s1762 + $0x550] sm:%s1755]
                  %2105 = vst [vmem:[%s1763 + $0x2a8] sm:%s1755] %v2104
                  %v2106 = vld [vmem:[%s1762 + $0x558] sm:%s1755]
                  %2107 = vst [vmem:[%s1763 + $0x2ac] sm:%s1755] %v2106
                  %v2108 = vld [vmem:[%s1762 + $0x560] sm:%s1755]
                  %2109 = vst [vmem:[%s1763 + $0x2b0] sm:%s1755] %v2108
                  %v2110 = vld [vmem:[%s1762 + $0x568] sm:%s1755]
                  %2111 = vst [vmem:[%s1763 + $0x2b4] sm:%s1755] %v2110
                  %v2112 = vld [vmem:[%s1762 + $0x570] sm:%s1755]
                  %2113 = vst [vmem:[%s1763 + $0x2b8] sm:%s1755] %v2112
                  %v2114 = vld [vmem:[%s1762 + $0x578] sm:%s1755]
                  %2115 = vst [vmem:[%s1763 + $0x2bc] sm:%s1755] %v2114
                  %v2116 = vld [vmem:[%s1762 + $0x580] sm:%s1755]
                  %2117 = vst [vmem:[%s1763 + $0x2c0] sm:%s1755] %v2116
                  %v2118 = vld [vmem:[%s1762 + $0x588] sm:%s1755]
                  %2119 = vst [vmem:[%s1763 + $0x2c4] sm:%s1755] %v2118
                  %v2120 = vld [vmem:[%s1762 + $0x590] sm:%s1755]
                  %2121 = vst [vmem:[%s1763 + $0x2c8] sm:%s1755] %v2120
                  %v2122 = vld [vmem:[%s1762 + $0x598] sm:%s1755]
                  %2123 = vst [vmem:[%s1763 + $0x2cc] sm:%s1755] %v2122
                  %v2124 = vld [vmem:[%s1762 + $0x5a0] sm:%s1755]
                  %2125 = vst [vmem:[%s1763 + $0x2d0] sm:%s1755] %v2124
                  %v2126 = vld [vmem:[%s1762 + $0x5a8] sm:%s1755]
                  %2127 = vst [vmem:[%s1763 + $0x2d4] sm:%s1755] %v2126
                  %v2128 = vld [vmem:[%s1762 + $0x5b0] sm:%s1755]
                  %2129 = vst [vmem:[%s1763 + $0x2d8] sm:%s1755] %v2128
                  %v2130 = vld [vmem:[%s1762 + $0x5b8] sm:%s1755]
                  %2131 = vst [vmem:[%s1763 + $0x2dc] sm:%s1755] %v2130
                  %v2132 = vld [vmem:[%s1762 + $0x5c0] sm:%s1755]
                  %2133 = vst [vmem:[%s1763 + $0x2e0] sm:%s1755] %v2132
                  %v2134 = vld [vmem:[%s1762 + $0x5c8] sm:%s1755]
                  %2135 = vst [vmem:[%s1763 + $0x2e4] sm:%s1755] %v2134
                  %v2136 = vld [vmem:[%s1762 + $0x5d0] sm:%s1755]
                  %2137 = vst [vmem:[%s1763 + $0x2e8] sm:%s1755] %v2136
                  %v2138 = vld [vmem:[%s1762 + $0x5d8] sm:%s1755]
                  %2139 = vst [vmem:[%s1763 + $0x2ec] sm:%s1755] %v2138
                  %v2140 = vld [vmem:[%s1762 + $0x5e0] sm:%s1755]
                  %2141 = vst [vmem:[%s1763 + $0x2f0] sm:%s1755] %v2140
                  %v2142 = vld [vmem:[%s1762 + $0x5e8] sm:%s1755]
                  %2143 = vst [vmem:[%s1763 + $0x2f4] sm:%s1755] %v2142
                  %v2144 = vld [vmem:[%s1762 + $0x5f0] sm:%s1755]
                  %2145 = vst [vmem:[%s1763 + $0x2f8] sm:%s1755] %v2144
                  %v2146 = vld [vmem:[%s1762 + $0x5f8] sm:%s1755]
                  %2147 = vst [vmem:[%s1763 + $0x2fc] sm:%s1755] %v2146
                  %v2148 = vld [vmem:[%s1762 + $0x600] sm:%s1755]
                  %2149 = vst [vmem:[%s1763 + $0x300] sm:%s1755] %v2148
                  %v2150 = vld [vmem:[%s1762 + $0x608] sm:%s1755]
                  %2151 = vst [vmem:[%s1763 + $0x304] sm:%s1755] %v2150
                  %v2152 = vld [vmem:[%s1762 + $0x610] sm:%s1755]
                  %2153 = vst [vmem:[%s1763 + $0x308] sm:%s1755] %v2152
                  %v2154 = vld [vmem:[%s1762 + $0x618] sm:%s1755]
                  %2155 = vst [vmem:[%s1763 + $0x30c] sm:%s1755] %v2154
                  %v2156 = vld [vmem:[%s1762 + $0x620] sm:%s1755]
                  %2157 = vst [vmem:[%s1763 + $0x310] sm:%s1755] %v2156
                  %v2158 = vld [vmem:[%s1762 + $0x628] sm:%s1755]
                  %2159 = vst [vmem:[%s1763 + $0x314] sm:%s1755] %v2158
                  %v2160 = vld [vmem:[%s1762 + $0x630] sm:%s1755]
                  %2161 = vst [vmem:[%s1763 + $0x318] sm:%s1755] %v2160
                  %v2162 = vld [vmem:[%s1762 + $0x638] sm:%s1755]
                  %2163 = vst [vmem:[%s1763 + $0x31c] sm:%s1755] %v2162
                  %v2164 = vld [vmem:[%s1762 + $0x640] sm:%s1755]
                  %2165 = vst [vmem:[%s1763 + $0x320] sm:%s1755] %v2164
                  %v2166 = vld [vmem:[%s1762 + $0x648] sm:%s1755]
                  %2167 = vst [vmem:[%s1763 + $0x324] sm:%s1755] %v2166
                  %v2168 = vld [vmem:[%s1762 + $0x650] sm:%s1755]
                  %2169 = vst [vmem:[%s1763 + $0x328] sm:%s1755] %v2168
                  %v2170 = vld [vmem:[%s1762 + $0x658] sm:%s1755]
                  %2171 = vst [vmem:[%s1763 + $0x32c] sm:%s1755] %v2170
                  %v2172 = vld [vmem:[%s1762 + $0x660] sm:%s1755]
                  %2173 = vst [vmem:[%s1763 + $0x330] sm:%s1755] %v2172
                  %v2174 = vld [vmem:[%s1762 + $0x668] sm:%s1755]
                  %2175 = vst [vmem:[%s1763 + $0x334] sm:%s1755] %v2174
                  %v2176 = vld [vmem:[%s1762 + $0x670] sm:%s1755]
                  %2177 = vst [vmem:[%s1763 + $0x338] sm:%s1755] %v2176
                  %v2178 = vld [vmem:[%s1762 + $0x678] sm:%s1755]
                  %2179 = vst [vmem:[%s1763 + $0x33c] sm:%s1755] %v2178
                  %v2180 = vld [vmem:[%s1762 + $0x680] sm:%s1755]
                  %2181 = vst [vmem:[%s1763 + $0x340] sm:%s1755] %v2180
                  %v2182 = vld [vmem:[%s1762 + $0x688] sm:%s1755]
                  %2183 = vst [vmem:[%s1763 + $0x344] sm:%s1755] %v2182
                  %v2184 = vld [vmem:[%s1762 + $0x690] sm:%s1755]
                  %2185 = vst [vmem:[%s1763 + $0x348] sm:%s1755] %v2184
                  %v2186 = vld [vmem:[%s1762 + $0x698] sm:%s1755]
                  %2187 = vst [vmem:[%s1763 + $0x34c] sm:%s1755] %v2186
                  %v2188 = vld [vmem:[%s1762 + $0x6a0] sm:%s1755]
                  %2189 = vst [vmem:[%s1763 + $0x350] sm:%s1755] %v2188
                  %v2190 = vld [vmem:[%s1762 + $0x6a8] sm:%s1755]
                  %2191 = vst [vmem:[%s1763 + $0x354] sm:%s1755] %v2190
                  %v2192 = vld [vmem:[%s1762 + $0x6b0] sm:%s1755]
                  %2193 = vst [vmem:[%s1763 + $0x358] sm:%s1755] %v2192
                  %v2194 = vld [vmem:[%s1762 + $0x6b8] sm:%s1755]
                  %2195 = vst [vmem:[%s1763 + $0x35c] sm:%s1755] %v2194
                  %v2196 = vld [vmem:[%s1762 + $0x6c0] sm:%s1755]
                  %2197 = vst [vmem:[%s1763 + $0x360] sm:%s1755] %v2196
                  %v2198 = vld [vmem:[%s1762 + $0x6c8] sm:%s1755]
                  %2199 = vst [vmem:[%s1763 + $0x364] sm:%s1755] %v2198
                  %v2200 = vld [vmem:[%s1762 + $0x6d0] sm:%s1755]
                  %2201 = vst [vmem:[%s1763 + $0x368] sm:%s1755] %v2200
                  %v2202 = vld [vmem:[%s1762 + $0x6d8] sm:%s1755]
                  %2203 = vst [vmem:[%s1763 + $0x36c] sm:%s1755] %v2202
                  %v2204 = vld [vmem:[%s1762 + $0x6e0] sm:%s1755]
                  %2205 = vst [vmem:[%s1763 + $0x370] sm:%s1755] %v2204
                  %v2206 = vld [vmem:[%s1762 + $0x6e8] sm:%s1755]
                  %2207 = vst [vmem:[%s1763 + $0x374] sm:%s1755] %v2206
                  %v2208 = vld [vmem:[%s1762 + $0x6f0] sm:%s1755]
                  %2209 = vst [vmem:[%s1763 + $0x378] sm:%s1755] %v2208
                  %v2210 = vld [vmem:[%s1762 + $0x6f8] sm:%s1755]
                  %2211 = vst [vmem:[%s1763 + $0x37c] sm:%s1755] %v2210
                  %v2212 = vld [vmem:[%s1762 + $0x700] sm:%s1755]
                  %2213 = vst [vmem:[%s1763 + $0x380] sm:%s1755] %v2212
                  %v2214 = vld [vmem:[%s1762 + $0x708] sm:%s1755]
                  %2215 = vst [vmem:[%s1763 + $0x384] sm:%s1755] %v2214
                  %v2216 = vld [vmem:[%s1762 + $0x710] sm:%s1755]
                  %2217 = vst [vmem:[%s1763 + $0x388] sm:%s1755] %v2216
                  %v2218 = vld [vmem:[%s1762 + $0x718] sm:%s1755]
                  %2219 = vst [vmem:[%s1763 + $0x38c] sm:%s1755] %v2218
                  %v2220 = vld [vmem:[%s1762 + $0x720] sm:%s1755]
                  %2221 = vst [vmem:[%s1763 + $0x390] sm:%s1755] %v2220
                  %v2222 = vld [vmem:[%s1762 + $0x728] sm:%s1755]
                  %2223 = vst [vmem:[%s1763 + $0x394] sm:%s1755] %v2222
                  %v2224 = vld [vmem:[%s1762 + $0x730] sm:%s1755]
                  %2225 = vst [vmem:[%s1763 + $0x398] sm:%s1755] %v2224
                  %v2226 = vld [vmem:[%s1762 + $0x738] sm:%s1755]
                  %2227 = vst [vmem:[%s1763 + $0x39c] sm:%s1755] %v2226
                  %v2228 = vld [vmem:[%s1762 + $0x740] sm:%s1755]
                  %2229 = vst [vmem:[%s1763 + $0x3a0] sm:%s1755] %v2228
                  %v2230 = vld [vmem:[%s1762 + $0x748] sm:%s1755]
                  %2231 = vst [vmem:[%s1763 + $0x3a4] sm:%s1755] %v2230
                  %v2232 = vld [vmem:[%s1762 + $0x750] sm:%s1755]
                  %2233 = vst [vmem:[%s1763 + $0x3a8] sm:%s1755] %v2232
                  %v2234 = vld [vmem:[%s1762 + $0x758] sm:%s1755]
                  %2235 = vst [vmem:[%s1763 + $0x3ac] sm:%s1755] %v2234
                  %v2236 = vld [vmem:[%s1762 + $0x760] sm:%s1755]
                  %2237 = vst [vmem:[%s1763 + $0x3b0] sm:%s1755] %v2236
                  %v2238 = vld [vmem:[%s1762 + $0x768] sm:%s1755]
                  %2239 = vst [vmem:[%s1763 + $0x3b4] sm:%s1755] %v2238
                  %v2240 = vld [vmem:[%s1762 + $0x770] sm:%s1755]
                  %2241 = vst [vmem:[%s1763 + $0x3b8] sm:%s1755] %v2240
                  %v2242 = vld [vmem:[%s1762 + $0x778] sm:%s1755]
                  %2243 = vst [vmem:[%s1763 + $0x3bc] sm:%s1755] %v2242
                  %v2244 = vld [vmem:[%s1762 + $0x780] sm:%s1755]
                  %2245 = vst [vmem:[%s1763 + $0x3c0] sm:%s1755] %v2244
                  %v2246 = vld [vmem:[%s1762 + $0x788] sm:%s1755]
                  %2247 = vst [vmem:[%s1763 + $0x3c4] sm:%s1755] %v2246
                  %v2248 = vld [vmem:[%s1762 + $0x790] sm:%s1755]
                  %2249 = vst [vmem:[%s1763 + $0x3c8] sm:%s1755] %v2248
                  %v2250 = vld [vmem:[%s1762 + $0x798] sm:%s1755]
                  %2251 = vst [vmem:[%s1763 + $0x3cc] sm:%s1755] %v2250
                  %v2252 = vld [vmem:[%s1762 + $0x7a0] sm:%s1755]
                  %2253 = vst [vmem:[%s1763 + $0x3d0] sm:%s1755] %v2252
                  %v2254 = vld [vmem:[%s1762 + $0x7a8] sm:%s1755]
                  %2255 = vst [vmem:[%s1763 + $0x3d4] sm:%s1755] %v2254
                  %v2256 = vld [vmem:[%s1762 + $0x7b0] sm:%s1755]
                  %2257 = vst [vmem:[%s1763 + $0x3d8] sm:%s1755] %v2256
                  %v2258 = vld [vmem:[%s1762 + $0x7b8] sm:%s1755]
                  %2259 = vst [vmem:[%s1763 + $0x3dc] sm:%s1755] %v2258
                  %v2260 = vld [vmem:[%s1762 + $0x7c0] sm:%s1755]
                  %2261 = vst [vmem:[%s1763 + $0x3e0] sm:%s1755] %v2260
                  %v2262 = vld [vmem:[%s1762 + $0x7c8] sm:%s1755]
                  %2263 = vst [vmem:[%s1763 + $0x3e4] sm:%s1755] %v2262
                  %v2264 = vld [vmem:[%s1762 + $0x7d0] sm:%s1755]
                  %2265 = vst [vmem:[%s1763 + $0x3e8] sm:%s1755] %v2264
                  %v2266 = vld [vmem:[%s1762 + $0x7d8] sm:%s1755]
                  %2267 = vst [vmem:[%s1763 + $0x3ec] sm:%s1755] %v2266
                  %v2268 = vld [vmem:[%s1762 + $0x7e0] sm:%s1755]
                  %2269 = vst [vmem:[%s1763 + $0x3f0] sm:%s1755] %v2268
                  %v2270 = vld [vmem:[%s1762 + $0x7e8] sm:%s1755]
                  %2271 = vst [vmem:[%s1763 + $0x3f4] sm:%s1755] %v2270
                  %v2272 = vld [vmem:[%s1762 + $0x7f0] sm:%s1755]
                  %2273 = vst [vmem:[%s1763 + $0x3f8] sm:%s1755] %v2272
                  %v2274 = vld [vmem:[%s1762 + $0x7f8] sm:%s1755]
                  %2275 = vst [vmem:[%s1763 + $0x3fc] sm:%s1755] %v2274
                $region70: #{discriminator_forward.8} parent=57 // loop_footer
                  %s1761 = sadd.s32 1, %s1757
                $region71: #{discriminator_forward.8} parent=57 // loop_footer_branch
                  %1756 = sbr.rel target = $region67
                $region72: #{discriminator_forward.8} parent=57 // loop_exit
                  _
              $region58: #{discriminator_forward.8} parent=31 // pred_fallthru
                _
            $region32: #{discriminator_forward.8} parent=27 // pred_fallthru
              _
            // Predicated region
            $region33: #{discriminator_forward.8} parent=27 // pred_check
              _
            $region34: #{discriminator_forward.8} parent=27 // pred_check_branch
              %171 = sbr.rel (0) target = $region36
            $region35: #{discriminator_forward.8} parent=27 // pred_region
              %s173 = ssub.s32 16, 1
              loop: start=0, step=1, limit=1
              $region37: #{discriminator_forward.8} parent=35 // loop_pre_header
                _
              $region38: #{discriminator_forward.8} parent=35 // loop_header
                %s175 = sphi 0, %s179
                %p176 = scmp.ge.s32.totalorder %s175, 1
                %s180 = sphi %s165, %s165
                %s181 = sphi %s163, %s163
              $region39: #{discriminator_forward.8} parent=35 // loop_header_branch
                %178 = sbr.rel (%p176) target = $region43
              $region40: #{discriminator_forward.8} parent=35 // loop_body
                %v182 = vld [vmem:[%s180] sm:%s173]
                %183 = vst [vmem:[%s181] sm:%s173] %v182
                %v184 = vld [vmem:[%s180 + $0x8] sm:%s173]
                %185 = vst [vmem:[%s181 + $0x4] sm:%s173] %v184
                %v186 = vld [vmem:[%s180 + $0x10] sm:%s173]
                %187 = vst [vmem:[%s181 + $0x8] sm:%s173] %v186
                %v188 = vld [vmem:[%s180 + $0x18] sm:%s173]
                %189 = vst [vmem:[%s181 + $0xc] sm:%s173] %v188
                %v190 = vld [vmem:[%s180 + $0x20] sm:%s173]
                %191 = vst [vmem:[%s181 + $0x10] sm:%s173] %v190
                %v192 = vld [vmem:[%s180 + $0x28] sm:%s173]
                %193 = vst [vmem:[%s181 + $0x14] sm:%s173] %v192
                %v194 = vld [vmem:[%s180 + $0x30] sm:%s173]
                %195 = vst [vmem:[%s181 + $0x18] sm:%s173] %v194
                %v196 = vld [vmem:[%s180 + $0x38] sm:%s173]
                %197 = vst [vmem:[%s181 + $0x1c] sm:%s173] %v196
                %v198 = vld [vmem:[%s180 + $0x40] sm:%s173]
                %199 = vst [vmem:[%s181 + $0x20] sm:%s173] %v198
                %v200 = vld [vmem:[%s180 + $0x48] sm:%s173]
                %201 = vst [vmem:[%s181 + $0x24] sm:%s173] %v200
                %v202 = vld [vmem:[%s180 + $0x50] sm:%s173]
                %203 = vst [vmem:[%s181 + $0x28] sm:%s173] %v202
                %v204 = vld [vmem:[%s180 + $0x58] sm:%s173]
                %205 = vst [vmem:[%s181 + $0x2c] sm:%s173] %v204
                %v206 = vld [vmem:[%s180 + $0x60] sm:%s173]
                %207 = vst [vmem:[%s181 + $0x30] sm:%s173] %v206
                %v208 = vld [vmem:[%s180 + $0x68] sm:%s173]
                %209 = vst [vmem:[%s181 + $0x34] sm:%s173] %v208
                %v210 = vld [vmem:[%s180 + $0x70] sm:%s173]
                %211 = vst [vmem:[%s181 + $0x38] sm:%s173] %v210
                %v212 = vld [vmem:[%s180 + $0x78] sm:%s173]
                %213 = vst [vmem:[%s181 + $0x3c] sm:%s173] %v212
                %v214 = vld [vmem:[%s180 + $0x80] sm:%s173]
                %215 = vst [vmem:[%s181 + $0x40] sm:%s173] %v214
                %v216 = vld [vmem:[%s180 + $0x88] sm:%s173]
                %217 = vst [vmem:[%s181 + $0x44] sm:%s173] %v216
                %v218 = vld [vmem:[%s180 + $0x90] sm:%s173]
                %219 = vst [vmem:[%s181 + $0x48] sm:%s173] %v218
                %v220 = vld [vmem:[%s180 + $0x98] sm:%s173]
                %221 = vst [vmem:[%s181 + $0x4c] sm:%s173] %v220
                %v222 = vld [vmem:[%s180 + $0xa0] sm:%s173]
                %223 = vst [vmem:[%s181 + $0x50] sm:%s173] %v222
                %v224 = vld [vmem:[%s180 + $0xa8] sm:%s173]
                %225 = vst [vmem:[%s181 + $0x54] sm:%s173] %v224
                %v226 = vld [vmem:[%s180 + $0xb0] sm:%s173]
                %227 = vst [vmem:[%s181 + $0x58] sm:%s173] %v226
                %v228 = vld [vmem:[%s180 + $0xb8] sm:%s173]
                %229 = vst [vmem:[%s181 + $0x5c] sm:%s173] %v228
                %v230 = vld [vmem:[%s180 + $0xc0] sm:%s173]
                %231 = vst [vmem:[%s181 + $0x60] sm:%s173] %v230
                %v232 = vld [vmem:[%s180 + $0xc8] sm:%s173]
                %233 = vst [vmem:[%s181 + $0x64] sm:%s173] %v232
                %v234 = vld [vmem:[%s180 + $0xd0] sm:%s173]
                %235 = vst [vmem:[%s181 + $0x68] sm:%s173] %v234
                %v236 = vld [vmem:[%s180 + $0xd8] sm:%s173]
                %237 = vst [vmem:[%s181 + $0x6c] sm:%s173] %v236
                %v238 = vld [vmem:[%s180 + $0xe0] sm:%s173]
                %239 = vst [vmem:[%s181 + $0x70] sm:%s173] %v238
                %v240 = vld [vmem:[%s180 + $0xe8] sm:%s173]
                %241 = vst [vmem:[%s181 + $0x74] sm:%s173] %v240
                %v242 = vld [vmem:[%s180 + $0xf0] sm:%s173]
                %243 = vst [vmem:[%s181 + $0x78] sm:%s173] %v242
                %v244 = vld [vmem:[%s180 + $0xf8] sm:%s173]
                %245 = vst [vmem:[%s181 + $0x7c] sm:%s173] %v244
                %v246 = vld [vmem:[%s180 + $0x100] sm:%s173]
                %247 = vst [vmem:[%s181 + $0x80] sm:%s173] %v246
                %v248 = vld [vmem:[%s180 + $0x108] sm:%s173]
                %249 = vst [vmem:[%s181 + $0x84] sm:%s173] %v248
                %v250 = vld [vmem:[%s180 + $0x110] sm:%s173]
                %251 = vst [vmem:[%s181 + $0x88] sm:%s173] %v250
                %v252 = vld [vmem:[%s180 + $0x118] sm:%s173]
                %253 = vst [vmem:[%s181 + $0x8c] sm:%s173] %v252
                %v254 = vld [vmem:[%s180 + $0x120] sm:%s173]
                %255 = vst [vmem:[%s181 + $0x90] sm:%s173] %v254
                %v256 = vld [vmem:[%s180 + $0x128] sm:%s173]
                %257 = vst [vmem:[%s181 + $0x94] sm:%s173] %v256
                %v258 = vld [vmem:[%s180 + $0x130] sm:%s173]
                %259 = vst [vmem:[%s181 + $0x98] sm:%s173] %v258
                %v260 = vld [vmem:[%s180 + $0x138] sm:%s173]
                %261 = vst [vmem:[%s181 + $0x9c] sm:%s173] %v260
                %v262 = vld [vmem:[%s180 + $0x140] sm:%s173]
                %263 = vst [vmem:[%s181 + $0xa0] sm:%s173] %v262
                %v264 = vld [vmem:[%s180 + $0x148] sm:%s173]
                %265 = vst [vmem:[%s181 + $0xa4] sm:%s173] %v264
                %v266 = vld [vmem:[%s180 + $0x150] sm:%s173]
                %267 = vst [vmem:[%s181 + $0xa8] sm:%s173] %v266
                %v268 = vld [vmem:[%s180 + $0x158] sm:%s173]
                %269 = vst [vmem:[%s181 + $0xac] sm:%s173] %v268
                %v270 = vld [vmem:[%s180 + $0x160] sm:%s173]
                %271 = vst [vmem:[%s181 + $0xb0] sm:%s173] %v270
                %v272 = vld [vmem:[%s180 + $0x168] sm:%s173]
                %273 = vst [vmem:[%s181 + $0xb4] sm:%s173] %v272
                %v274 = vld [vmem:[%s180 + $0x170] sm:%s173]
                %275 = vst [vmem:[%s181 + $0xb8] sm:%s173] %v274
                %v276 = vld [vmem:[%s180 + $0x178] sm:%s173]
                %277 = vst [vmem:[%s181 + $0xbc] sm:%s173] %v276
                %v278 = vld [vmem:[%s180 + $0x180] sm:%s173]
                %279 = vst [vmem:[%s181 + $0xc0] sm:%s173] %v278
                %v280 = vld [vmem:[%s180 + $0x188] sm:%s173]
                %281 = vst [vmem:[%s181 + $0xc4] sm:%s173] %v280
                %v282 = vld [vmem:[%s180 + $0x190] sm:%s173]
                %283 = vst [vmem:[%s181 + $0xc8] sm:%s173] %v282
                %v284 = vld [vmem:[%s180 + $0x198] sm:%s173]
                %285 = vst [vmem:[%s181 + $0xcc] sm:%s173] %v284
                %v286 = vld [vmem:[%s180 + $0x1a0] sm:%s173]
                %287 = vst [vmem:[%s181 + $0xd0] sm:%s173] %v286
                %v288 = vld [vmem:[%s180 + $0x1a8] sm:%s173]
                %289 = vst [vmem:[%s181 + $0xd4] sm:%s173] %v288
                %v290 = vld [vmem:[%s180 + $0x1b0] sm:%s173]
                %291 = vst [vmem:[%s181 + $0xd8] sm:%s173] %v290
                %v292 = vld [vmem:[%s180 + $0x1b8] sm:%s173]
                %293 = vst [vmem:[%s181 + $0xdc] sm:%s173] %v292
                %v294 = vld [vmem:[%s180 + $0x1c0] sm:%s173]
                %295 = vst [vmem:[%s181 + $0xe0] sm:%s173] %v294
                %v296 = vld [vmem:[%s180 + $0x1c8] sm:%s173]
                %297 = vst [vmem:[%s181 + $0xe4] sm:%s173] %v296
                %v298 = vld [vmem:[%s180 + $0x1d0] sm:%s173]
                %299 = vst [vmem:[%s181 + $0xe8] sm:%s173] %v298
                %v300 = vld [vmem:[%s180 + $0x1d8] sm:%s173]
                %301 = vst [vmem:[%s181 + $0xec] sm:%s173] %v300
                %v302 = vld [vmem:[%s180 + $0x1e0] sm:%s173]
                %303 = vst [vmem:[%s181 + $0xf0] sm:%s173] %v302
                %v304 = vld [vmem:[%s180 + $0x1e8] sm:%s173]
                %305 = vst [vmem:[%s181 + $0xf4] sm:%s173] %v304
                %v306 = vld [vmem:[%s180 + $0x1f0] sm:%s173]
                %307 = vst [vmem:[%s181 + $0xf8] sm:%s173] %v306
                %v308 = vld [vmem:[%s180 + $0x1f8] sm:%s173]
                %309 = vst [vmem:[%s181 + $0xfc] sm:%s173] %v308
                %v310 = vld [vmem:[%s180 + $0x200] sm:%s173]
                %311 = vst [vmem:[%s181 + $0x100] sm:%s173] %v310
                %v312 = vld [vmem:[%s180 + $0x208] sm:%s173]
                %313 = vst [vmem:[%s181 + $0x104] sm:%s173] %v312
                %v314 = vld [vmem:[%s180 + $0x210] sm:%s173]
                %315 = vst [vmem:[%s181 + $0x108] sm:%s173] %v314
                %v316 = vld [vmem:[%s180 + $0x218] sm:%s173]
                %317 = vst [vmem:[%s181 + $0x10c] sm:%s173] %v316
                %v318 = vld [vmem:[%s180 + $0x220] sm:%s173]
                %319 = vst [vmem:[%s181 + $0x110] sm:%s173] %v318
                %v320 = vld [vmem:[%s180 + $0x228] sm:%s173]
                %321 = vst [vmem:[%s181 + $0x114] sm:%s173] %v320
                %v322 = vld [vmem:[%s180 + $0x230] sm:%s173]
                %323 = vst [vmem:[%s181 + $0x118] sm:%s173] %v322
                %v324 = vld [vmem:[%s180 + $0x238] sm:%s173]
                %325 = vst [vmem:[%s181 + $0x11c] sm:%s173] %v324
                %v326 = vld [vmem:[%s180 + $0x240] sm:%s173]
                %327 = vst [vmem:[%s181 + $0x120] sm:%s173] %v326
                %v328 = vld [vmem:[%s180 + $0x248] sm:%s173]
                %329 = vst [vmem:[%s181 + $0x124] sm:%s173] %v328
                %v330 = vld [vmem:[%s180 + $0x250] sm:%s173]
                %331 = vst [vmem:[%s181 + $0x128] sm:%s173] %v330
                %v332 = vld [vmem:[%s180 + $0x258] sm:%s173]
                %333 = vst [vmem:[%s181 + $0x12c] sm:%s173] %v332
                %v334 = vld [vmem:[%s180 + $0x260] sm:%s173]
                %335 = vst [vmem:[%s181 + $0x130] sm:%s173] %v334
                %v336 = vld [vmem:[%s180 + $0x268] sm:%s173]
                %337 = vst [vmem:[%s181 + $0x134] sm:%s173] %v336
                %v338 = vld [vmem:[%s180 + $0x270] sm:%s173]
                %339 = vst [vmem:[%s181 + $0x138] sm:%s173] %v338
                %v340 = vld [vmem:[%s180 + $0x278] sm:%s173]
                %341 = vst [vmem:[%s181 + $0x13c] sm:%s173] %v340
                %v342 = vld [vmem:[%s180 + $0x280] sm:%s173]
                %343 = vst [vmem:[%s181 + $0x140] sm:%s173] %v342
                %v344 = vld [vmem:[%s180 + $0x288] sm:%s173]
                %345 = vst [vmem:[%s181 + $0x144] sm:%s173] %v344
                %v346 = vld [vmem:[%s180 + $0x290] sm:%s173]
                %347 = vst [vmem:[%s181 + $0x148] sm:%s173] %v346
                %v348 = vld [vmem:[%s180 + $0x298] sm:%s173]
                %349 = vst [vmem:[%s181 + $0x14c] sm:%s173] %v348
                %v350 = vld [vmem:[%s180 + $0x2a0] sm:%s173]
                %351 = vst [vmem:[%s181 + $0x150] sm:%s173] %v350
                %v352 = vld [vmem:[%s180 + $0x2a8] sm:%s173]
                %353 = vst [vmem:[%s181 + $0x154] sm:%s173] %v352
                %v354 = vld [vmem:[%s180 + $0x2b0] sm:%s173]
                %355 = vst [vmem:[%s181 + $0x158] sm:%s173] %v354
                %v356 = vld [vmem:[%s180 + $0x2b8] sm:%s173]
                %357 = vst [vmem:[%s181 + $0x15c] sm:%s173] %v356
                %v358 = vld [vmem:[%s180 + $0x2c0] sm:%s173]
                %359 = vst [vmem:[%s181 + $0x160] sm:%s173] %v358
                %v360 = vld [vmem:[%s180 + $0x2c8] sm:%s173]
                %361 = vst [vmem:[%s181 + $0x164] sm:%s173] %v360
                %v362 = vld [vmem:[%s180 + $0x2d0] sm:%s173]
                %363 = vst [vmem:[%s181 + $0x168] sm:%s173] %v362
                %v364 = vld [vmem:[%s180 + $0x2d8] sm:%s173]
                %365 = vst [vmem:[%s181 + $0x16c] sm:%s173] %v364
                %v366 = vld [vmem:[%s180 + $0x2e0] sm:%s173]
                %367 = vst [vmem:[%s181 + $0x170] sm:%s173] %v366
                %v368 = vld [vmem:[%s180 + $0x2e8] sm:%s173]
                %369 = vst [vmem:[%s181 + $0x174] sm:%s173] %v368
                %v370 = vld [vmem:[%s180 + $0x2f0] sm:%s173]
                %371 = vst [vmem:[%s181 + $0x178] sm:%s173] %v370
                %v372 = vld [vmem:[%s180 + $0x2f8] sm:%s173]
                %373 = vst [vmem:[%s181 + $0x17c] sm:%s173] %v372
                %v374 = vld [vmem:[%s180 + $0x300] sm:%s173]
                %375 = vst [vmem:[%s181 + $0x180] sm:%s173] %v374
                %v376 = vld [vmem:[%s180 + $0x308] sm:%s173]
                %377 = vst [vmem:[%s181 + $0x184] sm:%s173] %v376
                %v378 = vld [vmem:[%s180 + $0x310] sm:%s173]
                %379 = vst [vmem:[%s181 + $0x188] sm:%s173] %v378
                %v380 = vld [vmem:[%s180 + $0x318] sm:%s173]
                %381 = vst [vmem:[%s181 + $0x18c] sm:%s173] %v380
                %v382 = vld [vmem:[%s180 + $0x320] sm:%s173]
                %383 = vst [vmem:[%s181 + $0x190] sm:%s173] %v382
                %v384 = vld [vmem:[%s180 + $0x328] sm:%s173]
                %385 = vst [vmem:[%s181 + $0x194] sm:%s173] %v384
                %v386 = vld [vmem:[%s180 + $0x330] sm:%s173]
                %387 = vst [vmem:[%s181 + $0x198] sm:%s173] %v386
                %v388 = vld [vmem:[%s180 + $0x338] sm:%s173]
                %389 = vst [vmem:[%s181 + $0x19c] sm:%s173] %v388
                %v390 = vld [vmem:[%s180 + $0x340] sm:%s173]
                %391 = vst [vmem:[%s181 + $0x1a0] sm:%s173] %v390
                %v392 = vld [vmem:[%s180 + $0x348] sm:%s173]
                %393 = vst [vmem:[%s181 + $0x1a4] sm:%s173] %v392
                %v394 = vld [vmem:[%s180 + $0x350] sm:%s173]
                %395 = vst [vmem:[%s181 + $0x1a8] sm:%s173] %v394
                %v396 = vld [vmem:[%s180 + $0x358] sm:%s173]
                %397 = vst [vmem:[%s181 + $0x1ac] sm:%s173] %v396
                %v398 = vld [vmem:[%s180 + $0x360] sm:%s173]
                %399 = vst [vmem:[%s181 + $0x1b0] sm:%s173] %v398
                %v400 = vld [vmem:[%s180 + $0x368] sm:%s173]
                %401 = vst [vmem:[%s181 + $0x1b4] sm:%s173] %v400
                %v402 = vld [vmem:[%s180 + $0x370] sm:%s173]
                %403 = vst [vmem:[%s181 + $0x1b8] sm:%s173] %v402
                %v404 = vld [vmem:[%s180 + $0x378] sm:%s173]
                %405 = vst [vmem:[%s181 + $0x1bc] sm:%s173] %v404
                %v406 = vld [vmem:[%s180 + $0x380] sm:%s173]
                %407 = vst [vmem:[%s181 + $0x1c0] sm:%s173] %v406
                %v408 = vld [vmem:[%s180 + $0x388] sm:%s173]
                %409 = vst [vmem:[%s181 + $0x1c4] sm:%s173] %v408
                %v410 = vld [vmem:[%s180 + $0x390] sm:%s173]
                %411 = vst [vmem:[%s181 + $0x1c8] sm:%s173] %v410
                %v412 = vld [vmem:[%s180 + $0x398] sm:%s173]
                %413 = vst [vmem:[%s181 + $0x1cc] sm:%s173] %v412
                %v414 = vld [vmem:[%s180 + $0x3a0] sm:%s173]
                %415 = vst [vmem:[%s181 + $0x1d0] sm:%s173] %v414
                %v416 = vld [vmem:[%s180 + $0x3a8] sm:%s173]
                %417 = vst [vmem:[%s181 + $0x1d4] sm:%s173] %v416
                %v418 = vld [vmem:[%s180 + $0x3b0] sm:%s173]
                %419 = vst [vmem:[%s181 + $0x1d8] sm:%s173] %v418
                %v420 = vld [vmem:[%s180 + $0x3b8] sm:%s173]
                %421 = vst [vmem:[%s181 + $0x1dc] sm:%s173] %v420
                %v422 = vld [vmem:[%s180 + $0x3c0] sm:%s173]
                %423 = vst [vmem:[%s181 + $0x1e0] sm:%s173] %v422
                %v424 = vld [vmem:[%s180 + $0x3c8] sm:%s173]
                %425 = vst [vmem:[%s181 + $0x1e4] sm:%s173] %v424
                %v426 = vld [vmem:[%s180 + $0x3d0] sm:%s173]
                %427 = vst [vmem:[%s181 + $0x1e8] sm:%s173] %v426
                %v428 = vld [vmem:[%s180 + $0x3d8] sm:%s173]
                %429 = vst [vmem:[%s181 + $0x1ec] sm:%s173] %v428
                %v430 = vld [vmem:[%s180 + $0x3e0] sm:%s173]
                %431 = vst [vmem:[%s181 + $0x1f0] sm:%s173] %v430
                %v432 = vld [vmem:[%s180 + $0x3e8] sm:%s173]
                %433 = vst [vmem:[%s181 + $0x1f4] sm:%s173] %v432
                %v434 = vld [vmem:[%s180 + $0x3f0] sm:%s173]
                %435 = vst [vmem:[%s181 + $0x1f8] sm:%s173] %v434
                %v436 = vld [vmem:[%s180 + $0x3f8] sm:%s173]
                %437 = vst [vmem:[%s181 + $0x1fc] sm:%s173] %v436
                %v438 = vld [vmem:[%s180 + $0x400] sm:%s173]
                %439 = vst [vmem:[%s181 + $0x200] sm:%s173] %v438
                %v440 = vld [vmem:[%s180 + $0x408] sm:%s173]
                %441 = vst [vmem:[%s181 + $0x204] sm:%s173] %v440
                %v442 = vld [vmem:[%s180 + $0x410] sm:%s173]
                %443 = vst [vmem:[%s181 + $0x208] sm:%s173] %v442
                %v444 = vld [vmem:[%s180 + $0x418] sm:%s173]
                %445 = vst [vmem:[%s181 + $0x20c] sm:%s173] %v444
                %v446 = vld [vmem:[%s180 + $0x420] sm:%s173]
                %447 = vst [vmem:[%s181 + $0x210] sm:%s173] %v446
                %v448 = vld [vmem:[%s180 + $0x428] sm:%s173]
                %449 = vst [vmem:[%s181 + $0x214] sm:%s173] %v448
                %v450 = vld [vmem:[%s180 + $0x430] sm:%s173]
                %451 = vst [vmem:[%s181 + $0x218] sm:%s173] %v450
                %v452 = vld [vmem:[%s180 + $0x438] sm:%s173]
                %453 = vst [vmem:[%s181 + $0x21c] sm:%s173] %v452
                %v454 = vld [vmem:[%s180 + $0x440] sm:%s173]
                %455 = vst [vmem:[%s181 + $0x220] sm:%s173] %v454
                %v456 = vld [vmem:[%s180 + $0x448] sm:%s173]
                %457 = vst [vmem:[%s181 + $0x224] sm:%s173] %v456
                %v458 = vld [vmem:[%s180 + $0x450] sm:%s173]
                %459 = vst [vmem:[%s181 + $0x228] sm:%s173] %v458
                %v460 = vld [vmem:[%s180 + $0x458] sm:%s173]
                %461 = vst [vmem:[%s181 + $0x22c] sm:%s173] %v460
                %v462 = vld [vmem:[%s180 + $0x460] sm:%s173]
                %463 = vst [vmem:[%s181 + $0x230] sm:%s173] %v462
                %v464 = vld [vmem:[%s180 + $0x468] sm:%s173]
                %465 = vst [vmem:[%s181 + $0x234] sm:%s173] %v464
                %v466 = vld [vmem:[%s180 + $0x470] sm:%s173]
                %467 = vst [vmem:[%s181 + $0x238] sm:%s173] %v466
                %v468 = vld [vmem:[%s180 + $0x478] sm:%s173]
                %469 = vst [vmem:[%s181 + $0x23c] sm:%s173] %v468
                %v470 = vld [vmem:[%s180 + $0x480] sm:%s173]
                %471 = vst [vmem:[%s181 + $0x240] sm:%s173] %v470
                %v472 = vld [vmem:[%s180 + $0x488] sm:%s173]
                %473 = vst [vmem:[%s181 + $0x244] sm:%s173] %v472
                %v474 = vld [vmem:[%s180 + $0x490] sm:%s173]
                %475 = vst [vmem:[%s181 + $0x248] sm:%s173] %v474
                %v476 = vld [vmem:[%s180 + $0x498] sm:%s173]
                %477 = vst [vmem:[%s181 + $0x24c] sm:%s173] %v476
                %v478 = vld [vmem:[%s180 + $0x4a0] sm:%s173]
                %479 = vst [vmem:[%s181 + $0x250] sm:%s173] %v478
                %v480 = vld [vmem:[%s180 + $0x4a8] sm:%s173]
                %481 = vst [vmem:[%s181 + $0x254] sm:%s173] %v480
                %v482 = vld [vmem:[%s180 + $0x4b0] sm:%s173]
                %483 = vst [vmem:[%s181 + $0x258] sm:%s173] %v482
                %v484 = vld [vmem:[%s180 + $0x4b8] sm:%s173]
                %485 = vst [vmem:[%s181 + $0x25c] sm:%s173] %v484
                %v486 = vld [vmem:[%s180 + $0x4c0] sm:%s173]
                %487 = vst [vmem:[%s181 + $0x260] sm:%s173] %v486
                %v488 = vld [vmem:[%s180 + $0x4c8] sm:%s173]
                %489 = vst [vmem:[%s181 + $0x264] sm:%s173] %v488
                %v490 = vld [vmem:[%s180 + $0x4d0] sm:%s173]
                %491 = vst [vmem:[%s181 + $0x268] sm:%s173] %v490
                %v492 = vld [vmem:[%s180 + $0x4d8] sm:%s173]
                %493 = vst [vmem:[%s181 + $0x26c] sm:%s173] %v492
                %v494 = vld [vmem:[%s180 + $0x4e0] sm:%s173]
                %495 = vst [vmem:[%s181 + $0x270] sm:%s173] %v494
                %v496 = vld [vmem:[%s180 + $0x4e8] sm:%s173]
                %497 = vst [vmem:[%s181 + $0x274] sm:%s173] %v496
                %v498 = vld [vmem:[%s180 + $0x4f0] sm:%s173]
                %499 = vst [vmem:[%s181 + $0x278] sm:%s173] %v498
                %v500 = vld [vmem:[%s180 + $0x4f8] sm:%s173]
                %501 = vst [vmem:[%s181 + $0x27c] sm:%s173] %v500
                %v502 = vld [vmem:[%s180 + $0x500] sm:%s173]
                %503 = vst [vmem:[%s181 + $0x280] sm:%s173] %v502
                %v504 = vld [vmem:[%s180 + $0x508] sm:%s173]
                %505 = vst [vmem:[%s181 + $0x284] sm:%s173] %v504
                %v506 = vld [vmem:[%s180 + $0x510] sm:%s173]
                %507 = vst [vmem:[%s181 + $0x288] sm:%s173] %v506
                %v508 = vld [vmem:[%s180 + $0x518] sm:%s173]
                %509 = vst [vmem:[%s181 + $0x28c] sm:%s173] %v508
                %v510 = vld [vmem:[%s180 + $0x520] sm:%s173]
                %511 = vst [vmem:[%s181 + $0x290] sm:%s173] %v510
                %v512 = vld [vmem:[%s180 + $0x528] sm:%s173]
                %513 = vst [vmem:[%s181 + $0x294] sm:%s173] %v512
                %v514 = vld [vmem:[%s180 + $0x530] sm:%s173]
                %515 = vst [vmem:[%s181 + $0x298] sm:%s173] %v514
                %v516 = vld [vmem:[%s180 + $0x538] sm:%s173]
                %517 = vst [vmem:[%s181 + $0x29c] sm:%s173] %v516
                %v518 = vld [vmem:[%s180 + $0x540] sm:%s173]
                %519 = vst [vmem:[%s181 + $0x2a0] sm:%s173] %v518
                %v520 = vld [vmem:[%s180 + $0x548] sm:%s173]
                %521 = vst [vmem:[%s181 + $0x2a4] sm:%s173] %v520
                %v522 = vld [vmem:[%s180 + $0x550] sm:%s173]
                %523 = vst [vmem:[%s181 + $0x2a8] sm:%s173] %v522
                %v524 = vld [vmem:[%s180 + $0x558] sm:%s173]
                %525 = vst [vmem:[%s181 + $0x2ac] sm:%s173] %v524
                %v526 = vld [vmem:[%s180 + $0x560] sm:%s173]
                %527 = vst [vmem:[%s181 + $0x2b0] sm:%s173] %v526
                %v528 = vld [vmem:[%s180 + $0x568] sm:%s173]
                %529 = vst [vmem:[%s181 + $0x2b4] sm:%s173] %v528
                %v530 = vld [vmem:[%s180 + $0x570] sm:%s173]
                %531 = vst [vmem:[%s181 + $0x2b8] sm:%s173] %v530
                %v532 = vld [vmem:[%s180 + $0x578] sm:%s173]
                %533 = vst [vmem:[%s181 + $0x2bc] sm:%s173] %v532
                %v534 = vld [vmem:[%s180 + $0x580] sm:%s173]
                %535 = vst [vmem:[%s181 + $0x2c0] sm:%s173] %v534
                %v536 = vld [vmem:[%s180 + $0x588] sm:%s173]
                %537 = vst [vmem:[%s181 + $0x2c4] sm:%s173] %v536
                %v538 = vld [vmem:[%s180 + $0x590] sm:%s173]
                %539 = vst [vmem:[%s181 + $0x2c8] sm:%s173] %v538
                %v540 = vld [vmem:[%s180 + $0x598] sm:%s173]
                %541 = vst [vmem:[%s181 + $0x2cc] sm:%s173] %v540
                %v542 = vld [vmem:[%s180 + $0x5a0] sm:%s173]
                %543 = vst [vmem:[%s181 + $0x2d0] sm:%s173] %v542
                %v544 = vld [vmem:[%s180 + $0x5a8] sm:%s173]
                %545 = vst [vmem:[%s181 + $0x2d4] sm:%s173] %v544
                %v546 = vld [vmem:[%s180 + $0x5b0] sm:%s173]
                %547 = vst [vmem:[%s181 + $0x2d8] sm:%s173] %v546
                %v548 = vld [vmem:[%s180 + $0x5b8] sm:%s173]
                %549 = vst [vmem:[%s181 + $0x2dc] sm:%s173] %v548
                %v550 = vld [vmem:[%s180 + $0x5c0] sm:%s173]
                %551 = vst [vmem:[%s181 + $0x2e0] sm:%s173] %v550
                %v552 = vld [vmem:[%s180 + $0x5c8] sm:%s173]
                %553 = vst [vmem:[%s181 + $0x2e4] sm:%s173] %v552
                %v554 = vld [vmem:[%s180 + $0x5d0] sm:%s173]
                %555 = vst [vmem:[%s181 + $0x2e8] sm:%s173] %v554
                %v556 = vld [vmem:[%s180 + $0x5d8] sm:%s173]
                %557 = vst [vmem:[%s181 + $0x2ec] sm:%s173] %v556
                %v558 = vld [vmem:[%s180 + $0x5e0] sm:%s173]
                %559 = vst [vmem:[%s181 + $0x2f0] sm:%s173] %v558
                %v560 = vld [vmem:[%s180 + $0x5e8] sm:%s173]
                %561 = vst [vmem:[%s181 + $0x2f4] sm:%s173] %v560
                %v562 = vld [vmem:[%s180 + $0x5f0] sm:%s173]
                %563 = vst [vmem:[%s181 + $0x2f8] sm:%s173] %v562
                %v564 = vld [vmem:[%s180 + $0x5f8] sm:%s173]
                %565 = vst [vmem:[%s181 + $0x2fc] sm:%s173] %v564
                %v566 = vld [vmem:[%s180 + $0x600] sm:%s173]
                %567 = vst [vmem:[%s181 + $0x300] sm:%s173] %v566
                %v568 = vld [vmem:[%s180 + $0x608] sm:%s173]
                %569 = vst [vmem:[%s181 + $0x304] sm:%s173] %v568
                %v570 = vld [vmem:[%s180 + $0x610] sm:%s173]
                %571 = vst [vmem:[%s181 + $0x308] sm:%s173] %v570
                %v572 = vld [vmem:[%s180 + $0x618] sm:%s173]
                %573 = vst [vmem:[%s181 + $0x30c] sm:%s173] %v572
                %v574 = vld [vmem:[%s180 + $0x620] sm:%s173]
                %575 = vst [vmem:[%s181 + $0x310] sm:%s173] %v574
                %v576 = vld [vmem:[%s180 + $0x628] sm:%s173]
                %577 = vst [vmem:[%s181 + $0x314] sm:%s173] %v576
                %v578 = vld [vmem:[%s180 + $0x630] sm:%s173]
                %579 = vst [vmem:[%s181 + $0x318] sm:%s173] %v578
                %v580 = vld [vmem:[%s180 + $0x638] sm:%s173]
                %581 = vst [vmem:[%s181 + $0x31c] sm:%s173] %v580
                %v582 = vld [vmem:[%s180 + $0x640] sm:%s173]
                %583 = vst [vmem:[%s181 + $0x320] sm:%s173] %v582
                %v584 = vld [vmem:[%s180 + $0x648] sm:%s173]
                %585 = vst [vmem:[%s181 + $0x324] sm:%s173] %v584
                %v586 = vld [vmem:[%s180 + $0x650] sm:%s173]
                %587 = vst [vmem:[%s181 + $0x328] sm:%s173] %v586
                %v588 = vld [vmem:[%s180 + $0x658] sm:%s173]
                %589 = vst [vmem:[%s181 + $0x32c] sm:%s173] %v588
                %v590 = vld [vmem:[%s180 + $0x660] sm:%s173]
                %591 = vst [vmem:[%s181 + $0x330] sm:%s173] %v590
                %v592 = vld [vmem:[%s180 + $0x668] sm:%s173]
                %593 = vst [vmem:[%s181 + $0x334] sm:%s173] %v592
                %v594 = vld [vmem:[%s180 + $0x670] sm:%s173]
                %595 = vst [vmem:[%s181 + $0x338] sm:%s173] %v594
                %v596 = vld [vmem:[%s180 + $0x678] sm:%s173]
                %597 = vst [vmem:[%s181 + $0x33c] sm:%s173] %v596
                %v598 = vld [vmem:[%s180 + $0x680] sm:%s173]
                %599 = vst [vmem:[%s181 + $0x340] sm:%s173] %v598
                %v600 = vld [vmem:[%s180 + $0x688] sm:%s173]
                %601 = vst [vmem:[%s181 + $0x344] sm:%s173] %v600
                %v602 = vld [vmem:[%s180 + $0x690] sm:%s173]
                %603 = vst [vmem:[%s181 + $0x348] sm:%s173] %v602
                %v604 = vld [vmem:[%s180 + $0x698] sm:%s173]
                %605 = vst [vmem:[%s181 + $0x34c] sm:%s173] %v604
                %v606 = vld [vmem:[%s180 + $0x6a0] sm:%s173]
                %607 = vst [vmem:[%s181 + $0x350] sm:%s173] %v606
                %v608 = vld [vmem:[%s180 + $0x6a8] sm:%s173]
                %609 = vst [vmem:[%s181 + $0x354] sm:%s173] %v608
                %v610 = vld [vmem:[%s180 + $0x6b0] sm:%s173]
                %611 = vst [vmem:[%s181 + $0x358] sm:%s173] %v610
                %v612 = vld [vmem:[%s180 + $0x6b8] sm:%s173]
                %613 = vst [vmem:[%s181 + $0x35c] sm:%s173] %v612
                %v614 = vld [vmem:[%s180 + $0x6c0] sm:%s173]
                %615 = vst [vmem:[%s181 + $0x360] sm:%s173] %v614
                %v616 = vld [vmem:[%s180 + $0x6c8] sm:%s173]
                %617 = vst [vmem:[%s181 + $0x364] sm:%s173] %v616
                %v618 = vld [vmem:[%s180 + $0x6d0] sm:%s173]
                %619 = vst [vmem:[%s181 + $0x368] sm:%s173] %v618
                %v620 = vld [vmem:[%s180 + $0x6d8] sm:%s173]
                %621 = vst [vmem:[%s181 + $0x36c] sm:%s173] %v620
                %v622 = vld [vmem:[%s180 + $0x6e0] sm:%s173]
                %623 = vst [vmem:[%s181 + $0x370] sm:%s173] %v622
                %v624 = vld [vmem:[%s180 + $0x6e8] sm:%s173]
                %625 = vst [vmem:[%s181 + $0x374] sm:%s173] %v624
                %v626 = vld [vmem:[%s180 + $0x6f0] sm:%s173]
                %627 = vst [vmem:[%s181 + $0x378] sm:%s173] %v626
                %v628 = vld [vmem:[%s180 + $0x6f8] sm:%s173]
                %629 = vst [vmem:[%s181 + $0x37c] sm:%s173] %v628
                %v630 = vld [vmem:[%s180 + $0x700] sm:%s173]
                %631 = vst [vmem:[%s181 + $0x380] sm:%s173] %v630
                %v632 = vld [vmem:[%s180 + $0x708] sm:%s173]
                %633 = vst [vmem:[%s181 + $0x384] sm:%s173] %v632
                %v634 = vld [vmem:[%s180 + $0x710] sm:%s173]
                %635 = vst [vmem:[%s181 + $0x388] sm:%s173] %v634
                %v636 = vld [vmem:[%s180 + $0x718] sm:%s173]
                %637 = vst [vmem:[%s181 + $0x38c] sm:%s173] %v636
                %v638 = vld [vmem:[%s180 + $0x720] sm:%s173]
                %639 = vst [vmem:[%s181 + $0x390] sm:%s173] %v638
                %v640 = vld [vmem:[%s180 + $0x728] sm:%s173]
                %641 = vst [vmem:[%s181 + $0x394] sm:%s173] %v640
                %v642 = vld [vmem:[%s180 + $0x730] sm:%s173]
                %643 = vst [vmem:[%s181 + $0x398] sm:%s173] %v642
                %v644 = vld [vmem:[%s180 + $0x738] sm:%s173]
                %645 = vst [vmem:[%s181 + $0x39c] sm:%s173] %v644
                %v646 = vld [vmem:[%s180 + $0x740] sm:%s173]
                %647 = vst [vmem:[%s181 + $0x3a0] sm:%s173] %v646
                %v648 = vld [vmem:[%s180 + $0x748] sm:%s173]
                %649 = vst [vmem:[%s181 + $0x3a4] sm:%s173] %v648
                %v650 = vld [vmem:[%s180 + $0x750] sm:%s173]
                %651 = vst [vmem:[%s181 + $0x3a8] sm:%s173] %v650
                %v652 = vld [vmem:[%s180 + $0x758] sm:%s173]
                %653 = vst [vmem:[%s181 + $0x3ac] sm:%s173] %v652
                %v654 = vld [vmem:[%s180 + $0x760] sm:%s173]
                %655 = vst [vmem:[%s181 + $0x3b0] sm:%s173] %v654
                %v656 = vld [vmem:[%s180 + $0x768] sm:%s173]
                %657 = vst [vmem:[%s181 + $0x3b4] sm:%s173] %v656
                %v658 = vld [vmem:[%s180 + $0x770] sm:%s173]
                %659 = vst [vmem:[%s181 + $0x3b8] sm:%s173] %v658
                %v660 = vld [vmem:[%s180 + $0x778] sm:%s173]
                %661 = vst [vmem:[%s181 + $0x3bc] sm:%s173] %v660
                %v662 = vld [vmem:[%s180 + $0x780] sm:%s173]
                %663 = vst [vmem:[%s181 + $0x3c0] sm:%s173] %v662
                %v664 = vld [vmem:[%s180 + $0x788] sm:%s173]
                %665 = vst [vmem:[%s181 + $0x3c4] sm:%s173] %v664
                %v666 = vld [vmem:[%s180 + $0x790] sm:%s173]
                %667 = vst [vmem:[%s181 + $0x3c8] sm:%s173] %v666
                %v668 = vld [vmem:[%s180 + $0x798] sm:%s173]
                %669 = vst [vmem:[%s181 + $0x3cc] sm:%s173] %v668
                %v670 = vld [vmem:[%s180 + $0x7a0] sm:%s173]
                %671 = vst [vmem:[%s181 + $0x3d0] sm:%s173] %v670
                %v672 = vld [vmem:[%s180 + $0x7a8] sm:%s173]
                %673 = vst [vmem:[%s181 + $0x3d4] sm:%s173] %v672
                %v674 = vld [vmem:[%s180 + $0x7b0] sm:%s173]
                %675 = vst [vmem:[%s181 + $0x3d8] sm:%s173] %v674
                %v676 = vld [vmem:[%s180 + $0x7b8] sm:%s173]
                %677 = vst [vmem:[%s181 + $0x3dc] sm:%s173] %v676
                %v678 = vld [vmem:[%s180 + $0x7c0] sm:%s173]
                %679 = vst [vmem:[%s181 + $0x3e0] sm:%s173] %v678
                %v680 = vld [vmem:[%s180 + $0x7c8] sm:%s173]
                %681 = vst [vmem:[%s181 + $0x3e4] sm:%s173] %v680
                %v682 = vld [vmem:[%s180 + $0x7d0] sm:%s173]
                %683 = vst [vmem:[%s181 + $0x3e8] sm:%s173] %v682
                %v684 = vld [vmem:[%s180 + $0x7d8] sm:%s173]
                %685 = vst [vmem:[%s181 + $0x3ec] sm:%s173] %v684
                %v686 = vld [vmem:[%s180 + $0x7e0] sm:%s173]
                %687 = vst [vmem:[%s181 + $0x3f0] sm:%s173] %v686
                %v688 = vld [vmem:[%s180 + $0x7e8] sm:%s173]
                %689 = vst [vmem:[%s181 + $0x3f4] sm:%s173] %v688
                %v690 = vld [vmem:[%s180 + $0x7f0] sm:%s173]
                %691 = vst [vmem:[%s181 + $0x3f8] sm:%s173] %v690
                %v692 = vld [vmem:[%s180 + $0x7f8] sm:%s173]
                %693 = vst [vmem:[%s181 + $0x3fc] sm:%s173] %v692
              $region41: #{discriminator_forward.8} parent=35 // loop_footer
                %s179 = sadd.s32 1, %s175
              $region42: #{discriminator_forward.8} parent=35 // loop_footer_branch
                %174 = sbr.rel target = $region38
              $region43: #{discriminator_forward.8} parent=35 // loop_exit
                _
            $region36: #{discriminator_forward.8} parent=27 // pred_fallthru
              _
          $region28: #{discriminator_forward.8} parent=23 // pred_fallthru
            _
          %2276 = vnop
        $region24: #{discriminator_forward.8} parent=19 // pred_fallthru
          _
        // Predicated region
        $region73: #{discriminator_forward.8} parent=19 // pred_check
          %p2277 = pneg %p77
        $region74: #{discriminator_forward.8} parent=19 // pred_check_branch
          %2279 = sbr.rel (%p2277) target = $region76
        $region75: #{discriminator_forward.8} parent=19 // pred_region
          %p2280 = scmp.lt.s32.totalorder %s10, 1
          %s2281 = scalar_select %p2280, %s10, 1
          %s2282 = scalar_lea.vmem %s2, %s2281
        $region76: #{discriminator_forward.8} parent=19 // pred_fallthru
          _
        // Predicated region
        $region77: #{discriminator_forward.8} parent=19 // pred_check
          %p2283 = pneg %p103
        $region78: #{discriminator_forward.8} parent=19 // pred_check_branch
          %2285 = sbr.rel (%p2283) target = $region80
        $region79: #{discriminator_forward.8} parent=19 // pred_region
          %p2286 = scmp.lt.s32.totalorder %s10, 1
          %s2287 = scalar_select %p2286, %s10, 1
          %s2288 = scalar_lea.vmem %s3, %s2287
        $region80: #{discriminator_forward.8} parent=19 // pred_fallthru
          _
      $region20: #{discriminator_forward.8} parent=5 // pred_fallthru
        _
      %p2289 = scmp.le.s32.totalorder 1, %s10
      %p2290 = scmp.lt.s32.totalorder %s10, 3
      %p2291 = pnand %p2289, %p2290
      %p2292 = pneg %p2291
      // Predicated region
      $region81: #{discriminator_forward.8} parent=5 // pred_check
        _
      $region82: #{discriminator_forward.8} parent=5 // pred_check_branch
        %2294 = sbr.rel (%p2291) target = $region84
      $region83: #{discriminator_forward.8} parent=5 // pred_region
        %s2295 = ssub.s32 %s10, 1
        %s2296 = sand.u32 %s44, 1
        %s2297 = sand.u32 %s44, 1
        %s2298 = smul.addr %s2297, 1024
        %s2299 = scalar_lea.vmem [#allocation2], %s2298
        // Predicated region
        $region85: #{discriminator_forward.8} parent=83 // pred_check
          %p2300 = pneg %p57
        $region86: #{discriminator_forward.8} parent=83 // pred_check_branch
          %2302 = sbr.rel (%p2300) target = $region88
        $region87: #{discriminator_forward.8} parent=83 // pred_region
          _
        $region88: #{discriminator_forward.8} parent=83 // pred_fallthru
          _
        %p2303 = pneg %p31
        %p2304 = pneg %p28
        %s2305 = sand.u32 %s44, 1
        %s2306 = sand.u32 %s44, 1
        %s2307 = smul.addr %s2306, 1024
        %s2308 = scalar_lea.vmem [#allocation2], %s2307
        %p2309 = pneg %p57
        %p2310 = pneg %p54
        %p2311 = scmp.lt.s32.totalorder %s15, 1
        %s2312 = scalar_select %p2311, %s15, 1
        %s2313 = scalar_lea.vmem %s2, %s2312
        %p2314 = pneg %p83
        %p2315 = pneg %p80
        %p2316 = scmp.lt.s32.totalorder %s15, 1
        %s2317 = scalar_select %p2316, %s15, 1
        %s2318 = scalar_lea.vmem %s3, %s2317
        %p2319 = pneg %p109
        %p2320 = pneg %p106
        %p2321 = pneg %p135
        %p2322 = pneg %p132
        %s2323 = sand.u32 %s122, 1
        %s2324 = sand.u32 %s122, 1
        %s2325 = smul.addr %s2324, 16
        %s2326 = scalar_lea.vmem [#allocation3], %s2325
        %p2327 = scmp.lt.s32.totalorder %s15, 1
        %s2328 = scalar_select %p2327, %s15, 1
        %s2329 = scalar_lea.vmem %s2, %s2328
        %p2330 = scmp.lt.s32.totalorder %s15, 1
        %s2331 = scalar_select %p2330, %s15, 1
        %s2332 = scalar_lea.vmem %s3, %s2331
        %v2333 = vld [vmem:[%s0] sm:$0xff]
        %v2334 = vld [vmem:[%s0 + $0x8] sm:$0xff]
        %v2335 = vld [vmem:[%s0 + $0x10] sm:$0xff]
        %v2336 = vld [vmem:[%s0 + $0x18] sm:$0xff]
        %v2337 = vld [vmem:[%s0 + $0x20] sm:$0xff]
        %v2338 = vld [vmem:[%s0 + $0x28] sm:$0xff]
        %v2339 = vld [vmem:[%s0 + $0x30] sm:$0xff]
        %v2340 = vld [vmem:[%s0 + $0x38] sm:$0xff]
        %v2341 = vld [vmem:[%s0 + $0x40] sm:$0xff]
        %v2342 = vld [vmem:[%s0 + $0x48] sm:$0xff]
        %v2343 = vld [vmem:[%s0 + $0x50] sm:$0xff]
        %v2344 = vld [vmem:[%s0 + $0x58] sm:$0xff]
        %v2345 = vld [vmem:[%s0 + $0x60] sm:$0xff]
        %v2346 = vld [vmem:[%s0 + $0x68] sm:$0xff]
        %v2347 = vld [vmem:[%s0 + $0x70] sm:$0xff]
        %v2348 = vld [vmem:[%s0 + $0x78] sm:$0xff]
        %v2349 = vld [vmem:[%s0 + $0x80] sm:$0xff]
        %v2350 = vld [vmem:[%s0 + $0x88] sm:$0xff]
        %v2351 = vld [vmem:[%s0 + $0x90] sm:$0xff]
        %v2352 = vld [vmem:[%s0 + $0x98] sm:$0xff]
        %v2353 = vld [vmem:[%s0 + $0xa0] sm:$0xff]
        %v2354 = vld [vmem:[%s0 + $0xa8] sm:$0xff]
        %v2355 = vld [vmem:[%s0 + $0xb0] sm:$0xff]
        %v2356 = vld [vmem:[%s0 + $0xb8] sm:$0xff]
        %v2357 = vld [vmem:[%s0 + $0xc0] sm:$0xff]
        %v2358 = vld [vmem:[%s0 + $0xc8] sm:$0xff]
        %v2359 = vld [vmem:[%s0 + $0xd0] sm:$0xff]
        %v2360 = vld [vmem:[%s0 + $0xd8] sm:$0xff]
        %v2361 = vld [vmem:[%s0 + $0xe0] sm:$0xff]
        %v2362 = vld [vmem:[%s0 + $0xe8] sm:$0xff]
        %v2363 = vld [vmem:[%s0 + $0xf0] sm:$0xff]
        %v2364 = vld [vmem:[%s0 + $0xf8] sm:$0xff]
        %v2365 = vld [vmem:[%s2299] sm:$0xf]
        %v2366 = vld [vmem:[%s2299 + $0x4] sm:$0xf]
        %v2367 = vld [vmem:[%s2299 + $0x8] sm:$0xf]
        %v2368 = vld [vmem:[%s2299 + $0xc] sm:$0xf]
        %v2369 = vld [vmem:[%s2299 + $0x10] sm:$0xf]
        %v2370 = vld [vmem:[%s2299 + $0x14] sm:$0xf]
        %v2371 = vld [vmem:[%s2299 + $0x18] sm:$0xf]
        %v2372 = vld [vmem:[%s2299 + $0x1c] sm:$0xf]
        %v2373 = vld [vmem:[%s2299 + $0x20] sm:$0xf]
        %v2374 = vld [vmem:[%s2299 + $0x24] sm:$0xf]
        %v2375 = vld [vmem:[%s2299 + $0x28] sm:$0xf]
        %v2376 = vld [vmem:[%s2299 + $0x2c] sm:$0xf]
        %v2377 = vld [vmem:[%s2299 + $0x30] sm:$0xf]
        %v2378 = vld [vmem:[%s2299 + $0x34] sm:$0xf]
        %v2379 = vld [vmem:[%s2299 + $0x38] sm:$0xf]
        %v2380 = vld [vmem:[%s2299 + $0x3c] sm:$0xf]
        %v2381 = vld [vmem:[%s2299 + $0x40] sm:$0xf]
        %v2382 = vld [vmem:[%s2299 + $0x44] sm:$0xf]
        %v2383 = vld [vmem:[%s2299 + $0x48] sm:$0xf]
        %v2384 = vld [vmem:[%s2299 + $0x4c] sm:$0xf]
        %v2385 = vld [vmem:[%s2299 + $0x50] sm:$0xf]
        %v2386 = vld [vmem:[%s2299 + $0x54] sm:$0xf]
        %v2387 = vld [vmem:[%s2299 + $0x58] sm:$0xf]
        %v2388 = vld [vmem:[%s2299 + $0x5c] sm:$0xf]
        %v2389 = vld [vmem:[%s2299 + $0x60] sm:$0xf]
        %v2390 = vld [vmem:[%s2299 + $0x64] sm:$0xf]
        %v2391 = vld [vmem:[%s2299 + $0x68] sm:$0xf]
        %v2392 = vld [vmem:[%s2299 + $0x6c] sm:$0xf]
        %v2393 = vld [vmem:[%s2299 + $0x70] sm:$0xf]
        %v2394 = vld [vmem:[%s2299 + $0x74] sm:$0xf]
        %v2395 = vld [vmem:[%s2299 + $0x78] sm:$0xf]
        %v2396 = vld [vmem:[%s2299 + $0x7c] sm:$0xf]
        %v2397 = vld [vmem:[%s2299 + $0x80] sm:$0xf]
        %v2398 = vld [vmem:[%s2299 + $0x84] sm:$0xf]
        %v2399 = vld [vmem:[%s2299 + $0x88] sm:$0xf]
        %v2400 = vld [vmem:[%s2299 + $0x8c] sm:$0xf]
        %v2401 = vld [vmem:[%s2299 + $0x90] sm:$0xf]
        %v2402 = vld [vmem:[%s2299 + $0x94] sm:$0xf]
        %v2403 = vld [vmem:[%s2299 + $0x98] sm:$0xf]
        %v2404 = vld [vmem:[%s2299 + $0x9c] sm:$0xf]
        %v2405 = vld [vmem:[%s2299 + $0xa0] sm:$0xf]
        %v2406 = vld [vmem:[%s2299 + $0xa4] sm:$0xf]
        %v2407 = vld [vmem:[%s2299 + $0xa8] sm:$0xf]
        %v2408 = vld [vmem:[%s2299 + $0xac] sm:$0xf]
        %v2409 = vld [vmem:[%s2299 + $0xb0] sm:$0xf]
        %v2410 = vld [vmem:[%s2299 + $0xb4] sm:$0xf]
        %v2411 = vld [vmem:[%s2299 + $0xb8] sm:$0xf]
        %v2412 = vld [vmem:[%s2299 + $0xbc] sm:$0xf]
        %v2413 = vld [vmem:[%s2299 + $0xc0] sm:$0xf]
        %v2414 = vld [vmem:[%s2299 + $0xc4] sm:$0xf]
        %v2415 = vld [vmem:[%s2299 + $0xc8] sm:$0xf]
        %v2416 = vld [vmem:[%s2299 + $0xcc] sm:$0xf]
        %v2417 = vld [vmem:[%s2299 + $0xd0] sm:$0xf]
        %v2418 = vld [vmem:[%s2299 + $0xd4] sm:$0xf]
        %v2419 = vld [vmem:[%s2299 + $0xd8] sm:$0xf]
        %v2420 = vld [vmem:[%s2299 + $0xdc] sm:$0xf]
        %v2421 = vld [vmem:[%s2299 + $0xe0] sm:$0xf]
        %v2422 = vld [vmem:[%s2299 + $0xe4] sm:$0xf]
        %v2423 = vld [vmem:[%s2299 + $0xe8] sm:$0xf]
        %v2424 = vld [vmem:[%s2299 + $0xec] sm:$0xf]
        %v2425 = vld [vmem:[%s2299 + $0xf0] sm:$0xf]
        %v2426 = vld [vmem:[%s2299 + $0xf4] sm:$0xf]
        %v2427 = vld [vmem:[%s2299 + $0xf8] sm:$0xf]
        %v2428 = vld [vmem:[%s2299 + $0xfc] sm:$0xf]
        %v2429 = vld [vmem:[%s2299 + $0x100] sm:$0xf]
        %v2430 = vld [vmem:[%s2299 + $0x104] sm:$0xf]
        %v2431 = vld [vmem:[%s2299 + $0x108] sm:$0xf]
        %v2432 = vld [vmem:[%s2299 + $0x10c] sm:$0xf]
        %v2433 = vld [vmem:[%s2299 + $0x110] sm:$0xf]
        %v2434 = vld [vmem:[%s2299 + $0x114] sm:$0xf]
        %v2435 = vld [vmem:[%s2299 + $0x118] sm:$0xf]
        %v2436 = vld [vmem:[%s2299 + $0x11c] sm:$0xf]
        %v2437 = vld [vmem:[%s2299 + $0x120] sm:$0xf]
        %v2438 = vld [vmem:[%s2299 + $0x124] sm:$0xf]
        %v2439 = vld [vmem:[%s2299 + $0x128] sm:$0xf]
        %v2440 = vld [vmem:[%s2299 + $0x12c] sm:$0xf]
        %v2441 = vld [vmem:[%s2299 + $0x130] sm:$0xf]
        %v2442 = vld [vmem:[%s2299 + $0x134] sm:$0xf]
        %v2443 = vld [vmem:[%s2299 + $0x138] sm:$0xf]
        %v2444 = vld [vmem:[%s2299 + $0x13c] sm:$0xf]
        %v2445 = vld [vmem:[%s2299 + $0x140] sm:$0xf]
        %v2446 = vld [vmem:[%s2299 + $0x144] sm:$0xf]
        %v2447 = vld [vmem:[%s2299 + $0x148] sm:$0xf]
        %v2448 = vld [vmem:[%s2299 + $0x14c] sm:$0xf]
        %v2449 = vld [vmem:[%s2299 + $0x150] sm:$0xf]
        %v2450 = vld [vmem:[%s2299 + $0x154] sm:$0xf]
        %v2451 = vld [vmem:[%s2299 + $0x158] sm:$0xf]
        %v2452 = vld [vmem:[%s2299 + $0x15c] sm:$0xf]
        %v2453 = vld [vmem:[%s2299 + $0x160] sm:$0xf]
        %v2454 = vld [vmem:[%s2299 + $0x164] sm:$0xf]
        %v2455 = vld [vmem:[%s2299 + $0x168] sm:$0xf]
        %v2456 = vld [vmem:[%s2299 + $0x16c] sm:$0xf]
        %v2457 = vld [vmem:[%s2299 + $0x170] sm:$0xf]
        %v2458 = vld [vmem:[%s2299 + $0x174] sm:$0xf]
        %v2459 = vld [vmem:[%s2299 + $0x178] sm:$0xf]
        %v2460 = vld [vmem:[%s2299 + $0x17c] sm:$0xf]
        %v2461 = vld [vmem:[%s2299 + $0x180] sm:$0xf]
        %v2462 = vld [vmem:[%s2299 + $0x184] sm:$0xf]
        %v2463 = vld [vmem:[%s2299 + $0x188] sm:$0xf]
        %v2464 = vld [vmem:[%s2299 + $0x18c] sm:$0xf]
        %v2465 = vld [vmem:[%s2299 + $0x190] sm:$0xf]
        %v2466 = vld [vmem:[%s2299 + $0x194] sm:$0xf]
        %v2467 = vld [vmem:[%s2299 + $0x198] sm:$0xf]
        %v2468 = vld [vmem:[%s2299 + $0x19c] sm:$0xf]
        %v2469 = vld [vmem:[%s2299 + $0x1a0] sm:$0xf]
        %v2470 = vld [vmem:[%s2299 + $0x1a4] sm:$0xf]
        %v2471 = vld [vmem:[%s2299 + $0x1a8] sm:$0xf]
        %v2472 = vld [vmem:[%s2299 + $0x1ac] sm:$0xf]
        %v2473 = vld [vmem:[%s2299 + $0x1b0] sm:$0xf]
        %v2474 = vld [vmem:[%s2299 + $0x1b4] sm:$0xf]
        %v2475 = vld [vmem:[%s2299 + $0x1b8] sm:$0xf]
        %v2476 = vld [vmem:[%s2299 + $0x1bc] sm:$0xf]
        %v2477 = vld [vmem:[%s2299 + $0x1c0] sm:$0xf]
        %v2478 = vld [vmem:[%s2299 + $0x1c4] sm:$0xf]
        %v2479 = vld [vmem:[%s2299 + $0x1c8] sm:$0xf]
        %v2480 = vld [vmem:[%s2299 + $0x1cc] sm:$0xf]
        %v2481 = vld [vmem:[%s2299 + $0x1d0] sm:$0xf]
        %v2482 = vld [vmem:[%s2299 + $0x1d4] sm:$0xf]
        %v2483 = vld [vmem:[%s2299 + $0x1d8] sm:$0xf]
        %v2484 = vld [vmem:[%s2299 + $0x1dc] sm:$0xf]
        %v2485 = vld [vmem:[%s2299 + $0x1e0] sm:$0xf]
        %v2486 = vld [vmem:[%s2299 + $0x1e4] sm:$0xf]
        %v2487 = vld [vmem:[%s2299 + $0x1e8] sm:$0xf]
        %v2488 = vld [vmem:[%s2299 + $0x1ec] sm:$0xf]
        %v2489 = vld [vmem:[%s2299 + $0x1f0] sm:$0xf]
        %v2490 = vld [vmem:[%s2299 + $0x1f4] sm:$0xf]
        %v2491 = vld [vmem:[%s2299 + $0x1f8] sm:$0xf]
        %v2492 = vld [vmem:[%s2299 + $0x1fc] sm:$0xf]
        %v2493 = vld [vmem:[%s2299 + $0x200] sm:$0xf]
        %v2494 = vld [vmem:[%s2299 + $0x204] sm:$0xf]
        %v2495 = vld [vmem:[%s2299 + $0x208] sm:$0xf]
        %v2496 = vld [vmem:[%s2299 + $0x20c] sm:$0xf]
        %v2497 = vld [vmem:[%s2299 + $0x210] sm:$0xf]
        %v2498 = vld [vmem:[%s2299 + $0x214] sm:$0xf]
        %v2499 = vld [vmem:[%s2299 + $0x218] sm:$0xf]
        %v2500 = vld [vmem:[%s2299 + $0x21c] sm:$0xf]
        %v2501 = vld [vmem:[%s2299 + $0x220] sm:$0xf]
        %v2502 = vld [vmem:[%s2299 + $0x224] sm:$0xf]
        %v2503 = vld [vmem:[%s2299 + $0x228] sm:$0xf]
        %v2504 = vld [vmem:[%s2299 + $0x22c] sm:$0xf]
        %v2505 = vld [vmem:[%s2299 + $0x230] sm:$0xf]
        %v2506 = vld [vmem:[%s2299 + $0x234] sm:$0xf]
        %v2507 = vld [vmem:[%s2299 + $0x238] sm:$0xf]
        %v2508 = vld [vmem:[%s2299 + $0x23c] sm:$0xf]
        %v2509 = vld [vmem:[%s2299 + $0x240] sm:$0xf]
        %v2510 = vld [vmem:[%s2299 + $0x244] sm:$0xf]
        %v2511 = vld [vmem:[%s2299 + $0x248] sm:$0xf]
        %v2512 = vld [vmem:[%s2299 + $0x24c] sm:$0xf]
        %v2513 = vld [vmem:[%s2299 + $0x250] sm:$0xf]
        %v2514 = vld [vmem:[%s2299 + $0x254] sm:$0xf]
        %v2515 = vld [vmem:[%s2299 + $0x258] sm:$0xf]
        %v2516 = vld [vmem:[%s2299 + $0x25c] sm:$0xf]
        %v2517 = vld [vmem:[%s2299 + $0x260] sm:$0xf]
        %v2518 = vld [vmem:[%s2299 + $0x264] sm:$0xf]
        %v2519 = vld [vmem:[%s2299 + $0x268] sm:$0xf]
        %v2520 = vld [vmem:[%s2299 + $0x26c] sm:$0xf]
        %v2521 = vld [vmem:[%s2299 + $0x270] sm:$0xf]
        %v2522 = vld [vmem:[%s2299 + $0x274] sm:$0xf]
        %v2523 = vld [vmem:[%s2299 + $0x278] sm:$0xf]
        %v2524 = vld [vmem:[%s2299 + $0x27c] sm:$0xf]
        %v2525 = vld [vmem:[%s2299 + $0x280] sm:$0xf]
        %v2526 = vld [vmem:[%s2299 + $0x284] sm:$0xf]
        %v2527 = vld [vmem:[%s2299 + $0x288] sm:$0xf]
        %v2528 = vld [vmem:[%s2299 + $0x28c] sm:$0xf]
        %v2529 = vld [vmem:[%s2299 + $0x290] sm:$0xf]
        %v2530 = vld [vmem:[%s2299 + $0x294] sm:$0xf]
        %v2531 = vld [vmem:[%s2299 + $0x298] sm:$0xf]
        %v2532 = vld [vmem:[%s2299 + $0x29c] sm:$0xf]
        %v2533 = vld [vmem:[%s2299 + $0x2a0] sm:$0xf]
        %v2534 = vld [vmem:[%s2299 + $0x2a4] sm:$0xf]
        %v2535 = vld [vmem:[%s2299 + $0x2a8] sm:$0xf]
        %v2536 = vld [vmem:[%s2299 + $0x2ac] sm:$0xf]
        %v2537 = vld [vmem:[%s2299 + $0x2b0] sm:$0xf]
        %v2538 = vld [vmem:[%s2299 + $0x2b4] sm:$0xf]
        %v2539 = vld [vmem:[%s2299 + $0x2b8] sm:$0xf]
        %v2540 = vld [vmem:[%s2299 + $0x2bc] sm:$0xf]
        %v2541 = vld [vmem:[%s2299 + $0x2c0] sm:$0xf]
        %v2542 = vld [vmem:[%s2299 + $0x2c4] sm:$0xf]
        %v2543 = vld [vmem:[%s2299 + $0x2c8] sm:$0xf]
        %v2544 = vld [vmem:[%s2299 + $0x2cc] sm:$0xf]
        %v2545 = vld [vmem:[%s2299 + $0x2d0] sm:$0xf]
        %v2546 = vld [vmem:[%s2299 + $0x2d4] sm:$0xf]
        %v2547 = vld [vmem:[%s2299 + $0x2d8] sm:$0xf]
        %v2548 = vld [vmem:[%s2299 + $0x2dc] sm:$0xf]
        %v2549 = vld [vmem:[%s2299 + $0x2e0] sm:$0xf]
        %v2550 = vld [vmem:[%s2299 + $0x2e4] sm:$0xf]
        %v2551 = vld [vmem:[%s2299 + $0x2e8] sm:$0xf]
        %v2552 = vld [vmem:[%s2299 + $0x2ec] sm:$0xf]
        %v2553 = vld [vmem:[%s2299 + $0x2f0] sm:$0xf]
        %v2554 = vld [vmem:[%s2299 + $0x2f4] sm:$0xf]
        %v2555 = vld [vmem:[%s2299 + $0x2f8] sm:$0xf]
        %v2556 = vld [vmem:[%s2299 + $0x2fc] sm:$0xf]
        %v2557 = vld [vmem:[%s2299 + $0x300] sm:$0xf]
        %v2558 = vld [vmem:[%s2299 + $0x304] sm:$0xf]
        %v2559 = vld [vmem:[%s2299 + $0x308] sm:$0xf]
        %v2560 = vld [vmem:[%s2299 + $0x30c] sm:$0xf]
        %v2561 = vld [vmem:[%s2299 + $0x310] sm:$0xf]
        %v2562 = vld [vmem:[%s2299 + $0x314] sm:$0xf]
        %v2563 = vld [vmem:[%s2299 + $0x318] sm:$0xf]
        %v2564 = vld [vmem:[%s2299 + $0x31c] sm:$0xf]
        %v2565 = vld [vmem:[%s2299 + $0x320] sm:$0xf]
        %v2566 = vld [vmem:[%s2299 + $0x324] sm:$0xf]
        %v2567 = vld [vmem:[%s2299 + $0x328] sm:$0xf]
        %v2568 = vld [vmem:[%s2299 + $0x32c] sm:$0xf]
        %v2569 = vld [vmem:[%s2299 + $0x330] sm:$0xf]
        %v2570 = vld [vmem:[%s2299 + $0x334] sm:$0xf]
        %v2571 = vld [vmem:[%s2299 + $0x338] sm:$0xf]
        %v2572 = vld [vmem:[%s2299 + $0x33c] sm:$0xf]
        %v2573 = vld [vmem:[%s2299 + $0x340] sm:$0xf]
        %v2574 = vld [vmem:[%s2299 + $0x344] sm:$0xf]
        %v2575 = vld [vmem:[%s2299 + $0x348] sm:$0xf]
        %v2576 = vld [vmem:[%s2299 + $0x34c] sm:$0xf]
        %v2577 = vld [vmem:[%s2299 + $0x350] sm:$0xf]
        %v2578 = vld [vmem:[%s2299 + $0x354] sm:$0xf]
        %v2579 = vld [vmem:[%s2299 + $0x358] sm:$0xf]
        %v2580 = vld [vmem:[%s2299 + $0x35c] sm:$0xf]
        %v2581 = vld [vmem:[%s2299 + $0x360] sm:$0xf]
        %v2582 = vld [vmem:[%s2299 + $0x364] sm:$0xf]
        %v2583 = vld [vmem:[%s2299 + $0x368] sm:$0xf]
        %v2584 = vld [vmem:[%s2299 + $0x36c] sm:$0xf]
        %v2585 = vld [vmem:[%s2299 + $0x370] sm:$0xf]
        %v2586 = vld [vmem:[%s2299 + $0x374] sm:$0xf]
        %v2587 = vld [vmem:[%s2299 + $0x378] sm:$0xf]
        %v2588 = vld [vmem:[%s2299 + $0x37c] sm:$0xf]
        %v2589 = vld [vmem:[%s2299 + $0x380] sm:$0xf]
        %v2590 = vld [vmem:[%s2299 + $0x384] sm:$0xf]
        %v2591 = vld [vmem:[%s2299 + $0x388] sm:$0xf]
        %v2592 = vld [vmem:[%s2299 + $0x38c] sm:$0xf]
        %v2593 = vld [vmem:[%s2299 + $0x390] sm:$0xf]
        %v2594 = vld [vmem:[%s2299 + $0x394] sm:$0xf]
        %v2595 = vld [vmem:[%s2299 + $0x398] sm:$0xf]
        %v2596 = vld [vmem:[%s2299 + $0x39c] sm:$0xf]
        %v2597 = vld [vmem:[%s2299 + $0x3a0] sm:$0xf]
        %v2598 = vld [vmem:[%s2299 + $0x3a4] sm:$0xf]
        %v2599 = vld [vmem:[%s2299 + $0x3a8] sm:$0xf]
        %v2600 = vld [vmem:[%s2299 + $0x3ac] sm:$0xf]
        %v2601 = vld [vmem:[%s2299 + $0x3b0] sm:$0xf]
        %v2602 = vld [vmem:[%s2299 + $0x3b4] sm:$0xf]
        %v2603 = vld [vmem:[%s2299 + $0x3b8] sm:$0xf]
        %v2604 = vld [vmem:[%s2299 + $0x3bc] sm:$0xf]
        %v2605 = vld [vmem:[%s2299 + $0x3c0] sm:$0xf]
        %v2606 = vld [vmem:[%s2299 + $0x3c4] sm:$0xf]
        %v2607 = vld [vmem:[%s2299 + $0x3c8] sm:$0xf]
        %v2608 = vld [vmem:[%s2299 + $0x3cc] sm:$0xf]
        %v2609 = vld [vmem:[%s2299 + $0x3d0] sm:$0xf]
        %v2610 = vld [vmem:[%s2299 + $0x3d4] sm:$0xf]
        %v2611 = vld [vmem:[%s2299 + $0x3d8] sm:$0xf]
        %v2612 = vld [vmem:[%s2299 + $0x3dc] sm:$0xf]
        %v2613 = vld [vmem:[%s2299 + $0x3e0] sm:$0xf]
        %v2614 = vld [vmem:[%s2299 + $0x3e4] sm:$0xf]
        %v2615 = vld [vmem:[%s2299 + $0x3e8] sm:$0xf]
        %v2616 = vld [vmem:[%s2299 + $0x3ec] sm:$0xf]
        %v2617 = vld [vmem:[%s2299 + $0x3f0] sm:$0xf]
        %v2618 = vld [vmem:[%s2299 + $0x3f4] sm:$0xf]
        %v2619 = vld [vmem:[%s2299 + $0x3f8] sm:$0xf]
        %v2620 = vld [vmem:[%s2299 + $0x3fc] sm:$0xf]
        %v2653 = vunpack.c.l.b16 %v2333
        %v2654 = vunpack.c.h.b16 %v2333
        %v2655 = vunpack.c.l.b16 %v2334
        %v2656 = vunpack.c.h.b16 %v2334
        %v2657 = vunpack.c.l.b16 %v2335
        %v2658 = vunpack.c.h.b16 %v2335
        %v2659 = vunpack.c.l.b16 %v2336
        %v2660 = vunpack.c.h.b16 %v2336
        %v2661 = vunpack.c.l.b16 %v2337
        %v2662 = vunpack.c.h.b16 %v2337
        %v2663 = vunpack.c.l.b16 %v2338
        %v2664 = vunpack.c.h.b16 %v2338
        %v2665 = vunpack.c.l.b16 %v2339
        %v2666 = vunpack.c.h.b16 %v2339
        %v2667 = vunpack.c.l.b16 %v2340
        %v2668 = vunpack.c.h.b16 %v2340
        %v2669 = vunpack.c.l.b16 %v2341
        %v2670 = vunpack.c.h.b16 %v2341
        %v2671 = vunpack.c.l.b16 %v2342
        %v2672 = vunpack.c.h.b16 %v2342
        %v2673 = vunpack.c.l.b16 %v2343
        %v2674 = vunpack.c.h.b16 %v2343
        %v2675 = vunpack.c.l.b16 %v2344
        %v2676 = vunpack.c.h.b16 %v2344
        %v2677 = vunpack.c.l.b16 %v2345
        %v2678 = vunpack.c.h.b16 %v2345
        %v2679 = vunpack.c.l.b16 %v2346
        %v2680 = vunpack.c.h.b16 %v2346
        %v2681 = vunpack.c.l.b16 %v2347
        %v2682 = vunpack.c.h.b16 %v2347
        %v2683 = vunpack.c.l.b16 %v2348
        %v2684 = vunpack.c.h.b16 %v2348
        %v2685 = vunpack.c.l.b16 %v2349
        %v2686 = vunpack.c.h.b16 %v2349
        %v2687 = vunpack.c.l.b16 %v2350
        %v2688 = vunpack.c.h.b16 %v2350
        %v2689 = vunpack.c.l.b16 %v2351
        %v2690 = vunpack.c.h.b16 %v2351
        %v2691 = vunpack.c.l.b16 %v2352
        %v2692 = vunpack.c.h.b16 %v2352
        %v2693 = vunpack.c.l.b16 %v2353
        %v2694 = vunpack.c.h.b16 %v2353
        %v2695 = vunpack.c.l.b16 %v2354
        %v2696 = vunpack.c.h.b16 %v2354
        %v2697 = vunpack.c.l.b16 %v2355
        %v2698 = vunpack.c.h.b16 %v2355
        %v2699 = vunpack.c.l.b16 %v2356
        %v2700 = vunpack.c.h.b16 %v2356
        %v2701 = vunpack.c.l.b16 %v2357
        %v2702 = vunpack.c.h.b16 %v2357
        %v2703 = vunpack.c.l.b16 %v2358
        %v2704 = vunpack.c.h.b16 %v2358
        %v2705 = vunpack.c.l.b16 %v2359
        %v2706 = vunpack.c.h.b16 %v2359
        %v2707 = vunpack.c.l.b16 %v2360
        %v2708 = vunpack.c.h.b16 %v2360
        %v2709 = vunpack.c.l.b16 %v2361
        %v2710 = vunpack.c.h.b16 %v2361
        %v2711 = vunpack.c.l.b16 %v2362
        %v2712 = vunpack.c.h.b16 %v2362
        %v2713 = vunpack.c.l.b16 %v2363
        %v2714 = vunpack.c.h.b16 %v2363
        %v2715 = vunpack.c.l.b16 %v2364
        %v2716 = vunpack.c.h.b16 %v2364
        %v2717 = vpack.c.b16 %v2669, %v2653
        %v2718 = vpack.c.b16 %v2670, %v2654
        %v2719 = vpack.c.b16 %v2671, %v2655
        %v2720 = vpack.c.b16 %v2672, %v2656
        %v2721 = vpack.c.b16 %v2673, %v2657
        %v2722 = vpack.c.b16 %v2674, %v2658
        %v2723 = vpack.c.b16 %v2675, %v2659
        %v2724 = vpack.c.b16 %v2676, %v2660
        %v2725 = vpack.c.b16 %v2677, %v2661
        %v2726 = vpack.c.b16 %v2678, %v2662
        %v2727 = vpack.c.b16 %v2679, %v2663
        %v2728 = vpack.c.b16 %v2680, %v2664
        %v2729 = vpack.c.b16 %v2681, %v2665
        %v2730 = vpack.c.b16 %v2682, %v2666
        %v2731 = vpack.c.b16 %v2683, %v2667
        %v2732 = vpack.c.b16 %v2684, %v2668
        %v2733 = vpack.c.b16 %v2701, %v2685
        %v2734 = vpack.c.b16 %v2702, %v2686
        %v2735 = vpack.c.b16 %v2703, %v2687
        %v2736 = vpack.c.b16 %v2704, %v2688
        %v2737 = vpack.c.b16 %v2705, %v2689
        %v2738 = vpack.c.b16 %v2706, %v2690
        %v2739 = vpack.c.b16 %v2707, %v2691
        %v2740 = vpack.c.b16 %v2708, %v2692
        %v2741 = vpack.c.b16 %v2709, %v2693
        %v2742 = vpack.c.b16 %v2710, %v2694
        %v2743 = vpack.c.b16 %v2711, %v2695
        %v2744 = vpack.c.b16 %v2712, %v2696
        %v2745 = vpack.c.b16 %v2713, %v2697
        %v2746 = vpack.c.b16 %v2714, %v2698
        %v2747 = vpack.c.b16 %v2715, %v2699
        %v2748 = vpack.c.b16 %v2716, %v2700
        %v3037 = vunpack.c.l.b16 %v2365
        %v3038 = vunpack.c.l.b16 %v2366
        %v3039 = vunpack.c.l.b16 %v2367
        %v3040 = vunpack.c.l.b16 %v2368
        %v3041 = vunpack.c.l.b16 %v2369
        %v3042 = vunpack.c.l.b16 %v2370
        %v3043 = vunpack.c.l.b16 %v2371
        %v3044 = vunpack.c.l.b16 %v2372
        %v3045 = vunpack.c.l.b16 %v2373
        %v3046 = vunpack.c.l.b16 %v2374
        %v3047 = vunpack.c.l.b16 %v2375
        %v3048 = vunpack.c.l.b16 %v2376
        %v3049 = vunpack.c.l.b16 %v2377
        %v3050 = vunpack.c.l.b16 %v2378
        %v3051 = vunpack.c.l.b16 %v2379
        %v3052 = vunpack.c.l.b16 %v2380
        %v3053 = vunpack.c.l.b16 %v2381
        %v3054 = vunpack.c.l.b16 %v2382
        %v3055 = vunpack.c.l.b16 %v2383
        %v3056 = vunpack.c.l.b16 %v2384
        %v3057 = vunpack.c.l.b16 %v2385
        %v3058 = vunpack.c.l.b16 %v2386
        %v3059 = vunpack.c.l.b16 %v2387
        %v3060 = vunpack.c.l.b16 %v2388
        %v3061 = vunpack.c.l.b16 %v2389
        %v3062 = vunpack.c.l.b16 %v2390
        %v3063 = vunpack.c.l.b16 %v2391
        %v3064 = vunpack.c.l.b16 %v2392
        %v3065 = vunpack.c.l.b16 %v2393
        %v3066 = vunpack.c.l.b16 %v2394
        %v3067 = vunpack.c.l.b16 %v2395
        %v3068 = vunpack.c.l.b16 %v2396
        %v3069 = vunpack.c.l.b16 %v2397
        %v3070 = vunpack.c.l.b16 %v2398
        %v3071 = vunpack.c.l.b16 %v2399
        %v3072 = vunpack.c.l.b16 %v2400
        %v3073 = vunpack.c.l.b16 %v2401
        %v3074 = vunpack.c.l.b16 %v2402
        %v3075 = vunpack.c.l.b16 %v2403
        %v3076 = vunpack.c.l.b16 %v2404
        %v3077 = vunpack.c.l.b16 %v2405
        %v3078 = vunpack.c.l.b16 %v2406
        %v3079 = vunpack.c.l.b16 %v2407
        %v3080 = vunpack.c.l.b16 %v2408
        %v3081 = vunpack.c.l.b16 %v2409
        %v3082 = vunpack.c.l.b16 %v2410
        %v3083 = vunpack.c.l.b16 %v2411
        %v3084 = vunpack.c.l.b16 %v2412
        %v3085 = vunpack.c.l.b16 %v2413
        %v3086 = vunpack.c.l.b16 %v2414
        %v3087 = vunpack.c.l.b16 %v2415
        %v3088 = vunpack.c.l.b16 %v2416
        %v3089 = vunpack.c.l.b16 %v2417
        %v3090 = vunpack.c.l.b16 %v2418
        %v3091 = vunpack.c.l.b16 %v2419
        %v3092 = vunpack.c.l.b16 %v2420
        %v3093 = vunpack.c.l.b16 %v2421
        %v3094 = vunpack.c.l.b16 %v2422
        %v3095 = vunpack.c.l.b16 %v2423
        %v3096 = vunpack.c.l.b16 %v2424
        %v3097 = vunpack.c.l.b16 %v2425
        %v3098 = vunpack.c.l.b16 %v2426
        %v3099 = vunpack.c.l.b16 %v2427
        %v3100 = vunpack.c.l.b16 %v2428
        %v3101 = vunpack.c.l.b16 %v2429
        %v3102 = vunpack.c.l.b16 %v2430
        %v3103 = vunpack.c.l.b16 %v2431
        %v3104 = vunpack.c.l.b16 %v2432
        %v3105 = vunpack.c.l.b16 %v2433
        %v3106 = vunpack.c.l.b16 %v2434
        %v3107 = vunpack.c.l.b16 %v2435
        %v3108 = vunpack.c.l.b16 %v2436
        %v3109 = vunpack.c.l.b16 %v2437
        %v3110 = vunpack.c.l.b16 %v2438
        %v3111 = vunpack.c.l.b16 %v2439
        %v3112 = vunpack.c.l.b16 %v2440
        %v3113 = vunpack.c.l.b16 %v2441
        %v3114 = vunpack.c.l.b16 %v2442
        %v3115 = vunpack.c.l.b16 %v2443
        %v3116 = vunpack.c.l.b16 %v2444
        %v3117 = vunpack.c.l.b16 %v2445
        %v3118 = vunpack.c.l.b16 %v2446
        %v3119 = vunpack.c.l.b16 %v2447
        %v3120 = vunpack.c.l.b16 %v2448
        %v3121 = vunpack.c.l.b16 %v2449
        %v3122 = vunpack.c.l.b16 %v2450
        %v3123 = vunpack.c.l.b16 %v2451
        %v3124 = vunpack.c.l.b16 %v2452
        %v3125 = vunpack.c.l.b16 %v2453
        %v3126 = vunpack.c.l.b16 %v2454
        %v3127 = vunpack.c.l.b16 %v2455
        %v3128 = vunpack.c.l.b16 %v2456
        %v3129 = vunpack.c.l.b16 %v2457
        %v3130 = vunpack.c.l.b16 %v2458
        %v3131 = vunpack.c.l.b16 %v2459
        %v3132 = vunpack.c.l.b16 %v2460
        %v3133 = vunpack.c.l.b16 %v2461
        %v3134 = vunpack.c.l.b16 %v2462
        %v3135 = vunpack.c.l.b16 %v2463
        %v3136 = vunpack.c.l.b16 %v2464
        %v3137 = vunpack.c.l.b16 %v2465
        %v3138 = vunpack.c.l.b16 %v2466
        %v3139 = vunpack.c.l.b16 %v2467
        %v3140 = vunpack.c.l.b16 %v2468
        %v3141 = vunpack.c.l.b16 %v2469
        %v3142 = vunpack.c.l.b16 %v2470
        %v3143 = vunpack.c.l.b16 %v2471
        %v3144 = vunpack.c.l.b16 %v2472
        %v3145 = vunpack.c.l.b16 %v2473
        %v3146 = vunpack.c.l.b16 %v2474
        %v3147 = vunpack.c.l.b16 %v2475
        %v3148 = vunpack.c.l.b16 %v2476
        %v3149 = vunpack.c.l.b16 %v2477
        %v3150 = vunpack.c.l.b16 %v2478
        %v3151 = vunpack.c.l.b16 %v2479
        %v3152 = vunpack.c.l.b16 %v2480
        %v3153 = vunpack.c.l.b16 %v2481
        %v3154 = vunpack.c.l.b16 %v2482
        %v3155 = vunpack.c.l.b16 %v2483
        %v3156 = vunpack.c.l.b16 %v2484
        %v3157 = vunpack.c.l.b16 %v2485
        %v3158 = vunpack.c.l.b16 %v2486
        %v3159 = vunpack.c.l.b16 %v2487
        %v3160 = vunpack.c.l.b16 %v2488
        %v3161 = vunpack.c.l.b16 %v2489
        %v3162 = vunpack.c.l.b16 %v2490
        %v3163 = vunpack.c.l.b16 %v2491
        %v3164 = vunpack.c.l.b16 %v2492
        %v3165 = vunpack.c.l.b16 %v2493
        %v3166 = vunpack.c.l.b16 %v2494
        %v3167 = vunpack.c.l.b16 %v2495
        %v3168 = vunpack.c.l.b16 %v2496
        %v3169 = vunpack.c.l.b16 %v2497
        %v3170 = vunpack.c.l.b16 %v2498
        %v3171 = vunpack.c.l.b16 %v2499
        %v3172 = vunpack.c.l.b16 %v2500
        %v3173 = vunpack.c.l.b16 %v2501
        %v3174 = vunpack.c.l.b16 %v2502
        %v3175 = vunpack.c.l.b16 %v2503
        %v3176 = vunpack.c.l.b16 %v2504
        %v3177 = vunpack.c.l.b16 %v2505
        %v3178 = vunpack.c.l.b16 %v2506
        %v3179 = vunpack.c.l.b16 %v2507
        %v3180 = vunpack.c.l.b16 %v2508
        %v3181 = vunpack.c.l.b16 %v2509
        %v3182 = vunpack.c.l.b16 %v2510
        %v3183 = vunpack.c.l.b16 %v2511
        %v3184 = vunpack.c.l.b16 %v2512
        %v3185 = vunpack.c.l.b16 %v2513
        %v3186 = vunpack.c.l.b16 %v2514
        %v3187 = vunpack.c.l.b16 %v2515
        %v3188 = vunpack.c.l.b16 %v2516
        %v3189 = vunpack.c.l.b16 %v2517
        %v3190 = vunpack.c.l.b16 %v2518
        %v3191 = vunpack.c.l.b16 %v2519
        %v3192 = vunpack.c.l.b16 %v2520
        %v3193 = vunpack.c.l.b16 %v2521
        %v3194 = vunpack.c.l.b16 %v2522
        %v3195 = vunpack.c.l.b16 %v2523
        %v3196 = vunpack.c.l.b16 %v2524
        %v3197 = vunpack.c.l.b16 %v2525
        %v3198 = vunpack.c.l.b16 %v2526
        %v3199 = vunpack.c.l.b16 %v2527
        %v3200 = vunpack.c.l.b16 %v2528
        %v3201 = vunpack.c.l.b16 %v2529
        %v3202 = vunpack.c.l.b16 %v2530
        %v3203 = vunpack.c.l.b16 %v2531
        %v3204 = vunpack.c.l.b16 %v2532
        %v3205 = vunpack.c.l.b16 %v2533
        %v3206 = vunpack.c.l.b16 %v2534
        %v3207 = vunpack.c.l.b16 %v2535
        %v3208 = vunpack.c.l.b16 %v2536
        %v3209 = vunpack.c.l.b16 %v2537
        %v3210 = vunpack.c.l.b16 %v2538
        %v3211 = vunpack.c.l.b16 %v2539
        %v3212 = vunpack.c.l.b16 %v2540
        %v3213 = vunpack.c.l.b16 %v2541
        %v3214 = vunpack.c.l.b16 %v2542
        %v3215 = vunpack.c.l.b16 %v2543
        %v3216 = vunpack.c.l.b16 %v2544
        %v3217 = vunpack.c.l.b16 %v2545
        %v3218 = vunpack.c.l.b16 %v2546
        %v3219 = vunpack.c.l.b16 %v2547
        %v3220 = vunpack.c.l.b16 %v2548
        %v3221 = vunpack.c.l.b16 %v2549
        %v3222 = vunpack.c.l.b16 %v2550
        %v3223 = vunpack.c.l.b16 %v2551
        %v3224 = vunpack.c.l.b16 %v2552
        %v3225 = vunpack.c.l.b16 %v2553
        %v3226 = vunpack.c.l.b16 %v2554
        %v3227 = vunpack.c.l.b16 %v2555
        %v3228 = vunpack.c.l.b16 %v2556
        %v3229 = vunpack.c.l.b16 %v2557
        %v3230 = vunpack.c.l.b16 %v2558
        %v3231 = vunpack.c.l.b16 %v2559
        %v3232 = vunpack.c.l.b16 %v2560
        %v3233 = vunpack.c.l.b16 %v2561
        %v3234 = vunpack.c.l.b16 %v2562
        %v3235 = vunpack.c.l.b16 %v2563
        %v3236 = vunpack.c.l.b16 %v2564
        %v3237 = vunpack.c.l.b16 %v2565
        %v3238 = vunpack.c.l.b16 %v2566
        %v3239 = vunpack.c.l.b16 %v2567
        %v3240 = vunpack.c.l.b16 %v2568
        %v3241 = vunpack.c.l.b16 %v2569
        %v3242 = vunpack.c.l.b16 %v2570
        %v3243 = vunpack.c.l.b16 %v2571
        %v3244 = vunpack.c.l.b16 %v2572
        %v3245 = vunpack.c.l.b16 %v2573
        %v3246 = vunpack.c.l.b16 %v2574
        %v3247 = vunpack.c.l.b16 %v2575
        %v3248 = vunpack.c.l.b16 %v2576
        %v3249 = vunpack.c.l.b16 %v2577
        %v3250 = vunpack.c.l.b16 %v2578
        %v3251 = vunpack.c.l.b16 %v2579
        %v3252 = vunpack.c.l.b16 %v2580
        %v3253 = vunpack.c.l.b16 %v2581
        %v3254 = vunpack.c.l.b16 %v2582
        %v3255 = vunpack.c.l.b16 %v2583
        %v3256 = vunpack.c.l.b16 %v2584
        %v3257 = vunpack.c.l.b16 %v2585
        %v3258 = vunpack.c.l.b16 %v2586
        %v3259 = vunpack.c.l.b16 %v2587
        %v3260 = vunpack.c.l.b16 %v2588
        %v3261 = vunpack.c.l.b16 %v2589
        %v3262 = vunpack.c.l.b16 %v2590
        %v3263 = vunpack.c.l.b16 %v2591
        %v3264 = vunpack.c.l.b16 %v2592
        %v3265 = vunpack.c.l.b16 %v2593
        %v3266 = vunpack.c.l.b16 %v2594
        %v3267 = vunpack.c.l.b16 %v2595
        %v3268 = vunpack.c.l.b16 %v2596
        %v3269 = vunpack.c.l.b16 %v2597
        %v3270 = vunpack.c.l.b16 %v2598
        %v3271 = vunpack.c.l.b16 %v2599
        %v3272 = vunpack.c.l.b16 %v2600
        %v3273 = vunpack.c.l.b16 %v2601
        %v3274 = vunpack.c.l.b16 %v2602
        %v3275 = vunpack.c.l.b16 %v2603
        %v3276 = vunpack.c.l.b16 %v2604
        %v3277 = vunpack.c.l.b16 %v2605
        %v3278 = vunpack.c.l.b16 %v2606
        %v3279 = vunpack.c.l.b16 %v2607
        %v3280 = vunpack.c.l.b16 %v2608
        %v3281 = vunpack.c.l.b16 %v2609
        %v3282 = vunpack.c.l.b16 %v2610
        %v3283 = vunpack.c.l.b16 %v2611
        %v3284 = vunpack.c.l.b16 %v2612
        %v3285 = vunpack.c.l.b16 %v2613
        %v3286 = vunpack.c.l.b16 %v2614
        %v3287 = vunpack.c.l.b16 %v2615
        %v3288 = vunpack.c.l.b16 %v2616
        %v3289 = vunpack.c.l.b16 %v2617
        %v3290 = vunpack.c.l.b16 %v2618
        %v3291 = vunpack.c.l.b16 %v2619
        %v3292 = vunpack.c.l.b16 %v2620
        %v3293 = vpack.c.b16 %v3038, %v3037
        %v3294 = vpack.c.b16 %v3040, %v3039
        %v3295 = vpack.c.b16 %v3042, %v3041
        %v3296 = vpack.c.b16 %v3044, %v3043
        %v3297 = vpack.c.b16 %v3046, %v3045
        %v3298 = vpack.c.b16 %v3048, %v3047
        %v3299 = vpack.c.b16 %v3050, %v3049
        %v3300 = vpack.c.b16 %v3052, %v3051
        %v3301 = vpack.c.b16 %v3054, %v3053
        %v3302 = vpack.c.b16 %v3056, %v3055
        %v3303 = vpack.c.b16 %v3058, %v3057
        %v3304 = vpack.c.b16 %v3060, %v3059
        %v3305 = vpack.c.b16 %v3062, %v3061
        %v3306 = vpack.c.b16 %v3064, %v3063
        %v3307 = vpack.c.b16 %v3066, %v3065
        %v3308 = vpack.c.b16 %v3068, %v3067
        %v3309 = vpack.c.b16 %v3070, %v3069
        %v3310 = vpack.c.b16 %v3072, %v3071
        %v3311 = vpack.c.b16 %v3074, %v3073
        %v3312 = vpack.c.b16 %v3076, %v3075
        %v3313 = vpack.c.b16 %v3078, %v3077
        %v3314 = vpack.c.b16 %v3080, %v3079
        %v3315 = vpack.c.b16 %v3082, %v3081
        %v3316 = vpack.c.b16 %v3084, %v3083
        %v3317 = vpack.c.b16 %v3086, %v3085
        %v3318 = vpack.c.b16 %v3088, %v3087
        %v3319 = vpack.c.b16 %v3090, %v3089
        %v3320 = vpack.c.b16 %v3092, %v3091
        %v3321 = vpack.c.b16 %v3094, %v3093
        %v3322 = vpack.c.b16 %v3096, %v3095
        %v3323 = vpack.c.b16 %v3098, %v3097
        %v3324 = vpack.c.b16 %v3100, %v3099
        %v3325 = vpack.c.b16 %v3102, %v3101
        %v3326 = vpack.c.b16 %v3104, %v3103
        %v3327 = vpack.c.b16 %v3106, %v3105
        %v3328 = vpack.c.b16 %v3108, %v3107
        %v3329 = vpack.c.b16 %v3110, %v3109
        %v3330 = vpack.c.b16 %v3112, %v3111
        %v3331 = vpack.c.b16 %v3114, %v3113
        %v3332 = vpack.c.b16 %v3116, %v3115
        %v3333 = vpack.c.b16 %v3118, %v3117
        %v3334 = vpack.c.b16 %v3120, %v3119
        %v3335 = vpack.c.b16 %v3122, %v3121
        %v3336 = vpack.c.b16 %v3124, %v3123
        %v3337 = vpack.c.b16 %v3126, %v3125
        %v3338 = vpack.c.b16 %v3128, %v3127
        %v3339 = vpack.c.b16 %v3130, %v3129
        %v3340 = vpack.c.b16 %v3132, %v3131
        %v3341 = vpack.c.b16 %v3134, %v3133
        %v3342 = vpack.c.b16 %v3136, %v3135
        %v3343 = vpack.c.b16 %v3138, %v3137
        %v3344 = vpack.c.b16 %v3140, %v3139
        %v3345 = vpack.c.b16 %v3142, %v3141
        %v3346 = vpack.c.b16 %v3144, %v3143
        %v3347 = vpack.c.b16 %v3146, %v3145
        %v3348 = vpack.c.b16 %v3148, %v3147
        %v3349 = vpack.c.b16 %v3150, %v3149
        %v3350 = vpack.c.b16 %v3152, %v3151
        %v3351 = vpack.c.b16 %v3154, %v3153
        %v3352 = vpack.c.b16 %v3156, %v3155
        %v3353 = vpack.c.b16 %v3158, %v3157
        %v3354 = vpack.c.b16 %v3160, %v3159
        %v3355 = vpack.c.b16 %v3162, %v3161
        %v3356 = vpack.c.b16 %v3164, %v3163
        %v3357 = vpack.c.b16 %v3166, %v3165
        %v3358 = vpack.c.b16 %v3168, %v3167
        %v3359 = vpack.c.b16 %v3170, %v3169
        %v3360 = vpack.c.b16 %v3172, %v3171
        %v3361 = vpack.c.b16 %v3174, %v3173
        %v3362 = vpack.c.b16 %v3176, %v3175
        %v3363 = vpack.c.b16 %v3178, %v3177
        %v3364 = vpack.c.b16 %v3180, %v3179
        %v3365 = vpack.c.b16 %v3182, %v3181
        %v3366 = vpack.c.b16 %v3184, %v3183
        %v3367 = vpack.c.b16 %v3186, %v3185
        %v3368 = vpack.c.b16 %v3188, %v3187
        %v3369 = vpack.c.b16 %v3190, %v3189
        %v3370 = vpack.c.b16 %v3192, %v3191
        %v3371 = vpack.c.b16 %v3194, %v3193
        %v3372 = vpack.c.b16 %v3196, %v3195
        %v3373 = vpack.c.b16 %v3198, %v3197
        %v3374 = vpack.c.b16 %v3200, %v3199
        %v3375 = vpack.c.b16 %v3202, %v3201
        %v3376 = vpack.c.b16 %v3204, %v3203
        %v3377 = vpack.c.b16 %v3206, %v3205
        %v3378 = vpack.c.b16 %v3208, %v3207
        %v3379 = vpack.c.b16 %v3210, %v3209
        %v3380 = vpack.c.b16 %v3212, %v3211
        %v3381 = vpack.c.b16 %v3214, %v3213
        %v3382 = vpack.c.b16 %v3216, %v3215
        %v3383 = vpack.c.b16 %v3218, %v3217
        %v3384 = vpack.c.b16 %v3220, %v3219
        %v3385 = vpack.c.b16 %v3222, %v3221
        %v3386 = vpack.c.b16 %v3224, %v3223
        %v3387 = vpack.c.b16 %v3226, %v3225
        %v3388 = vpack.c.b16 %v3228, %v3227
        %v3389 = vpack.c.b16 %v3230, %v3229
        %v3390 = vpack.c.b16 %v3232, %v3231
        %v3391 = vpack.c.b16 %v3234, %v3233
        %v3392 = vpack.c.b16 %v3236, %v3235
        %v3393 = vpack.c.b16 %v3238, %v3237
        %v3394 = vpack.c.b16 %v3240, %v3239
        %v3395 = vpack.c.b16 %v3242, %v3241
        %v3396 = vpack.c.b16 %v3244, %v3243
        %v3397 = vpack.c.b16 %v3246, %v3245
        %v3398 = vpack.c.b16 %v3248, %v3247
        %v3399 = vpack.c.b16 %v3250, %v3249
        %v3400 = vpack.c.b16 %v3252, %v3251
        %v3401 = vpack.c.b16 %v3254, %v3253
        %v3402 = vpack.c.b16 %v3256, %v3255
        %v3403 = vpack.c.b16 %v3258, %v3257
        %v3404 = vpack.c.b16 %v3260, %v3259
        %v3405 = vpack.c.b16 %v3262, %v3261
        %v3406 = vpack.c.b16 %v3264, %v3263
        %v3407 = vpack.c.b16 %v3266, %v3265
        %v3408 = vpack.c.b16 %v3268, %v3267
        %v3409 = vpack.c.b16 %v3270, %v3269
        %v3410 = vpack.c.b16 %v3272, %v3271
        %v3411 = vpack.c.b16 %v3274, %v3273
        %v3412 = vpack.c.b16 %v3276, %v3275
        %v3413 = vpack.c.b16 %v3278, %v3277
        %v3414 = vpack.c.b16 %v3280, %v3279
        %v3415 = vpack.c.b16 %v3282, %v3281
        %v3416 = vpack.c.b16 %v3284, %v3283
        %v3417 = vpack.c.b16 %v3286, %v3285
        %v3418 = vpack.c.b16 %v3288, %v3287
        %v3419 = vpack.c.b16 %v3290, %v3289
        %v3420 = vpack.c.b16 %v3292, %v3291
        %3549 = vmatpush.bf16.msra.mxu0 %v3300
        %3550 = vmatpush.bf16.msra.mxu0 %v3299
        %3551 = vmatpush.bf16.msra.mxu0 %v3298
        %3552 = vmatpush.bf16.msra.mxu0 %v3297
        %3553 = vmatpush.bf16.msra.mxu0 %v3296
        %3554 = vmatpush.bf16.msra.mxu0 %v3295
        %3555 = vmatpush.bf16.msra.mxu0 %v3294
        %3556 = vmatpush.bf16.msra.mxu0 %v3293
        %3557 = vmatmul.bf16.gmra.mxu0 %v2717
        %v3558 = vpop.f32.mrf.mxu0
        %v3559 = vadd.f32 0.0, %v3558
        %v3560 = vpop.f32.mrf.mxu0
        %v3561 = vadd.f32 0.0, %v3560
        %3562 = vmatmul.bf16.gmra.mxu0 %v2733
        %v3563 = vpop.f32.mrf.mxu0
        %v3564 = vadd.f32 0.0, %v3563
        %v3565 = vpop.f32.mrf.mxu0
        %v3566 = vadd.f32 0.0, %v3565
        %3567 = vdwg.mxu0
        %3568 = vmatpush.bf16.msra.mxu0 %v3308
        %3569 = vmatpush.bf16.msra.mxu0 %v3307
        %3570 = vmatpush.bf16.msra.mxu0 %v3306
        %3571 = vmatpush.bf16.msra.mxu0 %v3305
        %3572 = vmatpush.bf16.msra.mxu0 %v3304
        %3573 = vmatpush.bf16.msra.mxu0 %v3303
        %3574 = vmatpush.bf16.msra.mxu0 %v3302
        %3575 = vmatpush.bf16.msra.mxu0 %v3301
        %3576 = vmatmul.bf16.gmra.mxu0 %v2718
        %v3577 = vpop.f32.mrf.mxu0
        %v3578 = vadd.f32 %v3559, %v3577
        %v3579 = vpop.f32.mrf.mxu0
        %v3580 = vadd.f32 %v3561, %v3579
        %3581 = vmatmul.bf16.gmra.mxu0 %v2734
        %v3582 = vpop.f32.mrf.mxu0
        %v3583 = vadd.f32 %v3564, %v3582
        %v3584 = vpop.f32.mrf.mxu0
        %v3585 = vadd.f32 %v3566, %v3584
        %3586 = vdwg.mxu0
        %3587 = vmatpush.bf16.msra.mxu0 %v3316
        %3588 = vmatpush.bf16.msra.mxu0 %v3315
        %3589 = vmatpush.bf16.msra.mxu0 %v3314
        %3590 = vmatpush.bf16.msra.mxu0 %v3313
        %3591 = vmatpush.bf16.msra.mxu0 %v3312
        %3592 = vmatpush.bf16.msra.mxu0 %v3311
        %3593 = vmatpush.bf16.msra.mxu0 %v3310
        %3594 = vmatpush.bf16.msra.mxu0 %v3309
        %3595 = vmatmul.bf16.gmra.mxu0 %v2719
        %v3596 = vpop.f32.mrf.mxu0
        %v3597 = vadd.f32 %v3578, %v3596
        %v3598 = vpop.f32.mrf.mxu0
        %v3599 = vadd.f32 %v3580, %v3598
        %3600 = vmatmul.bf16.gmra.mxu0 %v2735
        %v3601 = vpop.f32.mrf.mxu0
        %v3602 = vadd.f32 %v3583, %v3601
        %v3603 = vpop.f32.mrf.mxu0
        %v3604 = vadd.f32 %v3585, %v3603
        %3605 = vdwg.mxu0
        %3606 = vmatpush.bf16.msra.mxu0 %v3324
        %3607 = vmatpush.bf16.msra.mxu0 %v3323
        %3608 = vmatpush.bf16.msra.mxu0 %v3322
        %3609 = vmatpush.bf16.msra.mxu0 %v3321
        %3610 = vmatpush.bf16.msra.mxu0 %v3320
        %3611 = vmatpush.bf16.msra.mxu0 %v3319
        %3612 = vmatpush.bf16.msra.mxu0 %v3318
        %3613 = vmatpush.bf16.msra.mxu0 %v3317
        %3614 = vmatmul.bf16.gmra.mxu0 %v2720
        %v3615 = vpop.f32.mrf.mxu0
        %v3616 = vadd.f32 %v3597, %v3615
        %v3617 = vpop.f32.mrf.mxu0
        %v3618 = vadd.f32 %v3599, %v3617
        %3619 = vmatmul.bf16.gmra.mxu0 %v2736
        %v3620 = vpop.f32.mrf.mxu0
        %v3621 = vadd.f32 %v3602, %v3620
        %v3622 = vpop.f32.mrf.mxu0
        %v3623 = vadd.f32 %v3604, %v3622
        %3624 = vdwg.mxu0
        %3625 = vmatpush.bf16.msra.mxu0 %v3332
        %3626 = vmatpush.bf16.msra.mxu0 %v3331
        %3627 = vmatpush.bf16.msra.mxu0 %v3330
        %3628 = vmatpush.bf16.msra.mxu0 %v3329
        %3629 = vmatpush.bf16.msra.mxu0 %v3328
        %3630 = vmatpush.bf16.msra.mxu0 %v3327
        %3631 = vmatpush.bf16.msra.mxu0 %v3326
        %3632 = vmatpush.bf16.msra.mxu0 %v3325
        %3633 = vmatmul.bf16.gmra.mxu0 %v2721
        %v3634 = vpop.f32.mrf.mxu0
        %v3635 = vadd.f32 %v3616, %v3634
        %v3636 = vpop.f32.mrf.mxu0
        %v3637 = vadd.f32 %v3618, %v3636
        %3638 = vmatmul.bf16.gmra.mxu0 %v2737
        %v3639 = vpop.f32.mrf.mxu0
        %v3640 = vadd.f32 %v3621, %v3639
        %v3641 = vpop.f32.mrf.mxu0
        %v3642 = vadd.f32 %v3623, %v3641
        %3643 = vdwg.mxu0
        %3644 = vmatpush.bf16.msra.mxu0 %v3340
        %3645 = vmatpush.bf16.msra.mxu0 %v3339
        %3646 = vmatpush.bf16.msra.mxu0 %v3338
        %3647 = vmatpush.bf16.msra.mxu0 %v3337
        %3648 = vmatpush.bf16.msra.mxu0 %v3336
        %3649 = vmatpush.bf16.msra.mxu0 %v3335
        %3650 = vmatpush.bf16.msra.mxu0 %v3334
        %3651 = vmatpush.bf16.msra.mxu0 %v3333
        %3652 = vmatmul.bf16.gmra.mxu0 %v2722
        %v3653 = vpop.f32.mrf.mxu0
        %v3654 = vadd.f32 %v3635, %v3653
        %v3655 = vpop.f32.mrf.mxu0
        %v3656 = vadd.f32 %v3637, %v3655
        %3657 = vmatmul.bf16.gmra.mxu0 %v2738
        %v3658 = vpop.f32.mrf.mxu0
        %v3659 = vadd.f32 %v3640, %v3658
        %v3660 = vpop.f32.mrf.mxu0
        %v3661 = vadd.f32 %v3642, %v3660
        %3662 = vdwg.mxu0
        %3663 = vmatpush.bf16.msra.mxu0 %v3348
        %3664 = vmatpush.bf16.msra.mxu0 %v3347
        %3665 = vmatpush.bf16.msra.mxu0 %v3346
        %3666 = vmatpush.bf16.msra.mxu0 %v3345
        %3667 = vmatpush.bf16.msra.mxu0 %v3344
        %3668 = vmatpush.bf16.msra.mxu0 %v3343
        %3669 = vmatpush.bf16.msra.mxu0 %v3342
        %3670 = vmatpush.bf16.msra.mxu0 %v3341
        %3671 = vmatmul.bf16.gmra.mxu0 %v2723
        %v3672 = vpop.f32.mrf.mxu0
        %v3673 = vadd.f32 %v3654, %v3672
        %v3674 = vpop.f32.mrf.mxu0
        %v3675 = vadd.f32 %v3656, %v3674
        %3676 = vmatmul.bf16.gmra.mxu0 %v2739
        %v3677 = vpop.f32.mrf.mxu0
        %v3678 = vadd.f32 %v3659, %v3677
        %v3679 = vpop.f32.mrf.mxu0
        %v3680 = vadd.f32 %v3661, %v3679
        %3681 = vdwg.mxu0
        %3682 = vmatpush.bf16.msra.mxu0 %v3356
        %3683 = vmatpush.bf16.msra.mxu0 %v3355
        %3684 = vmatpush.bf16.msra.mxu0 %v3354
        %3685 = vmatpush.bf16.msra.mxu0 %v3353
        %3686 = vmatpush.bf16.msra.mxu0 %v3352
        %3687 = vmatpush.bf16.msra.mxu0 %v3351
        %3688 = vmatpush.bf16.msra.mxu0 %v3350
        %3689 = vmatpush.bf16.msra.mxu0 %v3349
        %3690 = vmatmul.bf16.gmra.mxu0 %v2724
        %v3691 = vpop.f32.mrf.mxu0
        %v3692 = vadd.f32 %v3673, %v3691
        %v3693 = vpop.f32.mrf.mxu0
        %v3694 = vadd.f32 %v3675, %v3693
        %3695 = vmatmul.bf16.gmra.mxu0 %v2740
        %v3696 = vpop.f32.mrf.mxu0
        %v3697 = vadd.f32 %v3678, %v3696
        %v3698 = vpop.f32.mrf.mxu0
        %v3699 = vadd.f32 %v3680, %v3698
        %3700 = vdwg.mxu0
        %3701 = vmatpush.bf16.msra.mxu0 %v3364
        %3702 = vmatpush.bf16.msra.mxu0 %v3363
        %3703 = vmatpush.bf16.msra.mxu0 %v3362
        %3704 = vmatpush.bf16.msra.mxu0 %v3361
        %3705 = vmatpush.bf16.msra.mxu0 %v3360
        %3706 = vmatpush.bf16.msra.mxu0 %v3359
        %3707 = vmatpush.bf16.msra.mxu0 %v3358
        %3708 = vmatpush.bf16.msra.mxu0 %v3357
        %3709 = vmatmul.bf16.gmra.mxu0 %v2725
        %v3710 = vpop.f32.mrf.mxu0
        %v3711 = vadd.f32 %v3692, %v3710
        %v3712 = vpop.f32.mrf.mxu0
        %v3713 = vadd.f32 %v3694, %v3712
        %3714 = vmatmul.bf16.gmra.mxu0 %v2741
        %v3715 = vpop.f32.mrf.mxu0
        %v3716 = vadd.f32 %v3697, %v3715
        %v3717 = vpop.f32.mrf.mxu0
        %v3718 = vadd.f32 %v3699, %v3717
        %3719 = vdwg.mxu0
        %3720 = vmatpush.bf16.msra.mxu0 %v3372
        %3721 = vmatpush.bf16.msra.mxu0 %v3371
        %3722 = vmatpush.bf16.msra.mxu0 %v3370
        %3723 = vmatpush.bf16.msra.mxu0 %v3369
        %3724 = vmatpush.bf16.msra.mxu0 %v3368
        %3725 = vmatpush.bf16.msra.mxu0 %v3367
        %3726 = vmatpush.bf16.msra.mxu0 %v3366
        %3727 = vmatpush.bf16.msra.mxu0 %v3365
        %3728 = vmatmul.bf16.gmra.mxu0 %v2726
        %v3729 = vpop.f32.mrf.mxu0
        %v3730 = vadd.f32 %v3711, %v3729
        %v3731 = vpop.f32.mrf.mxu0
        %v3732 = vadd.f32 %v3713, %v3731
        %3733 = vmatmul.bf16.gmra.mxu0 %v2742
        %v3734 = vpop.f32.mrf.mxu0
        %v3735 = vadd.f32 %v3716, %v3734
        %v3736 = vpop.f32.mrf.mxu0
        %v3737 = vadd.f32 %v3718, %v3736
        %3738 = vdwg.mxu0
        %3739 = vmatpush.bf16.msra.mxu0 %v3380
        %3740 = vmatpush.bf16.msra.mxu0 %v3379
        %3741 = vmatpush.bf16.msra.mxu0 %v3378
        %3742 = vmatpush.bf16.msra.mxu0 %v3377
        %3743 = vmatpush.bf16.msra.mxu0 %v3376
        %3744 = vmatpush.bf16.msra.mxu0 %v3375
        %3745 = vmatpush.bf16.msra.mxu0 %v3374
        %3746 = vmatpush.bf16.msra.mxu0 %v3373
        %3747 = vmatmul.bf16.gmra.mxu0 %v2727
        %v3748 = vpop.f32.mrf.mxu0
        %v3749 = vadd.f32 %v3730, %v3748
        %v3750 = vpop.f32.mrf.mxu0
        %v3751 = vadd.f32 %v3732, %v3750
        %3752 = vmatmul.bf16.gmra.mxu0 %v2743
        %v3753 = vpop.f32.mrf.mxu0
        %v3754 = vadd.f32 %v3735, %v3753
        %v3755 = vpop.f32.mrf.mxu0
        %v3756 = vadd.f32 %v3737, %v3755
        %3757 = vdwg.mxu0
        %3758 = vmatpush.bf16.msra.mxu0 %v3388
        %3759 = vmatpush.bf16.msra.mxu0 %v3387
        %3760 = vmatpush.bf16.msra.mxu0 %v3386
        %3761 = vmatpush.bf16.msra.mxu0 %v3385
        %3762 = vmatpush.bf16.msra.mxu0 %v3384
        %3763 = vmatpush.bf16.msra.mxu0 %v3383
        %3764 = vmatpush.bf16.msra.mxu0 %v3382
        %3765 = vmatpush.bf16.msra.mxu0 %v3381
        %3766 = vmatmul.bf16.gmra.mxu0 %v2728
        %v3767 = vpop.f32.mrf.mxu0
        %v3768 = vadd.f32 %v3749, %v3767
        %v3769 = vpop.f32.mrf.mxu0
        %v3770 = vadd.f32 %v3751, %v3769
        %3771 = vmatmul.bf16.gmra.mxu0 %v2744
        %v3772 = vpop.f32.mrf.mxu0
        %v3773 = vadd.f32 %v3754, %v3772
        %v3774 = vpop.f32.mrf.mxu0
        %v3775 = vadd.f32 %v3756, %v3774
        %3776 = vdwg.mxu0
        %3777 = vmatpush.bf16.msra.mxu0 %v3396
        %3778 = vmatpush.bf16.msra.mxu0 %v3395
        %3779 = vmatpush.bf16.msra.mxu0 %v3394
        %3780 = vmatpush.bf16.msra.mxu0 %v3393
        %3781 = vmatpush.bf16.msra.mxu0 %v3392
        %3782 = vmatpush.bf16.msra.mxu0 %v3391
        %3783 = vmatpush.bf16.msra.mxu0 %v3390
        %3784 = vmatpush.bf16.msra.mxu0 %v3389
        %3785 = vmatmul.bf16.gmra.mxu0 %v2729
        %v3786 = vpop.f32.mrf.mxu0
        %v3787 = vadd.f32 %v3768, %v3786
        %v3788 = vpop.f32.mrf.mxu0
        %v3789 = vadd.f32 %v3770, %v3788
        %3790 = vmatmul.bf16.gmra.mxu0 %v2745
        %v3791 = vpop.f32.mrf.mxu0
        %v3792 = vadd.f32 %v3773, %v3791
        %v3793 = vpop.f32.mrf.mxu0
        %v3794 = vadd.f32 %v3775, %v3793
        %3795 = vdwg.mxu0
        %3796 = vmatpush.bf16.msra.mxu0 %v3404
        %3797 = vmatpush.bf16.msra.mxu0 %v3403
        %3798 = vmatpush.bf16.msra.mxu0 %v3402
        %3799 = vmatpush.bf16.msra.mxu0 %v3401
        %3800 = vmatpush.bf16.msra.mxu0 %v3400
        %3801 = vmatpush.bf16.msra.mxu0 %v3399
        %3802 = vmatpush.bf16.msra.mxu0 %v3398
        %3803 = vmatpush.bf16.msra.mxu0 %v3397
        %3804 = vmatmul.bf16.gmra.mxu0 %v2730
        %v3805 = vpop.f32.mrf.mxu0
        %v3806 = vadd.f32 %v3787, %v3805
        %v3807 = vpop.f32.mrf.mxu0
        %v3808 = vadd.f32 %v3789, %v3807
        %3809 = vmatmul.bf16.gmra.mxu0 %v2746
        %v3810 = vpop.f32.mrf.mxu0
        %v3811 = vadd.f32 %v3792, %v3810
        %v3812 = vpop.f32.mrf.mxu0
        %v3813 = vadd.f32 %v3794, %v3812
        %3814 = vdwg.mxu0
        %3815 = vmatpush.bf16.msra.mxu0 %v3412
        %3816 = vmatpush.bf16.msra.mxu0 %v3411
        %3817 = vmatpush.bf16.msra.mxu0 %v3410
        %3818 = vmatpush.bf16.msra.mxu0 %v3409
        %3819 = vmatpush.bf16.msra.mxu0 %v3408
        %3820 = vmatpush.bf16.msra.mxu0 %v3407
        %3821 = vmatpush.bf16.msra.mxu0 %v3406
        %3822 = vmatpush.bf16.msra.mxu0 %v3405
        %3823 = vmatmul.bf16.gmra.mxu0 %v2731
        %v3824 = vpop.f32.mrf.mxu0
        %v3825 = vadd.f32 %v3806, %v3824
        %v3826 = vpop.f32.mrf.mxu0
        %v3827 = vadd.f32 %v3808, %v3826
        %3828 = vmatmul.bf16.gmra.mxu0 %v2747
        %v3829 = vpop.f32.mrf.mxu0
        %v3830 = vadd.f32 %v3811, %v3829
        %v3831 = vpop.f32.mrf.mxu0
        %v3832 = vadd.f32 %v3813, %v3831
        %3833 = vdwg.mxu0
        %3834 = vmatpush.bf16.msra.mxu0 %v3420
        %3835 = vmatpush.bf16.msra.mxu0 %v3419
        %3836 = vmatpush.bf16.msra.mxu0 %v3418
        %3837 = vmatpush.bf16.msra.mxu0 %v3417
        %3838 = vmatpush.bf16.msra.mxu0 %v3416
        %3839 = vmatpush.bf16.msra.mxu0 %v3415
        %3840 = vmatpush.bf16.msra.mxu0 %v3414
        %3841 = vmatpush.bf16.msra.mxu0 %v3413
        %3842 = vmatmul.bf16.gmra.mxu0 %v2732
        %v3843 = vpop.f32.mrf.mxu0
        %v3844 = vadd.f32 %v3825, %v3843
        %v3845 = vpop.f32.mrf.mxu0
        %v3846 = vadd.f32 %v3827, %v3845
        %3847 = vmatmul.bf16.gmra.mxu0 %v2748
        %v3848 = vpop.f32.mrf.mxu0
        %v3849 = vadd.f32 %v3830, %v3848
        %v3850 = vpop.f32.mrf.mxu0
        %v3851 = vadd.f32 %v3832, %v3850
        %3852 = vdwg.mxu0
        %v3853 = vadd.f32 %v3844, %v3846
        %v3854 = vadd.f32 %v3853, %v3849
        %v3855 = vadd.f32 %v3854, %v3851
        %v3856 = vrot.slane %v3855, 4
        %v3857 = vadd.f32 %v3855, %v3856
        %v3858 = vrot.slane %v3857, 2
        %v3859 = vadd.f32 %v3857, %v3858
        %v3860 = vrot.slane %v3859, 1
        %v3861 = vadd.f32 %v3859, %v3860
        %v3862 = vmul.f32 %v3844, %v3844
        %v3863 = vmul.f32 %v3846, %v3846
        %v3864 = vmul.f32 %v3849, %v3849
        %v3865 = vmul.f32 %v3851, %v3851
        %v3866 = vadd.f32 %v3862, %v3863
        %v3867 = vadd.f32 %v3866, %v3864
        %v3868 = vadd.f32 %v3867, %v3865
        %v3869 = vrot.slane %v3868, 4
        %v3870 = vadd.f32 %v3868, %v3869
        %v3871 = vrot.slane %v3870, 2
        %v3872 = vadd.f32 %v3870, %v3871
        %v3873 = vrot.slane %v3872, 1
        %v3874 = vadd.f32 %v3872, %v3873
        %v3875 = vmul.f32 %v3861, 0.055555556
        %v3876 = vmul.f32 %v3874, 0.055555556
        %v3877 = vmul.f32 %v3875, %v3875
        %v3878 = vsub.f32 %v3876, %v3877
        %v3879 = vmax.f32 %v3878, 0.0
        %v3880 = vld [vmem:[%s2329] sm:$0x1]
        %v3881 = vadd.f32 %v3879, 1e-05
        %v3882 = vrsqrt.pop %v3881
        %v3883 = vmul.f32 %v3882, %v3881
        %v3884 = vmul.f32 %v3883, %v3882
        %v3885 = vmul.f32 0.5, %v3884
        %v3886 = vsub.f32 1.5, %v3885
        %v3887 = vmul.f32 %v3882, %v3886
        %vm3888 = vweird.f32 %v3881
        %vm3889 = vweird.f32 %v3882
        %vm3890 = vmor %vm3888, %vm3889
        %v3891 = vsel %vm3890, %v3882, %v3887
        %v3892 = vmul.f32 %v3880, %v3891
        %v3893 = vld [vmem:[%s2332] sm:$0x1]
        %v3894 = vmul.f32 %v3875, %v3892
        %v3895 = vsub.f32 %v3893, %v3894
        %v3897 = vperm.slane %v3892, 0
        %v3899 = vmul.f32 %v3844, %v3897
        %v3900 = vmul.f32 %v3846, %v3897
        %v3901 = vmul.f32 %v3849, %v3897
        %v3902 = vmul.f32 %v3851, %v3897
        %v3904 = vperm.slane %v3895, 0
        %v3906 = vadd.f32 %v3899, %v3904
        %v3907 = vadd.f32 %v3900, %v3904
        %v3908 = vadd.f32 %v3901, %v3904
        %v3909 = vadd.f32 %v3902, %v3904
        %vm3910 = vcmp.gt.f32.partialorder %v3906, 0.0
        %vm3911 = vcmp.gt.f32.partialorder %v3907, 0.0
        %vm3912 = vcmp.gt.f32.partialorder %v3908, 0.0
        %vm3913 = vcmp.gt.f32.partialorder %v3909, 0.0
        %v3914 = vmul.f32 %v3906, 0.2
        %v3915 = vmul.f32 %v3907, 0.2
        %v3916 = vmul.f32 %v3908, 0.2
        %v3917 = vmul.f32 %v3909, 0.2
        %v3918 = vsel %vm3910, %v3906, %v3914
        %v3919 = vsel %vm3911, %v3907, %v3915
        %v3920 = vsel %vm3912, %v3908, %v3916
        %v3921 = vsel %vm3913, %v3909, %v3917
        %v3922 = vpack.c.bf16 %v3918, %v3918
        %v3923 = vpack.c.bf16 %v3919, %v3919
        %v3924 = vpack.c.bf16 %v3920, %v3920
        %v3925 = vpack.c.bf16 %v3921, %v3921
        %3926 = vst [vmem:[%s2326] sm:$0xf] %v3922
        %3927 = vst [vmem:[%s2326 + $0x4] sm:$0xf] %v3923
        %3928 = vst [vmem:[%s2326 + $0x8] sm:$0xf] %v3924
        %3929 = vst [vmem:[%s2326 + $0xc] sm:$0xf] %v3925
        %s3930 = sand.u32 %s122, 1
        %s3931 = sand.u32 %s122, 1
        %s3932 = smul.addr %s3931, 16
        %s3933 = scalar_lea.vmem [#allocation3], %s3932
        // Predicated region
        $region89: #{discriminator_forward.8} parent=83 // pred_check
          %p3934 = pneg %p132
        $region90: #{discriminator_forward.8} parent=83 // pred_check_branch
          %3936 = sbr.rel (%p3934) target = $region92
        $region91: #{discriminator_forward.8} parent=83 // pred_region
          %s3937 = smul.addr %s15, 4
          %s3938 = scalar_lea.vmem %s4, %s3937
          // Predicated region
          $region93: #{discriminator_forward.8} parent=91 // pred_check
            _
          $region94: #{discriminator_forward.8} parent=91 // pred_check_branch
            %3940 = sbr.rel (0) target = $region96
          $region95: #{discriminator_forward.8} parent=91 // pred_region
            // Predicated region
            $region97: #{discriminator_forward.8} parent=95 // pred_check
              _
            $region98: #{discriminator_forward.8} parent=95 // pred_check_branch
              %3942 = sbr.rel target = $region100
            $region99: #{discriminator_forward.8} parent=95 // pred_region
              // Predicated region
              $region112: #{discriminator_forward.8} parent=99 // pred_check
                _
              $region113: #{discriminator_forward.8} parent=99 // pred_check_branch
                %3964 = sbr.rel (0) target = $region115
              $region114: #{discriminator_forward.8} parent=99 // pred_region
                loop: start=0, step=1, limit=1
                $region116: #{discriminator_forward.8} parent=114 // loop_pre_header
                  _
                $region117: #{discriminator_forward.8} parent=114 // loop_header
                  %s3966 = sphi 0, %s3970
                  %p3967 = scmp.ge.s32.totalorder %s3966, 1
                  %s3971 = sphi %s3933, %s3933
                  %s3972 = sphi %s3938, %s3938
                $region118: #{discriminator_forward.8} parent=114 // loop_header_branch
                  %3969 = sbr.rel (%p3967) target = $region122
                $region119: #{discriminator_forward.8} parent=114 // loop_body
                  _
                $region120: #{discriminator_forward.8} parent=114 // loop_footer
                  %s3970 = sadd.s32 1, %s3966
                $region121: #{discriminator_forward.8} parent=114 // loop_footer_branch
                  %3965 = sbr.rel target = $region117
                $region122: #{discriminator_forward.8} parent=114 // loop_exit
                  _
                %s3974 = ssub.s32 16, 1
                loop: start=0, step=1, limit=1
                $region123: #{discriminator_forward.8} parent=114 // loop_pre_header
                  _
                $region124: #{discriminator_forward.8} parent=114 // loop_header
                  %s3976 = sphi 0, %s3980
                  %p3977 = scmp.ge.s32.totalorder %s3976, 1
                  %s3981 = sphi %s3933, %s3933
                  %s3982 = sphi %s3938, %s3938
                $region125: #{discriminator_forward.8} parent=114 // loop_header_branch
                  %3979 = sbr.rel (%p3977) target = $region129
                $region126: #{discriminator_forward.8} parent=114 // loop_body
                  %v3983 = vld [vmem:[%s3981] sm:%s3974]
                  %3984 = vst [vmem:[%s3982] sm:%s3974] %v3983
                  %v3985 = vld [vmem:[%s3981 + $0x4] sm:%s3974]
                  %3986 = vst [vmem:[%s3982 + $0x8] sm:%s3974] %v3985
                  %v3987 = vld [vmem:[%s3981 + $0x8] sm:%s3974]
                  %3988 = vst [vmem:[%s3982 + $0x10] sm:%s3974] %v3987
                  %v3989 = vld [vmem:[%s3981 + $0xc] sm:%s3974]
                  %3990 = vst [vmem:[%s3982 + $0x18] sm:%s3974] %v3989
                $region127: #{discriminator_forward.8} parent=114 // loop_footer
                  %s3980 = sadd.s32 1, %s3976
                $region128: #{discriminator_forward.8} parent=114 // loop_footer_branch
                  %3975 = sbr.rel target = $region124
                $region129: #{discriminator_forward.8} parent=114 // loop_exit
                  _
              $region115: #{discriminator_forward.8} parent=99 // pred_fallthru
                _
            $region100: #{discriminator_forward.8} parent=95 // pred_fallthru
              _
            // Predicated region
            $region101: #{discriminator_forward.8} parent=95 // pred_check
              _
            $region102: #{discriminator_forward.8} parent=95 // pred_check_branch
              %3944 = sbr.rel (0) target = $region104
            $region103: #{discriminator_forward.8} parent=95 // pred_region
              %s3946 = ssub.s32 16, 1
              loop: start=0, step=1, limit=1
              $region105: #{discriminator_forward.8} parent=103 // loop_pre_header
                _
              $region106: #{discriminator_forward.8} parent=103 // loop_header
                %s3948 = sphi 0, %s3952
                %p3949 = scmp.ge.s32.totalorder %s3948, 1
                %s3953 = sphi %s3933, %s3933
                %s3954 = sphi %s3938, %s3938
              $region107: #{discriminator_forward.8} parent=103 // loop_header_branch
                %3951 = sbr.rel (%p3949) target = $region111
              $region108: #{discriminator_forward.8} parent=103 // loop_body
                %v3955 = vld [vmem:[%s3953] sm:%s3946]
                %3956 = vst [vmem:[%s3954] sm:%s3946] %v3955
                %v3957 = vld [vmem:[%s3953 + $0x4] sm:%s3946]
                %3958 = vst [vmem:[%s3954 + $0x8] sm:%s3946] %v3957
                %v3959 = vld [vmem:[%s3953 + $0x8] sm:%s3946]
                %3960 = vst [vmem:[%s3954 + $0x10] sm:%s3946] %v3959
                %v3961 = vld [vmem:[%s3953 + $0xc] sm:%s3946]
                %3962 = vst [vmem:[%s3954 + $0x18] sm:%s3946] %v3961
              $region109: #{discriminator_forward.8} parent=103 // loop_footer
                %s3952 = sadd.s32 1, %s3948
              $region110: #{discriminator_forward.8} parent=103 // loop_footer_branch
                %3947 = sbr.rel target = $region106
              $region111: #{discriminator_forward.8} parent=103 // loop_exit
                _
            $region104: #{discriminator_forward.8} parent=95 // pred_fallthru
              _
          $region96: #{discriminator_forward.8} parent=91 // pred_fallthru
            _
          %3991 = vnop
        $region92: #{discriminator_forward.8} parent=83 // pred_fallthru
          _
      $region84: #{discriminator_forward.8} parent=5 // pred_fallthru
        _
      %p3992 = scmp.le.s32.totalorder 2, %s10
      // Predicated region
      $region130: #{discriminator_forward.8} parent=5 // pred_check
        %p3993 = pneg %p3992
      $region131: #{discriminator_forward.8} parent=5 // pred_check_branch
        %3995 = sbr.rel (%p3993) target = $region133
      $region132: #{discriminator_forward.8} parent=5 // pred_region
        %s3996 = ssub.s32 %s10, 2
        // Predicated region
        $region134: #{discriminator_forward.8} parent=132 // pred_check
          %p3997 = pneg %p138
        $region135: #{discriminator_forward.8} parent=132 // pred_check_branch
          %3999 = sbr.rel (%p3997) target = $region137
        $region136: #{discriminator_forward.8} parent=132 // pred_region
          %s4000 = sand.u32 %s123, 1
          %s4001 = sand.u32 %s123, 1
          %s4002 = smul.addr %s4001, 16
          %s4003 = scalar_lea.vmem [#allocation3], %s4002
        $region137: #{discriminator_forward.8} parent=132 // pred_fallthru
          _
      $region133: #{discriminator_forward.8} parent=5 // pred_fallthru
        _
    $region6: #{discriminator_forward.8} parent=1 // loop_footer
      %s14 = sadd.s32 1, %s10
    $region7: #{discriminator_forward.8} parent=1 // loop_footer_branch
      %9 = sbr.rel target = $region3
    $region8: #{discriminator_forward.8} parent=1 // loop_exit
      _

// kernel: discriminator_forward.9
$region0: #{discriminator_forward.9}
  #allocation0 [shape = 'u32[]', space=smem, size = 0x4, offset = 0x4, fixed_abs, tag = 'smem constant byte address 0x4 - core index']
  #allocation1 [shape = 'u32[72,128]{1,0:T(1,128)}', space=vmem, size = 0x9000, scoped, tag = 'internal scratch']
  %s0 = inlined_call_operand.vmem [shape: bf16[16,4096], index: 0, kind: input, shape index: {}]
  %s1 = inlined_call_operand.vmem [shape: bf16[4096,128], index: 1, kind: input, shape index: {}]
  %s2 = inlined_call_operand.vmem [shape: f32[1,128], index: 2, kind: input, shape index: {}]
  %s3 = inlined_call_operand.vmem [shape: f32[16,128], index: 3, kind: output, shape index: {}]
  %s4 = sld [smem:[#allocation0]]
  $region22: #{discriminator_forward.9} parent=0
    _
  %s6 = ssub.s32 1, %s4
  %s7 = scalar_select 0, %s6, %s4
  // Predicated region
  $region2: #{discriminator_forward.9} parent=0 // pred_check
    _
  $region3: #{discriminator_forward.9} parent=0 // pred_check_branch
    %9 = sbr.rel (0) target = $region5
  $region4: #{discriminator_forward.9} parent=0 // pred_region
    _
  $region5: #{discriminator_forward.9} parent=0 // pred_fallthru
    _
  // Predicated region
  $region6: #{discriminator_forward.9} parent=0 // pred_check
    _
  $region7: #{discriminator_forward.9} parent=0 // pred_check_branch
    %11 = sbr.rel (0) target = $region9
  $region8: #{discriminator_forward.9} parent=0 // pred_region
    _
  $region9: #{discriminator_forward.9} parent=0 // pred_fallthru
    _
  // Predicated region
  $region10: #{discriminator_forward.9} parent=0 // pred_check
    _
  $region11: #{discriminator_forward.9} parent=0 // pred_check_branch
    %13 = sbr.rel (0) target = $region13
  $region12: #{discriminator_forward.9} parent=0 // pred_region
    _
  $region13: #{discriminator_forward.9} parent=0 // pred_fallthru
    _
  %v14 = vld [vmem:[%s0] sm:$0xff]
  %v15 = vld [vmem:[%s0 + $0x8] sm:$0xff]
  %v16 = vld [vmem:[%s0 + $0x10] sm:$0xff]
  %v17 = vld [vmem:[%s0 + $0x18] sm:$0xff]
  %v18 = vld [vmem:[%s0 + $0x20] sm:$0xff]
  %v19 = vld [vmem:[%s0 + $0x28] sm:$0xff]
  %v20 = vld [vmem:[%s0 + $0x30] sm:$0xff]
  %v21 = vld [vmem:[%s0 + $0x38] sm:$0xff]
  %v22 = vld [vmem:[%s0 + $0x40] sm:$0xff]
  %v23 = vld [vmem:[%s0 + $0x48] sm:$0xff]
  %v24 = vld [vmem:[%s0 + $0x50] sm:$0xff]
  %v25 = vld [vmem:[%s0 + $0x58] sm:$0xff]
  %v26 = vld [vmem:[%s0 + $0x60] sm:$0xff]
  %v27 = vld [vmem:[%s0 + $0x68] sm:$0xff]
  %v28 = vld [vmem:[%s0 + $0x70] sm:$0xff]
  %v29 = vld [vmem:[%s0 + $0x78] sm:$0xff]
  %v30 = vld [vmem:[%s0 + $0x80] sm:$0xff]
  %v31 = vld [vmem:[%s0 + $0x88] sm:$0xff]
  %v32 = vld [vmem:[%s0 + $0x90] sm:$0xff]
  %v33 = vld [vmem:[%s0 + $0x98] sm:$0xff]
  %v34 = vld [vmem:[%s0 + $0xa0] sm:$0xff]
  %v35 = vld [vmem:[%s0 + $0xa8] sm:$0xff]
  %v36 = vld [vmem:[%s0 + $0xb0] sm:$0xff]
  %v37 = vld [vmem:[%s0 + $0xb8] sm:$0xff]
  %v38 = vld [vmem:[%s0 + $0xc0] sm:$0xff]
  %v39 = vld [vmem:[%s0 + $0xc8] sm:$0xff]
  %v40 = vld [vmem:[%s0 + $0xd0] sm:$0xff]
  %v41 = vld [vmem:[%s0 + $0xd8] sm:$0xff]
  %v42 = vld [vmem:[%s0 + $0xe0] sm:$0xff]
  %v43 = vld [vmem:[%s0 + $0xe8] sm:$0xff]
  %v44 = vld [vmem:[%s0 + $0xf0] sm:$0xff]
  %v45 = vld [vmem:[%s0 + $0xf8] sm:$0xff]
  %v46 = vld [vmem:[%s1] sm:$0xf]
  %v47 = vld [vmem:[%s1 + $0x4] sm:$0xf]
  %v48 = vld [vmem:[%s1 + $0x8] sm:$0xf]
  %v49 = vld [vmem:[%s1 + $0xc] sm:$0xf]
  %v50 = vld [vmem:[%s1 + $0x10] sm:$0xf]
  %v51 = vld [vmem:[%s1 + $0x14] sm:$0xf]
  %v52 = vld [vmem:[%s1 + $0x18] sm:$0xf]
  %v53 = vld [vmem:[%s1 + $0x1c] sm:$0xf]
  %v54 = vld [vmem:[%s1 + $0x20] sm:$0xf]
  %v55 = vld [vmem:[%s1 + $0x24] sm:$0xf]
  %v56 = vld [vmem:[%s1 + $0x28] sm:$0xf]
  %v57 = vld [vmem:[%s1 + $0x2c] sm:$0xf]
  %v58 = vld [vmem:[%s1 + $0x30] sm:$0xf]
  %v59 = vld [vmem:[%s1 + $0x34] sm:$0xf]
  %v60 = vld [vmem:[%s1 + $0x38] sm:$0xf]
  %v61 = vld [vmem:[%s1 + $0x3c] sm:$0xf]
  %v62 = vld [vmem:[%s1 + $0x40] sm:$0xf]
  %v63 = vld [vmem:[%s1 + $0x44] sm:$0xf]
  %v64 = vld [vmem:[%s1 + $0x48] sm:$0xf]
  %v65 = vld [vmem:[%s1 + $0x4c] sm:$0xf]
  %v66 = vld [vmem:[%s1 + $0x50] sm:$0xf]
  %v67 = vld [vmem:[%s1 + $0x54] sm:$0xf]
  %v68 = vld [vmem:[%s1 + $0x58] sm:$0xf]
  %v69 = vld [vmem:[%s1 + $0x5c] sm:$0xf]
  %v70 = vld [vmem:[%s1 + $0x60] sm:$0xf]
  %v71 = vld [vmem:[%s1 + $0x64] sm:$0xf]
  %v72 = vld [vmem:[%s1 + $0x68] sm:$0xf]
  %v73 = vld [vmem:[%s1 + $0x6c] sm:$0xf]
  %v74 = vld [vmem:[%s1 + $0x70] sm:$0xf]
  %v75 = vld [vmem:[%s1 + $0x74] sm:$0xf]
  %v76 = vld [vmem:[%s1 + $0x78] sm:$0xf]
  %v77 = vld [vmem:[%s1 + $0x7c] sm:$0xf]
  %v78 = vld [vmem:[%s1 + $0x80] sm:$0xf]
  %v79 = vld [vmem:[%s1 + $0x84] sm:$0xf]
  %v80 = vld [vmem:[%s1 + $0x88] sm:$0xf]
  %v81 = vld [vmem:[%s1 + $0x8c] sm:$0xf]
  %v82 = vld [vmem:[%s1 + $0x90] sm:$0xf]
  %v83 = vld [vmem:[%s1 + $0x94] sm:$0xf]
  %v84 = vld [vmem:[%s1 + $0x98] sm:$0xf]
  %v85 = vld [vmem:[%s1 + $0x9c] sm:$0xf]
  %v86 = vld [vmem:[%s1 + $0xa0] sm:$0xf]
  %v87 = vld [vmem:[%s1 + $0xa4] sm:$0xf]
  %v88 = vld [vmem:[%s1 + $0xa8] sm:$0xf]
  %v89 = vld [vmem:[%s1 + $0xac] sm:$0xf]
  %v90 = vld [vmem:[%s1 + $0xb0] sm:$0xf]
  %v91 = vld [vmem:[%s1 + $0xb4] sm:$0xf]
  %v92 = vld [vmem:[%s1 + $0xb8] sm:$0xf]
  %v93 = vld [vmem:[%s1 + $0xbc] sm:$0xf]
  %v94 = vld [vmem:[%s1 + $0xc0] sm:$0xf]
  %v95 = vld [vmem:[%s1 + $0xc4] sm:$0xf]
  %v96 = vld [vmem:[%s1 + $0xc8] sm:$0xf]
  %v97 = vld [vmem:[%s1 + $0xcc] sm:$0xf]
  %v98 = vld [vmem:[%s1 + $0xd0] sm:$0xf]
  %v99 = vld [vmem:[%s1 + $0xd4] sm:$0xf]
  %v100 = vld [vmem:[%s1 + $0xd8] sm:$0xf]
  %v101 = vld [vmem:[%s1 + $0xdc] sm:$0xf]
  %v102 = vld [vmem:[%s1 + $0xe0] sm:$0xf]
  %v103 = vld [vmem:[%s1 + $0xe4] sm:$0xf]
  %v104 = vld [vmem:[%s1 + $0xe8] sm:$0xf]
  %v105 = vld [vmem:[%s1 + $0xec] sm:$0xf]
  %v106 = vld [vmem:[%s1 + $0xf0] sm:$0xf]
  %v107 = vld [vmem:[%s1 + $0xf4] sm:$0xf]
  %v108 = vld [vmem:[%s1 + $0xf8] sm:$0xf]
  %v109 = vld [vmem:[%s1 + $0xfc] sm:$0xf]
  %v110 = vld [vmem:[%s1 + $0x100] sm:$0xf]
  %v111 = vld [vmem:[%s1 + $0x104] sm:$0xf]
  %v112 = vld [vmem:[%s1 + $0x108] sm:$0xf]
  %v113 = vld [vmem:[%s1 + $0x10c] sm:$0xf]
  %v114 = vld [vmem:[%s1 + $0x110] sm:$0xf]
  %v115 = vld [vmem:[%s1 + $0x114] sm:$0xf]
  %v116 = vld [vmem:[%s1 + $0x118] sm:$0xf]
  %v117 = vld [vmem:[%s1 + $0x11c] sm:$0xf]
  %v118 = vld [vmem:[%s1 + $0x120] sm:$0xf]
  %v119 = vld [vmem:[%s1 + $0x124] sm:$0xf]
  %v120 = vld [vmem:[%s1 + $0x128] sm:$0xf]
  %v121 = vld [vmem:[%s1 + $0x12c] sm:$0xf]
  %v122 = vld [vmem:[%s1 + $0x130] sm:$0xf]
  %v123 = vld [vmem:[%s1 + $0x134] sm:$0xf]
  %v124 = vld [vmem:[%s1 + $0x138] sm:$0xf]
  %v125 = vld [vmem:[%s1 + $0x13c] sm:$0xf]
  %v126 = vld [vmem:[%s1 + $0x140] sm:$0xf]
  %v127 = vld [vmem:[%s1 + $0x144] sm:$0xf]
  %v128 = vld [vmem:[%s1 + $0x148] sm:$0xf]
  %v129 = vld [vmem:[%s1 + $0x14c] sm:$0xf]
  %v130 = vld [vmem:[%s1 + $0x150] sm:$0xf]
  %v131 = vld [vmem:[%s1 + $0x154] sm:$0xf]
  %v132 = vld [vmem:[%s1 + $0x158] sm:$0xf]
  %v133 = vld [vmem:[%s1 + $0x15c] sm:$0xf]
  %v134 = vld [vmem:[%s1 + $0x160] sm:$0xf]
  %v135 = vld [vmem:[%s1 + $0x164] sm:$0xf]
  %v136 = vld [vmem:[%s1 + $0x168] sm:$0xf]
  %v137 = vld [vmem:[%s1 + $0x16c] sm:$0xf]
  %v138 = vld [vmem:[%s1 + $0x170] sm:$0xf]
  %v139 = vld [vmem:[%s1 + $0x174] sm:$0xf]
  %v140 = vld [vmem:[%s1 + $0x178] sm:$0xf]
  %v141 = vld [vmem:[%s1 + $0x17c] sm:$0xf]
  %v142 = vld [vmem:[%s1 + $0x180] sm:$0xf]
  %v143 = vld [vmem:[%s1 + $0x184] sm:$0xf]
  %v144 = vld [vmem:[%s1 + $0x188] sm:$0xf]
  %v145 = vld [vmem:[%s1 + $0x18c] sm:$0xf]
  %v146 = vld [vmem:[%s1 + $0x190] sm:$0xf]
  %v147 = vld [vmem:[%s1 + $0x194] sm:$0xf]
  %v148 = vld [vmem:[%s1 + $0x198] sm:$0xf]
  %v149 = vld [vmem:[%s1 + $0x19c] sm:$0xf]
  %v150 = vld [vmem:[%s1 + $0x1a0] sm:$0xf]
  %v151 = vld [vmem:[%s1 + $0x1a4] sm:$0xf]
  %v152 = vld [vmem:[%s1 + $0x1a8] sm:$0xf]
  %v153 = vld [vmem:[%s1 + $0x1ac] sm:$0xf]
  %v154 = vld [vmem:[%s1 + $0x1b0] sm:$0xf]
  %v155 = vld [vmem:[%s1 + $0x1b4] sm:$0xf]
  %v156 = vld [vmem:[%s1 + $0x1b8] sm:$0xf]
  %v157 = vld [vmem:[%s1 + $0x1bc] sm:$0xf]
  %v158 = vld [vmem:[%s1 + $0x1c0] sm:$0xf]
  %v159 = vld [vmem:[%s1 + $0x1c4] sm:$0xf]
  %v160 = vld [vmem:[%s1 + $0x1c8] sm:$0xf]
  %v161 = vld [vmem:[%s1 + $0x1cc] sm:$0xf]
  %v162 = vld [vmem:[%s1 + $0x1d0] sm:$0xf]
  %v163 = vld [vmem:[%s1 + $0x1d4] sm:$0xf]
  %v164 = vld [vmem:[%s1 + $0x1d8] sm:$0xf]
  %v165 = vld [vmem:[%s1 + $0x1dc] sm:$0xf]
  %v166 = vld [vmem:[%s1 + $0x1e0] sm:$0xf]
  %v167 = vld [vmem:[%s1 + $0x1e4] sm:$0xf]
  %v168 = vld [vmem:[%s1 + $0x1e8] sm:$0xf]
  %v169 = vld [vmem:[%s1 + $0x1ec] sm:$0xf]
  %v170 = vld [vmem:[%s1 + $0x1f0] sm:$0xf]
  %v171 = vld [vmem:[%s1 + $0x1f4] sm:$0xf]
  %v172 = vld [vmem:[%s1 + $0x1f8] sm:$0xf]
  %v173 = vld [vmem:[%s1 + $0x1fc] sm:$0xf]
  %v174 = vld [vmem:[%s1 + $0x200] sm:$0xf]
  %v175 = vld [vmem:[%s1 + $0x204] sm:$0xf]
  %v176 = vld [vmem:[%s1 + $0x208] sm:$0xf]
  %v177 = vld [vmem:[%s1 + $0x20c] sm:$0xf]
  %v178 = vld [vmem:[%s1 + $0x210] sm:$0xf]
  %v179 = vld [vmem:[%s1 + $0x214] sm:$0xf]
  %v180 = vld [vmem:[%s1 + $0x218] sm:$0xf]
  %v181 = vld [vmem:[%s1 + $0x21c] sm:$0xf]
  %v182 = vld [vmem:[%s1 + $0x220] sm:$0xf]
  %v183 = vld [vmem:[%s1 + $0x224] sm:$0xf]
  %v184 = vld [vmem:[%s1 + $0x228] sm:$0xf]
  %v185 = vld [vmem:[%s1 + $0x22c] sm:$0xf]
  %v186 = vld [vmem:[%s1 + $0x230] sm:$0xf]
  %v187 = vld [vmem:[%s1 + $0x234] sm:$0xf]
  %v188 = vld [vmem:[%s1 + $0x238] sm:$0xf]
  %v189 = vld [vmem:[%s1 + $0x23c] sm:$0xf]
  %v190 = vld [vmem:[%s1 + $0x240] sm:$0xf]
  %v191 = vld [vmem:[%s1 + $0x244] sm:$0xf]
  %v192 = vld [vmem:[%s1 + $0x248] sm:$0xf]
  %v193 = vld [vmem:[%s1 + $0x24c] sm:$0xf]
  %v194 = vld [vmem:[%s1 + $0x250] sm:$0xf]
  %v195 = vld [vmem:[%s1 + $0x254] sm:$0xf]
  %v196 = vld [vmem:[%s1 + $0x258] sm:$0xf]
  %v197 = vld [vmem:[%s1 + $0x25c] sm:$0xf]
  %v198 = vld [vmem:[%s1 + $0x260] sm:$0xf]
  %v199 = vld [vmem:[%s1 + $0x264] sm:$0xf]
  %v200 = vld [vmem:[%s1 + $0x268] sm:$0xf]
  %v201 = vld [vmem:[%s1 + $0x26c] sm:$0xf]
  %v202 = vld [vmem:[%s1 + $0x270] sm:$0xf]
  %v203 = vld [vmem:[%s1 + $0x274] sm:$0xf]
  %v204 = vld [vmem:[%s1 + $0x278] sm:$0xf]
  %v205 = vld [vmem:[%s1 + $0x27c] sm:$0xf]
  %v206 = vld [vmem:[%s1 + $0x280] sm:$0xf]
  %v207 = vld [vmem:[%s1 + $0x284] sm:$0xf]
  %v208 = vld [vmem:[%s1 + $0x288] sm:$0xf]
  %v209 = vld [vmem:[%s1 + $0x28c] sm:$0xf]
  %v210 = vld [vmem:[%s1 + $0x290] sm:$0xf]
  %v211 = vld [vmem:[%s1 + $0x294] sm:$0xf]
  %v212 = vld [vmem:[%s1 + $0x298] sm:$0xf]
  %v213 = vld [vmem:[%s1 + $0x29c] sm:$0xf]
  %v214 = vld [vmem:[%s1 + $0x2a0] sm:$0xf]
  %v215 = vld [vmem:[%s1 + $0x2a4] sm:$0xf]
  %v216 = vld [vmem:[%s1 + $0x2a8] sm:$0xf]
  %v217 = vld [vmem:[%s1 + $0x2ac] sm:$0xf]
  %v218 = vld [vmem:[%s1 + $0x2b0] sm:$0xf]
  %v219 = vld [vmem:[%s1 + $0x2b4] sm:$0xf]
  %v220 = vld [vmem:[%s1 + $0x2b8] sm:$0xf]
  %v221 = vld [vmem:[%s1 + $0x2bc] sm:$0xf]
  %v222 = vld [vmem:[%s1 + $0x2c0] sm:$0xf]
  %v223 = vld [vmem:[%s1 + $0x2c4] sm:$0xf]
  %v224 = vld [vmem:[%s1 + $0x2c8] sm:$0xf]
  %v225 = vld [vmem:[%s1 + $0x2cc] sm:$0xf]
  %v226 = vld [vmem:[%s1 + $0x2d0] sm:$0xf]
  %v227 = vld [vmem:[%s1 + $0x2d4] sm:$0xf]
  %v228 = vld [vmem:[%s1 + $0x2d8] sm:$0xf]
  %v229 = vld [vmem:[%s1 + $0x2dc] sm:$0xf]
  %v230 = vld [vmem:[%s1 + $0x2e0] sm:$0xf]
  %v231 = vld [vmem:[%s1 + $0x2e4] sm:$0xf]
  %v232 = vld [vmem:[%s1 + $0x2e8] sm:$0xf]
  %v233 = vld [vmem:[%s1 + $0x2ec] sm:$0xf]
  %v234 = vld [vmem:[%s1 + $0x2f0] sm:$0xf]
  %v235 = vld [vmem:[%s1 + $0x2f4] sm:$0xf]
  %v236 = vld [vmem:[%s1 + $0x2f8] sm:$0xf]
  %v237 = vld [vmem:[%s1 + $0x2fc] sm:$0xf]
  %v238 = vld [vmem:[%s1 + $0x300] sm:$0xf]
  %v239 = vld [vmem:[%s1 + $0x304] sm:$0xf]
  %v240 = vld [vmem:[%s1 + $0x308] sm:$0xf]
  %v241 = vld [vmem:[%s1 + $0x30c] sm:$0xf]
  %v242 = vld [vmem:[%s1 + $0x310] sm:$0xf]
  %v243 = vld [vmem:[%s1 + $0x314] sm:$0xf]
  %v244 = vld [vmem:[%s1 + $0x318] sm:$0xf]
  %v245 = vld [vmem:[%s1 + $0x31c] sm:$0xf]
  %v246 = vld [vmem:[%s1 + $0x320] sm:$0xf]
  %v247 = vld [vmem:[%s1 + $0x324] sm:$0xf]
  %v248 = vld [vmem:[%s1 + $0x328] sm:$0xf]
  %v249 = vld [vmem:[%s1 + $0x32c] sm:$0xf]
  %v250 = vld [vmem:[%s1 + $0x330] sm:$0xf]
  %v251 = vld [vmem:[%s1 + $0x334] sm:$0xf]
  %v252 = vld [vmem:[%s1 + $0x338] sm:$0xf]
  %v253 = vld [vmem:[%s1 + $0x33c] sm:$0xf]
  %v254 = vld [vmem:[%s1 + $0x340] sm:$0xf]
  %v255 = vld [vmem:[%s1 + $0x344] sm:$0xf]
  %v256 = vld [vmem:[%s1 + $0x348] sm:$0xf]
  %v257 = vld [vmem:[%s1 + $0x34c] sm:$0xf]
  %v258 = vld [vmem:[%s1 + $0x350] sm:$0xf]
  %v259 = vld [vmem:[%s1 + $0x354] sm:$0xf]
  %v260 = vld [vmem:[%s1 + $0x358] sm:$0xf]
  %v261 = vld [vmem:[%s1 + $0x35c] sm:$0xf]
  %v262 = vld [vmem:[%s1 + $0x360] sm:$0xf]
  %v263 = vld [vmem:[%s1 + $0x364] sm:$0xf]
  %v264 = vld [vmem:[%s1 + $0x368] sm:$0xf]
  %v265 = vld [vmem:[%s1 + $0x36c] sm:$0xf]
  %v266 = vld [vmem:[%s1 + $0x370] sm:$0xf]
  %v267 = vld [vmem:[%s1 + $0x374] sm:$0xf]
  %v268 = vld [vmem:[%s1 + $0x378] sm:$0xf]
  %v269 = vld [vmem:[%s1 + $0x37c] sm:$0xf]
  %v270 = vld [vmem:[%s1 + $0x380] sm:$0xf]
  %v271 = vld [vmem:[%s1 + $0x384] sm:$0xf]
  %v272 = vld [vmem:[%s1 + $0x388] sm:$0xf]
  %v273 = vld [vmem:[%s1 + $0x38c] sm:$0xf]
  %v274 = vld [vmem:[%s1 + $0x390] sm:$0xf]
  %v275 = vld [vmem:[%s1 + $0x394] sm:$0xf]
  %v276 = vld [vmem:[%s1 + $0x398] sm:$0xf]
  %v277 = vld [vmem:[%s1 + $0x39c] sm:$0xf]
  %v278 = vld [vmem:[%s1 + $0x3a0] sm:$0xf]
  %v279 = vld [vmem:[%s1 + $0x3a4] sm:$0xf]
  %v280 = vld [vmem:[%s1 + $0x3a8] sm:$0xf]
  %v281 = vld [vmem:[%s1 + $0x3ac] sm:$0xf]
  %v282 = vld [vmem:[%s1 + $0x3b0] sm:$0xf]
  %v283 = vld [vmem:[%s1 + $0x3b4] sm:$0xf]
  %v284 = vld [vmem:[%s1 + $0x3b8] sm:$0xf]
  %v285 = vld [vmem:[%s1 + $0x3bc] sm:$0xf]
  %v286 = vld [vmem:[%s1 + $0x3c0] sm:$0xf]
  %v287 = vld [vmem:[%s1 + $0x3c4] sm:$0xf]
  %v288 = vld [vmem:[%s1 + $0x3c8] sm:$0xf]
  %v289 = vld [vmem:[%s1 + $0x3cc] sm:$0xf]
  %v290 = vld [vmem:[%s1 + $0x3d0] sm:$0xf]
  %v291 = vld [vmem:[%s1 + $0x3d4] sm:$0xf]
  %v292 = vld [vmem:[%s1 + $0x3d8] sm:$0xf]
  %v293 = vld [vmem:[%s1 + $0x3dc] sm:$0xf]
  %v294 = vld [vmem:[%s1 + $0x3e0] sm:$0xf]
  %v295 = vld [vmem:[%s1 + $0x3e4] sm:$0xf]
  %v296 = vld [vmem:[%s1 + $0x3e8] sm:$0xf]
  %v297 = vld [vmem:[%s1 + $0x3ec] sm:$0xf]
  %v298 = vld [vmem:[%s1 + $0x3f0] sm:$0xf]
  %v299 = vld [vmem:[%s1 + $0x3f4] sm:$0xf]
  %v300 = vld [vmem:[%s1 + $0x3f8] sm:$0xf]
  %v301 = vld [vmem:[%s1 + $0x3fc] sm:$0xf]
  %v302 = vld [vmem:[%s1 + $0x400] sm:$0xf]
  %v303 = vld [vmem:[%s1 + $0x404] sm:$0xf]
  %v304 = vld [vmem:[%s1 + $0x408] sm:$0xf]
  %v305 = vld [vmem:[%s1 + $0x40c] sm:$0xf]
  %v306 = vld [vmem:[%s1 + $0x410] sm:$0xf]
  %v307 = vld [vmem:[%s1 + $0x414] sm:$0xf]
  %v308 = vld [vmem:[%s1 + $0x418] sm:$0xf]
  %v309 = vld [vmem:[%s1 + $0x41c] sm:$0xf]
  %v310 = vld [vmem:[%s1 + $0x420] sm:$0xf]
  %v311 = vld [vmem:[%s1 + $0x424] sm:$0xf]
  %v312 = vld [vmem:[%s1 + $0x428] sm:$0xf]
  %v313 = vld [vmem:[%s1 + $0x42c] sm:$0xf]
  %v314 = vld [vmem:[%s1 + $0x430] sm:$0xf]
  %v315 = vld [vmem:[%s1 + $0x434] sm:$0xf]
  %v316 = vld [vmem:[%s1 + $0x438] sm:$0xf]
  %v317 = vld [vmem:[%s1 + $0x43c] sm:$0xf]
  %v318 = vld [vmem:[%s1 + $0x440] sm:$0xf]
  %v319 = vld [vmem:[%s1 + $0x444] sm:$0xf]
  %v320 = vld [vmem:[%s1 + $0x448] sm:$0xf]
  %v321 = vld [vmem:[%s1 + $0x44c] sm:$0xf]
  %v322 = vld [vmem:[%s1 + $0x450] sm:$0xf]
  %v323 = vld [vmem:[%s1 + $0x454] sm:$0xf]
  %v324 = vld [vmem:[%s1 + $0x458] sm:$0xf]
  %v325 = vld [vmem:[%s1 + $0x45c] sm:$0xf]
  %v326 = vld [vmem:[%s1 + $0x460] sm:$0xf]
  %v327 = vld [vmem:[%s1 + $0x464] sm:$0xf]
  %v328 = vld [vmem:[%s1 + $0x468] sm:$0xf]
  %v329 = vld [vmem:[%s1 + $0x46c] sm:$0xf]
  %v330 = vld [vmem:[%s1 + $0x470] sm:$0xf]
  %v331 = vld [vmem:[%s1 + $0x474] sm:$0xf]
  %v332 = vld [vmem:[%s1 + $0x478] sm:$0xf]
  %v333 = vld [vmem:[%s1 + $0x47c] sm:$0xf]
  %v334 = vld [vmem:[%s1 + $0x480] sm:$0xf]
  %v335 = vld [vmem:[%s1 + $0x484] sm:$0xf]
  %v336 = vld [vmem:[%s1 + $0x488] sm:$0xf]
  %v337 = vld [vmem:[%s1 + $0x48c] sm:$0xf]
  %v338 = vld [vmem:[%s1 + $0x490] sm:$0xf]
  %v339 = vld [vmem:[%s1 + $0x494] sm:$0xf]
  %v340 = vld [vmem:[%s1 + $0x498] sm:$0xf]
  %v341 = vld [vmem:[%s1 + $0x49c] sm:$0xf]
  %v342 = vld [vmem:[%s1 + $0x4a0] sm:$0xf]
  %v343 = vld [vmem:[%s1 + $0x4a4] sm:$0xf]
  %v344 = vld [vmem:[%s1 + $0x4a8] sm:$0xf]
  %v345 = vld [vmem:[%s1 + $0x4ac] sm:$0xf]
  %v346 = vld [vmem:[%s1 + $0x4b0] sm:$0xf]
  %v347 = vld [vmem:[%s1 + $0x4b4] sm:$0xf]
  %v348 = vld [vmem:[%s1 + $0x4b8] sm:$0xf]
  %v349 = vld [vmem:[%s1 + $0x4bc] sm:$0xf]
  %v350 = vld [vmem:[%s1 + $0x4c0] sm:$0xf]
  %v351 = vld [vmem:[%s1 + $0x4c4] sm:$0xf]
  %v352 = vld [vmem:[%s1 + $0x4c8] sm:$0xf]
  %v353 = vld [vmem:[%s1 + $0x4cc] sm:$0xf]
  %v354 = vld [vmem:[%s1 + $0x4d0] sm:$0xf]
  %v355 = vld [vmem:[%s1 + $0x4d4] sm:$0xf]
  %v356 = vld [vmem:[%s1 + $0x4d8] sm:$0xf]
  %v357 = vld [vmem:[%s1 + $0x4dc] sm:$0xf]
  %v358 = vld [vmem:[%s1 + $0x4e0] sm:$0xf]
  %v359 = vld [vmem:[%s1 + $0x4e4] sm:$0xf]
  %v360 = vld [vmem:[%s1 + $0x4e8] sm:$0xf]
  %v361 = vld [vmem:[%s1 + $0x4ec] sm:$0xf]
  %v362 = vld [vmem:[%s1 + $0x4f0] sm:$0xf]
  %v363 = vld [vmem:[%s1 + $0x4f4] sm:$0xf]
  %v364 = vld [vmem:[%s1 + $0x4f8] sm:$0xf]
  %v365 = vld [vmem:[%s1 + $0x4fc] sm:$0xf]
  %v366 = vld [vmem:[%s1 + $0x500] sm:$0xf]
  %v367 = vld [vmem:[%s1 + $0x504] sm:$0xf]
  %v368 = vld [vmem:[%s1 + $0x508] sm:$0xf]
  %v369 = vld [vmem:[%s1 + $0x50c] sm:$0xf]
  %v370 = vld [vmem:[%s1 + $0x510] sm:$0xf]
  %v371 = vld [vmem:[%s1 + $0x514] sm:$0xf]
  %v372 = vld [vmem:[%s1 + $0x518] sm:$0xf]
  %v373 = vld [vmem:[%s1 + $0x51c] sm:$0xf]
  %v374 = vld [vmem:[%s1 + $0x520] sm:$0xf]
  %v375 = vld [vmem:[%s1 + $0x524] sm:$0xf]
  %v376 = vld [vmem:[%s1 + $0x528] sm:$0xf]
  %v377 = vld [vmem:[%s1 + $0x52c] sm:$0xf]
  %v378 = vld [vmem:[%s1 + $0x530] sm:$0xf]
  %v379 = vld [vmem:[%s1 + $0x534] sm:$0xf]
  %v380 = vld [vmem:[%s1 + $0x538] sm:$0xf]
  %v381 = vld [vmem:[%s1 + $0x53c] sm:$0xf]
  %v382 = vld [vmem:[%s1 + $0x540] sm:$0xf]
  %v383 = vld [vmem:[%s1 + $0x544] sm:$0xf]
  %v384 = vld [vmem:[%s1 + $0x548] sm:$0xf]
  %v385 = vld [vmem:[%s1 + $0x54c] sm:$0xf]
  %v386 = vld [vmem:[%s1 + $0x550] sm:$0xf]
  %v387 = vld [vmem:[%s1 + $0x554] sm:$0xf]
  %v388 = vld [vmem:[%s1 + $0x558] sm:$0xf]
  %v389 = vld [vmem:[%s1 + $0x55c] sm:$0xf]
  %v390 = vld [vmem:[%s1 + $0x560] sm:$0xf]
  %v391 = vld [vmem:[%s1 + $0x564] sm:$0xf]
  %v392 = vld [vmem:[%s1 + $0x568] sm:$0xf]
  %v393 = vld [vmem:[%s1 + $0x56c] sm:$0xf]
  %v394 = vld [vmem:[%s1 + $0x570] sm:$0xf]
  %v395 = vld [vmem:[%s1 + $0x574] sm:$0xf]
  %v396 = vld [vmem:[%s1 + $0x578] sm:$0xf]
  %v397 = vld [vmem:[%s1 + $0x57c] sm:$0xf]
  %v398 = vld [vmem:[%s1 + $0x580] sm:$0xf]
  %v399 = vld [vmem:[%s1 + $0x584] sm:$0xf]
  %v400 = vld [vmem:[%s1 + $0x588] sm:$0xf]
  %v401 = vld [vmem:[%s1 + $0x58c] sm:$0xf]
  %v402 = vld [vmem:[%s1 + $0x590] sm:$0xf]
  %v403 = vld [vmem:[%s1 + $0x594] sm:$0xf]
  %v404 = vld [vmem:[%s1 + $0x598] sm:$0xf]
  %v405 = vld [vmem:[%s1 + $0x59c] sm:$0xf]
  %v406 = vld [vmem:[%s1 + $0x5a0] sm:$0xf]
  %v407 = vld [vmem:[%s1 + $0x5a4] sm:$0xf]
  %v408 = vld [vmem:[%s1 + $0x5a8] sm:$0xf]
  %v409 = vld [vmem:[%s1 + $0x5ac] sm:$0xf]
  %v410 = vld [vmem:[%s1 + $0x5b0] sm:$0xf]
  %v411 = vld [vmem:[%s1 + $0x5b4] sm:$0xf]
  %v412 = vld [vmem:[%s1 + $0x5b8] sm:$0xf]
  %v413 = vld [vmem:[%s1 + $0x5bc] sm:$0xf]
  %v414 = vld [vmem:[%s1 + $0x5c0] sm:$0xf]
  %v415 = vld [vmem:[%s1 + $0x5c4] sm:$0xf]
  %v416 = vld [vmem:[%s1 + $0x5c8] sm:$0xf]
  %v417 = vld [vmem:[%s1 + $0x5cc] sm:$0xf]
  %v418 = vld [vmem:[%s1 + $0x5d0] sm:$0xf]
  %v419 = vld [vmem:[%s1 + $0x5d4] sm:$0xf]
  %v420 = vld [vmem:[%s1 + $0x5d8] sm:$0xf]
  %v421 = vld [vmem:[%s1 + $0x5dc] sm:$0xf]
  %v422 = vld [vmem:[%s1 + $0x5e0] sm:$0xf]
  %v423 = vld [vmem:[%s1 + $0x5e4] sm:$0xf]
  %v424 = vld [vmem:[%s1 + $0x5e8] sm:$0xf]
  %v425 = vld [vmem:[%s1 + $0x5ec] sm:$0xf]
  %v426 = vld [vmem:[%s1 + $0x5f0] sm:$0xf]
  %v427 = vld [vmem:[%s1 + $0x5f4] sm:$0xf]
  %v428 = vld [vmem:[%s1 + $0x5f8] sm:$0xf]
  %v429 = vld [vmem:[%s1 + $0x5fc] sm:$0xf]
  %v430 = vld [vmem:[%s1 + $0x600] sm:$0xf]
  %v431 = vld [vmem:[%s1 + $0x604] sm:$0xf]
  %v432 = vld [vmem:[%s1 + $0x608] sm:$0xf]
  %v433 = vld [vmem:[%s1 + $0x60c] sm:$0xf]
  %v434 = vld [vmem:[%s1 + $0x610] sm:$0xf]
  %v435 = vld [vmem:[%s1 + $0x614] sm:$0xf]
  %v436 = vld [vmem:[%s1 + $0x618] sm:$0xf]
  %v437 = vld [vmem:[%s1 + $0x61c] sm:$0xf]
  %v438 = vld [vmem:[%s1 + $0x620] sm:$0xf]
  %v439 = vld [vmem:[%s1 + $0x624] sm:$0xf]
  %v440 = vld [vmem:[%s1 + $0x628] sm:$0xf]
  %v441 = vld [vmem:[%s1 + $0x62c] sm:$0xf]
  %v442 = vld [vmem:[%s1 + $0x630] sm:$0xf]
  %v443 = vld [vmem:[%s1 + $0x634] sm:$0xf]
  %v444 = vld [vmem:[%s1 + $0x638] sm:$0xf]
  %v445 = vld [vmem:[%s1 + $0x63c] sm:$0xf]
  %v446 = vld [vmem:[%s1 + $0x640] sm:$0xf]
  %v447 = vld [vmem:[%s1 + $0x644] sm:$0xf]
  %v448 = vld [vmem:[%s1 + $0x648] sm:$0xf]
  %v449 = vld [vmem:[%s1 + $0x64c] sm:$0xf]
  %v450 = vld [vmem:[%s1 + $0x650] sm:$0xf]
  %v451 = vld [vmem:[%s1 + $0x654] sm:$0xf]
  %v452 = vld [vmem:[%s1 + $0x658] sm:$0xf]
  %v453 = vld [vmem:[%s1 + $0x65c] sm:$0xf]
  %v454 = vld [vmem:[%s1 + $0x660] sm:$0xf]
  %v455 = vld [vmem:[%s1 + $0x664] sm:$0xf]
  %v456 = vld [vmem:[%s1 + $0x668] sm:$0xf]
  %v457 = vld [vmem:[%s1 + $0x66c] sm:$0xf]
  %v458 = vld [vmem:[%s1 + $0x670] sm:$0xf]
  %v459 = vld [vmem:[%s1 + $0x674] sm:$0xf]
  %v460 = vld [vmem:[%s1 + $0x678] sm:$0xf]
  %v461 = vld [vmem:[%s1 + $0x67c] sm:$0xf]
  %v462 = vld [vmem:[%s1 + $0x680] sm:$0xf]
  %v463 = vld [vmem:[%s1 + $0x684] sm:$0xf]
  %v464 = vld [vmem:[%s1 + $0x688] sm:$0xf]
  %v465 = vld [vmem:[%s1 + $0x68c] sm:$0xf]
  %v466 = vld [vmem:[%s1 + $0x690] sm:$0xf]
  %v467 = vld [vmem:[%s1 + $0x694] sm:$0xf]
  %v468 = vld [vmem:[%s1 + $0x698] sm:$0xf]
  %v469 = vld [vmem:[%s1 + $0x69c] sm:$0xf]
  %v470 = vld [vmem:[%s1 + $0x6a0] sm:$0xf]
  %v471 = vld [vmem:[%s1 + $0x6a4] sm:$0xf]
  %v472 = vld [vmem:[%s1 + $0x6a8] sm:$0xf]
  %v473 = vld [vmem:[%s1 + $0x6ac] sm:$0xf]
  %v474 = vld [vmem:[%s1 + $0x6b0] sm:$0xf]
  %v475 = vld [vmem:[%s1 + $0x6b4] sm:$0xf]
  %v476 = vld [vmem:[%s1 + $0x6b8] sm:$0xf]
  %v477 = vld [vmem:[%s1 + $0x6bc] sm:$0xf]
  %v478 = vld [vmem:[%s1 + $0x6c0] sm:$0xf]
  %v479 = vld [vmem:[%s1 + $0x6c4] sm:$0xf]
  %v480 = vld [vmem:[%s1 + $0x6c8] sm:$0xf]
  %v481 = vld [vmem:[%s1 + $0x6cc] sm:$0xf]
  %v482 = vld [vmem:[%s1 + $0x6d0] sm:$0xf]
  %v483 = vld [vmem:[%s1 + $0x6d4] sm:$0xf]
  %v484 = vld [vmem:[%s1 + $0x6d8] sm:$0xf]
  %v485 = vld [vmem:[%s1 + $0x6dc] sm:$0xf]
  %v486 = vld [vmem:[%s1 + $0x6e0] sm:$0xf]
  %v487 = vld [vmem:[%s1 + $0x6e4] sm:$0xf]
  %v488 = vld [vmem:[%s1 + $0x6e8] sm:$0xf]
  %v489 = vld [vmem:[%s1 + $0x6ec] sm:$0xf]
  %v490 = vld [vmem:[%s1 + $0x6f0] sm:$0xf]
  %v491 = vld [vmem:[%s1 + $0x6f4] sm:$0xf]
  %v492 = vld [vmem:[%s1 + $0x6f8] sm:$0xf]
  %v493 = vld [vmem:[%s1 + $0x6fc] sm:$0xf]
  %v494 = vld [vmem:[%s1 + $0x700] sm:$0xf]
  %v495 = vld [vmem:[%s1 + $0x704] sm:$0xf]
  %v496 = vld [vmem:[%s1 + $0x708] sm:$0xf]
  %v497 = vld [vmem:[%s1 + $0x70c] sm:$0xf]
  %v498 = vld [vmem:[%s1 + $0x710] sm:$0xf]
  %v499 = vld [vmem:[%s1 + $0x714] sm:$0xf]
  %v500 = vld [vmem:[%s1 + $0x718] sm:$0xf]
  %v501 = vld [vmem:[%s1 + $0x71c] sm:$0xf]
  %v502 = vld [vmem:[%s1 + $0x720] sm:$0xf]
  %v503 = vld [vmem:[%s1 + $0x724] sm:$0xf]
  %v504 = vld [vmem:[%s1 + $0x728] sm:$0xf]
  %v505 = vld [vmem:[%s1 + $0x72c] sm:$0xf]
  %v506 = vld [vmem:[%s1 + $0x730] sm:$0xf]
  %v507 = vld [vmem:[%s1 + $0x734] sm:$0xf]
  %v508 = vld [vmem:[%s1 + $0x738] sm:$0xf]
  %v509 = vld [vmem:[%s1 + $0x73c] sm:$0xf]
  %v510 = vld [vmem:[%s1 + $0x740] sm:$0xf]
  %v511 = vld [vmem:[%s1 + $0x744] sm:$0xf]
  %v512 = vld [vmem:[%s1 + $0x748] sm:$0xf]
  %v513 = vld [vmem:[%s1 + $0x74c] sm:$0xf]
  %v514 = vld [vmem:[%s1 + $0x750] sm:$0xf]
  %v515 = vld [vmem:[%s1 + $0x754] sm:$0xf]
  %v516 = vld [vmem:[%s1 + $0x758] sm:$0xf]
  %v517 = vld [vmem:[%s1 + $0x75c] sm:$0xf]
  %v518 = vld [vmem:[%s1 + $0x760] sm:$0xf]
  %v519 = vld [vmem:[%s1 + $0x764] sm:$0xf]
  %v520 = vld [vmem:[%s1 + $0x768] sm:$0xf]
  %v521 = vld [vmem:[%s1 + $0x76c] sm:$0xf]
  %v522 = vld [vmem:[%s1 + $0x770] sm:$0xf]
  %v523 = vld [vmem:[%s1 + $0x774] sm:$0xf]
  %v524 = vld [vmem:[%s1 + $0x778] sm:$0xf]
  %v525 = vld [vmem:[%s1 + $0x77c] sm:$0xf]
  %v526 = vld [vmem:[%s1 + $0x780] sm:$0xf]
  %v527 = vld [vmem:[%s1 + $0x784] sm:$0xf]
  %v528 = vld [vmem:[%s1 + $0x788] sm:$0xf]
  %v529 = vld [vmem:[%s1 + $0x78c] sm:$0xf]
  %v530 = vld [vmem:[%s1 + $0x790] sm:$0xf]
  %v531 = vld [vmem:[%s1 + $0x794] sm:$0xf]
  %v532 = vld [vmem:[%s1 + $0x798] sm:$0xf]
  %v533 = vld [vmem:[%s1 + $0x79c] sm:$0xf]
  %v534 = vld [vmem:[%s1 + $0x7a0] sm:$0xf]
  %v535 = vld [vmem:[%s1 + $0x7a4] sm:$0xf]
  %v536 = vld [vmem:[%s1 + $0x7a8] sm:$0xf]
  %v537 = vld [vmem:[%s1 + $0x7ac] sm:$0xf]
  %v538 = vld [vmem:[%s1 + $0x7b0] sm:$0xf]
  %v539 = vld [vmem:[%s1 + $0x7b4] sm:$0xf]
  %v540 = vld [vmem:[%s1 + $0x7b8] sm:$0xf]
  %v541 = vld [vmem:[%s1 + $0x7bc] sm:$0xf]
  %v542 = vld [vmem:[%s1 + $0x7c0] sm:$0xf]
  %v543 = vld [vmem:[%s1 + $0x7c4] sm:$0xf]
  %v544 = vld [vmem:[%s1 + $0x7c8] sm:$0xf]
  %v545 = vld [vmem:[%s1 + $0x7cc] sm:$0xf]
  %v546 = vld [vmem:[%s1 + $0x7d0] sm:$0xf]
  %v547 = vld [vmem:[%s1 + $0x7d4] sm:$0xf]
  %v548 = vld [vmem:[%s1 + $0x7d8] sm:$0xf]
  %v549 = vld [vmem:[%s1 + $0x7dc] sm:$0xf]
  %v550 = vld [vmem:[%s1 + $0x7e0] sm:$0xf]
  %v551 = vld [vmem:[%s1 + $0x7e4] sm:$0xf]
  %v552 = vld [vmem:[%s1 + $0x7e8] sm:$0xf]
  %v553 = vld [vmem:[%s1 + $0x7ec] sm:$0xf]
  %v554 = vld [vmem:[%s1 + $0x7f0] sm:$0xf]
  %v555 = vld [vmem:[%s1 + $0x7f4] sm:$0xf]
  %v556 = vld [vmem:[%s1 + $0x7f8] sm:$0xf]
  %v557 = vld [vmem:[%s1 + $0x7fc] sm:$0xf]
  %v558 = vld [vmem:[%s2] sm:$0x1]
  %v560 = vperm.slane %v558, 0
  %v594 = vunpack.c.l.b16 %v14
  %v595 = vunpack.c.h.b16 %v14
  %v596 = vunpack.c.l.b16 %v15
  %v597 = vunpack.c.h.b16 %v15
  %v598 = vunpack.c.l.b16 %v16
  %v599 = vunpack.c.h.b16 %v16
  %v600 = vunpack.c.l.b16 %v17
  %v601 = vunpack.c.h.b16 %v17
  %v602 = vunpack.c.l.b16 %v18
  %v603 = vunpack.c.h.b16 %v18
  %v604 = vunpack.c.l.b16 %v19
  %v605 = vunpack.c.h.b16 %v19
  %v606 = vunpack.c.l.b16 %v20
  %v607 = vunpack.c.h.b16 %v20
  %v608 = vunpack.c.l.b16 %v21
  %v609 = vunpack.c.h.b16 %v21
  %v610 = vunpack.c.l.b16 %v22
  %v611 = vunpack.c.h.b16 %v22
  %v612 = vunpack.c.l.b16 %v23
  %v613 = vunpack.c.h.b16 %v23
  %v614 = vunpack.c.l.b16 %v24
  %v615 = vunpack.c.h.b16 %v24
  %v616 = vunpack.c.l.b16 %v25
  %v617 = vunpack.c.h.b16 %v25
  %v618 = vunpack.c.l.b16 %v26
  %v619 = vunpack.c.h.b16 %v26
  %v620 = vunpack.c.l.b16 %v27
  %v621 = vunpack.c.h.b16 %v27
  %v622 = vunpack.c.l.b16 %v28
  %v623 = vunpack.c.h.b16 %v28
  %v624 = vunpack.c.l.b16 %v29
  %v625 = vunpack.c.h.b16 %v29
  %v626 = vunpack.c.l.b16 %v30
  %v627 = vunpack.c.h.b16 %v30
  %v628 = vunpack.c.l.b16 %v31
  %v629 = vunpack.c.h.b16 %v31
  %v630 = vunpack.c.l.b16 %v32
  %v631 = vunpack.c.h.b16 %v32
  %v632 = vunpack.c.l.b16 %v33
  %v633 = vunpack.c.h.b16 %v33
  %v634 = vunpack.c.l.b16 %v34
  %v635 = vunpack.c.h.b16 %v34
  %v636 = vunpack.c.l.b16 %v35
  %v637 = vunpack.c.h.b16 %v35
  %v638 = vunpack.c.l.b16 %v36
  %v639 = vunpack.c.h.b16 %v36
  %v640 = vunpack.c.l.b16 %v37
  %v641 = vunpack.c.h.b16 %v37
  %v642 = vunpack.c.l.b16 %v38
  %v643 = vunpack.c.h.b16 %v38
  %v644 = vunpack.c.l.b16 %v39
  %v645 = vunpack.c.h.b16 %v39
  %v646 = vunpack.c.l.b16 %v40
  %v647 = vunpack.c.h.b16 %v40
  %v648 = vunpack.c.l.b16 %v41
  %v649 = vunpack.c.h.b16 %v41
  %v650 = vunpack.c.l.b16 %v42
  %v651 = vunpack.c.h.b16 %v42
  %v652 = vunpack.c.l.b16 %v43
  %v653 = vunpack.c.h.b16 %v43
  %v654 = vunpack.c.l.b16 %v44
  %v655 = vunpack.c.h.b16 %v44
  %v656 = vunpack.c.l.b16 %v45
  %v657 = vunpack.c.h.b16 %v45
  %v658 = vpack.c.b16 %v626, %v594
  %v659 = vpack.c.b16 %v627, %v595
  %v660 = vpack.c.b16 %v628, %v596
  %v661 = vpack.c.b16 %v629, %v597
  %v662 = vpack.c.b16 %v630, %v598
  %v663 = vpack.c.b16 %v631, %v599
  %v664 = vpack.c.b16 %v632, %v600
  %v665 = vpack.c.b16 %v633, %v601
  %v666 = vpack.c.b16 %v634, %v602
  %v667 = vpack.c.b16 %v635, %v603
  %v668 = vpack.c.b16 %v636, %v604
  %v669 = vpack.c.b16 %v637, %v605
  %v670 = vpack.c.b16 %v638, %v606
  %v671 = vpack.c.b16 %v639, %v607
  %v672 = vpack.c.b16 %v640, %v608
  %v673 = vpack.c.b16 %v641, %v609
  %v674 = vpack.c.b16 %v642, %v610
  %v675 = vpack.c.b16 %v643, %v611
  %v676 = vpack.c.b16 %v644, %v612
  %v677 = vpack.c.b16 %v645, %v613
  %v678 = vpack.c.b16 %v646, %v614
  %v679 = vpack.c.b16 %v647, %v615
  %v680 = vpack.c.b16 %v648, %v616
  %v681 = vpack.c.b16 %v649, %v617
  %v682 = vpack.c.b16 %v650, %v618
  %v683 = vpack.c.b16 %v651, %v619
  %v684 = vpack.c.b16 %v652, %v620
  %v685 = vpack.c.b16 %v653, %v621
  %v686 = vpack.c.b16 %v654, %v622
  %v687 = vpack.c.b16 %v655, %v623
  %v688 = vpack.c.b16 %v656, %v624
  %v689 = vpack.c.b16 %v657, %v625
  %v1234 = vunpack.c.l.b16 %v46
  %v1235 = vunpack.c.l.b16 %v47
  %v1236 = vunpack.c.l.b16 %v48
  %v1237 = vunpack.c.l.b16 %v49
  %v1238 = vunpack.c.l.b16 %v50
  %v1239 = vunpack.c.l.b16 %v51
  %v1240 = vunpack.c.l.b16 %v52
  %v1241 = vunpack.c.l.b16 %v53
  %v1242 = vunpack.c.l.b16 %v54
  %v1243 = vunpack.c.l.b16 %v55
  %v1244 = vunpack.c.l.b16 %v56
  %v1245 = vunpack.c.l.b16 %v57
  %v1246 = vunpack.c.l.b16 %v58
  %v1247 = vunpack.c.l.b16 %v59
  %v1248 = vunpack.c.l.b16 %v60
  %v1249 = vunpack.c.l.b16 %v61
  %v1250 = vunpack.c.l.b16 %v62
  %v1251 = vunpack.c.l.b16 %v63
  %v1252 = vunpack.c.l.b16 %v64
  %v1253 = vunpack.c.l.b16 %v65
  %v1254 = vunpack.c.l.b16 %v66
  %v1255 = vunpack.c.l.b16 %v67
  %v1256 = vunpack.c.l.b16 %v68
  %v1257 = vunpack.c.l.b16 %v69
  %v1258 = vunpack.c.l.b16 %v70
  %v1259 = vunpack.c.l.b16 %v71
  %v1260 = vunpack.c.l.b16 %v72
  %v1261 = vunpack.c.l.b16 %v73
  %v1262 = vunpack.c.l.b16 %v74
  %v1263 = vunpack.c.l.b16 %v75
  %v1264 = vunpack.c.l.b16 %v76
  %v1265 = vunpack.c.l.b16 %v77
  %v1266 = vunpack.c.l.b16 %v78
  %v1267 = vunpack.c.l.b16 %v79
  %v1268 = vunpack.c.l.b16 %v80
  %v1269 = vunpack.c.l.b16 %v81
  %v1270 = vunpack.c.l.b16 %v82
  %v1271 = vunpack.c.l.b16 %v83
  %v1272 = vunpack.c.l.b16 %v84
  %v1273 = vunpack.c.l.b16 %v85
  %v1274 = vunpack.c.l.b16 %v86
  %v1275 = vunpack.c.l.b16 %v87
  %v1276 = vunpack.c.l.b16 %v88
  %v1277 = vunpack.c.l.b16 %v89
  %v1278 = vunpack.c.l.b16 %v90
  %v1279 = vunpack.c.l.b16 %v91
  %v1280 = vunpack.c.l.b16 %v92
  %v1281 = vunpack.c.l.b16 %v93
  %v1282 = vunpack.c.l.b16 %v94
  %v1283 = vunpack.c.l.b16 %v95
  %v1284 = vunpack.c.l.b16 %v96
  %v1285 = vunpack.c.l.b16 %v97
  %v1286 = vunpack.c.l.b16 %v98
  %v1287 = vunpack.c.l.b16 %v99
  %v1288 = vunpack.c.l.b16 %v100
  %v1289 = vunpack.c.l.b16 %v101
  %v1290 = vunpack.c.l.b16 %v102
  %v1291 = vunpack.c.l.b16 %v103
  %v1292 = vunpack.c.l.b16 %v104
  %v1293 = vunpack.c.l.b16 %v105
  %v1294 = vunpack.c.l.b16 %v106
  %v1295 = vunpack.c.l.b16 %v107
  %v1296 = vunpack.c.l.b16 %v108
  %v1297 = vunpack.c.l.b16 %v109
  %v1298 = vunpack.c.l.b16 %v110
  %v1299 = vunpack.c.l.b16 %v111
  %v1300 = vunpack.c.l.b16 %v112
  %v1301 = vunpack.c.l.b16 %v113
  %v1302 = vunpack.c.l.b16 %v114
  %v1303 = vunpack.c.l.b16 %v115
  %v1304 = vunpack.c.l.b16 %v116
  %v1305 = vunpack.c.l.b16 %v117
  %v1306 = vunpack.c.l.b16 %v118
  %v1307 = vunpack.c.l.b16 %v119
  %v1308 = vunpack.c.l.b16 %v120
  %v1309 = vunpack.c.l.b16 %v121
  %v1310 = vunpack.c.l.b16 %v122
  %v1311 = vunpack.c.l.b16 %v123
  %v1312 = vunpack.c.l.b16 %v124
  %v1313 = vunpack.c.l.b16 %v125
  %v1314 = vunpack.c.l.b16 %v126
  %v1315 = vunpack.c.l.b16 %v127
  %v1316 = vunpack.c.l.b16 %v128
  %v1317 = vunpack.c.l.b16 %v129
  %v1318 = vunpack.c.l.b16 %v130
  %v1319 = vunpack.c.l.b16 %v131
  %v1320 = vunpack.c.l.b16 %v132
  %v1321 = vunpack.c.l.b16 %v133
  %v1322 = vunpack.c.l.b16 %v134
  %v1323 = vunpack.c.l.b16 %v135
  %v1324 = vunpack.c.l.b16 %v136
  %v1325 = vunpack.c.l.b16 %v137
  %v1326 = vunpack.c.l.b16 %v138
  %v1327 = vunpack.c.l.b16 %v139
  %v1328 = vunpack.c.l.b16 %v140
  %v1329 = vunpack.c.l.b16 %v141
  %v1330 = vunpack.c.l.b16 %v142
  %v1331 = vunpack.c.l.b16 %v143
  %v1332 = vunpack.c.l.b16 %v144
  %v1333 = vunpack.c.l.b16 %v145
  %v1334 = vunpack.c.l.b16 %v146
  %v1335 = vunpack.c.l.b16 %v147
  %v1336 = vunpack.c.l.b16 %v148
  %v1337 = vunpack.c.l.b16 %v149
  %v1338 = vunpack.c.l.b16 %v150
  %v1339 = vunpack.c.l.b16 %v151
  %v1340 = vunpack.c.l.b16 %v152
  %v1341 = vunpack.c.l.b16 %v153
  %v1342 = vunpack.c.l.b16 %v154
  %v1343 = vunpack.c.l.b16 %v155
  %v1344 = vunpack.c.l.b16 %v156
  %v1345 = vunpack.c.l.b16 %v157
  %v1346 = vunpack.c.l.b16 %v158
  %v1347 = vunpack.c.l.b16 %v159
  %v1348 = vunpack.c.l.b16 %v160
  %v1349 = vunpack.c.l.b16 %v161
  %v1350 = vunpack.c.l.b16 %v162
  %v1351 = vunpack.c.l.b16 %v163
  %v1352 = vunpack.c.l.b16 %v164
  %v1353 = vunpack.c.l.b16 %v165
  %v1354 = vunpack.c.l.b16 %v166
  %v1355 = vunpack.c.l.b16 %v167
  %v1356 = vunpack.c.l.b16 %v168
  %v1357 = vunpack.c.l.b16 %v169
  %v1358 = vunpack.c.l.b16 %v170
  %v1359 = vunpack.c.l.b16 %v171
  %v1360 = vunpack.c.l.b16 %v172
  %v1361 = vunpack.c.l.b16 %v173
  %v1362 = vunpack.c.l.b16 %v174
  %v1363 = vunpack.c.l.b16 %v175
  %v1364 = vunpack.c.l.b16 %v176
  %v1365 = vunpack.c.l.b16 %v177
  %v1366 = vunpack.c.l.b16 %v178
  %v1367 = vunpack.c.l.b16 %v179
  %v1368 = vunpack.c.l.b16 %v180
  %v1369 = vunpack.c.l.b16 %v181
  %v1370 = vunpack.c.l.b16 %v182
  %v1371 = vunpack.c.l.b16 %v183
  %v1372 = vunpack.c.l.b16 %v184
  %v1373 = vunpack.c.l.b16 %v185
  %v1374 = vunpack.c.l.b16 %v186
  %v1375 = vunpack.c.l.b16 %v187
  %v1376 = vunpack.c.l.b16 %v188
  %v1377 = vunpack.c.l.b16 %v189
  %v1378 = vunpack.c.l.b16 %v190
  %v1379 = vunpack.c.l.b16 %v191
  %v1380 = vunpack.c.l.b16 %v192
  %v1381 = vunpack.c.l.b16 %v193
  %v1382 = vunpack.c.l.b16 %v194
  %v1383 = vunpack.c.l.b16 %v195
  %v1384 = vunpack.c.l.b16 %v196
  %v1385 = vunpack.c.l.b16 %v197
  %v1386 = vunpack.c.l.b16 %v198
  %v1387 = vunpack.c.l.b16 %v199
  %v1388 = vunpack.c.l.b16 %v200
  %v1389 = vunpack.c.l.b16 %v201
  %v1390 = vunpack.c.l.b16 %v202
  %v1391 = vunpack.c.l.b16 %v203
  %v1392 = vunpack.c.l.b16 %v204
  %v1393 = vunpack.c.l.b16 %v205
  %v1394 = vunpack.c.l.b16 %v206
  %v1395 = vunpack.c.l.b16 %v207
  %v1396 = vunpack.c.l.b16 %v208
  %v1397 = vunpack.c.l.b16 %v209
  %v1398 = vunpack.c.l.b16 %v210
  %v1399 = vunpack.c.l.b16 %v211
  %v1400 = vunpack.c.l.b16 %v212
  %v1401 = vunpack.c.l.b16 %v213
  %v1402 = vunpack.c.l.b16 %v214
  %v1403 = vunpack.c.l.b16 %v215
  %v1404 = vunpack.c.l.b16 %v216
  %v1405 = vunpack.c.l.b16 %v217
  %v1406 = vunpack.c.l.b16 %v218
  %v1407 = vunpack.c.l.b16 %v219
  %v1408 = vunpack.c.l.b16 %v220
  %v1409 = vunpack.c.l.b16 %v221
  %v1410 = vunpack.c.l.b16 %v222
  %v1411 = vunpack.c.l.b16 %v223
  %v1412 = vunpack.c.l.b16 %v224
  %v1413 = vunpack.c.l.b16 %v225
  %v1414 = vunpack.c.l.b16 %v226
  %v1415 = vunpack.c.l.b16 %v227
  %v1416 = vunpack.c.l.b16 %v228
  %v1417 = vunpack.c.l.b16 %v229
  %v1418 = vunpack.c.l.b16 %v230
  %v1419 = vunpack.c.l.b16 %v231
  %v1420 = vunpack.c.l.b16 %v232
  %v1421 = vunpack.c.l.b16 %v233
  %v1422 = vunpack.c.l.b16 %v234
  %v1423 = vunpack.c.l.b16 %v235
  %v1424 = vunpack.c.l.b16 %v236
  %v1425 = vunpack.c.l.b16 %v237
  %v1426 = vunpack.c.l.b16 %v238
  %v1427 = vunpack.c.l.b16 %v239
  %v1428 = vunpack.c.l.b16 %v240
  %v1429 = vunpack.c.l.b16 %v241
  %v1430 = vunpack.c.l.b16 %v242
  %v1431 = vunpack.c.l.b16 %v243
  %v1432 = vunpack.c.l.b16 %v244
  %v1433 = vunpack.c.l.b16 %v245
  %v1434 = vunpack.c.l.b16 %v246
  %v1435 = vunpack.c.l.b16 %v247
  %v1436 = vunpack.c.l.b16 %v248
  %v1437 = vunpack.c.l.b16 %v249
  %v1438 = vunpack.c.l.b16 %v250
  %v1439 = vunpack.c.l.b16 %v251
  %v1440 = vunpack.c.l.b16 %v252
  %v1441 = vunpack.c.l.b16 %v253
  %v1442 = vunpack.c.l.b16 %v254
  %v1443 = vunpack.c.l.b16 %v255
  %v1444 = vunpack.c.l.b16 %v256
  %v1445 = vunpack.c.l.b16 %v257
  %v1446 = vunpack.c.l.b16 %v258
  %v1447 = vunpack.c.l.b16 %v259
  %v1448 = vunpack.c.l.b16 %v260
  %v1449 = vunpack.c.l.b16 %v261
  %v1450 = vunpack.c.l.b16 %v262
  %v1451 = vunpack.c.l.b16 %v263
  %v1452 = vunpack.c.l.b16 %v264
  %v1453 = vunpack.c.l.b16 %v265
  %v1454 = vunpack.c.l.b16 %v266
  %v1455 = vunpack.c.l.b16 %v267
  %v1456 = vunpack.c.l.b16 %v268
  %v1457 = vunpack.c.l.b16 %v269
  %v1458 = vunpack.c.l.b16 %v270
  %v1459 = vunpack.c.l.b16 %v271
  %v1460 = vunpack.c.l.b16 %v272
  %v1461 = vunpack.c.l.b16 %v273
  %v1462 = vunpack.c.l.b16 %v274
  %v1463 = vunpack.c.l.b16 %v275
  %v1464 = vunpack.c.l.b16 %v276
  %v1465 = vunpack.c.l.b16 %v277
  %v1466 = vunpack.c.l.b16 %v278
  %v1467 = vunpack.c.l.b16 %v279
  %v1468 = vunpack.c.l.b16 %v280
  %v1469 = vunpack.c.l.b16 %v281
  %v1470 = vunpack.c.l.b16 %v282
  %v1471 = vunpack.c.l.b16 %v283
  %v1472 = vunpack.c.l.b16 %v284
  %v1473 = vunpack.c.l.b16 %v285
  %v1474 = vunpack.c.l.b16 %v286
  %v1475 = vunpack.c.l.b16 %v287
  %v1476 = vunpack.c.l.b16 %v288
  %v1477 = vunpack.c.l.b16 %v289
  %v1478 = vunpack.c.l.b16 %v290
  %v1479 = vunpack.c.l.b16 %v291
  %v1480 = vunpack.c.l.b16 %v292
  %v1481 = vunpack.c.l.b16 %v293
  %v1482 = vunpack.c.l.b16 %v294
  %v1483 = vunpack.c.l.b16 %v295
  %v1484 = vunpack.c.l.b16 %v296
  %v1485 = vunpack.c.l.b16 %v297
  %v1486 = vunpack.c.l.b16 %v298
  %v1487 = vunpack.c.l.b16 %v299
  %v1488 = vunpack.c.l.b16 %v300
  %v1489 = vunpack.c.l.b16 %v301
  %v1490 = vunpack.c.l.b16 %v302
  %v1491 = vunpack.c.l.b16 %v303
  %v1492 = vunpack.c.l.b16 %v304
  %v1493 = vunpack.c.l.b16 %v305
  %v1494 = vunpack.c.l.b16 %v306
  %v1495 = vunpack.c.l.b16 %v307
  %v1496 = vunpack.c.l.b16 %v308
  %v1497 = vunpack.c.l.b16 %v309
  %v1498 = vunpack.c.l.b16 %v310
  %v1499 = vunpack.c.l.b16 %v311
  %v1500 = vunpack.c.l.b16 %v312
  %v1501 = vunpack.c.l.b16 %v313
  %v1502 = vunpack.c.l.b16 %v314
  %v1503 = vunpack.c.l.b16 %v315
  %v1504 = vunpack.c.l.b16 %v316
  %v1505 = vunpack.c.l.b16 %v317
  %v1506 = vunpack.c.l.b16 %v318
  %v1507 = vunpack.c.l.b16 %v319
  %v1508 = vunpack.c.l.b16 %v320
  %v1509 = vunpack.c.l.b16 %v321
  %v1510 = vunpack.c.l.b16 %v322
  %v1511 = vunpack.c.l.b16 %v323
  %v1512 = vunpack.c.l.b16 %v324
  %v1513 = vunpack.c.l.b16 %v325
  %v1514 = vunpack.c.l.b16 %v326
  %v1515 = vunpack.c.l.b16 %v327
  %v1516 = vunpack.c.l.b16 %v328
  %v1517 = vunpack.c.l.b16 %v329
  %v1518 = vunpack.c.l.b16 %v330
  %v1519 = vunpack.c.l.b16 %v331
  %v1520 = vunpack.c.l.b16 %v332
  %v1521 = vunpack.c.l.b16 %v333
  %v1522 = vunpack.c.l.b16 %v334
  %v1523 = vunpack.c.l.b16 %v335
  %v1524 = vunpack.c.l.b16 %v336
  %v1525 = vunpack.c.l.b16 %v337
  %v1526 = vunpack.c.l.b16 %v338
  %v1527 = vunpack.c.l.b16 %v339
  %v1528 = vunpack.c.l.b16 %v340
  %v1529 = vunpack.c.l.b16 %v341
  %v1530 = vunpack.c.l.b16 %v342
  %v1531 = vunpack.c.l.b16 %v343
  %v1532 = vunpack.c.l.b16 %v344
  %v1533 = vunpack.c.l.b16 %v345
  %v1534 = vunpack.c.l.b16 %v346
  %v1535 = vunpack.c.l.b16 %v347
  %v1536 = vunpack.c.l.b16 %v348
  %v1537 = vunpack.c.l.b16 %v349
  %v1538 = vunpack.c.l.b16 %v350
  %v1539 = vunpack.c.l.b16 %v351
  %v1540 = vunpack.c.l.b16 %v352
  %v1541 = vunpack.c.l.b16 %v353
  %v1542 = vunpack.c.l.b16 %v354
  %v1543 = vunpack.c.l.b16 %v355
  %v1544 = vunpack.c.l.b16 %v356
  %v1545 = vunpack.c.l.b16 %v357
  %v1546 = vunpack.c.l.b16 %v358
  %v1547 = vunpack.c.l.b16 %v359
  %v1548 = vunpack.c.l.b16 %v360
  %v1549 = vunpack.c.l.b16 %v361
  %v1550 = vunpack.c.l.b16 %v362
  %v1551 = vunpack.c.l.b16 %v363
  %v1552 = vunpack.c.l.b16 %v364
  %v1553 = vunpack.c.l.b16 %v365
  %v1554 = vunpack.c.l.b16 %v366
  %v1555 = vunpack.c.l.b16 %v367
  %v1556 = vunpack.c.l.b16 %v368
  %v1557 = vunpack.c.l.b16 %v369
  %v1558 = vunpack.c.l.b16 %v370
  %v1559 = vunpack.c.l.b16 %v371
  %v1560 = vunpack.c.l.b16 %v372
  %v1561 = vunpack.c.l.b16 %v373
  %v1562 = vunpack.c.l.b16 %v374
  %v1563 = vunpack.c.l.b16 %v375
  %v1564 = vunpack.c.l.b16 %v376
  %v1565 = vunpack.c.l.b16 %v377
  %v1566 = vunpack.c.l.b16 %v378
  %v1567 = vunpack.c.l.b16 %v379
  %v1568 = vunpack.c.l.b16 %v380
  %v1569 = vunpack.c.l.b16 %v381
  %v1570 = vunpack.c.l.b16 %v382
  %v1571 = vunpack.c.l.b16 %v383
  %v1572 = vunpack.c.l.b16 %v384
  %v1573 = vunpack.c.l.b16 %v385
  %v1574 = vunpack.c.l.b16 %v386
  %v1575 = vunpack.c.l.b16 %v387
  %v1576 = vunpack.c.l.b16 %v388
  %v1577 = vunpack.c.l.b16 %v389
  %v1578 = vunpack.c.l.b16 %v390
  %v1579 = vunpack.c.l.b16 %v391
  %v1580 = vunpack.c.l.b16 %v392
  %v1581 = vunpack.c.l.b16 %v393
  %v1582 = vunpack.c.l.b16 %v394
  %v1583 = vunpack.c.l.b16 %v395
  %v1584 = vunpack.c.l.b16 %v396
  %v1585 = vunpack.c.l.b16 %v397
  %v1586 = vunpack.c.l.b16 %v398
  %v1587 = vunpack.c.l.b16 %v399
  %v1588 = vunpack.c.l.b16 %v400
  %v1589 = vunpack.c.l.b16 %v401
  %v1590 = vunpack.c.l.b16 %v402
  %v1591 = vunpack.c.l.b16 %v403
  %v1592 = vunpack.c.l.b16 %v404
  %v1593 = vunpack.c.l.b16 %v405
  %v1594 = vunpack.c.l.b16 %v406
  %v1595 = vunpack.c.l.b16 %v407
  %v1596 = vunpack.c.l.b16 %v408
  %v1597 = vunpack.c.l.b16 %v409
  %v1598 = vunpack.c.l.b16 %v410
  %v1599 = vunpack.c.l.b16 %v411
  %v1600 = vunpack.c.l.b16 %v412
  %v1601 = vunpack.c.l.b16 %v413
  %v1602 = vunpack.c.l.b16 %v414
  %v1603 = vunpack.c.l.b16 %v415
  %v1604 = vunpack.c.l.b16 %v416
  %v1605 = vunpack.c.l.b16 %v417
  %v1606 = vunpack.c.l.b16 %v418
  %v1607 = vunpack.c.l.b16 %v419
  %v1608 = vunpack.c.l.b16 %v420
  %v1609 = vunpack.c.l.b16 %v421
  %v1610 = vunpack.c.l.b16 %v422
  %v1611 = vunpack.c.l.b16 %v423
  %v1612 = vunpack.c.l.b16 %v424
  %v1613 = vunpack.c.l.b16 %v425
  %v1614 = vunpack.c.l.b16 %v426
  %v1615 = vunpack.c.l.b16 %v427
  %v1616 = vunpack.c.l.b16 %v428
  %v1617 = vunpack.c.l.b16 %v429
  %v1618 = vunpack.c.l.b16 %v430
  %v1619 = vunpack.c.l.b16 %v431
  %v1620 = vunpack.c.l.b16 %v432
  %v1621 = vunpack.c.l.b16 %v433
  %v1622 = vunpack.c.l.b16 %v434
  %v1623 = vunpack.c.l.b16 %v435
  %v1624 = vunpack.c.l.b16 %v436
  %v1625 = vunpack.c.l.b16 %v437
  %v1626 = vunpack.c.l.b16 %v438
  %v1627 = vunpack.c.l.b16 %v439
  %v1628 = vunpack.c.l.b16 %v440
  %v1629 = vunpack.c.l.b16 %v441
  %v1630 = vunpack.c.l.b16 %v442
  %v1631 = vunpack.c.l.b16 %v443
  %v1632 = vunpack.c.l.b16 %v444
  %v1633 = vunpack.c.l.b16 %v445
  %v1634 = vunpack.c.l.b16 %v446
  %v1635 = vunpack.c.l.b16 %v447
  %v1636 = vunpack.c.l.b16 %v448
  %v1637 = vunpack.c.l.b16 %v449
  %v1638 = vunpack.c.l.b16 %v450
  %v1639 = vunpack.c.l.b16 %v451
  %v1640 = vunpack.c.l.b16 %v452
  %v1641 = vunpack.c.l.b16 %v453
  %v1642 = vunpack.c.l.b16 %v454
  %v1643 = vunpack.c.l.b16 %v455
  %v1644 = vunpack.c.l.b16 %v456
  %v1645 = vunpack.c.l.b16 %v457
  %v1646 = vunpack.c.l.b16 %v458
  %v1647 = vunpack.c.l.b16 %v459
  %v1648 = vunpack.c.l.b16 %v460
  %v1649 = vunpack.c.l.b16 %v461
  %v1650 = vunpack.c.l.b16 %v462
  %v1651 = vunpack.c.l.b16 %v463
  %v1652 = vunpack.c.l.b16 %v464
  %v1653 = vunpack.c.l.b16 %v465
  %v1654 = vunpack.c.l.b16 %v466
  %v1655 = vunpack.c.l.b16 %v467
  %v1656 = vunpack.c.l.b16 %v468
  %v1657 = vunpack.c.l.b16 %v469
  %v1658 = vunpack.c.l.b16 %v470
  %v1659 = vunpack.c.l.b16 %v471
  %v1660 = vunpack.c.l.b16 %v472
  %v1661 = vunpack.c.l.b16 %v473
  %v1662 = vunpack.c.l.b16 %v474
  %v1663 = vunpack.c.l.b16 %v475
  %v1664 = vunpack.c.l.b16 %v476
  %v1665 = vunpack.c.l.b16 %v477
  %v1666 = vunpack.c.l.b16 %v478
  %v1667 = vunpack.c.l.b16 %v479
  %v1668 = vunpack.c.l.b16 %v480
  %v1669 = vunpack.c.l.b16 %v481
  %v1670 = vunpack.c.l.b16 %v482
  %v1671 = vunpack.c.l.b16 %v483
  %v1672 = vunpack.c.l.b16 %v484
  %v1673 = vunpack.c.l.b16 %v485
  %v1674 = vunpack.c.l.b16 %v486
  %v1675 = vunpack.c.l.b16 %v487
  %v1676 = vunpack.c.l.b16 %v488
  %v1677 = vunpack.c.l.b16 %v489
  %v1678 = vunpack.c.l.b16 %v490
  %v1679 = vunpack.c.l.b16 %v491
  %v1680 = vunpack.c.l.b16 %v492
  %v1681 = vunpack.c.l.b16 %v493
  %v1682 = vunpack.c.l.b16 %v494
  %v1683 = vunpack.c.l.b16 %v495
  %v1684 = vunpack.c.l.b16 %v496
  %v1685 = vunpack.c.l.b16 %v497
  %v1686 = vunpack.c.l.b16 %v498
  %v1687 = vunpack.c.l.b16 %v499
  %v1688 = vunpack.c.l.b16 %v500
  %v1689 = vunpack.c.l.b16 %v501
  %v1690 = vunpack.c.l.b16 %v502
  %v1691 = vunpack.c.l.b16 %v503
  %v1692 = vunpack.c.l.b16 %v504
  %v1693 = vunpack.c.l.b16 %v505
  %v1694 = vunpack.c.l.b16 %v506
  %v1695 = vunpack.c.l.b16 %v507
  %v1696 = vunpack.c.l.b16 %v508
  %v1697 = vunpack.c.l.b16 %v509
  %v1698 = vunpack.c.l.b16 %v510
  %v1699 = vunpack.c.l.b16 %v511
  %v1700 = vunpack.c.l.b16 %v512
  %v1701 = vunpack.c.l.b16 %v513
  %v1702 = vunpack.c.l.b16 %v514
  %v1703 = vunpack.c.l.b16 %v515
  %v1704 = vunpack.c.l.b16 %v516
  %v1705 = vunpack.c.l.b16 %v517
  %v1706 = vunpack.c.l.b16 %v518
  %v1707 = vunpack.c.l.b16 %v519
  %v1708 = vunpack.c.l.b16 %v520
  %v1709 = vunpack.c.l.b16 %v521
  %v1710 = vunpack.c.l.b16 %v522
  %v1711 = vunpack.c.l.b16 %v523
  %v1712 = vunpack.c.l.b16 %v524
  %v1713 = vunpack.c.l.b16 %v525
  %v1714 = vunpack.c.l.b16 %v526
  %v1715 = vunpack.c.l.b16 %v527
  %v1716 = vunpack.c.l.b16 %v528
  %v1717 = vunpack.c.l.b16 %v529
  %v1718 = vunpack.c.l.b16 %v530
  %v1719 = vunpack.c.l.b16 %v531
  %v1720 = vunpack.c.l.b16 %v532
  %v1721 = vunpack.c.l.b16 %v533
  %v1722 = vunpack.c.l.b16 %v534
  %v1723 = vunpack.c.l.b16 %v535
  %v1724 = vunpack.c.l.b16 %v536
  %v1725 = vunpack.c.l.b16 %v537
  %v1726 = vunpack.c.l.b16 %v538
  %v1727 = vunpack.c.l.b16 %v539
  %v1728 = vunpack.c.l.b16 %v540
  %v1729 = vunpack.c.l.b16 %v541
  %v1730 = vunpack.c.l.b16 %v542
  %v1731 = vunpack.c.l.b16 %v543
  %v1732 = vunpack.c.l.b16 %v544
  %v1733 = vunpack.c.l.b16 %v545
  %v1734 = vunpack.c.l.b16 %v546
  %v1735 = vunpack.c.l.b16 %v547
  %v1736 = vunpack.c.l.b16 %v548
  %v1737 = vunpack.c.l.b16 %v549
  %v1738 = vunpack.c.l.b16 %v550
  %v1739 = vunpack.c.l.b16 %v551
  %v1740 = vunpack.c.l.b16 %v552
  %v1741 = vunpack.c.l.b16 %v553
  %v1742 = vunpack.c.l.b16 %v554
  %v1743 = vunpack.c.l.b16 %v555
  %v1744 = vunpack.c.l.b16 %v556
  %v1745 = vunpack.c.l.b16 %v557
  %v1746 = vpack.c.b16 %v1235, %v1234
  %v1747 = vpack.c.b16 %v1237, %v1236
  %v1748 = vpack.c.b16 %v1239, %v1238
  %v1749 = vpack.c.b16 %v1241, %v1240
  %v1750 = vpack.c.b16 %v1243, %v1242
  %v1751 = vpack.c.b16 %v1245, %v1244
  %v1752 = vpack.c.b16 %v1247, %v1246
  %v1753 = vpack.c.b16 %v1249, %v1248
  %v1754 = vpack.c.b16 %v1251, %v1250
  %v1755 = vpack.c.b16 %v1253, %v1252
  %v1756 = vpack.c.b16 %v1255, %v1254
  %v1757 = vpack.c.b16 %v1257, %v1256
  %v1758 = vpack.c.b16 %v1259, %v1258
  %v1759 = vpack.c.b16 %v1261, %v1260
  %v1760 = vpack.c.b16 %v1263, %v1262
  %v1761 = vpack.c.b16 %v1265, %v1264
  %v1762 = vpack.c.b16 %v1267, %v1266
  %v1763 = vpack.c.b16 %v1269, %v1268
  %v1764 = vpack.c.b16 %v1271, %v1270
  %v1765 = vpack.c.b16 %v1273, %v1272
  %v1766 = vpack.c.b16 %v1275, %v1274
  %v1767 = vpack.c.b16 %v1277, %v1276
  %v1768 = vpack.c.b16 %v1279, %v1278
  %v1769 = vpack.c.b16 %v1281, %v1280
  %v1770 = vpack.c.b16 %v1283, %v1282
  %v1771 = vpack.c.b16 %v1285, %v1284
  %v1772 = vpack.c.b16 %v1287, %v1286
  %v1773 = vpack.c.b16 %v1289, %v1288
  %v1774 = vpack.c.b16 %v1291, %v1290
  %v1775 = vpack.c.b16 %v1293, %v1292
  %v1776 = vpack.c.b16 %v1295, %v1294
  %v1777 = vpack.c.b16 %v1297, %v1296
  %v1778 = vpack.c.b16 %v1299, %v1298
  %v1779 = vpack.c.b16 %v1301, %v1300
  %v1780 = vpack.c.b16 %v1303, %v1302
  %v1781 = vpack.c.b16 %v1305, %v1304
  %v1782 = vpack.c.b16 %v1307, %v1306
  %v1783 = vpack.c.b16 %v1309, %v1308
  %v1784 = vpack.c.b16 %v1311, %v1310
  %v1785 = vpack.c.b16 %v1313, %v1312
  %v1786 = vpack.c.b16 %v1315, %v1314
  %v1787 = vpack.c.b16 %v1317, %v1316
  %v1788 = vpack.c.b16 %v1319, %v1318
  %v1789 = vpack.c.b16 %v1321, %v1320
  %v1790 = vpack.c.b16 %v1323, %v1322
  %v1791 = vpack.c.b16 %v1325, %v1324
  %v1792 = vpack.c.b16 %v1327, %v1326
  %v1793 = vpack.c.b16 %v1329, %v1328
  %v1794 = vpack.c.b16 %v1331, %v1330
  %v1795 = vpack.c.b16 %v1333, %v1332
  %v1796 = vpack.c.b16 %v1335, %v1334
  %v1797 = vpack.c.b16 %v1337, %v1336
  %v1798 = vpack.c.b16 %v1339, %v1338
  %v1799 = vpack.c.b16 %v1341, %v1340
  %v1800 = vpack.c.b16 %v1343, %v1342
  %v1801 = vpack.c.b16 %v1345, %v1344
  %v1802 = vpack.c.b16 %v1347, %v1346
  %v1803 = vpack.c.b16 %v1349, %v1348
  %v1804 = vpack.c.b16 %v1351, %v1350
  %v1805 = vpack.c.b16 %v1353, %v1352
  %v1806 = vpack.c.b16 %v1355, %v1354
  %v1807 = vpack.c.b16 %v1357, %v1356
  %v1808 = vpack.c.b16 %v1359, %v1358
  %v1809 = vpack.c.b16 %v1361, %v1360
  %v1810 = vpack.c.b16 %v1363, %v1362
  %v1811 = vpack.c.b16 %v1365, %v1364
  %v1812 = vpack.c.b16 %v1367, %v1366
  %v1813 = vpack.c.b16 %v1369, %v1368
  %v1814 = vpack.c.b16 %v1371, %v1370
  %v1815 = vpack.c.b16 %v1373, %v1372
  %v1816 = vpack.c.b16 %v1375, %v1374
  %v1817 = vpack.c.b16 %v1377, %v1376
  %v1818 = vpack.c.b16 %v1379, %v1378
  %v1819 = vpack.c.b16 %v1381, %v1380
  %v1820 = vpack.c.b16 %v1383, %v1382
  %v1821 = vpack.c.b16 %v1385, %v1384
  %v1822 = vpack.c.b16 %v1387, %v1386
  %v1823 = vpack.c.b16 %v1389, %v1388
  %v1824 = vpack.c.b16 %v1391, %v1390
  %v1825 = vpack.c.b16 %v1393, %v1392
  %v1826 = vpack.c.b16 %v1395, %v1394
  %v1827 = vpack.c.b16 %v1397, %v1396
  %v1828 = vpack.c.b16 %v1399, %v1398
  %v1829 = vpack.c.b16 %v1401, %v1400
  %v1830 = vpack.c.b16 %v1403, %v1402
  %v1831 = vpack.c.b16 %v1405, %v1404
  %v1832 = vpack.c.b16 %v1407, %v1406
  %v1833 = vpack.c.b16 %v1409, %v1408
  %v1834 = vpack.c.b16 %v1411, %v1410
  %v1835 = vpack.c.b16 %v1413, %v1412
  %v1836 = vpack.c.b16 %v1415, %v1414
  %v1837 = vpack.c.b16 %v1417, %v1416
  %v1838 = vpack.c.b16 %v1419, %v1418
  %v1839 = vpack.c.b16 %v1421, %v1420
  %v1840 = vpack.c.b16 %v1423, %v1422
  %v1841 = vpack.c.b16 %v1425, %v1424
  %v1842 = vpack.c.b16 %v1427, %v1426
  %v1843 = vpack.c.b16 %v1429, %v1428
  %v1844 = vpack.c.b16 %v1431, %v1430
  %v1845 = vpack.c.b16 %v1433, %v1432
  %v1846 = vpack.c.b16 %v1435, %v1434
  %v1847 = vpack.c.b16 %v1437, %v1436
  %v1848 = vpack.c.b16 %v1439, %v1438
  %v1849 = vpack.c.b16 %v1441, %v1440
  %v1850 = vpack.c.b16 %v1443, %v1442
  %v1851 = vpack.c.b16 %v1445, %v1444
  %v1852 = vpack.c.b16 %v1447, %v1446
  %v1853 = vpack.c.b16 %v1449, %v1448
  %v1854 = vpack.c.b16 %v1451, %v1450
  %v1855 = vpack.c.b16 %v1453, %v1452
  %v1856 = vpack.c.b16 %v1455, %v1454
  %v1857 = vpack.c.b16 %v1457, %v1456
  %v1858 = vpack.c.b16 %v1459, %v1458
  %v1859 = vpack.c.b16 %v1461, %v1460
  %v1860 = vpack.c.b16 %v1463, %v1462
  %v1861 = vpack.c.b16 %v1465, %v1464
  %v1862 = vpack.c.b16 %v1467, %v1466
  %v1863 = vpack.c.b16 %v1469, %v1468
  %v1864 = vpack.c.b16 %v1471, %v1470
  %v1865 = vpack.c.b16 %v1473, %v1472
  %v1866 = vpack.c.b16 %v1475, %v1474
  %v1867 = vpack.c.b16 %v1477, %v1476
  %v1868 = vpack.c.b16 %v1479, %v1478
  %v1869 = vpack.c.b16 %v1481, %v1480
  %v1870 = vpack.c.b16 %v1483, %v1482
  %v1871 = vpack.c.b16 %v1485, %v1484
  %v1872 = vpack.c.b16 %v1487, %v1486
  %v1873 = vpack.c.b16 %v1489, %v1488
  %v1874 = vpack.c.b16 %v1491, %v1490
  %v1875 = vpack.c.b16 %v1493, %v1492
  %v1876 = vpack.c.b16 %v1495, %v1494
  %v1877 = vpack.c.b16 %v1497, %v1496
  %v1878 = vpack.c.b16 %v1499, %v1498
  %v1879 = vpack.c.b16 %v1501, %v1500
  %v1880 = vpack.c.b16 %v1503, %v1502
  %v1881 = vpack.c.b16 %v1505, %v1504
  %v1882 = vpack.c.b16 %v1507, %v1506
  %v1883 = vpack.c.b16 %v1509, %v1508
  %v1884 = vpack.c.b16 %v1511, %v1510
  %v1885 = vpack.c.b16 %v1513, %v1512
  %v1886 = vpack.c.b16 %v1515, %v1514
  %v1887 = vpack.c.b16 %v1517, %v1516
  %v1888 = vpack.c.b16 %v1519, %v1518
  %v1889 = vpack.c.b16 %v1521, %v1520
  %v1890 = vpack.c.b16 %v1523, %v1522
  %v1891 = vpack.c.b16 %v1525, %v1524
  %v1892 = vpack.c.b16 %v1527, %v1526
  %v1893 = vpack.c.b16 %v1529, %v1528
  %v1894 = vpack.c.b16 %v1531, %v1530
  %v1895 = vpack.c.b16 %v1533, %v1532
  %v1896 = vpack.c.b16 %v1535, %v1534
  %v1897 = vpack.c.b16 %v1537, %v1536
  %v1898 = vpack.c.b16 %v1539, %v1538
  %v1899 = vpack.c.b16 %v1541, %v1540
  %v1900 = vpack.c.b16 %v1543, %v1542
  %v1901 = vpack.c.b16 %v1545, %v1544
  %v1902 = vpack.c.b16 %v1547, %v1546
  %v1903 = vpack.c.b16 %v1549, %v1548
  %v1904 = vpack.c.b16 %v1551, %v1550
  %v1905 = vpack.c.b16 %v1553, %v1552
  %v1906 = vpack.c.b16 %v1555, %v1554
  %v1907 = vpack.c.b16 %v1557, %v1556
  %v1908 = vpack.c.b16 %v1559, %v1558
  %v1909 = vpack.c.b16 %v1561, %v1560
  %v1910 = vpack.c.b16 %v1563, %v1562
  %v1911 = vpack.c.b16 %v1565, %v1564
  %v1912 = vpack.c.b16 %v1567, %v1566
  %v1913 = vpack.c.b16 %v1569, %v1568
  %v1914 = vpack.c.b16 %v1571, %v1570
  %v1915 = vpack.c.b16 %v1573, %v1572
  %v1916 = vpack.c.b16 %v1575, %v1574
  %v1917 = vpack.c.b16 %v1577, %v1576
  %v1918 = vpack.c.b16 %v1579, %v1578
  %v1919 = vpack.c.b16 %v1581, %v1580
  %v1920 = vpack.c.b16 %v1583, %v1582
  %v1921 = vpack.c.b16 %v1585, %v1584
  %v1922 = vpack.c.b16 %v1587, %v1586
  %v1923 = vpack.c.b16 %v1589, %v1588
  %v1924 = vpack.c.b16 %v1591, %v1590
  %v1925 = vpack.c.b16 %v1593, %v1592
  %v1926 = vpack.c.b16 %v1595, %v1594
  %v1927 = vpack.c.b16 %v1597, %v1596
  %v1928 = vpack.c.b16 %v1599, %v1598
  %v1929 = vpack.c.b16 %v1601, %v1600
  %v1930 = vpack.c.b16 %v1603, %v1602
  %v1931 = vpack.c.b16 %v1605, %v1604
  %v1932 = vpack.c.b16 %v1607, %v1606
  %v1933 = vpack.c.b16 %v1609, %v1608
  %v1934 = vpack.c.b16 %v1611, %v1610
  %v1935 = vpack.c.b16 %v1613, %v1612
  %v1936 = vpack.c.b16 %v1615, %v1614
  %v1937 = vpack.c.b16 %v1617, %v1616
  %v1938 = vpack.c.b16 %v1619, %v1618
  %v1939 = vpack.c.b16 %v1621, %v1620
  %v1940 = vpack.c.b16 %v1623, %v1622
  %v1941 = vpack.c.b16 %v1625, %v1624
  %v1942 = vpack.c.b16 %v1627, %v1626
  %v1943 = vpack.c.b16 %v1629, %v1628
  %v1944 = vpack.c.b16 %v1631, %v1630
  %v1945 = vpack.c.b16 %v1633, %v1632
  %v1946 = vpack.c.b16 %v1635, %v1634
  %v1947 = vpack.c.b16 %v1637, %v1636
  %v1948 = vpack.c.b16 %v1639, %v1638
  %v1949 = vpack.c.b16 %v1641, %v1640
  %v1950 = vpack.c.b16 %v1643, %v1642
  %v1951 = vpack.c.b16 %v1645, %v1644
  %v1952 = vpack.c.b16 %v1647, %v1646
  %v1953 = vpack.c.b16 %v1649, %v1648
  %v1954 = vpack.c.b16 %v1651, %v1650
  %v1955 = vpack.c.b16 %v1653, %v1652
  %v1956 = vpack.c.b16 %v1655, %v1654
  %v1957 = vpack.c.b16 %v1657, %v1656
  %v1958 = vpack.c.b16 %v1659, %v1658
  %v1959 = vpack.c.b16 %v1661, %v1660
  %v1960 = vpack.c.b16 %v1663, %v1662
  %v1961 = vpack.c.b16 %v1665, %v1664
  %v1962 = vpack.c.b16 %v1667, %v1666
  %v1963 = vpack.c.b16 %v1669, %v1668
  %v1964 = vpack.c.b16 %v1671, %v1670
  %v1965 = vpack.c.b16 %v1673, %v1672
  %v1966 = vpack.c.b16 %v1675, %v1674
  %v1967 = vpack.c.b16 %v1677, %v1676
  %v1968 = vpack.c.b16 %v1679, %v1678
  %v1969 = vpack.c.b16 %v1681, %v1680
  %v1970 = vpack.c.b16 %v1683, %v1682
  %v1971 = vpack.c.b16 %v1685, %v1684
  %v1972 = vpack.c.b16 %v1687, %v1686
  %v1973 = vpack.c.b16 %v1689, %v1688
  %v1974 = vpack.c.b16 %v1691, %v1690
  %v1975 = vpack.c.b16 %v1693, %v1692
  %v1976 = vpack.c.b16 %v1695, %v1694
  %v1977 = vpack.c.b16 %v1697, %v1696
  %v1978 = vpack.c.b16 %v1699, %v1698
  %v1979 = vpack.c.b16 %v1701, %v1700
  %v1980 = vpack.c.b16 %v1703, %v1702
  %v1981 = vpack.c.b16 %v1705, %v1704
  %v1982 = vpack.c.b16 %v1707, %v1706
  %v1983 = vpack.c.b16 %v1709, %v1708
  %v1984 = vpack.c.b16 %v1711, %v1710
  %v1985 = vpack.c.b16 %v1713, %v1712
  %v1986 = vpack.c.b16 %v1715, %v1714
  %v1987 = vpack.c.b16 %v1717, %v1716
  %v1988 = vpack.c.b16 %v1719, %v1718
  %v1989 = vpack.c.b16 %v1721, %v1720
  %v1990 = vpack.c.b16 %v1723, %v1722
  %v1991 = vpack.c.b16 %v1725, %v1724
  %v1992 = vpack.c.b16 %v1727, %v1726
  %v1993 = vpack.c.b16 %v1729, %v1728
  %v1994 = vpack.c.b16 %v1731, %v1730
  %v1995 = vpack.c.b16 %v1733, %v1732
  %v1996 = vpack.c.b16 %v1735, %v1734
  %v1997 = vpack.c.b16 %v1737, %v1736
  %v1998 = vpack.c.b16 %v1739, %v1738
  %v1999 = vpack.c.b16 %v1741, %v1740
  %v2000 = vpack.c.b16 %v1743, %v1742
  %v2001 = vpack.c.b16 %v1745, %v1744
  %2258 = vmatpush.bf16.msra.mxu0 %v1753
  %2259 = vmatpush.bf16.msra.mxu0 %v1752
  %2260 = vmatpush.bf16.msra.mxu0 %v1751
  %2261 = vmatpush.bf16.msra.mxu0 %v1750
  %2262 = vmatpush.bf16.msra.mxu0 %v1749
  %2263 = vmatpush.bf16.msra.mxu0 %v1748
  %2264 = vmatpush.bf16.msra.mxu0 %v1747
  %2265 = vmatpush.bf16.msra.mxu0 %v1746
  %2266 = vmatmul.bf16.gmra.mxu0 %v658
  %v2267 = vpop.f32.mrf.mxu0
  %v2268 = vadd.f32 %v560, %v2267
  %v2269 = vpop.f32.mrf.mxu0
  %v2270 = vadd.f32 %v560, %v2269
  %2271 = vdwg.mxu0
  %2272 = vmatpush.bf16.msra.mxu0 %v1761
  %2273 = vmatpush.bf16.msra.mxu0 %v1760
  %2274 = vmatpush.bf16.msra.mxu0 %v1759
  %2275 = vmatpush.bf16.msra.mxu0 %v1758
  %2276 = vmatpush.bf16.msra.mxu0 %v1757
  %2277 = vmatpush.bf16.msra.mxu0 %v1756
  %2278 = vmatpush.bf16.msra.mxu0 %v1755
  %2279 = vmatpush.bf16.msra.mxu0 %v1754
  %2280 = vmatmul.bf16.gmra.mxu0 %v659
  %v2281 = vpop.f32.mrf.mxu0
  %v2282 = vadd.f32 %v2268, %v2281
  %v2283 = vpop.f32.mrf.mxu0
  %v2284 = vadd.f32 %v2270, %v2283
  %2285 = vdwg.mxu0
  %2286 = vmatpush.bf16.msra.mxu0 %v1769
  %2287 = vmatpush.bf16.msra.mxu0 %v1768
  %2288 = vmatpush.bf16.msra.mxu0 %v1767
  %2289 = vmatpush.bf16.msra.mxu0 %v1766
  %2290 = vmatpush.bf16.msra.mxu0 %v1765
  %2291 = vmatpush.bf16.msra.mxu0 %v1764
  %2292 = vmatpush.bf16.msra.mxu0 %v1763
  %2293 = vmatpush.bf16.msra.mxu0 %v1762
  %2294 = vmatmul.bf16.gmra.mxu0 %v660
  %v2295 = vpop.f32.mrf.mxu0
  %v2296 = vadd.f32 %v2282, %v2295
  %v2297 = vpop.f32.mrf.mxu0
  %v2298 = vadd.f32 %v2284, %v2297
  %2299 = vdwg.mxu0
  %2300 = vmatpush.bf16.msra.mxu0 %v1777
  %2301 = vmatpush.bf16.msra.mxu0 %v1776
  %2302 = vmatpush.bf16.msra.mxu0 %v1775
  %2303 = vmatpush.bf16.msra.mxu0 %v1774
  %2304 = vmatpush.bf16.msra.mxu0 %v1773
  %2305 = vmatpush.bf16.msra.mxu0 %v1772
  %2306 = vmatpush.bf16.msra.mxu0 %v1771
  %2307 = vmatpush.bf16.msra.mxu0 %v1770
  %2308 = vmatmul.bf16.gmra.mxu0 %v661
  %v2309 = vpop.f32.mrf.mxu0
  %v2310 = vadd.f32 %v2296, %v2309
  %v2311 = vpop.f32.mrf.mxu0
  %v2312 = vadd.f32 %v2298, %v2311
  %2313 = vdwg.mxu0
  %2314 = vmatpush.bf16.msra.mxu0 %v1785
  %2315 = vmatpush.bf16.msra.mxu0 %v1784
  %2316 = vmatpush.bf16.msra.mxu0 %v1783
  %2317 = vmatpush.bf16.msra.mxu0 %v1782
  %2318 = vmatpush.bf16.msra.mxu0 %v1781
  %2319 = vmatpush.bf16.msra.mxu0 %v1780
  %2320 = vmatpush.bf16.msra.mxu0 %v1779
  %2321 = vmatpush.bf16.msra.mxu0 %v1778
  %2322 = vmatmul.bf16.gmra.mxu0 %v662
  %v2323 = vpop.f32.mrf.mxu0
  %v2324 = vadd.f32 %v2310, %v2323
  %v2325 = vpop.f32.mrf.mxu0
  %v2326 = vadd.f32 %v2312, %v2325
  %2327 = vdwg.mxu0
  %2328 = vmatpush.bf16.msra.mxu0 %v1793
  %2329 = vmatpush.bf16.msra.mxu0 %v1792
  %2330 = vmatpush.bf16.msra.mxu0 %v1791
  %2331 = vmatpush.bf16.msra.mxu0 %v1790
  %2332 = vmatpush.bf16.msra.mxu0 %v1789
  %2333 = vmatpush.bf16.msra.mxu0 %v1788
  %2334 = vmatpush.bf16.msra.mxu0 %v1787
  %2335 = vmatpush.bf16.msra.mxu0 %v1786
  %2336 = vmatmul.bf16.gmra.mxu0 %v663
  %v2337 = vpop.f32.mrf.mxu0
  %v2338 = vadd.f32 %v2324, %v2337
  %v2339 = vpop.f32.mrf.mxu0
  %v2340 = vadd.f32 %v2326, %v2339
  %2341 = vdwg.mxu0
  %2342 = vmatpush.bf16.msra.mxu0 %v1801
  %2343 = vmatpush.bf16.msra.mxu0 %v1800
  %2344 = vmatpush.bf16.msra.mxu0 %v1799
  %2345 = vmatpush.bf16.msra.mxu0 %v1798
  %2346 = vmatpush.bf16.msra.mxu0 %v1797
  %2347 = vmatpush.bf16.msra.mxu0 %v1796
  %2348 = vmatpush.bf16.msra.mxu0 %v1795
  %2349 = vmatpush.bf16.msra.mxu0 %v1794
  %2350 = vmatmul.bf16.gmra.mxu0 %v664
  %v2351 = vpop.f32.mrf.mxu0
  %v2352 = vadd.f32 %v2338, %v2351
  %v2353 = vpop.f32.mrf.mxu0
  %v2354 = vadd.f32 %v2340, %v2353
  %2355 = vdwg.mxu0
  %2356 = vmatpush.bf16.msra.mxu0 %v1809
  %2357 = vmatpush.bf16.msra.mxu0 %v1808
  %2358 = vmatpush.bf16.msra.mxu0 %v1807
  %2359 = vmatpush.bf16.msra.mxu0 %v1806
  %2360 = vmatpush.bf16.msra.mxu0 %v1805
  %2361 = vmatpush.bf16.msra.mxu0 %v1804
  %2362 = vmatpush.bf16.msra.mxu0 %v1803
  %2363 = vmatpush.bf16.msra.mxu0 %v1802
  %2364 = vmatmul.bf16.gmra.mxu0 %v665
  %v2365 = vpop.f32.mrf.mxu0
  %v2366 = vadd.f32 %v2352, %v2365
  %v2367 = vpop.f32.mrf.mxu0
  %v2368 = vadd.f32 %v2354, %v2367
  %2369 = vdwg.mxu0
  %2370 = vmatpush.bf16.msra.mxu0 %v1817
  %2371 = vmatpush.bf16.msra.mxu0 %v1816
  %2372 = vmatpush.bf16.msra.mxu0 %v1815
  %2373 = vmatpush.bf16.msra.mxu0 %v1814
  %2374 = vmatpush.bf16.msra.mxu0 %v1813
  %2375 = vmatpush.bf16.msra.mxu0 %v1812
  %2376 = vmatpush.bf16.msra.mxu0 %v1811
  %2377 = vmatpush.bf16.msra.mxu0 %v1810
  %2378 = vmatmul.bf16.gmra.mxu0 %v666
  %v2379 = vpop.f32.mrf.mxu0
  %v2380 = vadd.f32 %v2366, %v2379
  %v2381 = vpop.f32.mrf.mxu0
  %v2382 = vadd.f32 %v2368, %v2381
  %2383 = vdwg.mxu0
  %2384 = vmatpush.bf16.msra.mxu0 %v1825
  %2385 = vmatpush.bf16.msra.mxu0 %v1824
  %2386 = vmatpush.bf16.msra.mxu0 %v1823
  %2387 = vmatpush.bf16.msra.mxu0 %v1822
  %2388 = vmatpush.bf16.msra.mxu0 %v1821
  %2389 = vmatpush.bf16.msra.mxu0 %v1820
  %2390 = vmatpush.bf16.msra.mxu0 %v1819
  %2391 = vmatpush.bf16.msra.mxu0 %v1818
  %2392 = vmatmul.bf16.gmra.mxu0 %v667
  %v2393 = vpop.f32.mrf.mxu0
  %v2394 = vadd.f32 %v2380, %v2393
  %v2395 = vpop.f32.mrf.mxu0
  %v2396 = vadd.f32 %v2382, %v2395
  %2397 = vdwg.mxu0
  %2398 = vmatpush.bf16.msra.mxu0 %v1833
  %2399 = vmatpush.bf16.msra.mxu0 %v1832
  %2400 = vmatpush.bf16.msra.mxu0 %v1831
  %2401 = vmatpush.bf16.msra.mxu0 %v1830
  %2402 = vmatpush.bf16.msra.mxu0 %v1829
  %2403 = vmatpush.bf16.msra.mxu0 %v1828
  %2404 = vmatpush.bf16.msra.mxu0 %v1827
  %2405 = vmatpush.bf16.msra.mxu0 %v1826
  %2406 = vmatmul.bf16.gmra.mxu0 %v668
  %v2407 = vpop.f32.mrf.mxu0
  %v2408 = vadd.f32 %v2394, %v2407
  %v2409 = vpop.f32.mrf.mxu0
  %v2410 = vadd.f32 %v2396, %v2409
  %2411 = vdwg.mxu0
  %2412 = vmatpush.bf16.msra.mxu0 %v1841
  %2413 = vmatpush.bf16.msra.mxu0 %v1840
  %2414 = vmatpush.bf16.msra.mxu0 %v1839
  %2415 = vmatpush.bf16.msra.mxu0 %v1838
  %2416 = vmatpush.bf16.msra.mxu0 %v1837
  %2417 = vmatpush.bf16.msra.mxu0 %v1836
  %2418 = vmatpush.bf16.msra.mxu0 %v1835
  %2419 = vmatpush.bf16.msra.mxu0 %v1834
  %2420 = vmatmul.bf16.gmra.mxu0 %v669
  %v2421 = vpop.f32.mrf.mxu0
  %v2422 = vadd.f32 %v2408, %v2421
  %v2423 = vpop.f32.mrf.mxu0
  %v2424 = vadd.f32 %v2410, %v2423
  %2425 = vdwg.mxu0
  %2426 = vmatpush.bf16.msra.mxu0 %v1849
  %2427 = vmatpush.bf16.msra.mxu0 %v1848
  %2428 = vmatpush.bf16.msra.mxu0 %v1847
  %2429 = vmatpush.bf16.msra.mxu0 %v1846
  %2430 = vmatpush.bf16.msra.mxu0 %v1845
  %2431 = vmatpush.bf16.msra.mxu0 %v1844
  %2432 = vmatpush.bf16.msra.mxu0 %v1843
  %2433 = vmatpush.bf16.msra.mxu0 %v1842
  %2434 = vmatmul.bf16.gmra.mxu0 %v670
  %v2435 = vpop.f32.mrf.mxu0
  %v2436 = vadd.f32 %v2422, %v2435
  %v2437 = vpop.f32.mrf.mxu0
  %v2438 = vadd.f32 %v2424, %v2437
  %2439 = vdwg.mxu0
  %2440 = vmatpush.bf16.msra.mxu0 %v1857
  %2441 = vmatpush.bf16.msra.mxu0 %v1856
  %2442 = vmatpush.bf16.msra.mxu0 %v1855
  %2443 = vmatpush.bf16.msra.mxu0 %v1854
  %2444 = vmatpush.bf16.msra.mxu0 %v1853
  %2445 = vmatpush.bf16.msra.mxu0 %v1852
  %2446 = vmatpush.bf16.msra.mxu0 %v1851
  %2447 = vmatpush.bf16.msra.mxu0 %v1850
  %2448 = vmatmul.bf16.gmra.mxu0 %v671
  %v2449 = vpop.f32.mrf.mxu0
  %v2450 = vadd.f32 %v2436, %v2449
  %v2451 = vpop.f32.mrf.mxu0
  %v2452 = vadd.f32 %v2438, %v2451
  %2453 = vdwg.mxu0
  %2454 = vmatpush.bf16.msra.mxu0 %v1865
  %2455 = vmatpush.bf16.msra.mxu0 %v1864
  %2456 = vmatpush.bf16.msra.mxu0 %v1863
  %2457 = vmatpush.bf16.msra.mxu0 %v1862
  %2458 = vmatpush.bf16.msra.mxu0 %v1861
  %2459 = vmatpush.bf16.msra.mxu0 %v1860
  %2460 = vmatpush.bf16.msra.mxu0 %v1859
  %2461 = vmatpush.bf16.msra.mxu0 %v1858
  %2462 = vmatmul.bf16.gmra.mxu0 %v672
  %v2463 = vpop.f32.mrf.mxu0
  %v2464 = vadd.f32 %v2450, %v2463
  %v2465 = vpop.f32.mrf.mxu0
  %v2466 = vadd.f32 %v2452, %v2465
  %2467 = vdwg.mxu0
  %2468 = vmatpush.bf16.msra.mxu0 %v1873
  %2469 = vmatpush.bf16.msra.mxu0 %v1872
  %2470 = vmatpush.bf16.msra.mxu0 %v1871
  %2471 = vmatpush.bf16.msra.mxu0 %v1870
  %2472 = vmatpush.bf16.msra.mxu0 %v1869
  %2473 = vmatpush.bf16.msra.mxu0 %v1868
  %2474 = vmatpush.bf16.msra.mxu0 %v1867
  %2475 = vmatpush.bf16.msra.mxu0 %v1866
  %2476 = vmatmul.bf16.gmra.mxu0 %v673
  %v2477 = vpop.f32.mrf.mxu0
  %v2478 = vadd.f32 %v2464, %v2477
  %v2479 = vpop.f32.mrf.mxu0
  %v2480 = vadd.f32 %v2466, %v2479
  %2481 = vdwg.mxu0
  %2482 = vmatpush.bf16.msra.mxu0 %v1881
  %2483 = vmatpush.bf16.msra.mxu0 %v1880
  %2484 = vmatpush.bf16.msra.mxu0 %v1879
  %2485 = vmatpush.bf16.msra.mxu0 %v1878
  %2486 = vmatpush.bf16.msra.mxu0 %v1877
  %2487 = vmatpush.bf16.msra.mxu0 %v1876
  %2488 = vmatpush.bf16.msra.mxu0 %v1875
  %2489 = vmatpush.bf16.msra.mxu0 %v1874
  %2490 = vmatmul.bf16.gmra.mxu0 %v674
  %v2491 = vpop.f32.mrf.mxu0
  %v2492 = vadd.f32 %v2478, %v2491
  %v2493 = vpop.f32.mrf.mxu0
  %v2494 = vadd.f32 %v2480, %v2493
  %2495 = vdwg.mxu0
  %2496 = vmatpush.bf16.msra.mxu0 %v1889
  %2497 = vmatpush.bf16.msra.mxu0 %v1888
  %2498 = vmatpush.bf16.msra.mxu0 %v1887
  %2499 = vmatpush.bf16.msra.mxu0 %v1886
  %2500 = vmatpush.bf16.msra.mxu0 %v1885
  %2501 = vmatpush.bf16.msra.mxu0 %v1884
  %2502 = vmatpush.bf16.msra.mxu0 %v1883
  %2503 = vmatpush.bf16.msra.mxu0 %v1882
  %2504 = vmatmul.bf16.gmra.mxu0 %v675
  %v2505 = vpop.f32.mrf.mxu0
  %v2506 = vadd.f32 %v2492, %v2505
  %v2507 = vpop.f32.mrf.mxu0
  %v2508 = vadd.f32 %v2494, %v2507
  %2509 = vdwg.mxu0
  %2510 = vmatpush.bf16.msra.mxu0 %v1897
  %2511 = vmatpush.bf16.msra.mxu0 %v1896
  %2512 = vmatpush.bf16.msra.mxu0 %v1895
  %2513 = vmatpush.bf16.msra.mxu0 %v1894
  %2514 = vmatpush.bf16.msra.mxu0 %v1893
  %2515 = vmatpush.bf16.msra.mxu0 %v1892
  %2516 = vmatpush.bf16.msra.mxu0 %v1891
  %2517 = vmatpush.bf16.msra.mxu0 %v1890
  %2518 = vmatmul.bf16.gmra.mxu0 %v676
  %v2519 = vpop.f32.mrf.mxu0
  %v2520 = vadd.f32 %v2506, %v2519
  %v2521 = vpop.f32.mrf.mxu0
  %v2522 = vadd.f32 %v2508, %v2521
  %2523 = vdwg.mxu0
  %2524 = vmatpush.bf16.msra.mxu0 %v1905
  %2525 = vmatpush.bf16.msra.mxu0 %v1904
  %2526 = vmatpush.bf16.msra.mxu0 %v1903
  %2527 = vmatpush.bf16.msra.mxu0 %v1902
  %2528 = vmatpush.bf16.msra.mxu0 %v1901
  %2529 = vmatpush.bf16.msra.mxu0 %v1900
  %2530 = vmatpush.bf16.msra.mxu0 %v1899
  %2531 = vmatpush.bf16.msra.mxu0 %v1898
  %2532 = vmatmul.bf16.gmra.mxu0 %v677
  %v2533 = vpop.f32.mrf.mxu0
  %v2534 = vadd.f32 %v2520, %v2533
  %v2535 = vpop.f32.mrf.mxu0
  %v2536 = vadd.f32 %v2522, %v2535
  %2537 = vdwg.mxu0
  %2538 = vmatpush.bf16.msra.mxu0 %v1913
  %2539 = vmatpush.bf16.msra.mxu0 %v1912
  %2540 = vmatpush.bf16.msra.mxu0 %v1911
  %2541 = vmatpush.bf16.msra.mxu0 %v1910
  %2542 = vmatpush.bf16.msra.mxu0 %v1909
  %2543 = vmatpush.bf16.msra.mxu0 %v1908
  %2544 = vmatpush.bf16.msra.mxu0 %v1907
  %2545 = vmatpush.bf16.msra.mxu0 %v1906
  %2546 = vmatmul.bf16.gmra.mxu0 %v678
  %v2547 = vpop.f32.mrf.mxu0
  %v2548 = vadd.f32 %v2534, %v2547
  %v2549 = vpop.f32.mrf.mxu0
  %v2550 = vadd.f32 %v2536, %v2549
  %2551 = vdwg.mxu0
  %2552 = vmatpush.bf16.msra.mxu0 %v1921
  %2553 = vmatpush.bf16.msra.mxu0 %v1920
  %2554 = vmatpush.bf16.msra.mxu0 %v1919
  %2555 = vmatpush.bf16.msra.mxu0 %v1918
  %2556 = vmatpush.bf16.msra.mxu0 %v1917
  %2557 = vmatpush.bf16.msra.mxu0 %v1916
  %2558 = vmatpush.bf16.msra.mxu0 %v1915
  %2559 = vmatpush.bf16.msra.mxu0 %v1914
  %2560 = vmatmul.bf16.gmra.mxu0 %v679
  %v2561 = vpop.f32.mrf.mxu0
  %v2562 = vadd.f32 %v2548, %v2561
  %v2563 = vpop.f32.mrf.mxu0
  %v2564 = vadd.f32 %v2550, %v2563
  %2565 = vdwg.mxu0
  %2566 = vmatpush.bf16.msra.mxu0 %v1929
  %2567 = vmatpush.bf16.msra.mxu0 %v1928
  %2568 = vmatpush.bf16.msra.mxu0 %v1927
  %2569 = vmatpush.bf16.msra.mxu0 %v1926
  %2570 = vmatpush.bf16.msra.mxu0 %v1925
  %2571 = vmatpush.bf16.msra.mxu0 %v1924
  %2572 = vmatpush.bf16.msra.mxu0 %v1923
  %2573 = vmatpush.bf16.msra.mxu0 %v1922
  %2574 = vmatmul.bf16.gmra.mxu0 %v680
  %v2575 = vpop.f32.mrf.mxu0
  %v2576 = vadd.f32 %v2562, %v2575
  %v2577 = vpop.f32.mrf.mxu0
  %v2578 = vadd.f32 %v2564, %v2577
  %2579 = vdwg.mxu0
  %2580 = vmatpush.bf16.msra.mxu0 %v1937
  %2581 = vmatpush.bf16.msra.mxu0 %v1936
  %2582 = vmatpush.bf16.msra.mxu0 %v1935
  %2583 = vmatpush.bf16.msra.mxu0 %v1934
  %2584 = vmatpush.bf16.msra.mxu0 %v1933
  %2585 = vmatpush.bf16.msra.mxu0 %v1932
  %2586 = vmatpush.bf16.msra.mxu0 %v1931
  %2587 = vmatpush.bf16.msra.mxu0 %v1930
  %2588 = vmatmul.bf16.gmra.mxu0 %v681
  %v2589 = vpop.f32.mrf.mxu0
  %v2590 = vadd.f32 %v2576, %v2589
  %v2591 = vpop.f32.mrf.mxu0
  %v2592 = vadd.f32 %v2578, %v2591
  %2593 = vdwg.mxu0
  %2594 = vmatpush.bf16.msra.mxu0 %v1945
  %2595 = vmatpush.bf16.msra.mxu0 %v1944
  %2596 = vmatpush.bf16.msra.mxu0 %v1943
  %2597 = vmatpush.bf16.msra.mxu0 %v1942
  %2598 = vmatpush.bf16.msra.mxu0 %v1941
  %2599 = vmatpush.bf16.msra.mxu0 %v1940
  %2600 = vmatpush.bf16.msra.mxu0 %v1939
  %2601 = vmatpush.bf16.msra.mxu0 %v1938
  %2602 = vmatmul.bf16.gmra.mxu0 %v682
  %v2603 = vpop.f32.mrf.mxu0
  %v2604 = vadd.f32 %v2590, %v2603
  %v2605 = vpop.f32.mrf.mxu0
  %v2606 = vadd.f32 %v2592, %v2605
  %2607 = vdwg.mxu0
  %2608 = vmatpush.bf16.msra.mxu0 %v1953
  %2609 = vmatpush.bf16.msra.mxu0 %v1952
  %2610 = vmatpush.bf16.msra.mxu0 %v1951
  %2611 = vmatpush.bf16.msra.mxu0 %v1950
  %2612 = vmatpush.bf16.msra.mxu0 %v1949
  %2613 = vmatpush.bf16.msra.mxu0 %v1948
  %2614 = vmatpush.bf16.msra.mxu0 %v1947
  %2615 = vmatpush.bf16.msra.mxu0 %v1946
  %2616 = vmatmul.bf16.gmra.mxu0 %v683
  %v2617 = vpop.f32.mrf.mxu0
  %v2618 = vadd.f32 %v2604, %v2617
  %v2619 = vpop.f32.mrf.mxu0
  %v2620 = vadd.f32 %v2606, %v2619
  %2621 = vdwg.mxu0
  %2622 = vmatpush.bf16.msra.mxu0 %v1961
  %2623 = vmatpush.bf16.msra.mxu0 %v1960
  %2624 = vmatpush.bf16.msra.mxu0 %v1959
  %2625 = vmatpush.bf16.msra.mxu0 %v1958
  %2626 = vmatpush.bf16.msra.mxu0 %v1957
  %2627 = vmatpush.bf16.msra.mxu0 %v1956
  %2628 = vmatpush.bf16.msra.mxu0 %v1955
  %2629 = vmatpush.bf16.msra.mxu0 %v1954
  %2630 = vmatmul.bf16.gmra.mxu0 %v684
  %v2631 = vpop.f32.mrf.mxu0
  %v2632 = vadd.f32 %v2618, %v2631
  %v2633 = vpop.f32.mrf.mxu0
  %v2634 = vadd.f32 %v2620, %v2633
  %2635 = vdwg.mxu0
  %2636 = vmatpush.bf16.msra.mxu0 %v1969
  %2637 = vmatpush.bf16.msra.mxu0 %v1968
  %2638 = vmatpush.bf16.msra.mxu0 %v1967
  %2639 = vmatpush.bf16.msra.mxu0 %v1966
  %2640 = vmatpush.bf16.msra.mxu0 %v1965
  %2641 = vmatpush.bf16.msra.mxu0 %v1964
  %2642 = vmatpush.bf16.msra.mxu0 %v1963
  %2643 = vmatpush.bf16.msra.mxu0 %v1962
  %2644 = vmatmul.bf16.gmra.mxu0 %v685
  %v2645 = vpop.f32.mrf.mxu0
  %v2646 = vadd.f32 %v2632, %v2645
  %v2647 = vpop.f32.mrf.mxu0
  %v2648 = vadd.f32 %v2634, %v2647
  %2649 = vdwg.mxu0
  %2650 = vmatpush.bf16.msra.mxu0 %v1977
  %2651 = vmatpush.bf16.msra.mxu0 %v1976
  %2652 = vmatpush.bf16.msra.mxu0 %v1975
  %2653 = vmatpush.bf16.msra.mxu0 %v1974
  %2654 = vmatpush.bf16.msra.mxu0 %v1973
  %2655 = vmatpush.bf16.msra.mxu0 %v1972
  %2656 = vmatpush.bf16.msra.mxu0 %v1971
  %2657 = vmatpush.bf16.msra.mxu0 %v1970
  %2658 = vmatmul.bf16.gmra.mxu0 %v686
  %v2659 = vpop.f32.mrf.mxu0
  %v2660 = vadd.f32 %v2646, %v2659
  %v2661 = vpop.f32.mrf.mxu0
  %v2662 = vadd.f32 %v2648, %v2661
  %2663 = vdwg.mxu0
  %2664 = vmatpush.bf16.msra.mxu0 %v1985
  %2665 = vmatpush.bf16.msra.mxu0 %v1984
  %2666 = vmatpush.bf16.msra.mxu0 %v1983
  %2667 = vmatpush.bf16.msra.mxu0 %v1982
  %2668 = vmatpush.bf16.msra.mxu0 %v1981
  %2669 = vmatpush.bf16.msra.mxu0 %v1980
  %2670 = vmatpush.bf16.msra.mxu0 %v1979
  %2671 = vmatpush.bf16.msra.mxu0 %v1978
  %2672 = vmatmul.bf16.gmra.mxu0 %v687
  %v2673 = vpop.f32.mrf.mxu0
  %v2674 = vadd.f32 %v2660, %v2673
  %v2675 = vpop.f32.mrf.mxu0
  %v2676 = vadd.f32 %v2662, %v2675
  %2677 = vdwg.mxu0
  %2678 = vmatpush.bf16.msra.mxu0 %v1993
  %2679 = vmatpush.bf16.msra.mxu0 %v1992
  %2680 = vmatpush.bf16.msra.mxu0 %v1991
  %2681 = vmatpush.bf16.msra.mxu0 %v1990
  %2682 = vmatpush.bf16.msra.mxu0 %v1989
  %2683 = vmatpush.bf16.msra.mxu0 %v1988
  %2684 = vmatpush.bf16.msra.mxu0 %v1987
  %2685 = vmatpush.bf16.msra.mxu0 %v1986
  %2686 = vmatmul.bf16.gmra.mxu0 %v688
  %v2687 = vpop.f32.mrf.mxu0
  %v2688 = vadd.f32 %v2674, %v2687
  %v2689 = vpop.f32.mrf.mxu0
  %v2690 = vadd.f32 %v2676, %v2689
  %2691 = vdwg.mxu0
  %2692 = vmatpush.bf16.msra.mxu0 %v2001
  %2693 = vmatpush.bf16.msra.mxu0 %v2000
  %2694 = vmatpush.bf16.msra.mxu0 %v1999
  %2695 = vmatpush.bf16.msra.mxu0 %v1998
  %2696 = vmatpush.bf16.msra.mxu0 %v1997
  %2697 = vmatpush.bf16.msra.mxu0 %v1996
  %2698 = vmatpush.bf16.msra.mxu0 %v1995
  %2699 = vmatpush.bf16.msra.mxu0 %v1994
  %2700 = vmatmul.bf16.gmra.mxu0 %v689
  %v2701 = vpop.f32.mrf.mxu0
  %v2702 = vadd.f32 %v2688, %v2701
  %v2703 = vpop.f32.mrf.mxu0
  %v2704 = vadd.f32 %v2690, %v2703
  %2705 = vdwg.mxu0
  %v2706 = vxor.u32 %v2702, 2147483648
  %v2707 = vxor.u32 %v2704, 2147483648
  %v2708 = vmul.f32 %v2706, 1.442695
  %v2709 = vpow.pop %v2708
  %v2710 = vmul.f32 %v2707, 1.442695
  %v2711 = vpow.pop %v2710
  %v2712 = vadd.f32 %v2709, 1.0
  %v2713 = vadd.f32 %v2711, 1.0
  %v2714 = vrcp.pop %v2712
  %v2715 = vmul.f32 %v2712, %v2714
  %v2716 = vsub.f32 1.0, %v2715
  %v2717 = vmul.f32 %v2714, %v2716
  %v2718 = vadd.f32 %v2714, %v2717
  %vm2719 = vweird.f32 %v2712
  %vm2720 = vweird.f32 %v2714
  %vm2721 = vmor %vm2719, %vm2720
  %v2722 = vsel %vm2721, %v2714, %v2718
  %v2723 = vand.u32 2147483647, %v2712
  %vm2724 = vcmp.eq.f32.partialorder %v2723, 8.507059e+37
  %v2725 = vand.u32 %v2712, 2147483648
  %v2726 = vor.u32 1.1754944e-38, %v2725
  %v2727 = vsel %vm2724, %v2726, %v2722
  %v2728 = vmul.f32 1.0, %v2727
  %v2729 = vrcp.pop %v2713
  %v2730 = vmul.f32 %v2713, %v2729
  %v2731 = vsub.f32 1.0, %v2730
  %v2732 = vmul.f32 %v2729, %v2731
  %v2733 = vadd.f32 %v2729, %v2732
  %vm2734 = vweird.f32 %v2713
  %vm2735 = vweird.f32 %v2729
  %vm2736 = vmor %vm2734, %vm2735
  %v2737 = vsel %vm2736, %v2729, %v2733
  %v2738 = vand.u32 2147483647, %v2713
  %vm2739 = vcmp.eq.f32.partialorder %v2738, 8.507059e+37
  %v2740 = vand.u32 %v2713, 2147483648
  %v2741 = vor.u32 1.1754944e-38, %v2740
  %v2742 = vsel %vm2739, %v2741, %v2737
  %v2743 = vmul.f32 1.0, %v2742
  %2744 = vst [vmem:[%s3] sm:$0xff] %v2728
  %2745 = vst [vmem:[%s3 + $0x8] sm:$0xff] %v2743
  // Predicated region
  $region14: #{discriminator_forward.9} parent=0 // pred_check
    _
  $region15: #{discriminator_forward.9} parent=0 // pred_check_branch
    %2747 = sbr.rel (0) target = $region17
  $region16: #{discriminator_forward.9} parent=0 // pred_region
    _
  $region17: #{discriminator_forward.9} parent=0 // pred_fallthru
    _
  // Predicated region
  $region18: #{discriminator_forward.9} parent=0 // pred_check
    _
  $region19: #{discriminator_forward.9} parent=0 // pred_check_branch
    %2749 = sbr.rel (0) target = $region21
  $region20: #{discriminator_forward.9} parent=0 // pred_region
    _
  $region21: #{discriminator_forward.9} parent=0 // pred_fallthru
    _

</llo_original>
